<compile_context>
chip_gen: v5e
topology: v5e:2x2
jax: 0.10.0
libtpu: 0.0.40
codegen_flags: <defaults>
</compile_context>

<pallas_src>
import jax
import jax.numpy as jnp
from jax.experimental import pallas as pl
from jax.experimental.pallas import tpu as pltpu

EPS = 1e-5
# f32 for bit-faithful comparison against the f32 reference; use jnp.bfloat16 on
# v6e/v7x for ~2-4x MXU throughput (dot still accumulates in f32).
MATMUL_DTYPE = jnp.float32


def double_conv_kernel(x_ref, w1_ref, g1_ref, b1_ref, w2_ref, g2_ref, b2_ref,
                       o_ref, pad_ref):
    N, Hp, Wp, Cin = x_ref.shape
    H, W = Hp - 2, Wp - 2
    Cout = w1_ref.shape[1]

    def im2col_matmul(src_ref, w_ref, cin):
        # Build the (N*H*W, 9*cin) im2col patch slab once (9 shifted windows
        # concatenated along channels), then contract with the (9*cin, Cout)
        # weight in a single MXU matmul (K = 9*cin instead of cin).
        taps = [src_ref[:, kh:kh + H, kw:kw + W, :]
                for kh in range(3) for kw in range(3)]
        patch = jnp.concatenate(taps, axis=-1)            # (N, H, W, 9*cin)
        patch = patch.reshape(N * H * W, 9 * cin)         # leading-dim collapse
        return jnp.dot(patch, w_ref[...],
                       preferred_element_type=jnp.float32)  # (N*H*W, Cout) f32

    def bn_relu(acc, g_ref, b_ref):
        # Training-mode BatchNorm (batch stats over N*H*W, biased variance).
        # Two-pass variance = mean((x - mean)^2), matching jnp.var / PyTorch.
        mean = jnp.mean(acc, axis=0, keepdims=True)
        d = acc - mean
        var = jnp.mean(d * d, axis=0, keepdims=True)
        scale = jax.lax.rsqrt(var + EPS) * g_ref[...]
        return jnp.maximum(d * scale + b_ref[...], 0.0)

    # ---- conv1 + BN + ReLU ----
    y1 = bn_relu(im2col_matmul(x_ref, w1_ref, Cin), g1_ref, b1_ref)

    # ---- zero-pad y1 for the second "same" conv: zero only the 4 halo strips,
    #      write the interior once (no full-buffer zero fill). ----
    zrow = jnp.zeros((N, 1, Wp, Cout), pad_ref.dtype)
    zcol = jnp.zeros((N, Hp, 1, Cout), pad_ref.dtype)
    pad_ref[:, 0:1, :, :] = zrow
    pad_ref[:, H + 1:H + 2, :, :] = zrow
    pad_ref[:, :, 0:1, :] = zcol
    pad_ref[:, :, W + 1:W + 2, :] = zcol
    pad_ref[:, 1:H + 1, 1:W + 1, :] = y1.reshape(N, H, W, Cout).astype(pad_ref.dtype)

    # ---- conv2 + BN + ReLU ----
    y2 = bn_relu(im2col_matmul(pad_ref, w2_ref, Cout), g2_ref, b2_ref)

    # Store the 2D (N*H*W, Cout) slab directly; layout back to NCHW is wrapper glue.
    o_ref[...] = y2.astype(o_ref.dtype)


def double_conv(x_nchw, w1_oihw, g1, b1, w2_oihw, g2, b2):
    N, Cin, H, W = x_nchw.shape
    Cout = w1_oihw.shape[0]
    Hp, Wp = H + 2, W + 2

    # Layout glue only (convs / BN / ReLU all run inside the kernel):
    #   NCHW -> NHWC + spatial zero-pad;  OIHW -> (KH*KW*Cin, Cout) im2col weight.
    x = jnp.transpose(x_nchw, (0, 2, 3, 1))
    x_pad = jnp.pad(x, ((0, 0), (1, 1), (1, 1), (0, 0))).astype(MATMUL_DTYPE)
    w1 = jnp.transpose(w1_oihw, (2, 3, 1, 0)).reshape(9 * Cin, Cout).astype(MATMUL_DTYPE)
    w2 = jnp.transpose(w2_oihw, (2, 3, 1, 0)).reshape(9 * Cout, Cout).astype(MATMUL_DTYPE)
    g1 = g1.reshape(1, Cout).astype(jnp.float32)
    b1 = b1.reshape(1, Cout).astype(jnp.float32)
    g2 = g2.reshape(1, Cout).astype(jnp.float32)
    b2 = b2.reshape(1, Cout).astype(jnp.float32)

    vmem = pl.BlockSpec(memory_space=pltpu.MemorySpace.VMEM)
    out2d = pl.pallas_call(
        double_conv_kernel,
        out_shape=jax.ShapeDtypeStruct((N * H * W, Cout), x_nchw.dtype),
        in_specs=[vmem] * 7,
        out_specs=vmem,
        scratch_shapes=[pltpu.VMEM((N, Hp, Wp, Cout), MATMUL_DTYPE)],
        compiler_params=pltpu.CompilerParams(vmem_limit_bytes=32 * 1024 * 1024),
    )(x_pad, w1, g1, b1, w2, g2, b2)

    out = out2d.reshape(N, H, W, Cout)
    return jnp.transpose(out, (0, 3, 1, 2))               # back to NCHW


def reference_double_conv(x, w1, g1, b1, w2, g2, b2):
    def conv_bn_relu(x, w, g, b):
        y = jax.lax.conv_general_dilated(
            x, w, window_strides=(1, 1), padding=((1, 1), (1, 1)),
            dimension_numbers=('NCHW', 'OIHW', 'NCHW'))
        mean = jnp.mean(y, axis=(0, 2, 3), keepdims=True)
        var = jnp.var(y, axis=(0, 2, 3), keepdims=True)
        y = (y - mean) / jnp.sqrt(var + EPS) * g.reshape(1, -1, 1, 1) + b.reshape(1, -1, 1, 1)
        return jnp.maximum(y, 0.0)
    return conv_bn_relu(conv_bn_relu(x, w1, g1, b1), w2, g2, b2)


if __name__ == "__main__":
    N, Cin, Cout, H, W = 2, 4, 8, 16, 16
    key = jax.random.PRNGKey(0)
    kx, kw1, kw2, kg1, kb1, kg2, kb2 = jax.random.split(key, 7)

    x = jax.random.normal(kx, (N, Cin, H, W), dtype=jnp.float32)
    # Conv2d weights OIHW (bias=False); BatchNorm affine params.
    w1 = jax.random.normal(kw1, (Cout, Cin, 3, 3), dtype=jnp.float32) * 0.1
    w2 = jax.random.normal(kw2, (Cout, Cout, 3, 3), dtype=jnp.float32) * 0.1
    g1 = 1.0 + 0.1 * jax.random.normal(kg1, (Cout,), dtype=jnp.float32)
    b1 = 0.1 * jax.random.normal(kb1, (Cout,), dtype=jnp.float32)
    g2 = 1.0 + 0.1 * jax.random.normal(kg2, (Cout,), dtype=jnp.float32)
    b2 = 0.1 * jax.random.normal(kb2, (Cout,), dtype=jnp.float32)

    out = double_conv(x, w1, g1, b1, w2, g2, b2)
    out = jax.block_until_ready(out)

    ref = reference_double_conv(x, w1, g1, b1, w2, g2, b2)
    assert out.shape == (N, Cout, H, W)
    assert jnp.allclose(out, ref, rtol=1e-3, atol=1e-3), \
        f"max abs err {jnp.max(jnp.abs(out - ref))}"

    print("KERNEL_OK")
</pallas_src>

<mosaic_0001>
module attributes {stable_mosaic.version = 11 : i64} {
  func.func @double_conv_kernel(%arg0: memref<2x18x18x4xf32, #tpu.memory_space<vmem>>, %arg1: memref<36x8xf32, #tpu.memory_space<vmem>>, %arg2: memref<1x8xf32, #tpu.memory_space<vmem>>, %arg3: memref<1x8xf32, #tpu.memory_space<vmem>>, %arg4: memref<72x8xf32, #tpu.memory_space<vmem>>, %arg5: memref<1x8xf32, #tpu.memory_space<vmem>>, %arg6: memref<1x8xf32, #tpu.memory_space<vmem>>, %arg7: memref<512x8xf32, #tpu.memory_space<vmem>>, %arg8: memref<2x18x18x8xf32, #tpu.memory_space<vmem>>) attributes {dimension_semantics = [], scalar_prefetch = 0 : i64, scratch_operands = 1 : i64, tpu.core_type = #tpu.core_type<tc>} {
    %c0 = arith.constant 0 : index
    %c0_0 = arith.constant 0 : index
    %c0_1 = arith.constant 0 : index
    %c0_2 = arith.constant 0 : index
    %0 = vector.load %arg0[%c0, %c0_0, %c0_1, %c0_2] : memref<2x18x18x4xf32, #tpu.memory_space<vmem>>, vector<2x16x16x4xf32>
    %c0_3 = arith.constant 0 : index
    %c0_4 = arith.constant 0 : index
    %c1 = arith.constant 1 : index
    %c0_5 = arith.constant 0 : index
    %1 = vector.load %arg0[%c0_3, %c0_4, %c1, %c0_5] : memref<2x18x18x4xf32, #tpu.memory_space<vmem>>, vector<2x16x16x4xf32>
    %c0_6 = arith.constant 0 : index
    %c0_7 = arith.constant 0 : index
    %c2 = arith.constant 2 : index
    %c0_8 = arith.constant 0 : index
    %2 = vector.load %arg0[%c0_6, %c0_7, %c2, %c0_8] : memref<2x18x18x4xf32, #tpu.memory_space<vmem>>, vector<2x16x16x4xf32>
    %c0_9 = arith.constant 0 : index
    %c1_10 = arith.constant 1 : index
    %c0_11 = arith.constant 0 : index
    %c0_12 = arith.constant 0 : index
    %3 = vector.load %arg0[%c0_9, %c1_10, %c0_11, %c0_12] : memref<2x18x18x4xf32, #tpu.memory_space<vmem>>, vector<2x16x16x4xf32>
    %c0_13 = arith.constant 0 : index
    %c1_14 = arith.constant 1 : index
    %c1_15 = arith.constant 1 : index
    %c0_16 = arith.constant 0 : index
    %4 = vector.load %arg0[%c0_13, %c1_14, %c1_15, %c0_16] : memref<2x18x18x4xf32, #tpu.memory_space<vmem>>, vector<2x16x16x4xf32>
    %c0_17 = arith.constant 0 : index
    %c1_18 = arith.constant 1 : index
    %c2_19 = arith.constant 2 : index
    %c0_20 = arith.constant 0 : index
    %5 = vector.load %arg0[%c0_17, %c1_18, %c2_19, %c0_20] : memref<2x18x18x4xf32, #tpu.memory_space<vmem>>, vector<2x16x16x4xf32>
    %c0_21 = arith.constant 0 : index
    %c2_22 = arith.constant 2 : index
    %c0_23 = arith.constant 0 : index
    %c0_24 = arith.constant 0 : index
    %6 = vector.load %arg0[%c0_21, %c2_22, %c0_23, %c0_24] : memref<2x18x18x4xf32, #tpu.memory_space<vmem>>, vector<2x16x16x4xf32>
    %c0_25 = arith.constant 0 : index
    %c2_26 = arith.constant 2 : index
    %c1_27 = arith.constant 1 : index
    %c0_28 = arith.constant 0 : index
    %7 = vector.load %arg0[%c0_25, %c2_26, %c1_27, %c0_28] : memref<2x18x18x4xf32, #tpu.memory_space<vmem>>, vector<2x16x16x4xf32>
    %c0_29 = arith.constant 0 : index
    %c2_30 = arith.constant 2 : index
    %c2_31 = arith.constant 2 : index
    %c0_32 = arith.constant 0 : index
    %8 = vector.load %arg0[%c0_29, %c2_30, %c2_31, %c0_32] : memref<2x18x18x4xf32, #tpu.memory_space<vmem>>, vector<2x16x16x4xf32>
    %9 = tpu.concatenate %0, %1, %2, %3, %4, %5, %6, %7, %8 in 3 : vector<2x16x16x4xf32>, vector<2x16x16x4xf32>, vector<2x16x16x4xf32>, vector<2x16x16x4xf32>, vector<2x16x16x4xf32>, vector<2x16x16x4xf32>, vector<2x16x16x4xf32>, vector<2x16x16x4xf32>, vector<2x16x16x4xf32> -> vector<2x16x16x36xf32>
    %10 = vector.shape_cast %9 : vector<2x16x16x36xf32> to vector<512x36xf32>
    %c0_33 = arith.constant 0 : index
    %c0_34 = arith.constant 0 : index
    %11 = vector.load %arg1[%c0_33, %c0_34] : memref<36x8xf32, #tpu.memory_space<vmem>>, vector<36x8xf32>
    %cst = arith.constant dense<0.000000e+00> : vector<512x8xf32>
    %12 = tpu.matmul %10, %11, %cst {dimension_numbers = #tpu.dot_dimension_numbers<[1], [0], [0], [1], [0, 0, 1, 1], [], []>} : vector<512x36xf32>, vector<36x8xf32>, vector<512x8xf32> -> vector<512x8xf32>
    %cst_35 = arith.constant dense<0.000000e+00> : vector<8xf32>
    %13 = vector.multi_reduction <add>, %12, %cst_35 [0] : vector<512x8xf32> to vector<8xf32>
    %14 = vector.shape_cast %13 : vector<8xf32> to vector<1x8xf32>
    %cst_36 = arith.constant 5.120000e+02 : f32
    %15 = vector.broadcast %cst_36 : f32 to vector<1x8xf32>
    %16 = arith.divf %14, %15 : vector<1x8xf32>
    %17 = vector.broadcast %16 : vector<1x8xf32> to vector<512x8xf32>
    %18 = arith.subf %12, %17 : vector<512x8xf32>
    %19 = arith.mulf %18, %18 : vector<512x8xf32>
    %cst_37 = arith.constant dense<0.000000e+00> : vector<8xf32>
    %20 = vector.multi_reduction <add>, %19, %cst_37 [0] : vector<512x8xf32> to vector<8xf32>
    %21 = vector.shape_cast %20 : vector<8xf32> to vector<1x8xf32>
    %cst_38 = arith.constant 5.120000e+02 : f32
    %22 = vector.broadcast %cst_38 : f32 to vector<1x8xf32>
    %23 = arith.divf %21, %22 : vector<1x8xf32>
    %cst_39 = arith.constant 9.99999974E-6 : f32
    %24 = vector.broadcast %cst_39 : f32 to vector<1x8xf32>
    %25 = arith.addf %23, %24 : vector<1x8xf32>
    %26 = math.rsqrt %25 : vector<1x8xf32>
    %c0_40 = arith.constant 0 : index
    %c0_41 = arith.constant 0 : index
    %27 = vector.load %arg2[%c0_40, %c0_41] : memref<1x8xf32, #tpu.memory_space<vmem>>, vector<1x8xf32>
    %28 = arith.mulf %26, %27 : vector<1x8xf32>
    %29 = vector.broadcast %28 : vector<1x8xf32> to vector<512x8xf32>
    %30 = arith.mulf %18, %29 : vector<512x8xf32>
    %c0_42 = arith.constant 0 : index
    %c0_43 = arith.constant 0 : index
    %31 = vector.load %arg3[%c0_42, %c0_43] : memref<1x8xf32, #tpu.memory_space<vmem>>, vector<1x8xf32>
    %32 = vector.broadcast %31 : vector<1x8xf32> to vector<512x8xf32>
    %33 = arith.addf %30, %32 : vector<512x8xf32>
    %cst_44 = arith.constant 0.000000e+00 : f32
    %34 = vector.broadcast %cst_44 : f32 to vector<512x8xf32>
    %35 = arith.maximumf %33, %34 : vector<512x8xf32>
    %cst_45 = arith.constant 0.000000e+00 : f32
    %36 = vector.broadcast %cst_45 : f32 to vector<2x1x18x8xf32>
    %cst_46 = arith.constant 0.000000e+00 : f32
    %37 = vector.broadcast %cst_46 : f32 to vector<2x18x1x8xf32>
    %c0_47 = arith.constant 0 : index
    %c0_48 = arith.constant 0 : index
    %c0_49 = arith.constant 0 : index
    %c0_50 = arith.constant 0 : index
    %38 = vector.load %arg8[%c0_47, %c0_48, %c0_49, %c0_50] : memref<2x18x18x8xf32, #tpu.memory_space<vmem>>, vector<2x1x18x8xf32>
    tpu.vector_store %arg8[%c0_47, %c0_48, %c0_49, %c0_50], %36 {strides = array<i32>} : memref<2x18x18x8xf32, #tpu.memory_space<vmem>>, vector<2x1x18x8xf32>,
    %c0_51 = arith.constant 0 : index
    %c17 = arith.constant 17 : index
    %c0_52 = arith.constant 0 : index
    %c0_53 = arith.constant 0 : index
    %39 = vector.load %arg8[%c0_51, %c17, %c0_52, %c0_53] : memref<2x18x18x8xf32, #tpu.memory_space<vmem>>, vector<2x1x18x8xf32>
    tpu.vector_store %arg8[%c0_51, %c17, %c0_52, %c0_53], %36 {strides = array<i32>} : memref<2x18x18x8xf32, #tpu.memory_space<vmem>>, vector<2x1x18x8xf32>,
    %c0_54 = arith.constant 0 : index
    %c0_55 = arith.constant 0 : index
    %c0_56 = arith.constant 0 : index
    %c0_57 = arith.constant 0 : index
    %40 = vector.load %arg8[%c0_54, %c0_55, %c0_56, %c0_57] : memref<2x18x18x8xf32, #tpu.memory_space<vmem>>, vector<2x18x1x8xf32>
    tpu.vector_store %arg8[%c0_54, %c0_55, %c0_56, %c0_57], %37 {strides = array<i32>} : memref<2x18x18x8xf32, #tpu.memory_space<vmem>>, vector<2x18x1x8xf32>,
    %c0_58 = arith.constant 0 : index
    %c0_59 = arith.constant 0 : index
    %c17_60 = arith.constant 17 : index
    %c0_61 = arith.constant 0 : index
    %41 = vector.load %arg8[%c0_58, %c0_59, %c17_60, %c0_61] : memref<2x18x18x8xf32, #tpu.memory_space<vmem>>, vector<2x18x1x8xf32>
    tpu.vector_store %arg8[%c0_58, %c0_59, %c17_60, %c0_61], %37 {strides = array<i32>} : memref<2x18x18x8xf32, #tpu.memory_space<vmem>>, vector<2x18x1x8xf32>,
    %42 = vector.shape_cast %35 : vector<512x8xf32> to vector<2x16x16x8xf32>
    %c0_62 = arith.constant 0 : index
    %c1_63 = arith.constant 1 : index
    %c1_64 = arith.constant 1 : index
    %c0_65 = arith.constant 0 : index
    %43 = vector.load %arg8[%c0_62, %c1_63, %c1_64, %c0_65] : memref<2x18x18x8xf32, #tpu.memory_space<vmem>>, vector<2x16x16x8xf32>
    tpu.vector_store %arg8[%c0_62, %c1_63, %c1_64, %c0_65], %42 {strides = array<i32>} : memref<2x18x18x8xf32, #tpu.memory_space<vmem>>, vector<2x16x16x8xf32>,
    %c0_66 = arith.constant 0 : index
    %c0_67 = arith.constant 0 : index
    %c0_68 = arith.constant 0 : index
    %c0_69 = arith.constant 0 : index
    %44 = vector.load %arg8[%c0_66, %c0_67, %c0_68, %c0_69] : memref<2x18x18x8xf32, #tpu.memory_space<vmem>>, vector<2x16x16x8xf32>
    %c0_70 = arith.constant 0 : index
    %c0_71 = arith.constant 0 : index
    %c1_72 = arith.constant 1 : index
    %c0_73 = arith.constant 0 : index
    %45 = vector.load %arg8[%c0_70, %c0_71, %c1_72, %c0_73] : memref<2x18x18x8xf32, #tpu.memory_space<vmem>>, vector<2x16x16x8xf32>
    %c0_74 = arith.constant 0 : index
    %c0_75 = arith.constant 0 : index
    %c2_76 = arith.constant 2 : index
    %c0_77 = arith.constant 0 : index
    %46 = vector.load %arg8[%c0_74, %c0_75, %c2_76, %c0_77] : memref<2x18x18x8xf32, #tpu.memory_space<vmem>>, vector<2x16x16x8xf32>
    %c0_78 = arith.constant 0 : index
    %c1_79 = arith.constant 1 : index
    %c0_80 = arith.constant 0 : index
    %c0_81 = arith.constant 0 : index
    %47 = vector.load %arg8[%c0_78, %c1_79, %c0_80, %c0_81] : memref<2x18x18x8xf32, #tpu.memory_space<vmem>>, vector<2x16x16x8xf32>
    %c0_82 = arith.constant 0 : index
    %c1_83 = arith.constant 1 : index
    %c1_84 = arith.constant 1 : index
    %c0_85 = arith.constant 0 : index
    %48 = vector.load %arg8[%c0_82, %c1_83, %c1_84, %c0_85] : memref<2x18x18x8xf32, #tpu.memory_space<vmem>>, vector<2x16x16x8xf32>
    %c0_86 = arith.constant 0 : index
    %c1_87 = arith.constant 1 : index
    %c2_88 = arith.constant 2 : index
    %c0_89 = arith.constant 0 : index
    %49 = vector.load %arg8[%c0_86, %c1_87, %c2_88, %c0_89] : memref<2x18x18x8xf32, #tpu.memory_space<vmem>>, vector<2x16x16x8xf32>
    %c0_90 = arith.constant 0 : index
    %c2_91 = arith.constant 2 : index
    %c0_92 = arith.constant 0 : index
    %c0_93 = arith.constant 0 : index
    %50 = vector.load %arg8[%c0_90, %c2_91, %c0_92, %c0_93] : memref<2x18x18x8xf32, #tpu.memory_space<vmem>>, vector<2x16x16x8xf32>
    %c0_94 = arith.constant 0 : index
    %c2_95 = arith.constant 2 : index
    %c1_96 = arith.constant 1 : index
    %c0_97 = arith.constant 0 : index
    %51 = vector.load %arg8[%c0_94, %c2_95, %c1_96, %c0_97] : memref<2x18x18x8xf32, #tpu.memory_space<vmem>>, vector<2x16x16x8xf32>
    %c0_98 = arith.constant 0 : index
    %c2_99 = arith.constant 2 : index
    %c2_100 = arith.constant 2 : index
    %c0_101 = arith.constant 0 : index
    %52 = vector.load %arg8[%c0_98, %c2_99, %c2_100, %c0_101] : memref<2x18x18x8xf32, #tpu.memory_space<vmem>>, vector<2x16x16x8xf32>
    %53 = tpu.concatenate %44, %45, %46, %47, %48, %49, %50, %51, %52 in 3 : vector<2x16x16x8xf32>, vector<2x16x16x8xf32>, vector<2x16x16x8xf32>, vector<2x16x16x8xf32>, vector<2x16x16x8xf32>, vector<2x16x16x8xf32>, vector<2x16x16x8xf32>, vector<2x16x16x8xf32>, vector<2x16x16x8xf32> -> vector<2x16x16x72xf32>
    %54 = vector.shape_cast %53 : vector<2x16x16x72xf32> to vector<512x72xf32>
    %c0_102 = arith.constant 0 : index
    %c0_103 = arith.constant 0 : index
    %55 = vector.load %arg4[%c0_102, %c0_103] : memref<72x8xf32, #tpu.memory_space<vmem>>, vector<72x8xf32>
    %cst_104 = arith.constant dense<0.000000e+00> : vector<512x8xf32>
    %56 = tpu.matmul %54, %55, %cst_104 {dimension_numbers = #tpu.dot_dimension_numbers<[1], [0], [0], [1], [0, 0, 1, 1], [], []>} : vector<512x72xf32>, vector<72x8xf32>, vector<512x8xf32> -> vector<512x8xf32>
    %cst_105 = arith.constant dense<0.000000e+00> : vector<8xf32>
    %57 = vector.multi_reduction <add>, %56, %cst_105 [0] : vector<512x8xf32> to vector<8xf32>
    %58 = vector.shape_cast %57 : vector<8xf32> to vector<1x8xf32>
    %cst_106 = arith.constant 5.120000e+02 : f32
    %59 = vector.broadcast %cst_106 : f32 to vector<1x8xf32>
    %60 = arith.divf %58, %59 : vector<1x8xf32>
    %61 = vector.broadcast %60 : vector<1x8xf32> to vector<512x8xf32>
    %62 = arith.subf %56, %61 : vector<512x8xf32>
    %63 = arith.mulf %62, %62 : vector<512x8xf32>
    %cst_107 = arith.constant dense<0.000000e+00> : vector<8xf32>
    %64 = vector.multi_reduction <add>, %63, %cst_107 [0] : vector<512x8xf32> to vector<8xf32>
    %65 = vector.shape_cast %64 : vector<8xf32> to vector<1x8xf32>
    %cst_108 = arith.constant 5.120000e+02 : f32
    %66 = vector.broadcast %cst_108 : f32 to vector<1x8xf32>
    %67 = arith.divf %65, %66 : vector<1x8xf32>
    %cst_109 = arith.constant 9.99999974E-6 : f32
    %68 = vector.broadcast %cst_109 : f32 to vector<1x8xf32>
    %69 = arith.addf %67, %68 : vector<1x8xf32>
    %70 = math.rsqrt %69 : vector<1x8xf32>
    %c0_110 = arith.constant 0 : index
    %c0_111 = arith.constant 0 : index
    %71 = vector.load %arg5[%c0_110, %c0_111] : memref<1x8xf32, #tpu.memory_space<vmem>>, vector<1x8xf32>
    %72 = arith.mulf %70, %71 : vector<1x8xf32>
    %73 = vector.broadcast %72 : vector<1x8xf32> to vector<512x8xf32>
    %74 = arith.mulf %62, %73 : vector<512x8xf32>
    %c0_112 = arith.constant 0 : index
    %c0_113 = arith.constant 0 : index
    %75 = vector.load %arg6[%c0_112, %c0_113] : memref<1x8xf32, #tpu.memory_space<vmem>>, vector<1x8xf32>
    %76 = vector.broadcast %75 : vector<1x8xf32> to vector<512x8xf32>
    %77 = arith.addf %74, %76 : vector<512x8xf32>
    %cst_114 = arith.constant 0.000000e+00 : f32
    %78 = vector.broadcast %cst_114 : f32 to vector<512x8xf32>
    %79 = arith.maximumf %77, %78 : vector<512x8xf32>
    %c0_115 = arith.constant 0 : index
    %c0_116 = arith.constant 0 : index
    %80 = vector.load %arg7[%c0_115, %c0_116] : memref<512x8xf32, #tpu.memory_space<vmem>>, vector<512x8xf32>
    tpu.vector_store %arg7[%c0_115, %c0_116], %79 {strides = array<i32>} : memref<512x8xf32, #tpu.memory_space<vmem>>, vector<512x8xf32>,
    return
  }
}

</mosaic_0001>

<llo_original>
// kernel: tpu_custom_call.1
$region0: #{tpu_custom_call.1}
  #allocation0 [shape = 'u32[]', space=smem, size = 0x4, offset = 0x4, fixed_abs, tag = 'smem constant byte address 0x4 - core index']
  #allocation1 [shape = 'u32[72,128]{1,0:T(1,128)}', space=vmem, size = 0x9000, scoped, tag = 'internal scratch']
  #allocation2 [shape = 'f32[2,18,18,8]{3,2,1,0:T(8,128)}', space=vmem, size = 0x6c000, scoped, tag = 'scratch operand']
  %s0 = inlined_call_operand.vmem [shape: f32[2,18,18,4], index: 0, kind: input, shape index: {}]
  %s1 = inlined_call_operand.vmem [shape: f32[36,8], index: 1, kind: input, shape index: {}]
  %s2 = inlined_call_operand.vmem [shape: f32[1,8], index: 2, kind: input, shape index: {}]
  %s3 = inlined_call_operand.vmem [shape: f32[1,8], index: 3, kind: input, shape index: {}]
  %s4 = inlined_call_operand.vmem [shape: f32[72,8], index: 4, kind: input, shape index: {}]
  %s5 = inlined_call_operand.vmem [shape: f32[1,8], index: 5, kind: input, shape index: {}]
  %s6 = inlined_call_operand.vmem [shape: f32[1,8], index: 6, kind: input, shape index: {}]
  %s7 = inlined_call_operand.vmem [shape: f32[512,8], index: 7, kind: output, shape index: {}]
  %s8 = sld [smem:[#allocation0]]
  $region38: #{tpu_custom_call.1} parent=0
    _
  %s10 = ssub.s32 1, %s8
  %s11 = scalar_select 0, %s10, %s8
  // Predicated region
  $region2: #{tpu_custom_call.1} parent=0 // pred_check
    _
  $region3: #{tpu_custom_call.1} parent=0 // pred_check_branch
    %13 = sbr.rel (0) target = $region5
  $region4: #{tpu_custom_call.1} parent=0 // pred_region
    _
  $region5: #{tpu_custom_call.1} parent=0 // pred_fallthru
    _
  // Predicated region
  $region6: #{tpu_custom_call.1} parent=0 // pred_check
    _
  $region7: #{tpu_custom_call.1} parent=0 // pred_check_branch
    %15 = sbr.rel (0) target = $region9
  $region8: #{tpu_custom_call.1} parent=0 // pred_region
    _
  $region9: #{tpu_custom_call.1} parent=0 // pred_fallthru
    _
  // Predicated region
  $region10: #{tpu_custom_call.1} parent=0 // pred_check
    _
  $region11: #{tpu_custom_call.1} parent=0 // pred_check_branch
    %17 = sbr.rel (0) target = $region13
  $region12: #{tpu_custom_call.1} parent=0 // pred_region
    _
  $region13: #{tpu_custom_call.1} parent=0 // pred_fallthru
    _
  // Predicated region
  $region14: #{tpu_custom_call.1} parent=0 // pred_check
    _
  $region15: #{tpu_custom_call.1} parent=0 // pred_check_branch
    %19 = sbr.rel (0) target = $region17
  $region16: #{tpu_custom_call.1} parent=0 // pred_region
    _
  $region17: #{tpu_custom_call.1} parent=0 // pred_fallthru
    _
  // Predicated region
  $region18: #{tpu_custom_call.1} parent=0 // pred_check
    _
  $region19: #{tpu_custom_call.1} parent=0 // pred_check_branch
    %21 = sbr.rel (0) target = $region21
  $region20: #{tpu_custom_call.1} parent=0 // pred_region
    _
  $region21: #{tpu_custom_call.1} parent=0 // pred_fallthru
    _
  // Predicated region
  $region22: #{tpu_custom_call.1} parent=0 // pred_check
    _
  $region23: #{tpu_custom_call.1} parent=0 // pred_check_branch
    %23 = sbr.rel (0) target = $region25
  $region24: #{tpu_custom_call.1} parent=0 // pred_region
    _
  $region25: #{tpu_custom_call.1} parent=0 // pred_fallthru
    _
  // Predicated region
  $region26: #{tpu_custom_call.1} parent=0 // pred_check
    _
  $region27: #{tpu_custom_call.1} parent=0 // pred_check_branch
    %25 = sbr.rel (0) target = $region29
  $region28: #{tpu_custom_call.1} parent=0 // pred_region
    _
  $region29: #{tpu_custom_call.1} parent=0 // pred_fallthru
    _
  %v26 = vld [vmem:[%s0] sm:$0xff]
  %v27 = vld [vmem:[%s0 + $0x8] sm:$0xff]
  %v28 = vld [vmem:[%s0 + $0x18] sm:$0xff]
  %v29 = vld [vmem:[%s0 + $0x20] sm:$0xff]
  %v30 = vld [vmem:[%s0 + $0x30] sm:$0xff]
  %v31 = vld [vmem:[%s0 + $0x38] sm:$0xff]
  %v32 = vld [vmem:[%s0 + $0x48] sm:$0xff]
  %v33 = vld [vmem:[%s0 + $0x50] sm:$0xff]
  %v34 = vld [vmem:[%s0 + $0x60] sm:$0xff]
  %v35 = vld [vmem:[%s0 + $0x68] sm:$0xff]
  %v36 = vld [vmem:[%s0 + $0x78] sm:$0xff]
  %v37 = vld [vmem:[%s0 + $0x80] sm:$0xff]
  %v38 = vld [vmem:[%s0 + $0x90] sm:$0xff]
  %v39 = vld [vmem:[%s0 + $0x98] sm:$0xff]
  %v40 = vld [vmem:[%s0 + $0xa8] sm:$0xff]
  %v41 = vld [vmem:[%s0 + $0xb0] sm:$0xff]
  %v42 = vld [vmem:[%s0 + $0xc0] sm:$0xff]
  %v43 = vld [vmem:[%s0 + $0xc8] sm:$0xff]
  %v44 = vld [vmem:[%s0 + $0xd8] sm:$0xff]
  %v45 = vld [vmem:[%s0 + $0xe0] sm:$0xff]
  %v46 = vld [vmem:[%s0 + $0xf0] sm:$0xff]
  %v47 = vld [vmem:[%s0 + $0xf8] sm:$0xff]
  %v48 = vld [vmem:[%s0 + $0x108] sm:$0xff]
  %v49 = vld [vmem:[%s0 + $0x110] sm:$0xff]
  %v50 = vld [vmem:[%s0 + $0x120] sm:$0xff]
  %v51 = vld [vmem:[%s0 + $0x128] sm:$0xff]
  %v52 = vld [vmem:[%s0 + $0x138] sm:$0xff]
  %v53 = vld [vmem:[%s0 + $0x140] sm:$0xff]
  %v54 = vld [vmem:[%s0 + $0x150] sm:$0xff]
  %v55 = vld [vmem:[%s0 + $0x158] sm:$0xff]
  %v56 = vld [vmem:[%s0 + $0x168] sm:$0xff]
  %v57 = vld [vmem:[%s0 + $0x170] sm:$0xff]
  %v58 = vld [vmem:[%s0 + $0x1b0] sm:$0xff]
  %v59 = vld [vmem:[%s0 + $0x1b8] sm:$0xff]
  %v60 = vld [vmem:[%s0 + $0x1c8] sm:$0xff]
  %v61 = vld [vmem:[%s0 + $0x1d0] sm:$0xff]
  %v62 = vld [vmem:[%s0 + $0x1e0] sm:$0xff]
  %v63 = vld [vmem:[%s0 + $0x1e8] sm:$0xff]
  %v64 = vld [vmem:[%s0 + $0x1f8] sm:$0xff]
  %v65 = vld [vmem:[%s0 + $0x200] sm:$0xff]
  %v66 = vld [vmem:[%s0 + $0x210] sm:$0xff]
  %v67 = vld [vmem:[%s0 + $0x218] sm:$0xff]
  %v68 = vld [vmem:[%s0 + $0x228] sm:$0xff]
  %v69 = vld [vmem:[%s0 + $0x230] sm:$0xff]
  %v70 = vld [vmem:[%s0 + $0x240] sm:$0xff]
  %v71 = vld [vmem:[%s0 + $0x248] sm:$0xff]
  %v72 = vld [vmem:[%s0 + $0x258] sm:$0xff]
  %v73 = vld [vmem:[%s0 + $0x260] sm:$0xff]
  %v74 = vld [vmem:[%s0 + $0x270] sm:$0xff]
  %v75 = vld [vmem:[%s0 + $0x278] sm:$0xff]
  %v76 = vld [vmem:[%s0 + $0x288] sm:$0xff]
  %v77 = vld [vmem:[%s0 + $0x290] sm:$0xff]
  %v78 = vld [vmem:[%s0 + $0x2a0] sm:$0xff]
  %v79 = vld [vmem:[%s0 + $0x2a8] sm:$0xff]
  %v80 = vld [vmem:[%s0 + $0x2b8] sm:$0xff]
  %v81 = vld [vmem:[%s0 + $0x2c0] sm:$0xff]
  %v82 = vld [vmem:[%s0 + $0x2d0] sm:$0xff]
  %v83 = vld [vmem:[%s0 + $0x2d8] sm:$0xff]
  %v84 = vld [vmem:[%s0 + $0x2e8] sm:$0xff]
  %v85 = vld [vmem:[%s0 + $0x2f0] sm:$0xff]
  %v86 = vld [vmem:[%s0 + $0x300] sm:$0xff]
  %v87 = vld [vmem:[%s0 + $0x308] sm:$0xff]
  %v88 = vld [vmem:[%s0 + $0x318] sm:$0xff]
  %v89 = vld [vmem:[%s0 + $0x320] sm:$0xff]
  %v90 = vld [vmem:[%s0 + $0x1] sm:$0xff]
  %v91 = vld [vmem:[%s0 + $0x9] sm:$0xff]
  %v92 = vld [vmem:[%s0 + $0x19] sm:$0xff]
  %v93 = vld [vmem:[%s0 + $0x21] sm:$0xff]
  %v94 = vld [vmem:[%s0 + $0x31] sm:$0xff]
  %v95 = vld [vmem:[%s0 + $0x39] sm:$0xff]
  %v96 = vld [vmem:[%s0 + $0x49] sm:$0xff]
  %v97 = vld [vmem:[%s0 + $0x51] sm:$0xff]
  %v98 = vld [vmem:[%s0 + $0x61] sm:$0xff]
  %v99 = vld [vmem:[%s0 + $0x69] sm:$0xff]
  %v100 = vld [vmem:[%s0 + $0x79] sm:$0xff]
  %v101 = vld [vmem:[%s0 + $0x81] sm:$0xff]
  %v102 = vld [vmem:[%s0 + $0x91] sm:$0xff]
  %v103 = vld [vmem:[%s0 + $0x99] sm:$0xff]
  %v104 = vld [vmem:[%s0 + $0xa9] sm:$0xff]
  %v105 = vld [vmem:[%s0 + $0xb1] sm:$0xff]
  %v106 = vld [vmem:[%s0 + $0xc1] sm:$0xff]
  %v107 = vld [vmem:[%s0 + $0xc9] sm:$0xff]
  %v108 = vld [vmem:[%s0 + $0xd9] sm:$0xff]
  %v109 = vld [vmem:[%s0 + $0xe1] sm:$0xff]
  %v110 = vld [vmem:[%s0 + $0xf1] sm:$0xff]
  %v111 = vld [vmem:[%s0 + $0xf9] sm:$0xff]
  %v112 = vld [vmem:[%s0 + $0x109] sm:$0xff]
  %v113 = vld [vmem:[%s0 + $0x111] sm:$0xff]
  %v114 = vld [vmem:[%s0 + $0x121] sm:$0xff]
  %v115 = vld [vmem:[%s0 + $0x129] sm:$0xff]
  %v116 = vld [vmem:[%s0 + $0x139] sm:$0xff]
  %v117 = vld [vmem:[%s0 + $0x141] sm:$0xff]
  %v118 = vld [vmem:[%s0 + $0x151] sm:$0xff]
  %v119 = vld [vmem:[%s0 + $0x159] sm:$0xff]
  %v120 = vld [vmem:[%s0 + $0x169] sm:$0xff]
  %v121 = vld [vmem:[%s0 + $0x171] sm:$0xff]
  %v122 = vld [vmem:[%s0 + $0x1b1] sm:$0xff]
  %v123 = vld [vmem:[%s0 + $0x1b9] sm:$0xff]
  %v124 = vld [vmem:[%s0 + $0x1c9] sm:$0xff]
  %v125 = vld [vmem:[%s0 + $0x1d1] sm:$0xff]
  %v126 = vld [vmem:[%s0 + $0x1e1] sm:$0xff]
  %v127 = vld [vmem:[%s0 + $0x1e9] sm:$0xff]
  %v128 = vld [vmem:[%s0 + $0x1f9] sm:$0xff]
  %v129 = vld [vmem:[%s0 + $0x201] sm:$0xff]
  %v130 = vld [vmem:[%s0 + $0x211] sm:$0xff]
  %v131 = vld [vmem:[%s0 + $0x219] sm:$0xff]
  %v132 = vld [vmem:[%s0 + $0x229] sm:$0xff]
  %v133 = vld [vmem:[%s0 + $0x231] sm:$0xff]
  %v134 = vld [vmem:[%s0 + $0x241] sm:$0xff]
  %v135 = vld [vmem:[%s0 + $0x249] sm:$0xff]
  %v136 = vld [vmem:[%s0 + $0x259] sm:$0xff]
  %v137 = vld [vmem:[%s0 + $0x261] sm:$0xff]
  %v138 = vld [vmem:[%s0 + $0x271] sm:$0xff]
  %v139 = vld [vmem:[%s0 + $0x279] sm:$0xff]
  %v140 = vld [vmem:[%s0 + $0x289] sm:$0xff]
  %v141 = vld [vmem:[%s0 + $0x291] sm:$0xff]
  %v142 = vld [vmem:[%s0 + $0x2a1] sm:$0xff]
  %v143 = vld [vmem:[%s0 + $0x2a9] sm:$0xff]
  %v144 = vld [vmem:[%s0 + $0x2b9] sm:$0xff]
  %v145 = vld [vmem:[%s0 + $0x2c1] sm:$0xff]
  %v146 = vld [vmem:[%s0 + $0x2d1] sm:$0xff]
  %v147 = vld [vmem:[%s0 + $0x2d9] sm:$0xff]
  %v148 = vld [vmem:[%s0 + $0x2e9] sm:$0xff]
  %v149 = vld [vmem:[%s0 + $0x2f1] sm:$0xff]
  %v150 = vld [vmem:[%s0 + $0x301] sm:$0xff]
  %v151 = vld [vmem:[%s0 + $0x309] sm:$0xff]
  %v152 = vld [vmem:[%s0 + $0x319] sm:$0xff]
  %v153 = vld [vmem:[%s0 + $0x321] sm:$0xff]
  %v154 = vld [vmem:[%s0 + $0x2] sm:$0xff]
  %v155 = vld [vmem:[%s0 + $0xa] sm:$0xff]
  %v156 = vld [vmem:[%s0 + $0x1a] sm:$0xff]
  %v157 = vld [vmem:[%s0 + $0x22] sm:$0xff]
  %v158 = vld [vmem:[%s0 + $0x32] sm:$0xff]
  %v159 = vld [vmem:[%s0 + $0x3a] sm:$0xff]
  %v160 = vld [vmem:[%s0 + $0x4a] sm:$0xff]
  %v161 = vld [vmem:[%s0 + $0x52] sm:$0xff]
  %v162 = vld [vmem:[%s0 + $0x62] sm:$0xff]
  %v163 = vld [vmem:[%s0 + $0x6a] sm:$0xff]
  %v164 = vld [vmem:[%s0 + $0x7a] sm:$0xff]
  %v165 = vld [vmem:[%s0 + $0x82] sm:$0xff]
  %v166 = vld [vmem:[%s0 + $0x92] sm:$0xff]
  %v167 = vld [vmem:[%s0 + $0x9a] sm:$0xff]
  %v168 = vld [vmem:[%s0 + $0xaa] sm:$0xff]
  %v169 = vld [vmem:[%s0 + $0xb2] sm:$0xff]
  %v170 = vld [vmem:[%s0 + $0xc2] sm:$0xff]
  %v171 = vld [vmem:[%s0 + $0xca] sm:$0xff]
  %v172 = vld [vmem:[%s0 + $0xda] sm:$0xff]
  %v173 = vld [vmem:[%s0 + $0xe2] sm:$0xff]
  %v174 = vld [vmem:[%s0 + $0xf2] sm:$0xff]
  %v175 = vld [vmem:[%s0 + $0xfa] sm:$0xff]
  %v176 = vld [vmem:[%s0 + $0x10a] sm:$0xff]
  %v177 = vld [vmem:[%s0 + $0x112] sm:$0xff]
  %v178 = vld [vmem:[%s0 + $0x122] sm:$0xff]
  %v179 = vld [vmem:[%s0 + $0x12a] sm:$0xff]
  %v180 = vld [vmem:[%s0 + $0x13a] sm:$0xff]
  %v181 = vld [vmem:[%s0 + $0x142] sm:$0xff]
  %v182 = vld [vmem:[%s0 + $0x152] sm:$0xff]
  %v183 = vld [vmem:[%s0 + $0x15a] sm:$0xff]
  %v184 = vld [vmem:[%s0 + $0x16a] sm:$0xff]
  %v185 = vld [vmem:[%s0 + $0x172] sm:$0xff]
  %v186 = vld [vmem:[%s0 + $0x1b2] sm:$0xff]
  %v187 = vld [vmem:[%s0 + $0x1ba] sm:$0xff]
  %v188 = vld [vmem:[%s0 + $0x1ca] sm:$0xff]
  %v189 = vld [vmem:[%s0 + $0x1d2] sm:$0xff]
  %v190 = vld [vmem:[%s0 + $0x1e2] sm:$0xff]
  %v191 = vld [vmem:[%s0 + $0x1ea] sm:$0xff]
  %v192 = vld [vmem:[%s0 + $0x1fa] sm:$0xff]
  %v193 = vld [vmem:[%s0 + $0x202] sm:$0xff]
  %v194 = vld [vmem:[%s0 + $0x212] sm:$0xff]
  %v195 = vld [vmem:[%s0 + $0x21a] sm:$0xff]
  %v196 = vld [vmem:[%s0 + $0x22a] sm:$0xff]
  %v197 = vld [vmem:[%s0 + $0x232] sm:$0xff]
  %v198 = vld [vmem:[%s0 + $0x242] sm:$0xff]
  %v199 = vld [vmem:[%s0 + $0x24a] sm:$0xff]
  %v200 = vld [vmem:[%s0 + $0x25a] sm:$0xff]
  %v201 = vld [vmem:[%s0 + $0x262] sm:$0xff]
  %v202 = vld [vmem:[%s0 + $0x272] sm:$0xff]
  %v203 = vld [vmem:[%s0 + $0x27a] sm:$0xff]
  %v204 = vld [vmem:[%s0 + $0x28a] sm:$0xff]
  %v205 = vld [vmem:[%s0 + $0x292] sm:$0xff]
  %v206 = vld [vmem:[%s0 + $0x2a2] sm:$0xff]
  %v207 = vld [vmem:[%s0 + $0x2aa] sm:$0xff]
  %v208 = vld [vmem:[%s0 + $0x2ba] sm:$0xff]
  %v209 = vld [vmem:[%s0 + $0x2c2] sm:$0xff]
  %v210 = vld [vmem:[%s0 + $0x2d2] sm:$0xff]
  %v211 = vld [vmem:[%s0 + $0x2da] sm:$0xff]
  %v212 = vld [vmem:[%s0 + $0x2ea] sm:$0xff]
  %v213 = vld [vmem:[%s0 + $0x2f2] sm:$0xff]
  %v214 = vld [vmem:[%s0 + $0x302] sm:$0xff]
  %v215 = vld [vmem:[%s0 + $0x30a] sm:$0xff]
  %v216 = vld [vmem:[%s0 + $0x31a] sm:$0xff]
  %v217 = vld [vmem:[%s0 + $0x322] sm:$0xff]
  %s218 = scalar_lea.vmem %s0, 24
  %v219 = vld [vmem:[%s218] sm:$0xff]
  %v220 = vld [vmem:[%s218 + $0x8] sm:$0xff]
  %v221 = vld [vmem:[%s218 + $0x18] sm:$0xff]
  %v222 = vld [vmem:[%s218 + $0x20] sm:$0xff]
  %v223 = vld [vmem:[%s218 + $0x30] sm:$0xff]
  %v224 = vld [vmem:[%s218 + $0x38] sm:$0xff]
  %v225 = vld [vmem:[%s218 + $0x48] sm:$0xff]
  %v226 = vld [vmem:[%s218 + $0x50] sm:$0xff]
  %v227 = vld [vmem:[%s218 + $0x60] sm:$0xff]
  %v228 = vld [vmem:[%s218 + $0x68] sm:$0xff]
  %v229 = vld [vmem:[%s218 + $0x78] sm:$0xff]
  %v230 = vld [vmem:[%s218 + $0x80] sm:$0xff]
  %v231 = vld [vmem:[%s218 + $0x90] sm:$0xff]
  %v232 = vld [vmem:[%s218 + $0x98] sm:$0xff]
  %v233 = vld [vmem:[%s218 + $0xa8] sm:$0xff]
  %v234 = vld [vmem:[%s218 + $0xb0] sm:$0xff]
  %v235 = vld [vmem:[%s218 + $0xc0] sm:$0xff]
  %v236 = vld [vmem:[%s218 + $0xc8] sm:$0xff]
  %v237 = vld [vmem:[%s218 + $0xd8] sm:$0xff]
  %v238 = vld [vmem:[%s218 + $0xe0] sm:$0xff]
  %v239 = vld [vmem:[%s218 + $0xf0] sm:$0xff]
  %v240 = vld [vmem:[%s218 + $0xf8] sm:$0xff]
  %v241 = vld [vmem:[%s218 + $0x108] sm:$0xff]
  %v242 = vld [vmem:[%s218 + $0x110] sm:$0xff]
  %v243 = vld [vmem:[%s218 + $0x120] sm:$0xff]
  %v244 = vld [vmem:[%s218 + $0x128] sm:$0xff]
  %v245 = vld [vmem:[%s218 + $0x138] sm:$0xff]
  %v246 = vld [vmem:[%s218 + $0x140] sm:$0xff]
  %v247 = vld [vmem:[%s218 + $0x150] sm:$0xff]
  %v248 = vld [vmem:[%s218 + $0x158] sm:$0xff]
  %v249 = vld [vmem:[%s218 + $0x168] sm:$0xff]
  %v250 = vld [vmem:[%s218 + $0x170] sm:$0xff]
  %v251 = vld [vmem:[%s218 + $0x1b0] sm:$0xff]
  %v252 = vld [vmem:[%s218 + $0x1b8] sm:$0xff]
  %v253 = vld [vmem:[%s218 + $0x1c8] sm:$0xff]
  %v254 = vld [vmem:[%s218 + $0x1d0] sm:$0xff]
  %v255 = vld [vmem:[%s218 + $0x1e0] sm:$0xff]
  %v256 = vld [vmem:[%s218 + $0x1e8] sm:$0xff]
  %v257 = vld [vmem:[%s218 + $0x1f8] sm:$0xff]
  %v258 = vld [vmem:[%s218 + $0x200] sm:$0xff]
  %v259 = vld [vmem:[%s218 + $0x210] sm:$0xff]
  %v260 = vld [vmem:[%s218 + $0x218] sm:$0xff]
  %v261 = vld [vmem:[%s218 + $0x228] sm:$0xff]
  %v262 = vld [vmem:[%s218 + $0x230] sm:$0xff]
  %v263 = vld [vmem:[%s218 + $0x240] sm:$0xff]
  %v264 = vld [vmem:[%s218 + $0x248] sm:$0xff]
  %v265 = vld [vmem:[%s218 + $0x258] sm:$0xff]
  %v266 = vld [vmem:[%s218 + $0x260] sm:$0xff]
  %v267 = vld [vmem:[%s218 + $0x270] sm:$0xff]
  %v268 = vld [vmem:[%s218 + $0x278] sm:$0xff]
  %v269 = vld [vmem:[%s218 + $0x288] sm:$0xff]
  %v270 = vld [vmem:[%s218 + $0x290] sm:$0xff]
  %v271 = vld [vmem:[%s218 + $0x2a0] sm:$0xff]
  %v272 = vld [vmem:[%s218 + $0x2a8] sm:$0xff]
  %v273 = vld [vmem:[%s218 + $0x2b8] sm:$0xff]
  %v274 = vld [vmem:[%s218 + $0x2c0] sm:$0xff]
  %v275 = vld [vmem:[%s218 + $0x2d0] sm:$0xff]
  %v276 = vld [vmem:[%s218 + $0x2d8] sm:$0xff]
  %v277 = vld [vmem:[%s218 + $0x2e8] sm:$0xff]
  %v278 = vld [vmem:[%s218 + $0x2f0] sm:$0xff]
  %v279 = vld [vmem:[%s218 + $0x300] sm:$0xff]
  %v280 = vld [vmem:[%s218 + $0x308] sm:$0xff]
  %v281 = vld [vmem:[%s218 + $0x318] sm:$0xff]
  %v282 = vld [vmem:[%s218 + $0x320] sm:$0xff]
  %v283 = vld [vmem:[%s218 + $0x1] sm:$0xff]
  %v284 = vld [vmem:[%s218 + $0x9] sm:$0xff]
  %v285 = vld [vmem:[%s218 + $0x19] sm:$0xff]
  %v286 = vld [vmem:[%s218 + $0x21] sm:$0xff]
  %v287 = vld [vmem:[%s218 + $0x31] sm:$0xff]
  %v288 = vld [vmem:[%s218 + $0x39] sm:$0xff]
  %v289 = vld [vmem:[%s218 + $0x49] sm:$0xff]
  %v290 = vld [vmem:[%s218 + $0x51] sm:$0xff]
  %v291 = vld [vmem:[%s218 + $0x61] sm:$0xff]
  %v292 = vld [vmem:[%s218 + $0x69] sm:$0xff]
  %v293 = vld [vmem:[%s218 + $0x79] sm:$0xff]
  %v294 = vld [vmem:[%s218 + $0x81] sm:$0xff]
  %v295 = vld [vmem:[%s218 + $0x91] sm:$0xff]
  %v296 = vld [vmem:[%s218 + $0x99] sm:$0xff]
  %v297 = vld [vmem:[%s218 + $0xa9] sm:$0xff]
  %v298 = vld [vmem:[%s218 + $0xb1] sm:$0xff]
  %v299 = vld [vmem:[%s218 + $0xc1] sm:$0xff]
  %v300 = vld [vmem:[%s218 + $0xc9] sm:$0xff]
  %v301 = vld [vmem:[%s218 + $0xd9] sm:$0xff]
  %v302 = vld [vmem:[%s218 + $0xe1] sm:$0xff]
  %v303 = vld [vmem:[%s218 + $0xf1] sm:$0xff]
  %v304 = vld [vmem:[%s218 + $0xf9] sm:$0xff]
  %v305 = vld [vmem:[%s218 + $0x109] sm:$0xff]
  %v306 = vld [vmem:[%s218 + $0x111] sm:$0xff]
  %v307 = vld [vmem:[%s218 + $0x121] sm:$0xff]
  %v308 = vld [vmem:[%s218 + $0x129] sm:$0xff]
  %v309 = vld [vmem:[%s218 + $0x139] sm:$0xff]
  %v310 = vld [vmem:[%s218 + $0x141] sm:$0xff]
  %v311 = vld [vmem:[%s218 + $0x151] sm:$0xff]
  %v312 = vld [vmem:[%s218 + $0x159] sm:$0xff]
  %v313 = vld [vmem:[%s218 + $0x169] sm:$0xff]
  %v314 = vld [vmem:[%s218 + $0x171] sm:$0xff]
  %v315 = vld [vmem:[%s218 + $0x1b1] sm:$0xff]
  %v316 = vld [vmem:[%s218 + $0x1b9] sm:$0xff]
  %v317 = vld [vmem:[%s218 + $0x1c9] sm:$0xff]
  %v318 = vld [vmem:[%s218 + $0x1d1] sm:$0xff]
  %v319 = vld [vmem:[%s218 + $0x1e1] sm:$0xff]
  %v320 = vld [vmem:[%s218 + $0x1e9] sm:$0xff]
  %v321 = vld [vmem:[%s218 + $0x1f9] sm:$0xff]
  %v322 = vld [vmem:[%s218 + $0x201] sm:$0xff]
  %v323 = vld [vmem:[%s218 + $0x211] sm:$0xff]
  %v324 = vld [vmem:[%s218 + $0x219] sm:$0xff]
  %v325 = vld [vmem:[%s218 + $0x229] sm:$0xff]
  %v326 = vld [vmem:[%s218 + $0x231] sm:$0xff]
  %v327 = vld [vmem:[%s218 + $0x241] sm:$0xff]
  %v328 = vld [vmem:[%s218 + $0x249] sm:$0xff]
  %v329 = vld [vmem:[%s218 + $0x259] sm:$0xff]
  %v330 = vld [vmem:[%s218 + $0x261] sm:$0xff]
  %v331 = vld [vmem:[%s218 + $0x271] sm:$0xff]
  %v332 = vld [vmem:[%s218 + $0x279] sm:$0xff]
  %v333 = vld [vmem:[%s218 + $0x289] sm:$0xff]
  %v334 = vld [vmem:[%s218 + $0x291] sm:$0xff]
  %v335 = vld [vmem:[%s218 + $0x2a1] sm:$0xff]
  %v336 = vld [vmem:[%s218 + $0x2a9] sm:$0xff]
  %v337 = vld [vmem:[%s218 + $0x2b9] sm:$0xff]
  %v338 = vld [vmem:[%s218 + $0x2c1] sm:$0xff]
  %v339 = vld [vmem:[%s218 + $0x2d1] sm:$0xff]
  %v340 = vld [vmem:[%s218 + $0x2d9] sm:$0xff]
  %v341 = vld [vmem:[%s218 + $0x2e9] sm:$0xff]
  %v342 = vld [vmem:[%s218 + $0x2f1] sm:$0xff]
  %v343 = vld [vmem:[%s218 + $0x301] sm:$0xff]
  %v344 = vld [vmem:[%s218 + $0x309] sm:$0xff]
  %v345 = vld [vmem:[%s218 + $0x319] sm:$0xff]
  %v346 = vld [vmem:[%s218 + $0x321] sm:$0xff]
  %v347 = vld [vmem:[%s218 + $0x2] sm:$0xff]
  %v348 = vld [vmem:[%s218 + $0xa] sm:$0xff]
  %v349 = vld [vmem:[%s218 + $0x1a] sm:$0xff]
  %v350 = vld [vmem:[%s218 + $0x22] sm:$0xff]
  %v351 = vld [vmem:[%s218 + $0x32] sm:$0xff]
  %v352 = vld [vmem:[%s218 + $0x3a] sm:$0xff]
  %v353 = vld [vmem:[%s218 + $0x4a] sm:$0xff]
  %v354 = vld [vmem:[%s218 + $0x52] sm:$0xff]
  %v355 = vld [vmem:[%s218 + $0x62] sm:$0xff]
  %v356 = vld [vmem:[%s218 + $0x6a] sm:$0xff]
  %v357 = vld [vmem:[%s218 + $0x7a] sm:$0xff]
  %v358 = vld [vmem:[%s218 + $0x82] sm:$0xff]
  %v359 = vld [vmem:[%s218 + $0x92] sm:$0xff]
  %v360 = vld [vmem:[%s218 + $0x9a] sm:$0xff]
  %v361 = vld [vmem:[%s218 + $0xaa] sm:$0xff]
  %v362 = vld [vmem:[%s218 + $0xb2] sm:$0xff]
  %v363 = vld [vmem:[%s218 + $0xc2] sm:$0xff]
  %v364 = vld [vmem:[%s218 + $0xca] sm:$0xff]
  %v365 = vld [vmem:[%s218 + $0xda] sm:$0xff]
  %v366 = vld [vmem:[%s218 + $0xe2] sm:$0xff]
  %v367 = vld [vmem:[%s218 + $0xf2] sm:$0xff]
  %v368 = vld [vmem:[%s218 + $0xfa] sm:$0xff]
  %v369 = vld [vmem:[%s218 + $0x10a] sm:$0xff]
  %v370 = vld [vmem:[%s218 + $0x112] sm:$0xff]
  %v371 = vld [vmem:[%s218 + $0x122] sm:$0xff]
  %v372 = vld [vmem:[%s218 + $0x12a] sm:$0xff]
  %v373 = vld [vmem:[%s218 + $0x13a] sm:$0xff]
  %v374 = vld [vmem:[%s218 + $0x142] sm:$0xff]
  %v375 = vld [vmem:[%s218 + $0x152] sm:$0xff]
  %v376 = vld [vmem:[%s218 + $0x15a] sm:$0xff]
  %v377 = vld [vmem:[%s218 + $0x16a] sm:$0xff]
  %v378 = vld [vmem:[%s218 + $0x172] sm:$0xff]
  %v379 = vld [vmem:[%s218 + $0x1b2] sm:$0xff]
  %v380 = vld [vmem:[%s218 + $0x1ba] sm:$0xff]
  %v381 = vld [vmem:[%s218 + $0x1ca] sm:$0xff]
  %v382 = vld [vmem:[%s218 + $0x1d2] sm:$0xff]
  %v383 = vld [vmem:[%s218 + $0x1e2] sm:$0xff]
  %v384 = vld [vmem:[%s218 + $0x1ea] sm:$0xff]
  %v385 = vld [vmem:[%s218 + $0x1fa] sm:$0xff]
  %v386 = vld [vmem:[%s218 + $0x202] sm:$0xff]
  %v387 = vld [vmem:[%s218 + $0x212] sm:$0xff]
  %v388 = vld [vmem:[%s218 + $0x21a] sm:$0xff]
  %v389 = vld [vmem:[%s218 + $0x22a] sm:$0xff]
  %v390 = vld [vmem:[%s218 + $0x232] sm:$0xff]
  %v391 = vld [vmem:[%s218 + $0x242] sm:$0xff]
  %v392 = vld [vmem:[%s218 + $0x24a] sm:$0xff]
  %v393 = vld [vmem:[%s218 + $0x25a] sm:$0xff]
  %v394 = vld [vmem:[%s218 + $0x262] sm:$0xff]
  %v395 = vld [vmem:[%s218 + $0x272] sm:$0xff]
  %v396 = vld [vmem:[%s218 + $0x27a] sm:$0xff]
  %v397 = vld [vmem:[%s218 + $0x28a] sm:$0xff]
  %v398 = vld [vmem:[%s218 + $0x292] sm:$0xff]
  %v399 = vld [vmem:[%s218 + $0x2a2] sm:$0xff]
  %v400 = vld [vmem:[%s218 + $0x2aa] sm:$0xff]
  %v401 = vld [vmem:[%s218 + $0x2ba] sm:$0xff]
  %v402 = vld [vmem:[%s218 + $0x2c2] sm:$0xff]
  %v403 = vld [vmem:[%s218 + $0x2d2] sm:$0xff]
  %v404 = vld [vmem:[%s218 + $0x2da] sm:$0xff]
  %v405 = vld [vmem:[%s218 + $0x2ea] sm:$0xff]
  %v406 = vld [vmem:[%s218 + $0x2f2] sm:$0xff]
  %v407 = vld [vmem:[%s218 + $0x302] sm:$0xff]
  %v408 = vld [vmem:[%s218 + $0x30a] sm:$0xff]
  %v409 = vld [vmem:[%s218 + $0x31a] sm:$0xff]
  %v410 = vld [vmem:[%s218 + $0x322] sm:$0xff]
  %s411 = scalar_lea.vmem %s0, 48
  %v412 = vld [vmem:[%s411] sm:$0xff]
  %v413 = vld [vmem:[%s411 + $0x8] sm:$0xff]
  %v414 = vld [vmem:[%s411 + $0x18] sm:$0xff]
  %v415 = vld [vmem:[%s411 + $0x20] sm:$0xff]
  %v416 = vld [vmem:[%s411 + $0x30] sm:$0xff]
  %v417 = vld [vmem:[%s411 + $0x38] sm:$0xff]
  %v418 = vld [vmem:[%s411 + $0x48] sm:$0xff]
  %v419 = vld [vmem:[%s411 + $0x50] sm:$0xff]
  %v420 = vld [vmem:[%s411 + $0x60] sm:$0xff]
  %v421 = vld [vmem:[%s411 + $0x68] sm:$0xff]
  %v422 = vld [vmem:[%s411 + $0x78] sm:$0xff]
  %v423 = vld [vmem:[%s411 + $0x80] sm:$0xff]
  %v424 = vld [vmem:[%s411 + $0x90] sm:$0xff]
  %v425 = vld [vmem:[%s411 + $0x98] sm:$0xff]
  %v426 = vld [vmem:[%s411 + $0xa8] sm:$0xff]
  %v427 = vld [vmem:[%s411 + $0xb0] sm:$0xff]
  %v428 = vld [vmem:[%s411 + $0xc0] sm:$0xff]
  %v429 = vld [vmem:[%s411 + $0xc8] sm:$0xff]
  %v430 = vld [vmem:[%s411 + $0xd8] sm:$0xff]
  %v431 = vld [vmem:[%s411 + $0xe0] sm:$0xff]
  %v432 = vld [vmem:[%s411 + $0xf0] sm:$0xff]
  %v433 = vld [vmem:[%s411 + $0xf8] sm:$0xff]
  %v434 = vld [vmem:[%s411 + $0x108] sm:$0xff]
  %v435 = vld [vmem:[%s411 + $0x110] sm:$0xff]
  %v436 = vld [vmem:[%s411 + $0x120] sm:$0xff]
  %v437 = vld [vmem:[%s411 + $0x128] sm:$0xff]
  %v438 = vld [vmem:[%s411 + $0x138] sm:$0xff]
  %v439 = vld [vmem:[%s411 + $0x140] sm:$0xff]
  %v440 = vld [vmem:[%s411 + $0x150] sm:$0xff]
  %v441 = vld [vmem:[%s411 + $0x158] sm:$0xff]
  %v442 = vld [vmem:[%s411 + $0x168] sm:$0xff]
  %v443 = vld [vmem:[%s411 + $0x170] sm:$0xff]
  %v444 = vld [vmem:[%s411 + $0x1b0] sm:$0xff]
  %v445 = vld [vmem:[%s411 + $0x1b8] sm:$0xff]
  %v446 = vld [vmem:[%s411 + $0x1c8] sm:$0xff]
  %v447 = vld [vmem:[%s411 + $0x1d0] sm:$0xff]
  %v448 = vld [vmem:[%s411 + $0x1e0] sm:$0xff]
  %v449 = vld [vmem:[%s411 + $0x1e8] sm:$0xff]
  %v450 = vld [vmem:[%s411 + $0x1f8] sm:$0xff]
  %v451 = vld [vmem:[%s411 + $0x200] sm:$0xff]
  %v452 = vld [vmem:[%s411 + $0x210] sm:$0xff]
  %v453 = vld [vmem:[%s411 + $0x218] sm:$0xff]
  %v454 = vld [vmem:[%s411 + $0x228] sm:$0xff]
  %v455 = vld [vmem:[%s411 + $0x230] sm:$0xff]
  %v456 = vld [vmem:[%s411 + $0x240] sm:$0xff]
  %v457 = vld [vmem:[%s411 + $0x248] sm:$0xff]
  %v458 = vld [vmem:[%s411 + $0x258] sm:$0xff]
  %v459 = vld [vmem:[%s411 + $0x260] sm:$0xff]
  %v460 = vld [vmem:[%s411 + $0x270] sm:$0xff]
  %v461 = vld [vmem:[%s411 + $0x278] sm:$0xff]
  %v462 = vld [vmem:[%s411 + $0x288] sm:$0xff]
  %v463 = vld [vmem:[%s411 + $0x290] sm:$0xff]
  %v464 = vld [vmem:[%s411 + $0x2a0] sm:$0xff]
  %v465 = vld [vmem:[%s411 + $0x2a8] sm:$0xff]
  %v466 = vld [vmem:[%s411 + $0x2b8] sm:$0xff]
  %v467 = vld [vmem:[%s411 + $0x2c0] sm:$0xff]
  %v468 = vld [vmem:[%s411 + $0x2d0] sm:$0xff]
  %v469 = vld [vmem:[%s411 + $0x2d8] sm:$0xff]
  %v470 = vld [vmem:[%s411 + $0x2e8] sm:$0xff]
  %v471 = vld [vmem:[%s411 + $0x2f0] sm:$0xff]
  %v472 = vld [vmem:[%s411 + $0x300] sm:$0xff]
  %v473 = vld [vmem:[%s411 + $0x308] sm:$0xff]
  %v474 = vld [vmem:[%s411 + $0x318] sm:$0xff]
  %v475 = vld [vmem:[%s411 + $0x320] sm:$0xff]
  %v476 = vld [vmem:[%s411 + $0x1] sm:$0xff]
  %v477 = vld [vmem:[%s411 + $0x9] sm:$0xff]
  %v478 = vld [vmem:[%s411 + $0x19] sm:$0xff]
  %v479 = vld [vmem:[%s411 + $0x21] sm:$0xff]
  %v480 = vld [vmem:[%s411 + $0x31] sm:$0xff]
  %v481 = vld [vmem:[%s411 + $0x39] sm:$0xff]
  %v482 = vld [vmem:[%s411 + $0x49] sm:$0xff]
  %v483 = vld [vmem:[%s411 + $0x51] sm:$0xff]
  %v484 = vld [vmem:[%s411 + $0x61] sm:$0xff]
  %v485 = vld [vmem:[%s411 + $0x69] sm:$0xff]
  %v486 = vld [vmem:[%s411 + $0x79] sm:$0xff]
  %v487 = vld [vmem:[%s411 + $0x81] sm:$0xff]
  %v488 = vld [vmem:[%s411 + $0x91] sm:$0xff]
  %v489 = vld [vmem:[%s411 + $0x99] sm:$0xff]
  %v490 = vld [vmem:[%s411 + $0xa9] sm:$0xff]
  %v491 = vld [vmem:[%s411 + $0xb1] sm:$0xff]
  %v492 = vld [vmem:[%s411 + $0xc1] sm:$0xff]
  %v493 = vld [vmem:[%s411 + $0xc9] sm:$0xff]
  %v494 = vld [vmem:[%s411 + $0xd9] sm:$0xff]
  %v495 = vld [vmem:[%s411 + $0xe1] sm:$0xff]
  %v496 = vld [vmem:[%s411 + $0xf1] sm:$0xff]
  %v497 = vld [vmem:[%s411 + $0xf9] sm:$0xff]
  %v498 = vld [vmem:[%s411 + $0x109] sm:$0xff]
  %v499 = vld [vmem:[%s411 + $0x111] sm:$0xff]
  %v500 = vld [vmem:[%s411 + $0x121] sm:$0xff]
  %v501 = vld [vmem:[%s411 + $0x129] sm:$0xff]
  %v502 = vld [vmem:[%s411 + $0x139] sm:$0xff]
  %v503 = vld [vmem:[%s411 + $0x141] sm:$0xff]
  %v504 = vld [vmem:[%s411 + $0x151] sm:$0xff]
  %v505 = vld [vmem:[%s411 + $0x159] sm:$0xff]
  %v506 = vld [vmem:[%s411 + $0x169] sm:$0xff]
  %v507 = vld [vmem:[%s411 + $0x171] sm:$0xff]
  %v508 = vld [vmem:[%s411 + $0x1b1] sm:$0xff]
  %v509 = vld [vmem:[%s411 + $0x1b9] sm:$0xff]
  %v510 = vld [vmem:[%s411 + $0x1c9] sm:$0xff]
  %v511 = vld [vmem:[%s411 + $0x1d1] sm:$0xff]
  %v512 = vld [vmem:[%s411 + $0x1e1] sm:$0xff]
  %v513 = vld [vmem:[%s411 + $0x1e9] sm:$0xff]
  %v514 = vld [vmem:[%s411 + $0x1f9] sm:$0xff]
  %v515 = vld [vmem:[%s411 + $0x201] sm:$0xff]
  %v516 = vld [vmem:[%s411 + $0x211] sm:$0xff]
  %v517 = vld [vmem:[%s411 + $0x219] sm:$0xff]
  %v518 = vld [vmem:[%s411 + $0x229] sm:$0xff]
  %v519 = vld [vmem:[%s411 + $0x231] sm:$0xff]
  %v520 = vld [vmem:[%s411 + $0x241] sm:$0xff]
  %v521 = vld [vmem:[%s411 + $0x249] sm:$0xff]
  %v522 = vld [vmem:[%s411 + $0x259] sm:$0xff]
  %v523 = vld [vmem:[%s411 + $0x261] sm:$0xff]
  %v524 = vld [vmem:[%s411 + $0x271] sm:$0xff]
  %v525 = vld [vmem:[%s411 + $0x279] sm:$0xff]
  %v526 = vld [vmem:[%s411 + $0x289] sm:$0xff]
  %v527 = vld [vmem:[%s411 + $0x291] sm:$0xff]
  %v528 = vld [vmem:[%s411 + $0x2a1] sm:$0xff]
  %v529 = vld [vmem:[%s411 + $0x2a9] sm:$0xff]
  %v530 = vld [vmem:[%s411 + $0x2b9] sm:$0xff]
  %v531 = vld [vmem:[%s411 + $0x2c1] sm:$0xff]
  %v532 = vld [vmem:[%s411 + $0x2d1] sm:$0xff]
  %v533 = vld [vmem:[%s411 + $0x2d9] sm:$0xff]
  %v534 = vld [vmem:[%s411 + $0x2e9] sm:$0xff]
  %v535 = vld [vmem:[%s411 + $0x2f1] sm:$0xff]
  %v536 = vld [vmem:[%s411 + $0x301] sm:$0xff]
  %v537 = vld [vmem:[%s411 + $0x309] sm:$0xff]
  %v538 = vld [vmem:[%s411 + $0x319] sm:$0xff]
  %v539 = vld [vmem:[%s411 + $0x321] sm:$0xff]
  %v540 = vld [vmem:[%s411 + $0x2] sm:$0xff]
  %v541 = vld [vmem:[%s411 + $0xa] sm:$0xff]
  %v542 = vld [vmem:[%s411 + $0x1a] sm:$0xff]
  %v543 = vld [vmem:[%s411 + $0x22] sm:$0xff]
  %v544 = vld [vmem:[%s411 + $0x32] sm:$0xff]
  %v545 = vld [vmem:[%s411 + $0x3a] sm:$0xff]
  %v546 = vld [vmem:[%s411 + $0x4a] sm:$0xff]
  %v547 = vld [vmem:[%s411 + $0x52] sm:$0xff]
  %v548 = vld [vmem:[%s411 + $0x62] sm:$0xff]
  %v549 = vld [vmem:[%s411 + $0x6a] sm:$0xff]
  %v550 = vld [vmem:[%s411 + $0x7a] sm:$0xff]
  %v551 = vld [vmem:[%s411 + $0x82] sm:$0xff]
  %v552 = vld [vmem:[%s411 + $0x92] sm:$0xff]
  %v553 = vld [vmem:[%s411 + $0x9a] sm:$0xff]
  %v554 = vld [vmem:[%s411 + $0xaa] sm:$0xff]
  %v555 = vld [vmem:[%s411 + $0xb2] sm:$0xff]
  %v556 = vld [vmem:[%s411 + $0xc2] sm:$0xff]
  %v557 = vld [vmem:[%s411 + $0xca] sm:$0xff]
  %v558 = vld [vmem:[%s411 + $0xda] sm:$0xff]
  %v559 = vld [vmem:[%s411 + $0xe2] sm:$0xff]
  %v560 = vld [vmem:[%s411 + $0xf2] sm:$0xff]
  %v561 = vld [vmem:[%s411 + $0xfa] sm:$0xff]
  %v562 = vld [vmem:[%s411 + $0x10a] sm:$0xff]
  %v563 = vld [vmem:[%s411 + $0x112] sm:$0xff]
  %v564 = vld [vmem:[%s411 + $0x122] sm:$0xff]
  %v565 = vld [vmem:[%s411 + $0x12a] sm:$0xff]
  %v566 = vld [vmem:[%s411 + $0x13a] sm:$0xff]
  %v567 = vld [vmem:[%s411 + $0x142] sm:$0xff]
  %v568 = vld [vmem:[%s411 + $0x152] sm:$0xff]
  %v569 = vld [vmem:[%s411 + $0x15a] sm:$0xff]
  %v570 = vld [vmem:[%s411 + $0x16a] sm:$0xff]
  %v571 = vld [vmem:[%s411 + $0x172] sm:$0xff]
  %v572 = vld [vmem:[%s411 + $0x1b2] sm:$0xff]
  %v573 = vld [vmem:[%s411 + $0x1ba] sm:$0xff]
  %v574 = vld [vmem:[%s411 + $0x1ca] sm:$0xff]
  %v575 = vld [vmem:[%s411 + $0x1d2] sm:$0xff]
  %v576 = vld [vmem:[%s411 + $0x1e2] sm:$0xff]
  %v577 = vld [vmem:[%s411 + $0x1ea] sm:$0xff]
  %v578 = vld [vmem:[%s411 + $0x1fa] sm:$0xff]
  %v579 = vld [vmem:[%s411 + $0x202] sm:$0xff]
  %v580 = vld [vmem:[%s411 + $0x212] sm:$0xff]
  %v581 = vld [vmem:[%s411 + $0x21a] sm:$0xff]
  %v582 = vld [vmem:[%s411 + $0x22a] sm:$0xff]
  %v583 = vld [vmem:[%s411 + $0x232] sm:$0xff]
  %v584 = vld [vmem:[%s411 + $0x242] sm:$0xff]
  %v585 = vld [vmem:[%s411 + $0x24a] sm:$0xff]
  %v586 = vld [vmem:[%s411 + $0x25a] sm:$0xff]
  %v587 = vld [vmem:[%s411 + $0x262] sm:$0xff]
  %v588 = vld [vmem:[%s411 + $0x272] sm:$0xff]
  %v589 = vld [vmem:[%s411 + $0x27a] sm:$0xff]
  %v590 = vld [vmem:[%s411 + $0x28a] sm:$0xff]
  %v591 = vld [vmem:[%s411 + $0x292] sm:$0xff]
  %v592 = vld [vmem:[%s411 + $0x2a2] sm:$0xff]
  %v593 = vld [vmem:[%s411 + $0x2aa] sm:$0xff]
  %v594 = vld [vmem:[%s411 + $0x2ba] sm:$0xff]
  %v595 = vld [vmem:[%s411 + $0x2c2] sm:$0xff]
  %v596 = vld [vmem:[%s411 + $0x2d2] sm:$0xff]
  %v597 = vld [vmem:[%s411 + $0x2da] sm:$0xff]
  %v598 = vld [vmem:[%s411 + $0x2ea] sm:$0xff]
  %v599 = vld [vmem:[%s411 + $0x2f2] sm:$0xff]
  %v600 = vld [vmem:[%s411 + $0x302] sm:$0xff]
  %v601 = vld [vmem:[%s411 + $0x30a] sm:$0xff]
  %v602 = vld [vmem:[%s411 + $0x31a] sm:$0xff]
  %v603 = vld [vmem:[%s411 + $0x322] sm:$0xff]
  %668 = vrot.lane.b32.xlu0 %v90, 4
  %v669 = vpop.permute.xlu0 %668
  %670 = vrot.lane.b32.xlu0 %v91, 4
  %v671 = vpop.permute.xlu0 %670
  %672 = vrot.lane.b32.xlu0 %v92, 4
  %v673 = vpop.permute.xlu0 %672
  %674 = vrot.lane.b32.xlu0 %v93, 4
  %v675 = vpop.permute.xlu0 %674
  %676 = vrot.lane.b32.xlu0 %v94, 4
  %v677 = vpop.permute.xlu0 %676
  %678 = vrot.lane.b32.xlu0 %v95, 4
  %v679 = vpop.permute.xlu0 %678
  %680 = vrot.lane.b32.xlu0 %v96, 4
  %v681 = vpop.permute.xlu0 %680
  %682 = vrot.lane.b32.xlu0 %v97, 4
  %v683 = vpop.permute.xlu0 %682
  %684 = vrot.lane.b32.xlu0 %v98, 4
  %v685 = vpop.permute.xlu0 %684
  %686 = vrot.lane.b32.xlu0 %v99, 4
  %v687 = vpop.permute.xlu0 %686
  %688 = vrot.lane.b32.xlu0 %v100, 4
  %v689 = vpop.permute.xlu0 %688
  %690 = vrot.lane.b32.xlu0 %v101, 4
  %v691 = vpop.permute.xlu0 %690
  %692 = vrot.lane.b32.xlu0 %v102, 4
  %v693 = vpop.permute.xlu0 %692
  %694 = vrot.lane.b32.xlu0 %v103, 4
  %v695 = vpop.permute.xlu0 %694
  %696 = vrot.lane.b32.xlu0 %v104, 4
  %v697 = vpop.permute.xlu0 %696
  %698 = vrot.lane.b32.xlu0 %v105, 4
  %v699 = vpop.permute.xlu0 %698
  %700 = vrot.lane.b32.xlu0 %v106, 4
  %v701 = vpop.permute.xlu0 %700
  %702 = vrot.lane.b32.xlu0 %v107, 4
  %v703 = vpop.permute.xlu0 %702
  %704 = vrot.lane.b32.xlu0 %v108, 4
  %v705 = vpop.permute.xlu0 %704
  %706 = vrot.lane.b32.xlu0 %v109, 4
  %v707 = vpop.permute.xlu0 %706
  %708 = vrot.lane.b32.xlu0 %v110, 4
  %v709 = vpop.permute.xlu0 %708
  %710 = vrot.lane.b32.xlu0 %v111, 4
  %v711 = vpop.permute.xlu0 %710
  %712 = vrot.lane.b32.xlu0 %v112, 4
  %v713 = vpop.permute.xlu0 %712
  %714 = vrot.lane.b32.xlu0 %v113, 4
  %v715 = vpop.permute.xlu0 %714
  %716 = vrot.lane.b32.xlu0 %v114, 4
  %v717 = vpop.permute.xlu0 %716
  %718 = vrot.lane.b32.xlu0 %v115, 4
  %v719 = vpop.permute.xlu0 %718
  %720 = vrot.lane.b32.xlu0 %v116, 4
  %v721 = vpop.permute.xlu0 %720
  %722 = vrot.lane.b32.xlu0 %v117, 4
  %v723 = vpop.permute.xlu0 %722
  %724 = vrot.lane.b32.xlu0 %v118, 4
  %v725 = vpop.permute.xlu0 %724
  %726 = vrot.lane.b32.xlu0 %v119, 4
  %v727 = vpop.permute.xlu0 %726
  %728 = vrot.lane.b32.xlu0 %v120, 4
  %v729 = vpop.permute.xlu0 %728
  %730 = vrot.lane.b32.xlu0 %v121, 4
  %v731 = vpop.permute.xlu0 %730
  %732 = vrot.lane.b32.xlu0 %v122, 4
  %v733 = vpop.permute.xlu0 %732
  %734 = vrot.lane.b32.xlu0 %v123, 4
  %v735 = vpop.permute.xlu0 %734
  %736 = vrot.lane.b32.xlu0 %v124, 4
  %v737 = vpop.permute.xlu0 %736
  %738 = vrot.lane.b32.xlu0 %v125, 4
  %v739 = vpop.permute.xlu0 %738
  %740 = vrot.lane.b32.xlu0 %v126, 4
  %v741 = vpop.permute.xlu0 %740
  %742 = vrot.lane.b32.xlu0 %v127, 4
  %v743 = vpop.permute.xlu0 %742
  %744 = vrot.lane.b32.xlu0 %v128, 4
  %v745 = vpop.permute.xlu0 %744
  %746 = vrot.lane.b32.xlu0 %v129, 4
  %v747 = vpop.permute.xlu0 %746
  %748 = vrot.lane.b32.xlu0 %v130, 4
  %v749 = vpop.permute.xlu0 %748
  %750 = vrot.lane.b32.xlu0 %v131, 4
  %v751 = vpop.permute.xlu0 %750
  %752 = vrot.lane.b32.xlu0 %v132, 4
  %v753 = vpop.permute.xlu0 %752
  %754 = vrot.lane.b32.xlu0 %v133, 4
  %v755 = vpop.permute.xlu0 %754
  %756 = vrot.lane.b32.xlu0 %v134, 4
  %v757 = vpop.permute.xlu0 %756
  %758 = vrot.lane.b32.xlu0 %v135, 4
  %v759 = vpop.permute.xlu0 %758
  %760 = vrot.lane.b32.xlu0 %v136, 4
  %v761 = vpop.permute.xlu0 %760
  %762 = vrot.lane.b32.xlu0 %v137, 4
  %v763 = vpop.permute.xlu0 %762
  %764 = vrot.lane.b32.xlu0 %v138, 4
  %v765 = vpop.permute.xlu0 %764
  %766 = vrot.lane.b32.xlu0 %v139, 4
  %v767 = vpop.permute.xlu0 %766
  %768 = vrot.lane.b32.xlu0 %v140, 4
  %v769 = vpop.permute.xlu0 %768
  %770 = vrot.lane.b32.xlu0 %v141, 4
  %v771 = vpop.permute.xlu0 %770
  %772 = vrot.lane.b32.xlu0 %v142, 4
  %v773 = vpop.permute.xlu0 %772
  %774 = vrot.lane.b32.xlu0 %v143, 4
  %v775 = vpop.permute.xlu0 %774
  %776 = vrot.lane.b32.xlu0 %v144, 4
  %v777 = vpop.permute.xlu0 %776
  %778 = vrot.lane.b32.xlu0 %v145, 4
  %v779 = vpop.permute.xlu0 %778
  %780 = vrot.lane.b32.xlu0 %v146, 4
  %v781 = vpop.permute.xlu0 %780
  %782 = vrot.lane.b32.xlu0 %v147, 4
  %v783 = vpop.permute.xlu0 %782
  %784 = vrot.lane.b32.xlu0 %v148, 4
  %v785 = vpop.permute.xlu0 %784
  %786 = vrot.lane.b32.xlu0 %v149, 4
  %v787 = vpop.permute.xlu0 %786
  %788 = vrot.lane.b32.xlu0 %v150, 4
  %v789 = vpop.permute.xlu0 %788
  %790 = vrot.lane.b32.xlu0 %v151, 4
  %v791 = vpop.permute.xlu0 %790
  %792 = vrot.lane.b32.xlu0 %v152, 4
  %v793 = vpop.permute.xlu0 %792
  %794 = vrot.lane.b32.xlu0 %v153, 4
  %v795 = vpop.permute.xlu0 %794
  %924 = vrot.lane.b32.xlu0 %v154, 8
  %v925 = vpop.permute.xlu0 %924
  %926 = vrot.lane.b32.xlu0 %v155, 8
  %v927 = vpop.permute.xlu0 %926
  %928 = vrot.lane.b32.xlu0 %v156, 8
  %v929 = vpop.permute.xlu0 %928
  %930 = vrot.lane.b32.xlu0 %v157, 8
  %v931 = vpop.permute.xlu0 %930
  %932 = vrot.lane.b32.xlu0 %v158, 8
  %v933 = vpop.permute.xlu0 %932
  %934 = vrot.lane.b32.xlu0 %v159, 8
  %v935 = vpop.permute.xlu0 %934
  %936 = vrot.lane.b32.xlu0 %v160, 8
  %v937 = vpop.permute.xlu0 %936
  %938 = vrot.lane.b32.xlu0 %v161, 8
  %v939 = vpop.permute.xlu0 %938
  %940 = vrot.lane.b32.xlu0 %v162, 8
  %v941 = vpop.permute.xlu0 %940
  %942 = vrot.lane.b32.xlu0 %v163, 8
  %v943 = vpop.permute.xlu0 %942
  %944 = vrot.lane.b32.xlu0 %v164, 8
  %v945 = vpop.permute.xlu0 %944
  %946 = vrot.lane.b32.xlu0 %v165, 8
  %v947 = vpop.permute.xlu0 %946
  %948 = vrot.lane.b32.xlu0 %v166, 8
  %v949 = vpop.permute.xlu0 %948
  %950 = vrot.lane.b32.xlu0 %v167, 8
  %v951 = vpop.permute.xlu0 %950
  %952 = vrot.lane.b32.xlu0 %v168, 8
  %v953 = vpop.permute.xlu0 %952
  %954 = vrot.lane.b32.xlu0 %v169, 8
  %v955 = vpop.permute.xlu0 %954
  %956 = vrot.lane.b32.xlu0 %v170, 8
  %v957 = vpop.permute.xlu0 %956
  %958 = vrot.lane.b32.xlu0 %v171, 8
  %v959 = vpop.permute.xlu0 %958
  %960 = vrot.lane.b32.xlu0 %v172, 8
  %v961 = vpop.permute.xlu0 %960
  %962 = vrot.lane.b32.xlu0 %v173, 8
  %v963 = vpop.permute.xlu0 %962
  %964 = vrot.lane.b32.xlu0 %v174, 8
  %v965 = vpop.permute.xlu0 %964
  %966 = vrot.lane.b32.xlu0 %v175, 8
  %v967 = vpop.permute.xlu0 %966
  %968 = vrot.lane.b32.xlu0 %v176, 8
  %v969 = vpop.permute.xlu0 %968
  %970 = vrot.lane.b32.xlu0 %v177, 8
  %v971 = vpop.permute.xlu0 %970
  %972 = vrot.lane.b32.xlu0 %v178, 8
  %v973 = vpop.permute.xlu0 %972
  %974 = vrot.lane.b32.xlu0 %v179, 8
  %v975 = vpop.permute.xlu0 %974
  %976 = vrot.lane.b32.xlu0 %v180, 8
  %v977 = vpop.permute.xlu0 %976
  %978 = vrot.lane.b32.xlu0 %v181, 8
  %v979 = vpop.permute.xlu0 %978
  %980 = vrot.lane.b32.xlu0 %v182, 8
  %v981 = vpop.permute.xlu0 %980
  %982 = vrot.lane.b32.xlu0 %v183, 8
  %v983 = vpop.permute.xlu0 %982
  %984 = vrot.lane.b32.xlu0 %v184, 8
  %v985 = vpop.permute.xlu0 %984
  %986 = vrot.lane.b32.xlu0 %v185, 8
  %v987 = vpop.permute.xlu0 %986
  %988 = vrot.lane.b32.xlu0 %v186, 8
  %v989 = vpop.permute.xlu0 %988
  %990 = vrot.lane.b32.xlu0 %v187, 8
  %v991 = vpop.permute.xlu0 %990
  %992 = vrot.lane.b32.xlu0 %v188, 8
  %v993 = vpop.permute.xlu0 %992
  %994 = vrot.lane.b32.xlu0 %v189, 8
  %v995 = vpop.permute.xlu0 %994
  %996 = vrot.lane.b32.xlu0 %v190, 8
  %v997 = vpop.permute.xlu0 %996
  %998 = vrot.lane.b32.xlu0 %v191, 8
  %v999 = vpop.permute.xlu0 %998
  %1000 = vrot.lane.b32.xlu0 %v192, 8
  %v1001 = vpop.permute.xlu0 %1000
  %1002 = vrot.lane.b32.xlu0 %v193, 8
  %v1003 = vpop.permute.xlu0 %1002
  %1004 = vrot.lane.b32.xlu0 %v194, 8
  %v1005 = vpop.permute.xlu0 %1004
  %1006 = vrot.lane.b32.xlu0 %v195, 8
  %v1007 = vpop.permute.xlu0 %1006
  %1008 = vrot.lane.b32.xlu0 %v196, 8
  %v1009 = vpop.permute.xlu0 %1008
  %1010 = vrot.lane.b32.xlu0 %v197, 8
  %v1011 = vpop.permute.xlu0 %1010
  %1012 = vrot.lane.b32.xlu0 %v198, 8
  %v1013 = vpop.permute.xlu0 %1012
  %1014 = vrot.lane.b32.xlu0 %v199, 8
  %v1015 = vpop.permute.xlu0 %1014
  %1016 = vrot.lane.b32.xlu0 %v200, 8
  %v1017 = vpop.permute.xlu0 %1016
  %1018 = vrot.lane.b32.xlu0 %v201, 8
  %v1019 = vpop.permute.xlu0 %1018
  %1020 = vrot.lane.b32.xlu0 %v202, 8
  %v1021 = vpop.permute.xlu0 %1020
  %1022 = vrot.lane.b32.xlu0 %v203, 8
  %v1023 = vpop.permute.xlu0 %1022
  %1024 = vrot.lane.b32.xlu0 %v204, 8
  %v1025 = vpop.permute.xlu0 %1024
  %1026 = vrot.lane.b32.xlu0 %v205, 8
  %v1027 = vpop.permute.xlu0 %1026
  %1028 = vrot.lane.b32.xlu0 %v206, 8
  %v1029 = vpop.permute.xlu0 %1028
  %1030 = vrot.lane.b32.xlu0 %v207, 8
  %v1031 = vpop.permute.xlu0 %1030
  %1032 = vrot.lane.b32.xlu0 %v208, 8
  %v1033 = vpop.permute.xlu0 %1032
  %1034 = vrot.lane.b32.xlu0 %v209, 8
  %v1035 = vpop.permute.xlu0 %1034
  %1036 = vrot.lane.b32.xlu0 %v210, 8
  %v1037 = vpop.permute.xlu0 %1036
  %1038 = vrot.lane.b32.xlu0 %v211, 8
  %v1039 = vpop.permute.xlu0 %1038
  %1040 = vrot.lane.b32.xlu0 %v212, 8
  %v1041 = vpop.permute.xlu0 %1040
  %1042 = vrot.lane.b32.xlu0 %v213, 8
  %v1043 = vpop.permute.xlu0 %1042
  %1044 = vrot.lane.b32.xlu0 %v214, 8
  %v1045 = vpop.permute.xlu0 %1044
  %1046 = vrot.lane.b32.xlu0 %v215, 8
  %v1047 = vpop.permute.xlu0 %1046
  %1048 = vrot.lane.b32.xlu0 %v216, 8
  %v1049 = vpop.permute.xlu0 %1048
  %1050 = vrot.lane.b32.xlu0 %v217, 8
  %v1051 = vpop.permute.xlu0 %1050
  %1180 = vrot.lane.b32.xlu0 %v219, 12
  %v1181 = vpop.permute.xlu0 %1180
  %1182 = vrot.lane.b32.xlu0 %v220, 12
  %v1183 = vpop.permute.xlu0 %1182
  %1184 = vrot.lane.b32.xlu0 %v221, 12
  %v1185 = vpop.permute.xlu0 %1184
  %1186 = vrot.lane.b32.xlu0 %v222, 12
  %v1187 = vpop.permute.xlu0 %1186
  %1188 = vrot.lane.b32.xlu0 %v223, 12
  %v1189 = vpop.permute.xlu0 %1188
  %1190 = vrot.lane.b32.xlu0 %v224, 12
  %v1191 = vpop.permute.xlu0 %1190
  %1192 = vrot.lane.b32.xlu0 %v225, 12
  %v1193 = vpop.permute.xlu0 %1192
  %1194 = vrot.lane.b32.xlu0 %v226, 12
  %v1195 = vpop.permute.xlu0 %1194
  %1196 = vrot.lane.b32.xlu0 %v227, 12
  %v1197 = vpop.permute.xlu0 %1196
  %1198 = vrot.lane.b32.xlu0 %v228, 12
  %v1199 = vpop.permute.xlu0 %1198
  %1200 = vrot.lane.b32.xlu0 %v229, 12
  %v1201 = vpop.permute.xlu0 %1200
  %1202 = vrot.lane.b32.xlu0 %v230, 12
  %v1203 = vpop.permute.xlu0 %1202
  %1204 = vrot.lane.b32.xlu0 %v231, 12
  %v1205 = vpop.permute.xlu0 %1204
  %1206 = vrot.lane.b32.xlu0 %v232, 12
  %v1207 = vpop.permute.xlu0 %1206
  %1208 = vrot.lane.b32.xlu0 %v233, 12
  %v1209 = vpop.permute.xlu0 %1208
  %1210 = vrot.lane.b32.xlu0 %v234, 12
  %v1211 = vpop.permute.xlu0 %1210
  %1212 = vrot.lane.b32.xlu0 %v235, 12
  %v1213 = vpop.permute.xlu0 %1212
  %1214 = vrot.lane.b32.xlu0 %v236, 12
  %v1215 = vpop.permute.xlu0 %1214
  %1216 = vrot.lane.b32.xlu0 %v237, 12
  %v1217 = vpop.permute.xlu0 %1216
  %1218 = vrot.lane.b32.xlu0 %v238, 12
  %v1219 = vpop.permute.xlu0 %1218
  %1220 = vrot.lane.b32.xlu0 %v239, 12
  %v1221 = vpop.permute.xlu0 %1220
  %1222 = vrot.lane.b32.xlu0 %v240, 12
  %v1223 = vpop.permute.xlu0 %1222
  %1224 = vrot.lane.b32.xlu0 %v241, 12
  %v1225 = vpop.permute.xlu0 %1224
  %1226 = vrot.lane.b32.xlu0 %v242, 12
  %v1227 = vpop.permute.xlu0 %1226
  %1228 = vrot.lane.b32.xlu0 %v243, 12
  %v1229 = vpop.permute.xlu0 %1228
  %1230 = vrot.lane.b32.xlu0 %v244, 12
  %v1231 = vpop.permute.xlu0 %1230
  %1232 = vrot.lane.b32.xlu0 %v245, 12
  %v1233 = vpop.permute.xlu0 %1232
  %1234 = vrot.lane.b32.xlu0 %v246, 12
  %v1235 = vpop.permute.xlu0 %1234
  %1236 = vrot.lane.b32.xlu0 %v247, 12
  %v1237 = vpop.permute.xlu0 %1236
  %1238 = vrot.lane.b32.xlu0 %v248, 12
  %v1239 = vpop.permute.xlu0 %1238
  %1240 = vrot.lane.b32.xlu0 %v249, 12
  %v1241 = vpop.permute.xlu0 %1240
  %1242 = vrot.lane.b32.xlu0 %v250, 12
  %v1243 = vpop.permute.xlu0 %1242
  %1244 = vrot.lane.b32.xlu0 %v251, 12
  %v1245 = vpop.permute.xlu0 %1244
  %1246 = vrot.lane.b32.xlu0 %v252, 12
  %v1247 = vpop.permute.xlu0 %1246
  %1248 = vrot.lane.b32.xlu0 %v253, 12
  %v1249 = vpop.permute.xlu0 %1248
  %1250 = vrot.lane.b32.xlu0 %v254, 12
  %v1251 = vpop.permute.xlu0 %1250
  %1252 = vrot.lane.b32.xlu0 %v255, 12
  %v1253 = vpop.permute.xlu0 %1252
  %1254 = vrot.lane.b32.xlu0 %v256, 12
  %v1255 = vpop.permute.xlu0 %1254
  %1256 = vrot.lane.b32.xlu0 %v257, 12
  %v1257 = vpop.permute.xlu0 %1256
  %1258 = vrot.lane.b32.xlu0 %v258, 12
  %v1259 = vpop.permute.xlu0 %1258
  %1260 = vrot.lane.b32.xlu0 %v259, 12
  %v1261 = vpop.permute.xlu0 %1260
  %1262 = vrot.lane.b32.xlu0 %v260, 12
  %v1263 = vpop.permute.xlu0 %1262
  %1264 = vrot.lane.b32.xlu0 %v261, 12
  %v1265 = vpop.permute.xlu0 %1264
  %1266 = vrot.lane.b32.xlu0 %v262, 12
  %v1267 = vpop.permute.xlu0 %1266
  %1268 = vrot.lane.b32.xlu0 %v263, 12
  %v1269 = vpop.permute.xlu0 %1268
  %1270 = vrot.lane.b32.xlu0 %v264, 12
  %v1271 = vpop.permute.xlu0 %1270
  %1272 = vrot.lane.b32.xlu0 %v265, 12
  %v1273 = vpop.permute.xlu0 %1272
  %1274 = vrot.lane.b32.xlu0 %v266, 12
  %v1275 = vpop.permute.xlu0 %1274
  %1276 = vrot.lane.b32.xlu0 %v267, 12
  %v1277 = vpop.permute.xlu0 %1276
  %1278 = vrot.lane.b32.xlu0 %v268, 12
  %v1279 = vpop.permute.xlu0 %1278
  %1280 = vrot.lane.b32.xlu0 %v269, 12
  %v1281 = vpop.permute.xlu0 %1280
  %1282 = vrot.lane.b32.xlu0 %v270, 12
  %v1283 = vpop.permute.xlu0 %1282
  %1284 = vrot.lane.b32.xlu0 %v271, 12
  %v1285 = vpop.permute.xlu0 %1284
  %1286 = vrot.lane.b32.xlu0 %v272, 12
  %v1287 = vpop.permute.xlu0 %1286
  %1288 = vrot.lane.b32.xlu0 %v273, 12
  %v1289 = vpop.permute.xlu0 %1288
  %1290 = vrot.lane.b32.xlu0 %v274, 12
  %v1291 = vpop.permute.xlu0 %1290
  %1292 = vrot.lane.b32.xlu0 %v275, 12
  %v1293 = vpop.permute.xlu0 %1292
  %1294 = vrot.lane.b32.xlu0 %v276, 12
  %v1295 = vpop.permute.xlu0 %1294
  %1296 = vrot.lane.b32.xlu0 %v277, 12
  %v1297 = vpop.permute.xlu0 %1296
  %1298 = vrot.lane.b32.xlu0 %v278, 12
  %v1299 = vpop.permute.xlu0 %1298
  %1300 = vrot.lane.b32.xlu0 %v279, 12
  %v1301 = vpop.permute.xlu0 %1300
  %1302 = vrot.lane.b32.xlu0 %v280, 12
  %v1303 = vpop.permute.xlu0 %1302
  %1304 = vrot.lane.b32.xlu0 %v281, 12
  %v1305 = vpop.permute.xlu0 %1304
  %1306 = vrot.lane.b32.xlu0 %v282, 12
  %v1307 = vpop.permute.xlu0 %1306
  %1436 = vrot.lane.b32.xlu0 %v283, 16
  %v1437 = vpop.permute.xlu0 %1436
  %1438 = vrot.lane.b32.xlu0 %v284, 16
  %v1439 = vpop.permute.xlu0 %1438
  %1440 = vrot.lane.b32.xlu0 %v285, 16
  %v1441 = vpop.permute.xlu0 %1440
  %1442 = vrot.lane.b32.xlu0 %v286, 16
  %v1443 = vpop.permute.xlu0 %1442
  %1444 = vrot.lane.b32.xlu0 %v287, 16
  %v1445 = vpop.permute.xlu0 %1444
  %1446 = vrot.lane.b32.xlu0 %v288, 16
  %v1447 = vpop.permute.xlu0 %1446
  %1448 = vrot.lane.b32.xlu0 %v289, 16
  %v1449 = vpop.permute.xlu0 %1448
  %1450 = vrot.lane.b32.xlu0 %v290, 16
  %v1451 = vpop.permute.xlu0 %1450
  %1452 = vrot.lane.b32.xlu0 %v291, 16
  %v1453 = vpop.permute.xlu0 %1452
  %1454 = vrot.lane.b32.xlu0 %v292, 16
  %v1455 = vpop.permute.xlu0 %1454
  %1456 = vrot.lane.b32.xlu0 %v293, 16
  %v1457 = vpop.permute.xlu0 %1456
  %1458 = vrot.lane.b32.xlu0 %v294, 16
  %v1459 = vpop.permute.xlu0 %1458
  %1460 = vrot.lane.b32.xlu0 %v295, 16
  %v1461 = vpop.permute.xlu0 %1460
  %1462 = vrot.lane.b32.xlu0 %v296, 16
  %v1463 = vpop.permute.xlu0 %1462
  %1464 = vrot.lane.b32.xlu0 %v297, 16
  %v1465 = vpop.permute.xlu0 %1464
  %1466 = vrot.lane.b32.xlu0 %v298, 16
  %v1467 = vpop.permute.xlu0 %1466
  %1468 = vrot.lane.b32.xlu0 %v299, 16
  %v1469 = vpop.permute.xlu0 %1468
  %1470 = vrot.lane.b32.xlu0 %v300, 16
  %v1471 = vpop.permute.xlu0 %1470
  %1472 = vrot.lane.b32.xlu0 %v301, 16
  %v1473 = vpop.permute.xlu0 %1472
  %1474 = vrot.lane.b32.xlu0 %v302, 16
  %v1475 = vpop.permute.xlu0 %1474
  %1476 = vrot.lane.b32.xlu0 %v303, 16
  %v1477 = vpop.permute.xlu0 %1476
  %1478 = vrot.lane.b32.xlu0 %v304, 16
  %v1479 = vpop.permute.xlu0 %1478
  %1480 = vrot.lane.b32.xlu0 %v305, 16
  %v1481 = vpop.permute.xlu0 %1480
  %1482 = vrot.lane.b32.xlu0 %v306, 16
  %v1483 = vpop.permute.xlu0 %1482
  %1484 = vrot.lane.b32.xlu0 %v307, 16
  %v1485 = vpop.permute.xlu0 %1484
  %1486 = vrot.lane.b32.xlu0 %v308, 16
  %v1487 = vpop.permute.xlu0 %1486
  %1488 = vrot.lane.b32.xlu0 %v309, 16
  %v1489 = vpop.permute.xlu0 %1488
  %1490 = vrot.lane.b32.xlu0 %v310, 16
  %v1491 = vpop.permute.xlu0 %1490
  %1492 = vrot.lane.b32.xlu0 %v311, 16
  %v1493 = vpop.permute.xlu0 %1492
  %1494 = vrot.lane.b32.xlu0 %v312, 16
  %v1495 = vpop.permute.xlu0 %1494
  %1496 = vrot.lane.b32.xlu0 %v313, 16
  %v1497 = vpop.permute.xlu0 %1496
  %1498 = vrot.lane.b32.xlu0 %v314, 16
  %v1499 = vpop.permute.xlu0 %1498
  %1500 = vrot.lane.b32.xlu0 %v315, 16
  %v1501 = vpop.permute.xlu0 %1500
  %1502 = vrot.lane.b32.xlu0 %v316, 16
  %v1503 = vpop.permute.xlu0 %1502
  %1504 = vrot.lane.b32.xlu0 %v317, 16
  %v1505 = vpop.permute.xlu0 %1504
  %1506 = vrot.lane.b32.xlu0 %v318, 16
  %v1507 = vpop.permute.xlu0 %1506
  %1508 = vrot.lane.b32.xlu0 %v319, 16
  %v1509 = vpop.permute.xlu0 %1508
  %1510 = vrot.lane.b32.xlu0 %v320, 16
  %v1511 = vpop.permute.xlu0 %1510
  %1512 = vrot.lane.b32.xlu0 %v321, 16
  %v1513 = vpop.permute.xlu0 %1512
  %1514 = vrot.lane.b32.xlu0 %v322, 16
  %v1515 = vpop.permute.xlu0 %1514
  %1516 = vrot.lane.b32.xlu0 %v323, 16
  %v1517 = vpop.permute.xlu0 %1516
  %1518 = vrot.lane.b32.xlu0 %v324, 16
  %v1519 = vpop.permute.xlu0 %1518
  %1520 = vrot.lane.b32.xlu0 %v325, 16
  %v1521 = vpop.permute.xlu0 %1520
  %1522 = vrot.lane.b32.xlu0 %v326, 16
  %v1523 = vpop.permute.xlu0 %1522
  %1524 = vrot.lane.b32.xlu0 %v327, 16
  %v1525 = vpop.permute.xlu0 %1524
  %1526 = vrot.lane.b32.xlu0 %v328, 16
  %v1527 = vpop.permute.xlu0 %1526
  %1528 = vrot.lane.b32.xlu0 %v329, 16
  %v1529 = vpop.permute.xlu0 %1528
  %1530 = vrot.lane.b32.xlu0 %v330, 16
  %v1531 = vpop.permute.xlu0 %1530
  %1532 = vrot.lane.b32.xlu0 %v331, 16
  %v1533 = vpop.permute.xlu0 %1532
  %1534 = vrot.lane.b32.xlu0 %v332, 16
  %v1535 = vpop.permute.xlu0 %1534
  %1536 = vrot.lane.b32.xlu0 %v333, 16
  %v1537 = vpop.permute.xlu0 %1536
  %1538 = vrot.lane.b32.xlu0 %v334, 16
  %v1539 = vpop.permute.xlu0 %1538
  %1540 = vrot.lane.b32.xlu0 %v335, 16
  %v1541 = vpop.permute.xlu0 %1540
  %1542 = vrot.lane.b32.xlu0 %v336, 16
  %v1543 = vpop.permute.xlu0 %1542
  %1544 = vrot.lane.b32.xlu0 %v337, 16
  %v1545 = vpop.permute.xlu0 %1544
  %1546 = vrot.lane.b32.xlu0 %v338, 16
  %v1547 = vpop.permute.xlu0 %1546
  %1548 = vrot.lane.b32.xlu0 %v339, 16
  %v1549 = vpop.permute.xlu0 %1548
  %1550 = vrot.lane.b32.xlu0 %v340, 16
  %v1551 = vpop.permute.xlu0 %1550
  %1552 = vrot.lane.b32.xlu0 %v341, 16
  %v1553 = vpop.permute.xlu0 %1552
  %1554 = vrot.lane.b32.xlu0 %v342, 16
  %v1555 = vpop.permute.xlu0 %1554
  %1556 = vrot.lane.b32.xlu0 %v343, 16
  %v1557 = vpop.permute.xlu0 %1556
  %1558 = vrot.lane.b32.xlu0 %v344, 16
  %v1559 = vpop.permute.xlu0 %1558
  %1560 = vrot.lane.b32.xlu0 %v345, 16
  %v1561 = vpop.permute.xlu0 %1560
  %1562 = vrot.lane.b32.xlu0 %v346, 16
  %v1563 = vpop.permute.xlu0 %1562
  %1692 = vrot.lane.b32.xlu0 %v347, 20
  %v1693 = vpop.permute.xlu0 %1692
  %1694 = vrot.lane.b32.xlu0 %v348, 20
  %v1695 = vpop.permute.xlu0 %1694
  %1696 = vrot.lane.b32.xlu0 %v349, 20
  %v1697 = vpop.permute.xlu0 %1696
  %1698 = vrot.lane.b32.xlu0 %v350, 20
  %v1699 = vpop.permute.xlu0 %1698
  %1700 = vrot.lane.b32.xlu0 %v351, 20
  %v1701 = vpop.permute.xlu0 %1700
  %1702 = vrot.lane.b32.xlu0 %v352, 20
  %v1703 = vpop.permute.xlu0 %1702
  %1704 = vrot.lane.b32.xlu0 %v353, 20
  %v1705 = vpop.permute.xlu0 %1704
  %1706 = vrot.lane.b32.xlu0 %v354, 20
  %v1707 = vpop.permute.xlu0 %1706
  %1708 = vrot.lane.b32.xlu0 %v355, 20
  %v1709 = vpop.permute.xlu0 %1708
  %1710 = vrot.lane.b32.xlu0 %v356, 20
  %v1711 = vpop.permute.xlu0 %1710
  %1712 = vrot.lane.b32.xlu0 %v357, 20
  %v1713 = vpop.permute.xlu0 %1712
  %1714 = vrot.lane.b32.xlu0 %v358, 20
  %v1715 = vpop.permute.xlu0 %1714
  %1716 = vrot.lane.b32.xlu0 %v359, 20
  %v1717 = vpop.permute.xlu0 %1716
  %1718 = vrot.lane.b32.xlu0 %v360, 20
  %v1719 = vpop.permute.xlu0 %1718
  %1720 = vrot.lane.b32.xlu0 %v361, 20
  %v1721 = vpop.permute.xlu0 %1720
  %1722 = vrot.lane.b32.xlu0 %v362, 20
  %v1723 = vpop.permute.xlu0 %1722
  %1724 = vrot.lane.b32.xlu0 %v363, 20
  %v1725 = vpop.permute.xlu0 %1724
  %1726 = vrot.lane.b32.xlu0 %v364, 20
  %v1727 = vpop.permute.xlu0 %1726
  %1728 = vrot.lane.b32.xlu0 %v365, 20
  %v1729 = vpop.permute.xlu0 %1728
  %1730 = vrot.lane.b32.xlu0 %v366, 20
  %v1731 = vpop.permute.xlu0 %1730
  %1732 = vrot.lane.b32.xlu0 %v367, 20
  %v1733 = vpop.permute.xlu0 %1732
  %1734 = vrot.lane.b32.xlu0 %v368, 20
  %v1735 = vpop.permute.xlu0 %1734
  %1736 = vrot.lane.b32.xlu0 %v369, 20
  %v1737 = vpop.permute.xlu0 %1736
  %1738 = vrot.lane.b32.xlu0 %v370, 20
  %v1739 = vpop.permute.xlu0 %1738
  %1740 = vrot.lane.b32.xlu0 %v371, 20
  %v1741 = vpop.permute.xlu0 %1740
  %1742 = vrot.lane.b32.xlu0 %v372, 20
  %v1743 = vpop.permute.xlu0 %1742
  %1744 = vrot.lane.b32.xlu0 %v373, 20
  %v1745 = vpop.permute.xlu0 %1744
  %1746 = vrot.lane.b32.xlu0 %v374, 20
  %v1747 = vpop.permute.xlu0 %1746
  %1748 = vrot.lane.b32.xlu0 %v375, 20
  %v1749 = vpop.permute.xlu0 %1748
  %1750 = vrot.lane.b32.xlu0 %v376, 20
  %v1751 = vpop.permute.xlu0 %1750
  %1752 = vrot.lane.b32.xlu0 %v377, 20
  %v1753 = vpop.permute.xlu0 %1752
  %1754 = vrot.lane.b32.xlu0 %v378, 20
  %v1755 = vpop.permute.xlu0 %1754
  %1756 = vrot.lane.b32.xlu0 %v379, 20
  %v1757 = vpop.permute.xlu0 %1756
  %1758 = vrot.lane.b32.xlu0 %v380, 20
  %v1759 = vpop.permute.xlu0 %1758
  %1760 = vrot.lane.b32.xlu0 %v381, 20
  %v1761 = vpop.permute.xlu0 %1760
  %1762 = vrot.lane.b32.xlu0 %v382, 20
  %v1763 = vpop.permute.xlu0 %1762
  %1764 = vrot.lane.b32.xlu0 %v383, 20
  %v1765 = vpop.permute.xlu0 %1764
  %1766 = vrot.lane.b32.xlu0 %v384, 20
  %v1767 = vpop.permute.xlu0 %1766
  %1768 = vrot.lane.b32.xlu0 %v385, 20
  %v1769 = vpop.permute.xlu0 %1768
  %1770 = vrot.lane.b32.xlu0 %v386, 20
  %v1771 = vpop.permute.xlu0 %1770
  %1772 = vrot.lane.b32.xlu0 %v387, 20
  %v1773 = vpop.permute.xlu0 %1772
  %1774 = vrot.lane.b32.xlu0 %v388, 20
  %v1775 = vpop.permute.xlu0 %1774
  %1776 = vrot.lane.b32.xlu0 %v389, 20
  %v1777 = vpop.permute.xlu0 %1776
  %1778 = vrot.lane.b32.xlu0 %v390, 20
  %v1779 = vpop.permute.xlu0 %1778
  %1780 = vrot.lane.b32.xlu0 %v391, 20
  %v1781 = vpop.permute.xlu0 %1780
  %1782 = vrot.lane.b32.xlu0 %v392, 20
  %v1783 = vpop.permute.xlu0 %1782
  %1784 = vrot.lane.b32.xlu0 %v393, 20
  %v1785 = vpop.permute.xlu0 %1784
  %1786 = vrot.lane.b32.xlu0 %v394, 20
  %v1787 = vpop.permute.xlu0 %1786
  %1788 = vrot.lane.b32.xlu0 %v395, 20
  %v1789 = vpop.permute.xlu0 %1788
  %1790 = vrot.lane.b32.xlu0 %v396, 20
  %v1791 = vpop.permute.xlu0 %1790
  %1792 = vrot.lane.b32.xlu0 %v397, 20
  %v1793 = vpop.permute.xlu0 %1792
  %1794 = vrot.lane.b32.xlu0 %v398, 20
  %v1795 = vpop.permute.xlu0 %1794
  %1796 = vrot.lane.b32.xlu0 %v399, 20
  %v1797 = vpop.permute.xlu0 %1796
  %1798 = vrot.lane.b32.xlu0 %v400, 20
  %v1799 = vpop.permute.xlu0 %1798
  %1800 = vrot.lane.b32.xlu0 %v401, 20
  %v1801 = vpop.permute.xlu0 %1800
  %1802 = vrot.lane.b32.xlu0 %v402, 20
  %v1803 = vpop.permute.xlu0 %1802
  %1804 = vrot.lane.b32.xlu0 %v403, 20
  %v1805 = vpop.permute.xlu0 %1804
  %1806 = vrot.lane.b32.xlu0 %v404, 20
  %v1807 = vpop.permute.xlu0 %1806
  %1808 = vrot.lane.b32.xlu0 %v405, 20
  %v1809 = vpop.permute.xlu0 %1808
  %1810 = vrot.lane.b32.xlu0 %v406, 20
  %v1811 = vpop.permute.xlu0 %1810
  %1812 = vrot.lane.b32.xlu0 %v407, 20
  %v1813 = vpop.permute.xlu0 %1812
  %1814 = vrot.lane.b32.xlu0 %v408, 20
  %v1815 = vpop.permute.xlu0 %1814
  %1816 = vrot.lane.b32.xlu0 %v409, 20
  %v1817 = vpop.permute.xlu0 %1816
  %1818 = vrot.lane.b32.xlu0 %v410, 20
  %v1819 = vpop.permute.xlu0 %1818
  %1948 = vrot.lane.b32.xlu0 %v412, 24
  %v1949 = vpop.permute.xlu0 %1948
  %1950 = vrot.lane.b32.xlu0 %v413, 24
  %v1951 = vpop.permute.xlu0 %1950
  %1952 = vrot.lane.b32.xlu0 %v414, 24
  %v1953 = vpop.permute.xlu0 %1952
  %1954 = vrot.lane.b32.xlu0 %v415, 24
  %v1955 = vpop.permute.xlu0 %1954
  %1956 = vrot.lane.b32.xlu0 %v416, 24
  %v1957 = vpop.permute.xlu0 %1956
  %1958 = vrot.lane.b32.xlu0 %v417, 24
  %v1959 = vpop.permute.xlu0 %1958
  %1960 = vrot.lane.b32.xlu0 %v418, 24
  %v1961 = vpop.permute.xlu0 %1960
  %1962 = vrot.lane.b32.xlu0 %v419, 24
  %v1963 = vpop.permute.xlu0 %1962
  %1964 = vrot.lane.b32.xlu0 %v420, 24
  %v1965 = vpop.permute.xlu0 %1964
  %1966 = vrot.lane.b32.xlu0 %v421, 24
  %v1967 = vpop.permute.xlu0 %1966
  %1968 = vrot.lane.b32.xlu0 %v422, 24
  %v1969 = vpop.permute.xlu0 %1968
  %1970 = vrot.lane.b32.xlu0 %v423, 24
  %v1971 = vpop.permute.xlu0 %1970
  %1972 = vrot.lane.b32.xlu0 %v424, 24
  %v1973 = vpop.permute.xlu0 %1972
  %1974 = vrot.lane.b32.xlu0 %v425, 24
  %v1975 = vpop.permute.xlu0 %1974
  %1976 = vrot.lane.b32.xlu0 %v426, 24
  %v1977 = vpop.permute.xlu0 %1976
  %1978 = vrot.lane.b32.xlu0 %v427, 24
  %v1979 = vpop.permute.xlu0 %1978
  %1980 = vrot.lane.b32.xlu0 %v428, 24
  %v1981 = vpop.permute.xlu0 %1980
  %1982 = vrot.lane.b32.xlu0 %v429, 24
  %v1983 = vpop.permute.xlu0 %1982
  %1984 = vrot.lane.b32.xlu0 %v430, 24
  %v1985 = vpop.permute.xlu0 %1984
  %1986 = vrot.lane.b32.xlu0 %v431, 24
  %v1987 = vpop.permute.xlu0 %1986
  %1988 = vrot.lane.b32.xlu0 %v432, 24
  %v1989 = vpop.permute.xlu0 %1988
  %1990 = vrot.lane.b32.xlu0 %v433, 24
  %v1991 = vpop.permute.xlu0 %1990
  %1992 = vrot.lane.b32.xlu0 %v434, 24
  %v1993 = vpop.permute.xlu0 %1992
  %1994 = vrot.lane.b32.xlu0 %v435, 24
  %v1995 = vpop.permute.xlu0 %1994
  %1996 = vrot.lane.b32.xlu0 %v436, 24
  %v1997 = vpop.permute.xlu0 %1996
  %1998 = vrot.lane.b32.xlu0 %v437, 24
  %v1999 = vpop.permute.xlu0 %1998
  %2000 = vrot.lane.b32.xlu0 %v438, 24
  %v2001 = vpop.permute.xlu0 %2000
  %2002 = vrot.lane.b32.xlu0 %v439, 24
  %v2003 = vpop.permute.xlu0 %2002
  %2004 = vrot.lane.b32.xlu0 %v440, 24
  %v2005 = vpop.permute.xlu0 %2004
  %2006 = vrot.lane.b32.xlu0 %v441, 24
  %v2007 = vpop.permute.xlu0 %2006
  %2008 = vrot.lane.b32.xlu0 %v442, 24
  %v2009 = vpop.permute.xlu0 %2008
  %2010 = vrot.lane.b32.xlu0 %v443, 24
  %v2011 = vpop.permute.xlu0 %2010
  %2012 = vrot.lane.b32.xlu0 %v444, 24
  %v2013 = vpop.permute.xlu0 %2012
  %2014 = vrot.lane.b32.xlu0 %v445, 24
  %v2015 = vpop.permute.xlu0 %2014
  %2016 = vrot.lane.b32.xlu0 %v446, 24
  %v2017 = vpop.permute.xlu0 %2016
  %2018 = vrot.lane.b32.xlu0 %v447, 24
  %v2019 = vpop.permute.xlu0 %2018
  %2020 = vrot.lane.b32.xlu0 %v448, 24
  %v2021 = vpop.permute.xlu0 %2020
  %2022 = vrot.lane.b32.xlu0 %v449, 24
  %v2023 = vpop.permute.xlu0 %2022
  %2024 = vrot.lane.b32.xlu0 %v450, 24
  %v2025 = vpop.permute.xlu0 %2024
  %2026 = vrot.lane.b32.xlu0 %v451, 24
  %v2027 = vpop.permute.xlu0 %2026
  %2028 = vrot.lane.b32.xlu0 %v452, 24
  %v2029 = vpop.permute.xlu0 %2028
  %2030 = vrot.lane.b32.xlu0 %v453, 24
  %v2031 = vpop.permute.xlu0 %2030
  %2032 = vrot.lane.b32.xlu0 %v454, 24
  %v2033 = vpop.permute.xlu0 %2032
  %2034 = vrot.lane.b32.xlu0 %v455, 24
  %v2035 = vpop.permute.xlu0 %2034
  %2036 = vrot.lane.b32.xlu0 %v456, 24
  %v2037 = vpop.permute.xlu0 %2036
  %2038 = vrot.lane.b32.xlu0 %v457, 24
  %v2039 = vpop.permute.xlu0 %2038
  %2040 = vrot.lane.b32.xlu0 %v458, 24
  %v2041 = vpop.permute.xlu0 %2040
  %2042 = vrot.lane.b32.xlu0 %v459, 24
  %v2043 = vpop.permute.xlu0 %2042
  %2044 = vrot.lane.b32.xlu0 %v460, 24
  %v2045 = vpop.permute.xlu0 %2044
  %2046 = vrot.lane.b32.xlu0 %v461, 24
  %v2047 = vpop.permute.xlu0 %2046
  %2048 = vrot.lane.b32.xlu0 %v462, 24
  %v2049 = vpop.permute.xlu0 %2048
  %2050 = vrot.lane.b32.xlu0 %v463, 24
  %v2051 = vpop.permute.xlu0 %2050
  %2052 = vrot.lane.b32.xlu0 %v464, 24
  %v2053 = vpop.permute.xlu0 %2052
  %2054 = vrot.lane.b32.xlu0 %v465, 24
  %v2055 = vpop.permute.xlu0 %2054
  %2056 = vrot.lane.b32.xlu0 %v466, 24
  %v2057 = vpop.permute.xlu0 %2056
  %2058 = vrot.lane.b32.xlu0 %v467, 24
  %v2059 = vpop.permute.xlu0 %2058
  %2060 = vrot.lane.b32.xlu0 %v468, 24
  %v2061 = vpop.permute.xlu0 %2060
  %2062 = vrot.lane.b32.xlu0 %v469, 24
  %v2063 = vpop.permute.xlu0 %2062
  %2064 = vrot.lane.b32.xlu0 %v470, 24
  %v2065 = vpop.permute.xlu0 %2064
  %2066 = vrot.lane.b32.xlu0 %v471, 24
  %v2067 = vpop.permute.xlu0 %2066
  %2068 = vrot.lane.b32.xlu0 %v472, 24
  %v2069 = vpop.permute.xlu0 %2068
  %2070 = vrot.lane.b32.xlu0 %v473, 24
  %v2071 = vpop.permute.xlu0 %2070
  %2072 = vrot.lane.b32.xlu0 %v474, 24
  %v2073 = vpop.permute.xlu0 %2072
  %2074 = vrot.lane.b32.xlu0 %v475, 24
  %v2075 = vpop.permute.xlu0 %2074
  %2204 = vrot.lane.b32.xlu0 %v476, 28
  %v2205 = vpop.permute.xlu0 %2204
  %2206 = vrot.lane.b32.xlu0 %v477, 28
  %v2207 = vpop.permute.xlu0 %2206
  %2208 = vrot.lane.b32.xlu0 %v478, 28
  %v2209 = vpop.permute.xlu0 %2208
  %2210 = vrot.lane.b32.xlu0 %v479, 28
  %v2211 = vpop.permute.xlu0 %2210
  %2212 = vrot.lane.b32.xlu0 %v480, 28
  %v2213 = vpop.permute.xlu0 %2212
  %2214 = vrot.lane.b32.xlu0 %v481, 28
  %v2215 = vpop.permute.xlu0 %2214
  %2216 = vrot.lane.b32.xlu0 %v482, 28
  %v2217 = vpop.permute.xlu0 %2216
  %2218 = vrot.lane.b32.xlu0 %v483, 28
  %v2219 = vpop.permute.xlu0 %2218
  %2220 = vrot.lane.b32.xlu0 %v484, 28
  %v2221 = vpop.permute.xlu0 %2220
  %2222 = vrot.lane.b32.xlu0 %v485, 28
  %v2223 = vpop.permute.xlu0 %2222
  %2224 = vrot.lane.b32.xlu0 %v486, 28
  %v2225 = vpop.permute.xlu0 %2224
  %2226 = vrot.lane.b32.xlu0 %v487, 28
  %v2227 = vpop.permute.xlu0 %2226
  %2228 = vrot.lane.b32.xlu0 %v488, 28
  %v2229 = vpop.permute.xlu0 %2228
  %2230 = vrot.lane.b32.xlu0 %v489, 28
  %v2231 = vpop.permute.xlu0 %2230
  %2232 = vrot.lane.b32.xlu0 %v490, 28
  %v2233 = vpop.permute.xlu0 %2232
  %2234 = vrot.lane.b32.xlu0 %v491, 28
  %v2235 = vpop.permute.xlu0 %2234
  %2236 = vrot.lane.b32.xlu0 %v492, 28
  %v2237 = vpop.permute.xlu0 %2236
  %2238 = vrot.lane.b32.xlu0 %v493, 28
  %v2239 = vpop.permute.xlu0 %2238
  %2240 = vrot.lane.b32.xlu0 %v494, 28
  %v2241 = vpop.permute.xlu0 %2240
  %2242 = vrot.lane.b32.xlu0 %v495, 28
  %v2243 = vpop.permute.xlu0 %2242
  %2244 = vrot.lane.b32.xlu0 %v496, 28
  %v2245 = vpop.permute.xlu0 %2244
  %2246 = vrot.lane.b32.xlu0 %v497, 28
  %v2247 = vpop.permute.xlu0 %2246
  %2248 = vrot.lane.b32.xlu0 %v498, 28
  %v2249 = vpop.permute.xlu0 %2248
  %2250 = vrot.lane.b32.xlu0 %v499, 28
  %v2251 = vpop.permute.xlu0 %2250
  %2252 = vrot.lane.b32.xlu0 %v500, 28
  %v2253 = vpop.permute.xlu0 %2252
  %2254 = vrot.lane.b32.xlu0 %v501, 28
  %v2255 = vpop.permute.xlu0 %2254
  %2256 = vrot.lane.b32.xlu0 %v502, 28
  %v2257 = vpop.permute.xlu0 %2256
  %2258 = vrot.lane.b32.xlu0 %v503, 28
  %v2259 = vpop.permute.xlu0 %2258
  %2260 = vrot.lane.b32.xlu0 %v504, 28
  %v2261 = vpop.permute.xlu0 %2260
  %2262 = vrot.lane.b32.xlu0 %v505, 28
  %v2263 = vpop.permute.xlu0 %2262
  %2264 = vrot.lane.b32.xlu0 %v506, 28
  %v2265 = vpop.permute.xlu0 %2264
  %2266 = vrot.lane.b32.xlu0 %v507, 28
  %v2267 = vpop.permute.xlu0 %2266
  %2268 = vrot.lane.b32.xlu0 %v508, 28
  %v2269 = vpop.permute.xlu0 %2268
  %2270 = vrot.lane.b32.xlu0 %v509, 28
  %v2271 = vpop.permute.xlu0 %2270
  %2272 = vrot.lane.b32.xlu0 %v510, 28
  %v2273 = vpop.permute.xlu0 %2272
  %2274 = vrot.lane.b32.xlu0 %v511, 28
  %v2275 = vpop.permute.xlu0 %2274
  %2276 = vrot.lane.b32.xlu0 %v512, 28
  %v2277 = vpop.permute.xlu0 %2276
  %2278 = vrot.lane.b32.xlu0 %v513, 28
  %v2279 = vpop.permute.xlu0 %2278
  %2280 = vrot.lane.b32.xlu0 %v514, 28
  %v2281 = vpop.permute.xlu0 %2280
  %2282 = vrot.lane.b32.xlu0 %v515, 28
  %v2283 = vpop.permute.xlu0 %2282
  %2284 = vrot.lane.b32.xlu0 %v516, 28
  %v2285 = vpop.permute.xlu0 %2284
  %2286 = vrot.lane.b32.xlu0 %v517, 28
  %v2287 = vpop.permute.xlu0 %2286
  %2288 = vrot.lane.b32.xlu0 %v518, 28
  %v2289 = vpop.permute.xlu0 %2288
  %2290 = vrot.lane.b32.xlu0 %v519, 28
  %v2291 = vpop.permute.xlu0 %2290
  %2292 = vrot.lane.b32.xlu0 %v520, 28
  %v2293 = vpop.permute.xlu0 %2292
  %2294 = vrot.lane.b32.xlu0 %v521, 28
  %v2295 = vpop.permute.xlu0 %2294
  %2296 = vrot.lane.b32.xlu0 %v522, 28
  %v2297 = vpop.permute.xlu0 %2296
  %2298 = vrot.lane.b32.xlu0 %v523, 28
  %v2299 = vpop.permute.xlu0 %2298
  %2300 = vrot.lane.b32.xlu0 %v524, 28
  %v2301 = vpop.permute.xlu0 %2300
  %2302 = vrot.lane.b32.xlu0 %v525, 28
  %v2303 = vpop.permute.xlu0 %2302
  %2304 = vrot.lane.b32.xlu0 %v526, 28
  %v2305 = vpop.permute.xlu0 %2304
  %2306 = vrot.lane.b32.xlu0 %v527, 28
  %v2307 = vpop.permute.xlu0 %2306
  %2308 = vrot.lane.b32.xlu0 %v528, 28
  %v2309 = vpop.permute.xlu0 %2308
  %2310 = vrot.lane.b32.xlu0 %v529, 28
  %v2311 = vpop.permute.xlu0 %2310
  %2312 = vrot.lane.b32.xlu0 %v530, 28
  %v2313 = vpop.permute.xlu0 %2312
  %2314 = vrot.lane.b32.xlu0 %v531, 28
  %v2315 = vpop.permute.xlu0 %2314
  %2316 = vrot.lane.b32.xlu0 %v532, 28
  %v2317 = vpop.permute.xlu0 %2316
  %2318 = vrot.lane.b32.xlu0 %v533, 28
  %v2319 = vpop.permute.xlu0 %2318
  %2320 = vrot.lane.b32.xlu0 %v534, 28
  %v2321 = vpop.permute.xlu0 %2320
  %2322 = vrot.lane.b32.xlu0 %v535, 28
  %v2323 = vpop.permute.xlu0 %2322
  %2324 = vrot.lane.b32.xlu0 %v536, 28
  %v2325 = vpop.permute.xlu0 %2324
  %2326 = vrot.lane.b32.xlu0 %v537, 28
  %v2327 = vpop.permute.xlu0 %2326
  %2328 = vrot.lane.b32.xlu0 %v538, 28
  %v2329 = vpop.permute.xlu0 %2328
  %2330 = vrot.lane.b32.xlu0 %v539, 28
  %v2331 = vpop.permute.xlu0 %2330
  %2460 = vrot.lane.b32.xlu0 %v540, 32
  %v2461 = vpop.permute.xlu0 %2460
  %2462 = vrot.lane.b32.xlu0 %v541, 32
  %v2463 = vpop.permute.xlu0 %2462
  %2464 = vrot.lane.b32.xlu0 %v542, 32
  %v2465 = vpop.permute.xlu0 %2464
  %2466 = vrot.lane.b32.xlu0 %v543, 32
  %v2467 = vpop.permute.xlu0 %2466
  %2468 = vrot.lane.b32.xlu0 %v544, 32
  %v2469 = vpop.permute.xlu0 %2468
  %2470 = vrot.lane.b32.xlu0 %v545, 32
  %v2471 = vpop.permute.xlu0 %2470
  %2472 = vrot.lane.b32.xlu0 %v546, 32
  %v2473 = vpop.permute.xlu0 %2472
  %2474 = vrot.lane.b32.xlu0 %v547, 32
  %v2475 = vpop.permute.xlu0 %2474
  %2476 = vrot.lane.b32.xlu0 %v548, 32
  %v2477 = vpop.permute.xlu0 %2476
  %2478 = vrot.lane.b32.xlu0 %v549, 32
  %v2479 = vpop.permute.xlu0 %2478
  %2480 = vrot.lane.b32.xlu0 %v550, 32
  %v2481 = vpop.permute.xlu0 %2480
  %2482 = vrot.lane.b32.xlu0 %v551, 32
  %v2483 = vpop.permute.xlu0 %2482
  %2484 = vrot.lane.b32.xlu0 %v552, 32
  %v2485 = vpop.permute.xlu0 %2484
  %2486 = vrot.lane.b32.xlu0 %v553, 32
  %v2487 = vpop.permute.xlu0 %2486
  %2488 = vrot.lane.b32.xlu0 %v554, 32
  %v2489 = vpop.permute.xlu0 %2488
  %2490 = vrot.lane.b32.xlu0 %v555, 32
  %v2491 = vpop.permute.xlu0 %2490
  %2492 = vrot.lane.b32.xlu0 %v556, 32
  %v2493 = vpop.permute.xlu0 %2492
  %2494 = vrot.lane.b32.xlu0 %v557, 32
  %v2495 = vpop.permute.xlu0 %2494
  %2496 = vrot.lane.b32.xlu0 %v558, 32
  %v2497 = vpop.permute.xlu0 %2496
  %2498 = vrot.lane.b32.xlu0 %v559, 32
  %v2499 = vpop.permute.xlu0 %2498
  %2500 = vrot.lane.b32.xlu0 %v560, 32
  %v2501 = vpop.permute.xlu0 %2500
  %2502 = vrot.lane.b32.xlu0 %v561, 32
  %v2503 = vpop.permute.xlu0 %2502
  %2504 = vrot.lane.b32.xlu0 %v562, 32
  %v2505 = vpop.permute.xlu0 %2504
  %2506 = vrot.lane.b32.xlu0 %v563, 32
  %v2507 = vpop.permute.xlu0 %2506
  %2508 = vrot.lane.b32.xlu0 %v564, 32
  %v2509 = vpop.permute.xlu0 %2508
  %2510 = vrot.lane.b32.xlu0 %v565, 32
  %v2511 = vpop.permute.xlu0 %2510
  %2512 = vrot.lane.b32.xlu0 %v566, 32
  %v2513 = vpop.permute.xlu0 %2512
  %2514 = vrot.lane.b32.xlu0 %v567, 32
  %v2515 = vpop.permute.xlu0 %2514
  %2516 = vrot.lane.b32.xlu0 %v568, 32
  %v2517 = vpop.permute.xlu0 %2516
  %2518 = vrot.lane.b32.xlu0 %v569, 32
  %v2519 = vpop.permute.xlu0 %2518
  %2520 = vrot.lane.b32.xlu0 %v570, 32
  %v2521 = vpop.permute.xlu0 %2520
  %2522 = vrot.lane.b32.xlu0 %v571, 32
  %v2523 = vpop.permute.xlu0 %2522
  %2524 = vrot.lane.b32.xlu0 %v572, 32
  %v2525 = vpop.permute.xlu0 %2524
  %2526 = vrot.lane.b32.xlu0 %v573, 32
  %v2527 = vpop.permute.xlu0 %2526
  %2528 = vrot.lane.b32.xlu0 %v574, 32
  %v2529 = vpop.permute.xlu0 %2528
  %2530 = vrot.lane.b32.xlu0 %v575, 32
  %v2531 = vpop.permute.xlu0 %2530
  %2532 = vrot.lane.b32.xlu0 %v576, 32
  %v2533 = vpop.permute.xlu0 %2532
  %2534 = vrot.lane.b32.xlu0 %v577, 32
  %v2535 = vpop.permute.xlu0 %2534
  %2536 = vrot.lane.b32.xlu0 %v578, 32
  %v2537 = vpop.permute.xlu0 %2536
  %2538 = vrot.lane.b32.xlu0 %v579, 32
  %v2539 = vpop.permute.xlu0 %2538
  %2540 = vrot.lane.b32.xlu0 %v580, 32
  %v2541 = vpop.permute.xlu0 %2540
  %2542 = vrot.lane.b32.xlu0 %v581, 32
  %v2543 = vpop.permute.xlu0 %2542
  %2544 = vrot.lane.b32.xlu0 %v582, 32
  %v2545 = vpop.permute.xlu0 %2544
  %2546 = vrot.lane.b32.xlu0 %v583, 32
  %v2547 = vpop.permute.xlu0 %2546
  %2548 = vrot.lane.b32.xlu0 %v584, 32
  %v2549 = vpop.permute.xlu0 %2548
  %2550 = vrot.lane.b32.xlu0 %v585, 32
  %v2551 = vpop.permute.xlu0 %2550
  %2552 = vrot.lane.b32.xlu0 %v586, 32
  %v2553 = vpop.permute.xlu0 %2552
  %2554 = vrot.lane.b32.xlu0 %v587, 32
  %v2555 = vpop.permute.xlu0 %2554
  %2556 = vrot.lane.b32.xlu0 %v588, 32
  %v2557 = vpop.permute.xlu0 %2556
  %2558 = vrot.lane.b32.xlu0 %v589, 32
  %v2559 = vpop.permute.xlu0 %2558
  %2560 = vrot.lane.b32.xlu0 %v590, 32
  %v2561 = vpop.permute.xlu0 %2560
  %2562 = vrot.lane.b32.xlu0 %v591, 32
  %v2563 = vpop.permute.xlu0 %2562
  %2564 = vrot.lane.b32.xlu0 %v592, 32
  %v2565 = vpop.permute.xlu0 %2564
  %2566 = vrot.lane.b32.xlu0 %v593, 32
  %v2567 = vpop.permute.xlu0 %2566
  %2568 = vrot.lane.b32.xlu0 %v594, 32
  %v2569 = vpop.permute.xlu0 %2568
  %2570 = vrot.lane.b32.xlu0 %v595, 32
  %v2571 = vpop.permute.xlu0 %2570
  %2572 = vrot.lane.b32.xlu0 %v596, 32
  %v2573 = vpop.permute.xlu0 %2572
  %2574 = vrot.lane.b32.xlu0 %v597, 32
  %v2575 = vpop.permute.xlu0 %2574
  %2576 = vrot.lane.b32.xlu0 %v598, 32
  %v2577 = vpop.permute.xlu0 %2576
  %2578 = vrot.lane.b32.xlu0 %v599, 32
  %v2579 = vpop.permute.xlu0 %2578
  %2580 = vrot.lane.b32.xlu0 %v600, 32
  %v2581 = vpop.permute.xlu0 %2580
  %2582 = vrot.lane.b32.xlu0 %v601, 32
  %v2583 = vpop.permute.xlu0 %2582
  %2584 = vrot.lane.b32.xlu0 %v602, 32
  %v2585 = vpop.permute.xlu0 %2584
  %2586 = vrot.lane.b32.xlu0 %v603, 32
  %v2587 = vpop.permute.xlu0 %2586
  %vm2652 = vcmask 31744
  %v2653 = vsel %vm2652, %v26, %v669
  %v2654 = vsel %vm2652, %v27, %v671
  %v2655 = vsel %vm2652, %v28, %v673
  %v2656 = vsel %vm2652, %v29, %v675
  %v2657 = vsel %vm2652, %v30, %v677
  %v2658 = vsel %vm2652, %v31, %v679
  %v2659 = vsel %vm2652, %v32, %v681
  %v2660 = vsel %vm2652, %v33, %v683
  %v2661 = vsel %vm2652, %v34, %v685
  %v2662 = vsel %vm2652, %v35, %v687
  %v2663 = vsel %vm2652, %v36, %v689
  %v2664 = vsel %vm2652, %v37, %v691
  %v2665 = vsel %vm2652, %v38, %v693
  %v2666 = vsel %vm2652, %v39, %v695
  %v2667 = vsel %vm2652, %v40, %v697
  %v2668 = vsel %vm2652, %v41, %v699
  %v2669 = vsel %vm2652, %v42, %v701
  %v2670 = vsel %vm2652, %v43, %v703
  %v2671 = vsel %vm2652, %v44, %v705
  %v2672 = vsel %vm2652, %v45, %v707
  %v2673 = vsel %vm2652, %v46, %v709
  %v2674 = vsel %vm2652, %v47, %v711
  %v2675 = vsel %vm2652, %v48, %v713
  %v2676 = vsel %vm2652, %v49, %v715
  %v2677 = vsel %vm2652, %v50, %v717
  %v2678 = vsel %vm2652, %v51, %v719
  %v2679 = vsel %vm2652, %v52, %v721
  %v2680 = vsel %vm2652, %v53, %v723
  %v2681 = vsel %vm2652, %v54, %v725
  %v2682 = vsel %vm2652, %v55, %v727
  %v2683 = vsel %vm2652, %v56, %v729
  %v2684 = vsel %vm2652, %v57, %v731
  %v2685 = vsel %vm2652, %v58, %v733
  %v2686 = vsel %vm2652, %v59, %v735
  %v2687 = vsel %vm2652, %v60, %v737
  %v2688 = vsel %vm2652, %v61, %v739
  %v2689 = vsel %vm2652, %v62, %v741
  %v2690 = vsel %vm2652, %v63, %v743
  %v2691 = vsel %vm2652, %v64, %v745
  %v2692 = vsel %vm2652, %v65, %v747
  %v2693 = vsel %vm2652, %v66, %v749
  %v2694 = vsel %vm2652, %v67, %v751
  %v2695 = vsel %vm2652, %v68, %v753
  %v2696 = vsel %vm2652, %v69, %v755
  %v2697 = vsel %vm2652, %v70, %v757
  %v2698 = vsel %vm2652, %v71, %v759
  %v2699 = vsel %vm2652, %v72, %v761
  %v2700 = vsel %vm2652, %v73, %v763
  %v2701 = vsel %vm2652, %v74, %v765
  %v2702 = vsel %vm2652, %v75, %v767
  %v2703 = vsel %vm2652, %v76, %v769
  %v2704 = vsel %vm2652, %v77, %v771
  %v2705 = vsel %vm2652, %v78, %v773
  %v2706 = vsel %vm2652, %v79, %v775
  %v2707 = vsel %vm2652, %v80, %v777
  %v2708 = vsel %vm2652, %v81, %v779
  %v2709 = vsel %vm2652, %v82, %v781
  %v2710 = vsel %vm2652, %v83, %v783
  %v2711 = vsel %vm2652, %v84, %v785
  %v2712 = vsel %vm2652, %v85, %v787
  %v2713 = vsel %vm2652, %v86, %v789
  %v2714 = vsel %vm2652, %v87, %v791
  %v2715 = vsel %vm2652, %v88, %v793
  %v2716 = vsel %vm2652, %v89, %v795
  %vm2717 = vcmask 64512
  %v2718 = vsel %vm2717, %v2653, %v925
  %v2719 = vsel %vm2717, %v2654, %v927
  %v2720 = vsel %vm2717, %v2655, %v929
  %v2721 = vsel %vm2717, %v2656, %v931
  %v2722 = vsel %vm2717, %v2657, %v933
  %v2723 = vsel %vm2717, %v2658, %v935
  %v2724 = vsel %vm2717, %v2659, %v937
  %v2725 = vsel %vm2717, %v2660, %v939
  %v2726 = vsel %vm2717, %v2661, %v941
  %v2727 = vsel %vm2717, %v2662, %v943
  %v2728 = vsel %vm2717, %v2663, %v945
  %v2729 = vsel %vm2717, %v2664, %v947
  %v2730 = vsel %vm2717, %v2665, %v949
  %v2731 = vsel %vm2717, %v2666, %v951
  %v2732 = vsel %vm2717, %v2667, %v953
  %v2733 = vsel %vm2717, %v2668, %v955
  %v2734 = vsel %vm2717, %v2669, %v957
  %v2735 = vsel %vm2717, %v2670, %v959
  %v2736 = vsel %vm2717, %v2671, %v961
  %v2737 = vsel %vm2717, %v2672, %v963
  %v2738 = vsel %vm2717, %v2673, %v965
  %v2739 = vsel %vm2717, %v2674, %v967
  %v2740 = vsel %vm2717, %v2675, %v969
  %v2741 = vsel %vm2717, %v2676, %v971
  %v2742 = vsel %vm2717, %v2677, %v973
  %v2743 = vsel %vm2717, %v2678, %v975
  %v2744 = vsel %vm2717, %v2679, %v977
  %v2745 = vsel %vm2717, %v2680, %v979
  %v2746 = vsel %vm2717, %v2681, %v981
  %v2747 = vsel %vm2717, %v2682, %v983
  %v2748 = vsel %vm2717, %v2683, %v985
  %v2749 = vsel %vm2717, %v2684, %v987
  %v2750 = vsel %vm2717, %v2685, %v989
  %v2751 = vsel %vm2717, %v2686, %v991
  %v2752 = vsel %vm2717, %v2687, %v993
  %v2753 = vsel %vm2717, %v2688, %v995
  %v2754 = vsel %vm2717, %v2689, %v997
  %v2755 = vsel %vm2717, %v2690, %v999
  %v2756 = vsel %vm2717, %v2691, %v1001
  %v2757 = vsel %vm2717, %v2692, %v1003
  %v2758 = vsel %vm2717, %v2693, %v1005
  %v2759 = vsel %vm2717, %v2694, %v1007
  %v2760 = vsel %vm2717, %v2695, %v1009
  %v2761 = vsel %vm2717, %v2696, %v1011
  %v2762 = vsel %vm2717, %v2697, %v1013
  %v2763 = vsel %vm2717, %v2698, %v1015
  %v2764 = vsel %vm2717, %v2699, %v1017
  %v2765 = vsel %vm2717, %v2700, %v1019
  %v2766 = vsel %vm2717, %v2701, %v1021
  %v2767 = vsel %vm2717, %v2702, %v1023
  %v2768 = vsel %vm2717, %v2703, %v1025
  %v2769 = vsel %vm2717, %v2704, %v1027
  %v2770 = vsel %vm2717, %v2705, %v1029
  %v2771 = vsel %vm2717, %v2706, %v1031
  %v2772 = vsel %vm2717, %v2707, %v1033
  %v2773 = vsel %vm2717, %v2708, %v1035
  %v2774 = vsel %vm2717, %v2709, %v1037
  %v2775 = vsel %vm2717, %v2710, %v1039
  %v2776 = vsel %vm2717, %v2711, %v1041
  %v2777 = vsel %vm2717, %v2712, %v1043
  %v2778 = vsel %vm2717, %v2713, %v1045
  %v2779 = vsel %vm2717, %v2714, %v1047
  %v2780 = vsel %vm2717, %v2715, %v1049
  %v2781 = vsel %vm2717, %v2716, %v1051
  %vm2782 = vcmask 97280
  %v2783 = vsel %vm2782, %v2718, %v1181
  %v2784 = vsel %vm2782, %v2719, %v1183
  %v2785 = vsel %vm2782, %v2720, %v1185
  %v2786 = vsel %vm2782, %v2721, %v1187
  %v2787 = vsel %vm2782, %v2722, %v1189
  %v2788 = vsel %vm2782, %v2723, %v1191
  %v2789 = vsel %vm2782, %v2724, %v1193
  %v2790 = vsel %vm2782, %v2725, %v1195
  %v2791 = vsel %vm2782, %v2726, %v1197
  %v2792 = vsel %vm2782, %v2727, %v1199
  %v2793 = vsel %vm2782, %v2728, %v1201
  %v2794 = vsel %vm2782, %v2729, %v1203
  %v2795 = vsel %vm2782, %v2730, %v1205
  %v2796 = vsel %vm2782, %v2731, %v1207
  %v2797 = vsel %vm2782, %v2732, %v1209
  %v2798 = vsel %vm2782, %v2733, %v1211
  %v2799 = vsel %vm2782, %v2734, %v1213
  %v2800 = vsel %vm2782, %v2735, %v1215
  %v2801 = vsel %vm2782, %v2736, %v1217
  %v2802 = vsel %vm2782, %v2737, %v1219
  %v2803 = vsel %vm2782, %v2738, %v1221
  %v2804 = vsel %vm2782, %v2739, %v1223
  %v2805 = vsel %vm2782, %v2740, %v1225
  %v2806 = vsel %vm2782, %v2741, %v1227
  %v2807 = vsel %vm2782, %v2742, %v1229
  %v2808 = vsel %vm2782, %v2743, %v1231
  %v2809 = vsel %vm2782, %v2744, %v1233
  %v2810 = vsel %vm2782, %v2745, %v1235
  %v2811 = vsel %vm2782, %v2746, %v1237
  %v2812 = vsel %vm2782, %v2747, %v1239
  %v2813 = vsel %vm2782, %v2748, %v1241
  %v2814 = vsel %vm2782, %v2749, %v1243
  %v2815 = vsel %vm2782, %v2750, %v1245
  %v2816 = vsel %vm2782, %v2751, %v1247
  %v2817 = vsel %vm2782, %v2752, %v1249
  %v2818 = vsel %vm2782, %v2753, %v1251
  %v2819 = vsel %vm2782, %v2754, %v1253
  %v2820 = vsel %vm2782, %v2755, %v1255
  %v2821 = vsel %vm2782, %v2756, %v1257
  %v2822 = vsel %vm2782, %v2757, %v1259
  %v2823 = vsel %vm2782, %v2758, %v1261
  %v2824 = vsel %vm2782, %v2759, %v1263
  %v2825 = vsel %vm2782, %v2760, %v1265
  %v2826 = vsel %vm2782, %v2761, %v1267
  %v2827 = vsel %vm2782, %v2762, %v1269
  %v2828 = vsel %vm2782, %v2763, %v1271
  %v2829 = vsel %vm2782, %v2764, %v1273
  %v2830 = vsel %vm2782, %v2765, %v1275
  %v2831 = vsel %vm2782, %v2766, %v1277
  %v2832 = vsel %vm2782, %v2767, %v1279
  %v2833 = vsel %vm2782, %v2768, %v1281
  %v2834 = vsel %vm2782, %v2769, %v1283
  %v2835 = vsel %vm2782, %v2770, %v1285
  %v2836 = vsel %vm2782, %v2771, %v1287
  %v2837 = vsel %vm2782, %v2772, %v1289
  %v2838 = vsel %vm2782, %v2773, %v1291
  %v2839 = vsel %vm2782, %v2774, %v1293
  %v2840 = vsel %vm2782, %v2775, %v1295
  %v2841 = vsel %vm2782, %v2776, %v1297
  %v2842 = vsel %vm2782, %v2777, %v1299
  %v2843 = vsel %vm2782, %v2778, %v1301
  %v2844 = vsel %vm2782, %v2779, %v1303
  %v2845 = vsel %vm2782, %v2780, %v1305
  %v2846 = vsel %vm2782, %v2781, %v1307
  %vm2847 = vcmask 130048
  %v2848 = vsel %vm2847, %v2783, %v1437
  %v2849 = vsel %vm2847, %v2784, %v1439
  %v2850 = vsel %vm2847, %v2785, %v1441
  %v2851 = vsel %vm2847, %v2786, %v1443
  %v2852 = vsel %vm2847, %v2787, %v1445
  %v2853 = vsel %vm2847, %v2788, %v1447
  %v2854 = vsel %vm2847, %v2789, %v1449
  %v2855 = vsel %vm2847, %v2790, %v1451
  %v2856 = vsel %vm2847, %v2791, %v1453
  %v2857 = vsel %vm2847, %v2792, %v1455
  %v2858 = vsel %vm2847, %v2793, %v1457
  %v2859 = vsel %vm2847, %v2794, %v1459
  %v2860 = vsel %vm2847, %v2795, %v1461
  %v2861 = vsel %vm2847, %v2796, %v1463
  %v2862 = vsel %vm2847, %v2797, %v1465
  %v2863 = vsel %vm2847, %v2798, %v1467
  %v2864 = vsel %vm2847, %v2799, %v1469
  %v2865 = vsel %vm2847, %v2800, %v1471
  %v2866 = vsel %vm2847, %v2801, %v1473
  %v2867 = vsel %vm2847, %v2802, %v1475
  %v2868 = vsel %vm2847, %v2803, %v1477
  %v2869 = vsel %vm2847, %v2804, %v1479
  %v2870 = vsel %vm2847, %v2805, %v1481
  %v2871 = vsel %vm2847, %v2806, %v1483
  %v2872 = vsel %vm2847, %v2807, %v1485
  %v2873 = vsel %vm2847, %v2808, %v1487
  %v2874 = vsel %vm2847, %v2809, %v1489
  %v2875 = vsel %vm2847, %v2810, %v1491
  %v2876 = vsel %vm2847, %v2811, %v1493
  %v2877 = vsel %vm2847, %v2812, %v1495
  %v2878 = vsel %vm2847, %v2813, %v1497
  %v2879 = vsel %vm2847, %v2814, %v1499
  %v2880 = vsel %vm2847, %v2815, %v1501
  %v2881 = vsel %vm2847, %v2816, %v1503
  %v2882 = vsel %vm2847, %v2817, %v1505
  %v2883 = vsel %vm2847, %v2818, %v1507
  %v2884 = vsel %vm2847, %v2819, %v1509
  %v2885 = vsel %vm2847, %v2820, %v1511
  %v2886 = vsel %vm2847, %v2821, %v1513
  %v2887 = vsel %vm2847, %v2822, %v1515
  %v2888 = vsel %vm2847, %v2823, %v1517
  %v2889 = vsel %vm2847, %v2824, %v1519
  %v2890 = vsel %vm2847, %v2825, %v1521
  %v2891 = vsel %vm2847, %v2826, %v1523
  %v2892 = vsel %vm2847, %v2827, %v1525
  %v2893 = vsel %vm2847, %v2828, %v1527
  %v2894 = vsel %vm2847, %v2829, %v1529
  %v2895 = vsel %vm2847, %v2830, %v1531
  %v2896 = vsel %vm2847, %v2831, %v1533
  %v2897 = vsel %vm2847, %v2832, %v1535
  %v2898 = vsel %vm2847, %v2833, %v1537
  %v2899 = vsel %vm2847, %v2834, %v1539
  %v2900 = vsel %vm2847, %v2835, %v1541
  %v2901 = vsel %vm2847, %v2836, %v1543
  %v2902 = vsel %vm2847, %v2837, %v1545
  %v2903 = vsel %vm2847, %v2838, %v1547
  %v2904 = vsel %vm2847, %v2839, %v1549
  %v2905 = vsel %vm2847, %v2840, %v1551
  %v2906 = vsel %vm2847, %v2841, %v1553
  %v2907 = vsel %vm2847, %v2842, %v1555
  %v2908 = vsel %vm2847, %v2843, %v1557
  %v2909 = vsel %vm2847, %v2844, %v1559
  %v2910 = vsel %vm2847, %v2845, %v1561
  %v2911 = vsel %vm2847, %v2846, %v1563
  %vm2912 = vcmask 162816
  %v2913 = vsel %vm2912, %v2848, %v1693
  %v2914 = vsel %vm2912, %v2849, %v1695
  %v2915 = vsel %vm2912, %v2850, %v1697
  %v2916 = vsel %vm2912, %v2851, %v1699
  %v2917 = vsel %vm2912, %v2852, %v1701
  %v2918 = vsel %vm2912, %v2853, %v1703
  %v2919 = vsel %vm2912, %v2854, %v1705
  %v2920 = vsel %vm2912, %v2855, %v1707
  %v2921 = vsel %vm2912, %v2856, %v1709
  %v2922 = vsel %vm2912, %v2857, %v1711
  %v2923 = vsel %vm2912, %v2858, %v1713
  %v2924 = vsel %vm2912, %v2859, %v1715
  %v2925 = vsel %vm2912, %v2860, %v1717
  %v2926 = vsel %vm2912, %v2861, %v1719
  %v2927 = vsel %vm2912, %v2862, %v1721
  %v2928 = vsel %vm2912, %v2863, %v1723
  %v2929 = vsel %vm2912, %v2864, %v1725
  %v2930 = vsel %vm2912, %v2865, %v1727
  %v2931 = vsel %vm2912, %v2866, %v1729
  %v2932 = vsel %vm2912, %v2867, %v1731
  %v2933 = vsel %vm2912, %v2868, %v1733
  %v2934 = vsel %vm2912, %v2869, %v1735
  %v2935 = vsel %vm2912, %v2870, %v1737
  %v2936 = vsel %vm2912, %v2871, %v1739
  %v2937 = vsel %vm2912, %v2872, %v1741
  %v2938 = vsel %vm2912, %v2873, %v1743
  %v2939 = vsel %vm2912, %v2874, %v1745
  %v2940 = vsel %vm2912, %v2875, %v1747
  %v2941 = vsel %vm2912, %v2876, %v1749
  %v2942 = vsel %vm2912, %v2877, %v1751
  %v2943 = vsel %vm2912, %v2878, %v1753
  %v2944 = vsel %vm2912, %v2879, %v1755
  %v2945 = vsel %vm2912, %v2880, %v1757
  %v2946 = vsel %vm2912, %v2881, %v1759
  %v2947 = vsel %vm2912, %v2882, %v1761
  %v2948 = vsel %vm2912, %v2883, %v1763
  %v2949 = vsel %vm2912, %v2884, %v1765
  %v2950 = vsel %vm2912, %v2885, %v1767
  %v2951 = vsel %vm2912, %v2886, %v1769
  %v2952 = vsel %vm2912, %v2887, %v1771
  %v2953 = vsel %vm2912, %v2888, %v1773
  %v2954 = vsel %vm2912, %v2889, %v1775
  %v2955 = vsel %vm2912, %v2890, %v1777
  %v2956 = vsel %vm2912, %v2891, %v1779
  %v2957 = vsel %vm2912, %v2892, %v1781
  %v2958 = vsel %vm2912, %v2893, %v1783
  %v2959 = vsel %vm2912, %v2894, %v1785
  %v2960 = vsel %vm2912, %v2895, %v1787
  %v2961 = vsel %vm2912, %v2896, %v1789
  %v2962 = vsel %vm2912, %v2897, %v1791
  %v2963 = vsel %vm2912, %v2898, %v1793
  %v2964 = vsel %vm2912, %v2899, %v1795
  %v2965 = vsel %vm2912, %v2900, %v1797
  %v2966 = vsel %vm2912, %v2901, %v1799
  %v2967 = vsel %vm2912, %v2902, %v1801
  %v2968 = vsel %vm2912, %v2903, %v1803
  %v2969 = vsel %vm2912, %v2904, %v1805
  %v2970 = vsel %vm2912, %v2905, %v1807
  %v2971 = vsel %vm2912, %v2906, %v1809
  %v2972 = vsel %vm2912, %v2907, %v1811
  %v2973 = vsel %vm2912, %v2908, %v1813
  %v2974 = vsel %vm2912, %v2909, %v1815
  %v2975 = vsel %vm2912, %v2910, %v1817
  %v2976 = vsel %vm2912, %v2911, %v1819
  %vm2977 = vcmask 195584
  %v2978 = vsel %vm2977, %v2913, %v1949
  %v2979 = vsel %vm2977, %v2914, %v1951
  %v2980 = vsel %vm2977, %v2915, %v1953
  %v2981 = vsel %vm2977, %v2916, %v1955
  %v2982 = vsel %vm2977, %v2917, %v1957
  %v2983 = vsel %vm2977, %v2918, %v1959
  %v2984 = vsel %vm2977, %v2919, %v1961
  %v2985 = vsel %vm2977, %v2920, %v1963
  %v2986 = vsel %vm2977, %v2921, %v1965
  %v2987 = vsel %vm2977, %v2922, %v1967
  %v2988 = vsel %vm2977, %v2923, %v1969
  %v2989 = vsel %vm2977, %v2924, %v1971
  %v2990 = vsel %vm2977, %v2925, %v1973
  %v2991 = vsel %vm2977, %v2926, %v1975
  %v2992 = vsel %vm2977, %v2927, %v1977
  %v2993 = vsel %vm2977, %v2928, %v1979
  %v2994 = vsel %vm2977, %v2929, %v1981
  %v2995 = vsel %vm2977, %v2930, %v1983
  %v2996 = vsel %vm2977, %v2931, %v1985
  %v2997 = vsel %vm2977, %v2932, %v1987
  %v2998 = vsel %vm2977, %v2933, %v1989
  %v2999 = vsel %vm2977, %v2934, %v1991
  %v3000 = vsel %vm2977, %v2935, %v1993
  %v3001 = vsel %vm2977, %v2936, %v1995
  %v3002 = vsel %vm2977, %v2937, %v1997
  %v3003 = vsel %vm2977, %v2938, %v1999
  %v3004 = vsel %vm2977, %v2939, %v2001
  %v3005 = vsel %vm2977, %v2940, %v2003
  %v3006 = vsel %vm2977, %v2941, %v2005
  %v3007 = vsel %vm2977, %v2942, %v2007
  %v3008 = vsel %vm2977, %v2943, %v2009
  %v3009 = vsel %vm2977, %v2944, %v2011
  %v3010 = vsel %vm2977, %v2945, %v2013
  %v3011 = vsel %vm2977, %v2946, %v2015
  %v3012 = vsel %vm2977, %v2947, %v2017
  %v3013 = vsel %vm2977, %v2948, %v2019
  %v3014 = vsel %vm2977, %v2949, %v2021
  %v3015 = vsel %vm2977, %v2950, %v2023
  %v3016 = vsel %vm2977, %v2951, %v2025
  %v3017 = vsel %vm2977, %v2952, %v2027
  %v3018 = vsel %vm2977, %v2953, %v2029
  %v3019 = vsel %vm2977, %v2954, %v2031
  %v3020 = vsel %vm2977, %v2955, %v2033
  %v3021 = vsel %vm2977, %v2956, %v2035
  %v3022 = vsel %vm2977, %v2957, %v2037
  %v3023 = vsel %vm2977, %v2958, %v2039
  %v3024 = vsel %vm2977, %v2959, %v2041
  %v3025 = vsel %vm2977, %v2960, %v2043
  %v3026 = vsel %vm2977, %v2961, %v2045
  %v3027 = vsel %vm2977, %v2962, %v2047
  %v3028 = vsel %vm2977, %v2963, %v2049
  %v3029 = vsel %vm2977, %v2964, %v2051
  %v3030 = vsel %vm2977, %v2965, %v2053
  %v3031 = vsel %vm2977, %v2966, %v2055
  %v3032 = vsel %vm2977, %v2967, %v2057
  %v3033 = vsel %vm2977, %v2968, %v2059
  %v3034 = vsel %vm2977, %v2969, %v2061
  %v3035 = vsel %vm2977, %v2970, %v2063
  %v3036 = vsel %vm2977, %v2971, %v2065
  %v3037 = vsel %vm2977, %v2972, %v2067
  %v3038 = vsel %vm2977, %v2973, %v2069
  %v3039 = vsel %vm2977, %v2974, %v2071
  %v3040 = vsel %vm2977, %v2975, %v2073
  %v3041 = vsel %vm2977, %v2976, %v2075
  %vm3042 = vcmask 228352
  %v3043 = vsel %vm3042, %v2978, %v2205
  %v3044 = vsel %vm3042, %v2979, %v2207
  %v3045 = vsel %vm3042, %v2980, %v2209
  %v3046 = vsel %vm3042, %v2981, %v2211
  %v3047 = vsel %vm3042, %v2982, %v2213
  %v3048 = vsel %vm3042, %v2983, %v2215
  %v3049 = vsel %vm3042, %v2984, %v2217
  %v3050 = vsel %vm3042, %v2985, %v2219
  %v3051 = vsel %vm3042, %v2986, %v2221
  %v3052 = vsel %vm3042, %v2987, %v2223
  %v3053 = vsel %vm3042, %v2988, %v2225
  %v3054 = vsel %vm3042, %v2989, %v2227
  %v3055 = vsel %vm3042, %v2990, %v2229
  %v3056 = vsel %vm3042, %v2991, %v2231
  %v3057 = vsel %vm3042, %v2992, %v2233
  %v3058 = vsel %vm3042, %v2993, %v2235
  %v3059 = vsel %vm3042, %v2994, %v2237
  %v3060 = vsel %vm3042, %v2995, %v2239
  %v3061 = vsel %vm3042, %v2996, %v2241
  %v3062 = vsel %vm3042, %v2997, %v2243
  %v3063 = vsel %vm3042, %v2998, %v2245
  %v3064 = vsel %vm3042, %v2999, %v2247
  %v3065 = vsel %vm3042, %v3000, %v2249
  %v3066 = vsel %vm3042, %v3001, %v2251
  %v3067 = vsel %vm3042, %v3002, %v2253
  %v3068 = vsel %vm3042, %v3003, %v2255
  %v3069 = vsel %vm3042, %v3004, %v2257
  %v3070 = vsel %vm3042, %v3005, %v2259
  %v3071 = vsel %vm3042, %v3006, %v2261
  %v3072 = vsel %vm3042, %v3007, %v2263
  %v3073 = vsel %vm3042, %v3008, %v2265
  %v3074 = vsel %vm3042, %v3009, %v2267
  %v3075 = vsel %vm3042, %v3010, %v2269
  %v3076 = vsel %vm3042, %v3011, %v2271
  %v3077 = vsel %vm3042, %v3012, %v2273
  %v3078 = vsel %vm3042, %v3013, %v2275
  %v3079 = vsel %vm3042, %v3014, %v2277
  %v3080 = vsel %vm3042, %v3015, %v2279
  %v3081 = vsel %vm3042, %v3016, %v2281
  %v3082 = vsel %vm3042, %v3017, %v2283
  %v3083 = vsel %vm3042, %v3018, %v2285
  %v3084 = vsel %vm3042, %v3019, %v2287
  %v3085 = vsel %vm3042, %v3020, %v2289
  %v3086 = vsel %vm3042, %v3021, %v2291
  %v3087 = vsel %vm3042, %v3022, %v2293
  %v3088 = vsel %vm3042, %v3023, %v2295
  %v3089 = vsel %vm3042, %v3024, %v2297
  %v3090 = vsel %vm3042, %v3025, %v2299
  %v3091 = vsel %vm3042, %v3026, %v2301
  %v3092 = vsel %vm3042, %v3027, %v2303
  %v3093 = vsel %vm3042, %v3028, %v2305
  %v3094 = vsel %vm3042, %v3029, %v2307
  %v3095 = vsel %vm3042, %v3030, %v2309
  %v3096 = vsel %vm3042, %v3031, %v2311
  %v3097 = vsel %vm3042, %v3032, %v2313
  %v3098 = vsel %vm3042, %v3033, %v2315
  %v3099 = vsel %vm3042, %v3034, %v2317
  %v3100 = vsel %vm3042, %v3035, %v2319
  %v3101 = vsel %vm3042, %v3036, %v2321
  %v3102 = vsel %vm3042, %v3037, %v2323
  %v3103 = vsel %vm3042, %v3038, %v2325
  %v3104 = vsel %vm3042, %v3039, %v2327
  %v3105 = vsel %vm3042, %v3040, %v2329
  %v3106 = vsel %vm3042, %v3041, %v2331
  %vm3107 = vcmask 261120
  %v3108 = vsel %vm3107, %v3043, %v2461
  %v3109 = vsel %vm3107, %v3044, %v2463
  %v3110 = vsel %vm3107, %v3045, %v2465
  %v3111 = vsel %vm3107, %v3046, %v2467
  %v3112 = vsel %vm3107, %v3047, %v2469
  %v3113 = vsel %vm3107, %v3048, %v2471
  %v3114 = vsel %vm3107, %v3049, %v2473
  %v3115 = vsel %vm3107, %v3050, %v2475
  %v3116 = vsel %vm3107, %v3051, %v2477
  %v3117 = vsel %vm3107, %v3052, %v2479
  %v3118 = vsel %vm3107, %v3053, %v2481
  %v3119 = vsel %vm3107, %v3054, %v2483
  %v3120 = vsel %vm3107, %v3055, %v2485
  %v3121 = vsel %vm3107, %v3056, %v2487
  %v3122 = vsel %vm3107, %v3057, %v2489
  %v3123 = vsel %vm3107, %v3058, %v2491
  %v3124 = vsel %vm3107, %v3059, %v2493
  %v3125 = vsel %vm3107, %v3060, %v2495
  %v3126 = vsel %vm3107, %v3061, %v2497
  %v3127 = vsel %vm3107, %v3062, %v2499
  %v3128 = vsel %vm3107, %v3063, %v2501
  %v3129 = vsel %vm3107, %v3064, %v2503
  %v3130 = vsel %vm3107, %v3065, %v2505
  %v3131 = vsel %vm3107, %v3066, %v2507
  %v3132 = vsel %vm3107, %v3067, %v2509
  %v3133 = vsel %vm3107, %v3068, %v2511
  %v3134 = vsel %vm3107, %v3069, %v2513
  %v3135 = vsel %vm3107, %v3070, %v2515
  %v3136 = vsel %vm3107, %v3071, %v2517
  %v3137 = vsel %vm3107, %v3072, %v2519
  %v3138 = vsel %vm3107, %v3073, %v2521
  %v3139 = vsel %vm3107, %v3074, %v2523
  %v3140 = vsel %vm3107, %v3075, %v2525
  %v3141 = vsel %vm3107, %v3076, %v2527
  %v3142 = vsel %vm3107, %v3077, %v2529
  %v3143 = vsel %vm3107, %v3078, %v2531
  %v3144 = vsel %vm3107, %v3079, %v2533
  %v3145 = vsel %vm3107, %v3080, %v2535
  %v3146 = vsel %vm3107, %v3081, %v2537
  %v3147 = vsel %vm3107, %v3082, %v2539
  %v3148 = vsel %vm3107, %v3083, %v2541
  %v3149 = vsel %vm3107, %v3084, %v2543
  %v3150 = vsel %vm3107, %v3085, %v2545
  %v3151 = vsel %vm3107, %v3086, %v2547
  %v3152 = vsel %vm3107, %v3087, %v2549
  %v3153 = vsel %vm3107, %v3088, %v2551
  %v3154 = vsel %vm3107, %v3089, %v2553
  %v3155 = vsel %vm3107, %v3090, %v2555
  %v3156 = vsel %vm3107, %v3091, %v2557
  %v3157 = vsel %vm3107, %v3092, %v2559
  %v3158 = vsel %vm3107, %v3093, %v2561
  %v3159 = vsel %vm3107, %v3094, %v2563
  %v3160 = vsel %vm3107, %v3095, %v2565
  %v3161 = vsel %vm3107, %v3096, %v2567
  %v3162 = vsel %vm3107, %v3097, %v2569
  %v3163 = vsel %vm3107, %v3098, %v2571
  %v3164 = vsel %vm3107, %v3099, %v2573
  %v3165 = vsel %vm3107, %v3100, %v2575
  %v3166 = vsel %vm3107, %v3101, %v2577
  %v3167 = vsel %vm3107, %v3102, %v2579
  %v3168 = vsel %vm3107, %v3103, %v2581
  %v3169 = vsel %vm3107, %v3104, %v2583
  %v3170 = vsel %vm3107, %v3105, %v2585
  %v3171 = vsel %vm3107, %v3106, %v2587
  %v3172 = vld [vmem:[%s1] sm:$0xff]
  %v3173 = vld [vmem:[%s1 + $0x8] sm:$0xff]
  %v3174 = vld [vmem:[%s1 + $0x10] sm:$0xff]
  %v3175 = vld [vmem:[%s1 + $0x18] sm:$0xff]
  %v3176 = vld [vmem:[%s1 + $0x20] sm:$0xf]
  %vm3177 = vcmask 293888
  %v3179 = vsel %vm3177, %v3108, 0
  %v3182 = vsel %vm3177, %v3109, 0
  %v3185 = vsel %vm3177, %v3110, 0
  %v3188 = vsel %vm3177, %v3111, 0
  %v3191 = vsel %vm3177, %v3112, 0
  %v3194 = vsel %vm3177, %v3113, 0
  %v3197 = vsel %vm3177, %v3114, 0
  %v3200 = vsel %vm3177, %v3115, 0
  %v3203 = vsel %vm3177, %v3116, 0
  %v3206 = vsel %vm3177, %v3117, 0
  %v3209 = vsel %vm3177, %v3118, 0
  %v3212 = vsel %vm3177, %v3119, 0
  %v3215 = vsel %vm3177, %v3120, 0
  %v3218 = vsel %vm3177, %v3121, 0
  %v3221 = vsel %vm3177, %v3122, 0
  %v3224 = vsel %vm3177, %v3123, 0
  %v3227 = vsel %vm3177, %v3124, 0
  %v3230 = vsel %vm3177, %v3125, 0
  %v3233 = vsel %vm3177, %v3126, 0
  %v3236 = vsel %vm3177, %v3127, 0
  %v3239 = vsel %vm3177, %v3128, 0
  %v3242 = vsel %vm3177, %v3129, 0
  %v3245 = vsel %vm3177, %v3130, 0
  %v3248 = vsel %vm3177, %v3131, 0
  %v3251 = vsel %vm3177, %v3132, 0
  %v3254 = vsel %vm3177, %v3133, 0
  %v3257 = vsel %vm3177, %v3134, 0
  %v3260 = vsel %vm3177, %v3135, 0
  %v3263 = vsel %vm3177, %v3136, 0
  %v3266 = vsel %vm3177, %v3137, 0
  %v3269 = vsel %vm3177, %v3138, 0
  %v3272 = vsel %vm3177, %v3139, 0
  %v3275 = vsel %vm3177, %v3140, 0
  %v3278 = vsel %vm3177, %v3141, 0
  %v3281 = vsel %vm3177, %v3142, 0
  %v3284 = vsel %vm3177, %v3143, 0
  %v3287 = vsel %vm3177, %v3144, 0
  %v3290 = vsel %vm3177, %v3145, 0
  %v3293 = vsel %vm3177, %v3146, 0
  %v3296 = vsel %vm3177, %v3147, 0
  %v3299 = vsel %vm3177, %v3148, 0
  %v3302 = vsel %vm3177, %v3149, 0
  %v3305 = vsel %vm3177, %v3150, 0
  %v3308 = vsel %vm3177, %v3151, 0
  %v3311 = vsel %vm3177, %v3152, 0
  %v3314 = vsel %vm3177, %v3153, 0
  %v3317 = vsel %vm3177, %v3154, 0
  %v3320 = vsel %vm3177, %v3155, 0
  %v3323 = vsel %vm3177, %v3156, 0
  %v3326 = vsel %vm3177, %v3157, 0
  %v3329 = vsel %vm3177, %v3158, 0
  %v3332 = vsel %vm3177, %v3159, 0
  %v3335 = vsel %vm3177, %v3160, 0
  %v3338 = vsel %vm3177, %v3161, 0
  %v3341 = vsel %vm3177, %v3162, 0
  %v3344 = vsel %vm3177, %v3163, 0
  %v3347 = vsel %vm3177, %v3164, 0
  %v3350 = vsel %vm3177, %v3165, 0
  %v3353 = vsel %vm3177, %v3166, 0
  %v3356 = vsel %vm3177, %v3167, 0
  %v3359 = vsel %vm3177, %v3168, 0
  %v3362 = vsel %vm3177, %v3169, 0
  %v3365 = vsel %vm3177, %v3170, 0
  %v3368 = vsel %vm3177, %v3171, 0
  %vm3370 = vcmask 1043456
  %v3372 = vsel %vm3370, %v3176, 0
  %3374 = vmatpush.msra.mxu0 0.0
  %3375 = vmatpush.msra.mxu0 0.0
  %3376 = vmatpush.msra.mxu0 0.0
  %3377 = vmatpush.msra.mxu0 0.0
  %3378 = vmatpush.msra.mxu0 0.0
  %3379 = vmatpush.msra.mxu0 0.0
  %3380 = vmatpush.msra.mxu0 0.0
  %3381 = vmatpush.msra.mxu0 0.0
  %3382 = vmatpush.msra.mxu0 0.0
  %3383 = vmatpush.msra.mxu0 0.0
  %3384 = vmatpush.msra.mxu0 0.0
  %3385 = vmatpush.msra.mxu0 %v3372
  %3386 = vmatpush.msra.mxu0 %v3175
  %3387 = vmatpush.msra.mxu0 %v3174
  %3388 = vmatpush.msra.mxu0 %v3173
  %3389 = vmatpush.msra.mxu0 %v3172
  %3390 = vmatmul.f32.gmra.mxu0 %v3179
  %v3391 = vpop.f32.mrf.mxu0
  %v3392 = vadd.f32 0.0, %v3391
  %3393 = vmatmul.f32.gmra.mxu0 %v3182
  %v3394 = vpop.f32.mrf.mxu0
  %v3395 = vadd.f32 0.0, %v3394
  %3396 = vmatmul.f32.gmra.mxu0 %v3185
  %v3397 = vpop.f32.mrf.mxu0
  %v3398 = vadd.f32 0.0, %v3397
  %3399 = vmatmul.f32.gmra.mxu0 %v3188
  %v3400 = vpop.f32.mrf.mxu0
  %v3401 = vadd.f32 0.0, %v3400
  %3402 = vmatmul.f32.gmra.mxu0 %v3191
  %v3403 = vpop.f32.mrf.mxu0
  %v3404 = vadd.f32 0.0, %v3403
  %3405 = vmatmul.f32.gmra.mxu0 %v3194
  %v3406 = vpop.f32.mrf.mxu0
  %v3407 = vadd.f32 0.0, %v3406
  %3408 = vmatmul.f32.gmra.mxu0 %v3197
  %v3409 = vpop.f32.mrf.mxu0
  %v3410 = vadd.f32 0.0, %v3409
  %3411 = vmatmul.f32.gmra.mxu0 %v3200
  %v3412 = vpop.f32.mrf.mxu0
  %v3413 = vadd.f32 0.0, %v3412
  %3414 = vmatmul.f32.gmra.mxu0 %v3203
  %v3415 = vpop.f32.mrf.mxu0
  %v3416 = vadd.f32 0.0, %v3415
  %3417 = vmatmul.f32.gmra.mxu0 %v3206
  %v3418 = vpop.f32.mrf.mxu0
  %v3419 = vadd.f32 0.0, %v3418
  %3420 = vmatmul.f32.gmra.mxu0 %v3209
  %v3421 = vpop.f32.mrf.mxu0
  %v3422 = vadd.f32 0.0, %v3421
  %3423 = vmatmul.f32.gmra.mxu0 %v3212
  %v3424 = vpop.f32.mrf.mxu0
  %v3425 = vadd.f32 0.0, %v3424
  %3426 = vmatmul.f32.gmra.mxu0 %v3215
  %v3427 = vpop.f32.mrf.mxu0
  %v3428 = vadd.f32 0.0, %v3427
  %3429 = vmatmul.f32.gmra.mxu0 %v3218
  %v3430 = vpop.f32.mrf.mxu0
  %v3431 = vadd.f32 0.0, %v3430
  %3432 = vmatmul.f32.gmra.mxu0 %v3221
  %v3433 = vpop.f32.mrf.mxu0
  %v3434 = vadd.f32 0.0, %v3433
  %3435 = vmatmul.f32.gmra.mxu0 %v3224
  %v3436 = vpop.f32.mrf.mxu0
  %v3437 = vadd.f32 0.0, %v3436
  %3438 = vmatmul.f32.gmra.mxu0 %v3227
  %v3439 = vpop.f32.mrf.mxu0
  %v3440 = vadd.f32 0.0, %v3439
  %3441 = vmatmul.f32.gmra.mxu0 %v3230
  %v3442 = vpop.f32.mrf.mxu0
  %v3443 = vadd.f32 0.0, %v3442
  %3444 = vmatmul.f32.gmra.mxu0 %v3233
  %v3445 = vpop.f32.mrf.mxu0
  %v3446 = vadd.f32 0.0, %v3445
  %3447 = vmatmul.f32.gmra.mxu0 %v3236
  %v3448 = vpop.f32.mrf.mxu0
  %v3449 = vadd.f32 0.0, %v3448
  %3450 = vmatmul.f32.gmra.mxu0 %v3239
  %v3451 = vpop.f32.mrf.mxu0
  %v3452 = vadd.f32 0.0, %v3451
  %3453 = vmatmul.f32.gmra.mxu0 %v3242
  %v3454 = vpop.f32.mrf.mxu0
  %v3455 = vadd.f32 0.0, %v3454
  %3456 = vmatmul.f32.gmra.mxu0 %v3245
  %v3457 = vpop.f32.mrf.mxu0
  %v3458 = vadd.f32 0.0, %v3457
  %3459 = vmatmul.f32.gmra.mxu0 %v3248
  %v3460 = vpop.f32.mrf.mxu0
  %v3461 = vadd.f32 0.0, %v3460
  %3462 = vmatmul.f32.gmra.mxu0 %v3251
  %v3463 = vpop.f32.mrf.mxu0
  %v3464 = vadd.f32 0.0, %v3463
  %3465 = vmatmul.f32.gmra.mxu0 %v3254
  %v3466 = vpop.f32.mrf.mxu0
  %v3467 = vadd.f32 0.0, %v3466
  %3468 = vmatmul.f32.gmra.mxu0 %v3257
  %v3469 = vpop.f32.mrf.mxu0
  %v3470 = vadd.f32 0.0, %v3469
  %3471 = vmatmul.f32.gmra.mxu0 %v3260
  %v3472 = vpop.f32.mrf.mxu0
  %v3473 = vadd.f32 0.0, %v3472
  %3474 = vmatmul.f32.gmra.mxu0 %v3263
  %v3475 = vpop.f32.mrf.mxu0
  %v3476 = vadd.f32 0.0, %v3475
  %3477 = vmatmul.f32.gmra.mxu0 %v3266
  %v3478 = vpop.f32.mrf.mxu0
  %v3479 = vadd.f32 0.0, %v3478
  %3480 = vmatmul.f32.gmra.mxu0 %v3269
  %v3481 = vpop.f32.mrf.mxu0
  %v3482 = vadd.f32 0.0, %v3481
  %3483 = vmatmul.f32.gmra.mxu0 %v3272
  %v3484 = vpop.f32.mrf.mxu0
  %v3485 = vadd.f32 0.0, %v3484
  %3486 = vmatmul.f32.gmra.mxu0 %v3275
  %v3487 = vpop.f32.mrf.mxu0
  %v3488 = vadd.f32 0.0, %v3487
  %3489 = vmatmul.f32.gmra.mxu0 %v3278
  %v3490 = vpop.f32.mrf.mxu0
  %v3491 = vadd.f32 0.0, %v3490
  %3492 = vmatmul.f32.gmra.mxu0 %v3281
  %v3493 = vpop.f32.mrf.mxu0
  %v3494 = vadd.f32 0.0, %v3493
  %3495 = vmatmul.f32.gmra.mxu0 %v3284
  %v3496 = vpop.f32.mrf.mxu0
  %v3497 = vadd.f32 0.0, %v3496
  %3498 = vmatmul.f32.gmra.mxu0 %v3287
  %v3499 = vpop.f32.mrf.mxu0
  %v3500 = vadd.f32 0.0, %v3499
  %3501 = vmatmul.f32.gmra.mxu0 %v3290
  %v3502 = vpop.f32.mrf.mxu0
  %v3503 = vadd.f32 0.0, %v3502
  %3504 = vmatmul.f32.gmra.mxu0 %v3293
  %v3505 = vpop.f32.mrf.mxu0
  %v3506 = vadd.f32 0.0, %v3505
  %3507 = vmatmul.f32.gmra.mxu0 %v3296
  %v3508 = vpop.f32.mrf.mxu0
  %v3509 = vadd.f32 0.0, %v3508
  %3510 = vmatmul.f32.gmra.mxu0 %v3299
  %v3511 = vpop.f32.mrf.mxu0
  %v3512 = vadd.f32 0.0, %v3511
  %3513 = vmatmul.f32.gmra.mxu0 %v3302
  %v3514 = vpop.f32.mrf.mxu0
  %v3515 = vadd.f32 0.0, %v3514
  %3516 = vmatmul.f32.gmra.mxu0 %v3305
  %v3517 = vpop.f32.mrf.mxu0
  %v3518 = vadd.f32 0.0, %v3517
  %3519 = vmatmul.f32.gmra.mxu0 %v3308
  %v3520 = vpop.f32.mrf.mxu0
  %v3521 = vadd.f32 0.0, %v3520
  %3522 = vmatmul.f32.gmra.mxu0 %v3311
  %v3523 = vpop.f32.mrf.mxu0
  %v3524 = vadd.f32 0.0, %v3523
  %3525 = vmatmul.f32.gmra.mxu0 %v3314
  %v3526 = vpop.f32.mrf.mxu0
  %v3527 = vadd.f32 0.0, %v3526
  %3528 = vmatmul.f32.gmra.mxu0 %v3317
  %v3529 = vpop.f32.mrf.mxu0
  %v3530 = vadd.f32 0.0, %v3529
  %3531 = vmatmul.f32.gmra.mxu0 %v3320
  %v3532 = vpop.f32.mrf.mxu0
  %v3533 = vadd.f32 0.0, %v3532
  %3534 = vmatmul.f32.gmra.mxu0 %v3323
  %v3535 = vpop.f32.mrf.mxu0
  %v3536 = vadd.f32 0.0, %v3535
  %3537 = vmatmul.f32.gmra.mxu0 %v3326
  %v3538 = vpop.f32.mrf.mxu0
  %v3539 = vadd.f32 0.0, %v3538
  %3540 = vmatmul.f32.gmra.mxu0 %v3329
  %v3541 = vpop.f32.mrf.mxu0
  %v3542 = vadd.f32 0.0, %v3541
  %3543 = vmatmul.f32.gmra.mxu0 %v3332
  %v3544 = vpop.f32.mrf.mxu0
  %v3545 = vadd.f32 0.0, %v3544
  %3546 = vmatmul.f32.gmra.mxu0 %v3335
  %v3547 = vpop.f32.mrf.mxu0
  %v3548 = vadd.f32 0.0, %v3547
  %3549 = vmatmul.f32.gmra.mxu0 %v3338
  %v3550 = vpop.f32.mrf.mxu0
  %v3551 = vadd.f32 0.0, %v3550
  %3552 = vmatmul.f32.gmra.mxu0 %v3341
  %v3553 = vpop.f32.mrf.mxu0
  %v3554 = vadd.f32 0.0, %v3553
  %3555 = vmatmul.f32.gmra.mxu0 %v3344
  %v3556 = vpop.f32.mrf.mxu0
  %v3557 = vadd.f32 0.0, %v3556
  %3558 = vmatmul.f32.gmra.mxu0 %v3347
  %v3559 = vpop.f32.mrf.mxu0
  %v3560 = vadd.f32 0.0, %v3559
  %3561 = vmatmul.f32.gmra.mxu0 %v3350
  %v3562 = vpop.f32.mrf.mxu0
  %v3563 = vadd.f32 0.0, %v3562
  %3564 = vmatmul.f32.gmra.mxu0 %v3353
  %v3565 = vpop.f32.mrf.mxu0
  %v3566 = vadd.f32 0.0, %v3565
  %3567 = vmatmul.f32.gmra.mxu0 %v3356
  %v3568 = vpop.f32.mrf.mxu0
  %v3569 = vadd.f32 0.0, %v3568
  %3570 = vmatmul.f32.gmra.mxu0 %v3359
  %v3571 = vpop.f32.mrf.mxu0
  %v3572 = vadd.f32 0.0, %v3571
  %3573 = vmatmul.f32.gmra.mxu0 %v3362
  %v3574 = vpop.f32.mrf.mxu0
  %v3575 = vadd.f32 0.0, %v3574
  %3576 = vmatmul.f32.gmra.mxu0 %v3365
  %v3577 = vpop.f32.mrf.mxu0
  %v3578 = vadd.f32 0.0, %v3577
  %3579 = vmatmul.f32.gmra.mxu0 %v3368
  %v3580 = vpop.f32.mrf.mxu0
  %v3581 = vadd.f32 0.0, %v3580
  %3582 = vdwg.mxu0
  %v3583 = vsel %vm2717, %v3392, 0.0
  %v3584 = vsel %vm2717, %v3395, 0.0
  %v3585 = vadd.f32 %v3583, %v3584
  %v3586 = vsel %vm2717, %v3398, 0.0
  %v3587 = vadd.f32 %v3585, %v3586
  %v3588 = vsel %vm2717, %v3401, 0.0
  %v3589 = vadd.f32 %v3587, %v3588
  %v3590 = vsel %vm2717, %v3404, 0.0
  %v3591 = vadd.f32 %v3589, %v3590
  %v3592 = vsel %vm2717, %v3407, 0.0
  %v3593 = vadd.f32 %v3591, %v3592
  %v3594 = vsel %vm2717, %v3410, 0.0
  %v3595 = vadd.f32 %v3593, %v3594
  %v3596 = vsel %vm2717, %v3413, 0.0
  %v3597 = vadd.f32 %v3595, %v3596
  %v3598 = vsel %vm2717, %v3416, 0.0
  %v3599 = vadd.f32 %v3597, %v3598
  %v3600 = vsel %vm2717, %v3419, 0.0
  %v3601 = vadd.f32 %v3599, %v3600
  %v3602 = vsel %vm2717, %v3422, 0.0
  %v3603 = vadd.f32 %v3601, %v3602
  %v3604 = vsel %vm2717, %v3425, 0.0
  %v3605 = vadd.f32 %v3603, %v3604
  %v3606 = vsel %vm2717, %v3428, 0.0
  %v3607 = vadd.f32 %v3605, %v3606
  %v3608 = vsel %vm2717, %v3431, 0.0
  %v3609 = vadd.f32 %v3607, %v3608
  %v3610 = vsel %vm2717, %v3434, 0.0
  %v3611 = vadd.f32 %v3609, %v3610
  %v3612 = vsel %vm2717, %v3437, 0.0
  %v3613 = vadd.f32 %v3611, %v3612
  %v3614 = vsel %vm2717, %v3440, 0.0
  %v3615 = vadd.f32 %v3613, %v3614
  %v3616 = vsel %vm2717, %v3443, 0.0
  %v3617 = vadd.f32 %v3615, %v3616
  %v3618 = vsel %vm2717, %v3446, 0.0
  %v3619 = vadd.f32 %v3617, %v3618
  %v3620 = vsel %vm2717, %v3449, 0.0
  %v3621 = vadd.f32 %v3619, %v3620
  %v3622 = vsel %vm2717, %v3452, 0.0
  %v3623 = vadd.f32 %v3621, %v3622
  %v3624 = vsel %vm2717, %v3455, 0.0
  %v3625 = vadd.f32 %v3623, %v3624
  %v3626 = vsel %vm2717, %v3458, 0.0
  %v3627 = vadd.f32 %v3625, %v3626
  %v3628 = vsel %vm2717, %v3461, 0.0
  %v3629 = vadd.f32 %v3627, %v3628
  %v3630 = vsel %vm2717, %v3464, 0.0
  %v3631 = vadd.f32 %v3629, %v3630
  %v3632 = vsel %vm2717, %v3467, 0.0
  %v3633 = vadd.f32 %v3631, %v3632
  %v3634 = vsel %vm2717, %v3470, 0.0
  %v3635 = vadd.f32 %v3633, %v3634
  %v3636 = vsel %vm2717, %v3473, 0.0
  %v3637 = vadd.f32 %v3635, %v3636
  %v3638 = vsel %vm2717, %v3476, 0.0
  %v3639 = vadd.f32 %v3637, %v3638
  %v3640 = vsel %vm2717, %v3479, 0.0
  %v3641 = vadd.f32 %v3639, %v3640
  %v3642 = vsel %vm2717, %v3482, 0.0
  %v3643 = vadd.f32 %v3641, %v3642
  %v3644 = vsel %vm2717, %v3485, 0.0
  %v3645 = vadd.f32 %v3643, %v3644
  %v3646 = vsel %vm2717, %v3488, 0.0
  %v3647 = vadd.f32 %v3645, %v3646
  %v3648 = vsel %vm2717, %v3491, 0.0
  %v3649 = vadd.f32 %v3647, %v3648
  %v3650 = vsel %vm2717, %v3494, 0.0
  %v3651 = vadd.f32 %v3649, %v3650
  %v3652 = vsel %vm2717, %v3497, 0.0
  %v3653 = vadd.f32 %v3651, %v3652
  %v3654 = vsel %vm2717, %v3500, 0.0
  %v3655 = vadd.f32 %v3653, %v3654
  %v3656 = vsel %vm2717, %v3503, 0.0
  %v3657 = vadd.f32 %v3655, %v3656
  %v3658 = vsel %vm2717, %v3506, 0.0
  %v3659 = vadd.f32 %v3657, %v3658
  %v3660 = vsel %vm2717, %v3509, 0.0
  %v3661 = vadd.f32 %v3659, %v3660
  %v3662 = vsel %vm2717, %v3512, 0.0
  %v3663 = vadd.f32 %v3661, %v3662
  %v3664 = vsel %vm2717, %v3515, 0.0
  %v3665 = vadd.f32 %v3663, %v3664
  %v3666 = vsel %vm2717, %v3518, 0.0
  %v3667 = vadd.f32 %v3665, %v3666
  %v3668 = vsel %vm2717, %v3521, 0.0
  %v3669 = vadd.f32 %v3667, %v3668
  %v3670 = vsel %vm2717, %v3524, 0.0
  %v3671 = vadd.f32 %v3669, %v3670
  %v3672 = vsel %vm2717, %v3527, 0.0
  %v3673 = vadd.f32 %v3671, %v3672
  %v3674 = vsel %vm2717, %v3530, 0.0
  %v3675 = vadd.f32 %v3673, %v3674
  %v3676 = vsel %vm2717, %v3533, 0.0
  %v3677 = vadd.f32 %v3675, %v3676
  %v3678 = vsel %vm2717, %v3536, 0.0
  %v3679 = vadd.f32 %v3677, %v3678
  %v3680 = vsel %vm2717, %v3539, 0.0
  %v3681 = vadd.f32 %v3679, %v3680
  %v3682 = vsel %vm2717, %v3542, 0.0
  %v3683 = vadd.f32 %v3681, %v3682
  %v3684 = vsel %vm2717, %v3545, 0.0
  %v3685 = vadd.f32 %v3683, %v3684
  %v3686 = vsel %vm2717, %v3548, 0.0
  %v3687 = vadd.f32 %v3685, %v3686
  %v3688 = vsel %vm2717, %v3551, 0.0
  %v3689 = vadd.f32 %v3687, %v3688
  %v3690 = vsel %vm2717, %v3554, 0.0
  %v3691 = vadd.f32 %v3689, %v3690
  %v3692 = vsel %vm2717, %v3557, 0.0
  %v3693 = vadd.f32 %v3691, %v3692
  %v3694 = vsel %vm2717, %v3560, 0.0
  %v3695 = vadd.f32 %v3693, %v3694
  %v3696 = vsel %vm2717, %v3563, 0.0
  %v3697 = vadd.f32 %v3695, %v3696
  %v3698 = vsel %vm2717, %v3566, 0.0
  %v3699 = vadd.f32 %v3697, %v3698
  %v3700 = vsel %vm2717, %v3569, 0.0
  %v3701 = vadd.f32 %v3699, %v3700
  %v3702 = vsel %vm2717, %v3572, 0.0
  %v3703 = vadd.f32 %v3701, %v3702
  %v3704 = vsel %vm2717, %v3575, 0.0
  %v3705 = vadd.f32 %v3703, %v3704
  %v3706 = vsel %vm2717, %v3578, 0.0
  %v3707 = vadd.f32 %v3705, %v3706
  %v3708 = vsel %vm2717, %v3581, 0.0
  %v3709 = vadd.f32 %v3707, %v3708
  %v3710 = vrot.slane %v3709, 4
  %v3711 = vadd.f32 %v3709, %v3710
  %v3712 = vrot.slane %v3711, 2
  %v3713 = vadd.f32 %v3711, %v3712
  %v3714 = vrot.slane %v3713, 1
  %v3715 = vadd.f32 %v3713, %v3714
  %v3716 = vrcp.pop 512.0
  %v3717 = vmul.f32 512.0, %v3716
  %v3718 = vsub.f32 1.0, %v3717
  %v3719 = vmul.f32 %v3716, %v3718
  %v3720 = vadd.f32 %v3716, %v3719
  %vm3721 = vweird.f32 %v3716
  %v3722 = vsel %vm3721, %v3716, %v3720
  %v3723 = vmul.f32 %v3715, %v3722
  %v3724 = vsub.f32 %v3392, %v3723
  %v3725 = vsub.f32 %v3395, %v3723
  %v3726 = vsub.f32 %v3398, %v3723
  %v3727 = vsub.f32 %v3401, %v3723
  %v3728 = vsub.f32 %v3404, %v3723
  %v3729 = vsub.f32 %v3407, %v3723
  %v3730 = vsub.f32 %v3410, %v3723
  %v3731 = vsub.f32 %v3413, %v3723
  %v3732 = vsub.f32 %v3416, %v3723
  %v3733 = vsub.f32 %v3419, %v3723
  %v3734 = vsub.f32 %v3422, %v3723
  %v3735 = vsub.f32 %v3425, %v3723
  %v3736 = vsub.f32 %v3428, %v3723
  %v3737 = vsub.f32 %v3431, %v3723
  %v3738 = vsub.f32 %v3434, %v3723
  %v3739 = vsub.f32 %v3437, %v3723
  %v3740 = vsub.f32 %v3440, %v3723
  %v3741 = vsub.f32 %v3443, %v3723
  %v3742 = vsub.f32 %v3446, %v3723
  %v3743 = vsub.f32 %v3449, %v3723
  %v3744 = vsub.f32 %v3452, %v3723
  %v3745 = vsub.f32 %v3455, %v3723
  %v3746 = vsub.f32 %v3458, %v3723
  %v3747 = vsub.f32 %v3461, %v3723
  %v3748 = vsub.f32 %v3464, %v3723
  %v3749 = vsub.f32 %v3467, %v3723
  %v3750 = vsub.f32 %v3470, %v3723
  %v3751 = vsub.f32 %v3473, %v3723
  %v3752 = vsub.f32 %v3476, %v3723
  %v3753 = vsub.f32 %v3479, %v3723
  %v3754 = vsub.f32 %v3482, %v3723
  %v3755 = vsub.f32 %v3485, %v3723
  %v3756 = vsub.f32 %v3488, %v3723
  %v3757 = vsub.f32 %v3491, %v3723
  %v3758 = vsub.f32 %v3494, %v3723
  %v3759 = vsub.f32 %v3497, %v3723
  %v3760 = vsub.f32 %v3500, %v3723
  %v3761 = vsub.f32 %v3503, %v3723
  %v3762 = vsub.f32 %v3506, %v3723
  %v3763 = vsub.f32 %v3509, %v3723
  %v3764 = vsub.f32 %v3512, %v3723
  %v3765 = vsub.f32 %v3515, %v3723
  %v3766 = vsub.f32 %v3518, %v3723
  %v3767 = vsub.f32 %v3521, %v3723
  %v3768 = vsub.f32 %v3524, %v3723
  %v3769 = vsub.f32 %v3527, %v3723
  %v3770 = vsub.f32 %v3530, %v3723
  %v3771 = vsub.f32 %v3533, %v3723
  %v3772 = vsub.f32 %v3536, %v3723
  %v3773 = vsub.f32 %v3539, %v3723
  %v3774 = vsub.f32 %v3542, %v3723
  %v3775 = vsub.f32 %v3545, %v3723
  %v3776 = vsub.f32 %v3548, %v3723
  %v3777 = vsub.f32 %v3551, %v3723
  %v3778 = vsub.f32 %v3554, %v3723
  %v3779 = vsub.f32 %v3557, %v3723
  %v3780 = vsub.f32 %v3560, %v3723
  %v3781 = vsub.f32 %v3563, %v3723
  %v3782 = vsub.f32 %v3566, %v3723
  %v3783 = vsub.f32 %v3569, %v3723
  %v3784 = vsub.f32 %v3572, %v3723
  %v3785 = vsub.f32 %v3575, %v3723
  %v3786 = vsub.f32 %v3578, %v3723
  %v3787 = vsub.f32 %v3581, %v3723
  %v3788 = vmul.f32 %v3724, %v3724
  %v3789 = vmul.f32 %v3725, %v3725
  %v3790 = vmul.f32 %v3726, %v3726
  %v3791 = vmul.f32 %v3727, %v3727
  %v3792 = vmul.f32 %v3728, %v3728
  %v3793 = vmul.f32 %v3729, %v3729
  %v3794 = vmul.f32 %v3730, %v3730
  %v3795 = vmul.f32 %v3731, %v3731
  %v3796 = vmul.f32 %v3732, %v3732
  %v3797 = vmul.f32 %v3733, %v3733
  %v3798 = vmul.f32 %v3734, %v3734
  %v3799 = vmul.f32 %v3735, %v3735
  %v3800 = vmul.f32 %v3736, %v3736
  %v3801 = vmul.f32 %v3737, %v3737
  %v3802 = vmul.f32 %v3738, %v3738
  %v3803 = vmul.f32 %v3739, %v3739
  %v3804 = vmul.f32 %v3740, %v3740
  %v3805 = vmul.f32 %v3741, %v3741
  %v3806 = vmul.f32 %v3742, %v3742
  %v3807 = vmul.f32 %v3743, %v3743
  %v3808 = vmul.f32 %v3744, %v3744
  %v3809 = vmul.f32 %v3745, %v3745
  %v3810 = vmul.f32 %v3746, %v3746
  %v3811 = vmul.f32 %v3747, %v3747
  %v3812 = vmul.f32 %v3748, %v3748
  %v3813 = vmul.f32 %v3749, %v3749
  %v3814 = vmul.f32 %v3750, %v3750
  %v3815 = vmul.f32 %v3751, %v3751
  %v3816 = vmul.f32 %v3752, %v3752
  %v3817 = vmul.f32 %v3753, %v3753
  %v3818 = vmul.f32 %v3754, %v3754
  %v3819 = vmul.f32 %v3755, %v3755
  %v3820 = vmul.f32 %v3756, %v3756
  %v3821 = vmul.f32 %v3757, %v3757
  %v3822 = vmul.f32 %v3758, %v3758
  %v3823 = vmul.f32 %v3759, %v3759
  %v3824 = vmul.f32 %v3760, %v3760
  %v3825 = vmul.f32 %v3761, %v3761
  %v3826 = vmul.f32 %v3762, %v3762
  %v3827 = vmul.f32 %v3763, %v3763
  %v3828 = vmul.f32 %v3764, %v3764
  %v3829 = vmul.f32 %v3765, %v3765
  %v3830 = vmul.f32 %v3766, %v3766
  %v3831 = vmul.f32 %v3767, %v3767
  %v3832 = vmul.f32 %v3768, %v3768
  %v3833 = vmul.f32 %v3769, %v3769
  %v3834 = vmul.f32 %v3770, %v3770
  %v3835 = vmul.f32 %v3771, %v3771
  %v3836 = vmul.f32 %v3772, %v3772
  %v3837 = vmul.f32 %v3773, %v3773
  %v3838 = vmul.f32 %v3774, %v3774
  %v3839 = vmul.f32 %v3775, %v3775
  %v3840 = vmul.f32 %v3776, %v3776
  %v3841 = vmul.f32 %v3777, %v3777
  %v3842 = vmul.f32 %v3778, %v3778
  %v3843 = vmul.f32 %v3779, %v3779
  %v3844 = vmul.f32 %v3780, %v3780
  %v3845 = vmul.f32 %v3781, %v3781
  %v3846 = vmul.f32 %v3782, %v3782
  %v3847 = vmul.f32 %v3783, %v3783
  %v3848 = vmul.f32 %v3784, %v3784
  %v3849 = vmul.f32 %v3785, %v3785
  %v3850 = vmul.f32 %v3786, %v3786
  %v3851 = vmul.f32 %v3787, %v3787
  %v3852 = vsel %vm2717, %v3788, 0.0
  %v3853 = vsel %vm2717, %v3789, 0.0
  %v3854 = vadd.f32 %v3852, %v3853
  %v3855 = vsel %vm2717, %v3790, 0.0
  %v3856 = vadd.f32 %v3854, %v3855
  %v3857 = vsel %vm2717, %v3791, 0.0
  %v3858 = vadd.f32 %v3856, %v3857
  %v3859 = vsel %vm2717, %v3792, 0.0
  %v3860 = vadd.f32 %v3858, %v3859
  %v3861 = vsel %vm2717, %v3793, 0.0
  %v3862 = vadd.f32 %v3860, %v3861
  %v3863 = vsel %vm2717, %v3794, 0.0
  %v3864 = vadd.f32 %v3862, %v3863
  %v3865 = vsel %vm2717, %v3795, 0.0
  %v3866 = vadd.f32 %v3864, %v3865
  %v3867 = vsel %vm2717, %v3796, 0.0
  %v3868 = vadd.f32 %v3866, %v3867
  %v3869 = vsel %vm2717, %v3797, 0.0
  %v3870 = vadd.f32 %v3868, %v3869
  %v3871 = vsel %vm2717, %v3798, 0.0
  %v3872 = vadd.f32 %v3870, %v3871
  %v3873 = vsel %vm2717, %v3799, 0.0
  %v3874 = vadd.f32 %v3872, %v3873
  %v3875 = vsel %vm2717, %v3800, 0.0
  %v3876 = vadd.f32 %v3874, %v3875
  %v3877 = vsel %vm2717, %v3801, 0.0
  %v3878 = vadd.f32 %v3876, %v3877
  %v3879 = vsel %vm2717, %v3802, 0.0
  %v3880 = vadd.f32 %v3878, %v3879
  %v3881 = vsel %vm2717, %v3803, 0.0
  %v3882 = vadd.f32 %v3880, %v3881
  %v3883 = vsel %vm2717, %v3804, 0.0
  %v3884 = vadd.f32 %v3882, %v3883
  %v3885 = vsel %vm2717, %v3805, 0.0
  %v3886 = vadd.f32 %v3884, %v3885
  %v3887 = vsel %vm2717, %v3806, 0.0
  %v3888 = vadd.f32 %v3886, %v3887
  %v3889 = vsel %vm2717, %v3807, 0.0
  %v3890 = vadd.f32 %v3888, %v3889
  %v3891 = vsel %vm2717, %v3808, 0.0
  %v3892 = vadd.f32 %v3890, %v3891
  %v3893 = vsel %vm2717, %v3809, 0.0
  %v3894 = vadd.f32 %v3892, %v3893
  %v3895 = vsel %vm2717, %v3810, 0.0
  %v3896 = vadd.f32 %v3894, %v3895
  %v3897 = vsel %vm2717, %v3811, 0.0
  %v3898 = vadd.f32 %v3896, %v3897
  %v3899 = vsel %vm2717, %v3812, 0.0
  %v3900 = vadd.f32 %v3898, %v3899
  %v3901 = vsel %vm2717, %v3813, 0.0
  %v3902 = vadd.f32 %v3900, %v3901
  %v3903 = vsel %vm2717, %v3814, 0.0
  %v3904 = vadd.f32 %v3902, %v3903
  %v3905 = vsel %vm2717, %v3815, 0.0
  %v3906 = vadd.f32 %v3904, %v3905
  %v3907 = vsel %vm2717, %v3816, 0.0
  %v3908 = vadd.f32 %v3906, %v3907
  %v3909 = vsel %vm2717, %v3817, 0.0
  %v3910 = vadd.f32 %v3908, %v3909
  %v3911 = vsel %vm2717, %v3818, 0.0
  %v3912 = vadd.f32 %v3910, %v3911
  %v3913 = vsel %vm2717, %v3819, 0.0
  %v3914 = vadd.f32 %v3912, %v3913
  %v3915 = vsel %vm2717, %v3820, 0.0
  %v3916 = vadd.f32 %v3914, %v3915
  %v3917 = vsel %vm2717, %v3821, 0.0
  %v3918 = vadd.f32 %v3916, %v3917
  %v3919 = vsel %vm2717, %v3822, 0.0
  %v3920 = vadd.f32 %v3918, %v3919
  %v3921 = vsel %vm2717, %v3823, 0.0
  %v3922 = vadd.f32 %v3920, %v3921
  %v3923 = vsel %vm2717, %v3824, 0.0
  %v3924 = vadd.f32 %v3922, %v3923
  %v3925 = vsel %vm2717, %v3825, 0.0
  %v3926 = vadd.f32 %v3924, %v3925
  %v3927 = vsel %vm2717, %v3826, 0.0
  %v3928 = vadd.f32 %v3926, %v3927
  %v3929 = vsel %vm2717, %v3827, 0.0
  %v3930 = vadd.f32 %v3928, %v3929
  %v3931 = vsel %vm2717, %v3828, 0.0
  %v3932 = vadd.f32 %v3930, %v3931
  %v3933 = vsel %vm2717, %v3829, 0.0
  %v3934 = vadd.f32 %v3932, %v3933
  %v3935 = vsel %vm2717, %v3830, 0.0
  %v3936 = vadd.f32 %v3934, %v3935
  %v3937 = vsel %vm2717, %v3831, 0.0
  %v3938 = vadd.f32 %v3936, %v3937
  %v3939 = vsel %vm2717, %v3832, 0.0
  %v3940 = vadd.f32 %v3938, %v3939
  %v3941 = vsel %vm2717, %v3833, 0.0
  %v3942 = vadd.f32 %v3940, %v3941
  %v3943 = vsel %vm2717, %v3834, 0.0
  %v3944 = vadd.f32 %v3942, %v3943
  %v3945 = vsel %vm2717, %v3835, 0.0
  %v3946 = vadd.f32 %v3944, %v3945
  %v3947 = vsel %vm2717, %v3836, 0.0
  %v3948 = vadd.f32 %v3946, %v3947
  %v3949 = vsel %vm2717, %v3837, 0.0
  %v3950 = vadd.f32 %v3948, %v3949
  %v3951 = vsel %vm2717, %v3838, 0.0
  %v3952 = vadd.f32 %v3950, %v3951
  %v3953 = vsel %vm2717, %v3839, 0.0
  %v3954 = vadd.f32 %v3952, %v3953
  %v3955 = vsel %vm2717, %v3840, 0.0
  %v3956 = vadd.f32 %v3954, %v3955
  %v3957 = vsel %vm2717, %v3841, 0.0
  %v3958 = vadd.f32 %v3956, %v3957
  %v3959 = vsel %vm2717, %v3842, 0.0
  %v3960 = vadd.f32 %v3958, %v3959
  %v3961 = vsel %vm2717, %v3843, 0.0
  %v3962 = vadd.f32 %v3960, %v3961
  %v3963 = vsel %vm2717, %v3844, 0.0
  %v3964 = vadd.f32 %v3962, %v3963
  %v3965 = vsel %vm2717, %v3845, 0.0
  %v3966 = vadd.f32 %v3964, %v3965
  %v3967 = vsel %vm2717, %v3846, 0.0
  %v3968 = vadd.f32 %v3966, %v3967
  %v3969 = vsel %vm2717, %v3847, 0.0
  %v3970 = vadd.f32 %v3968, %v3969
  %v3971 = vsel %vm2717, %v3848, 0.0
  %v3972 = vadd.f32 %v3970, %v3971
  %v3973 = vsel %vm2717, %v3849, 0.0
  %v3974 = vadd.f32 %v3972, %v3973
  %v3975 = vsel %vm2717, %v3850, 0.0
  %v3976 = vadd.f32 %v3974, %v3975
  %v3977 = vsel %vm2717, %v3851, 0.0
  %v3978 = vadd.f32 %v3976, %v3977
  %v3979 = vrot.slane %v3978, 4
  %v3980 = vadd.f32 %v3978, %v3979
  %v3981 = vrot.slane %v3980, 2
  %v3982 = vadd.f32 %v3980, %v3981
  %v3983 = vrot.slane %v3982, 1
  %v3984 = vadd.f32 %v3982, %v3983
  %v3985 = vmul.f32 %v3984, %v3722
  %v3986 = vadd.f32 %v3985, 1e-05
  %v3987 = vrsqrt.pop %v3986
  %v3988 = vmul.f32 %v3987, %v3986
  %v3989 = vmul.f32 %v3988, %v3987
  %v3990 = vmul.f32 0.5, %v3989
  %v3991 = vsub.f32 1.5, %v3990
  %v3992 = vmul.f32 %v3987, %v3991
  %vm3993 = vweird.f32 %v3986
  %vm3994 = vweird.f32 %v3987
  %vm3995 = vmor %vm3993, %vm3994
  %v3996 = vsel %vm3995, %v3987, %v3992
  %v3997 = vld [vmem:[%s2] sm:$0x1]
  %v3998 = vmul.f32 %v3996, %v3997
  %v3999 = vperm.slane %v3998, 0
  %v4000 = vmul.f32 %v3724, %v3999
  %v4001 = vmul.f32 %v3725, %v3999
  %v4002 = vmul.f32 %v3726, %v3999
  %v4003 = vmul.f32 %v3727, %v3999
  %v4004 = vmul.f32 %v3728, %v3999
  %v4005 = vmul.f32 %v3729, %v3999
  %v4006 = vmul.f32 %v3730, %v3999
  %v4007 = vmul.f32 %v3731, %v3999
  %v4008 = vmul.f32 %v3732, %v3999
  %v4009 = vmul.f32 %v3733, %v3999
  %v4010 = vmul.f32 %v3734, %v3999
  %v4011 = vmul.f32 %v3735, %v3999
  %v4012 = vmul.f32 %v3736, %v3999
  %v4013 = vmul.f32 %v3737, %v3999
  %v4014 = vmul.f32 %v3738, %v3999
  %v4015 = vmul.f32 %v3739, %v3999
  %v4016 = vmul.f32 %v3740, %v3999
  %v4017 = vmul.f32 %v3741, %v3999
  %v4018 = vmul.f32 %v3742, %v3999
  %v4019 = vmul.f32 %v3743, %v3999
  %v4020 = vmul.f32 %v3744, %v3999
  %v4021 = vmul.f32 %v3745, %v3999
  %v4022 = vmul.f32 %v3746, %v3999
  %v4023 = vmul.f32 %v3747, %v3999
  %v4024 = vmul.f32 %v3748, %v3999
  %v4025 = vmul.f32 %v3749, %v3999
  %v4026 = vmul.f32 %v3750, %v3999
  %v4027 = vmul.f32 %v3751, %v3999
  %v4028 = vmul.f32 %v3752, %v3999
  %v4029 = vmul.f32 %v3753, %v3999
  %v4030 = vmul.f32 %v3754, %v3999
  %v4031 = vmul.f32 %v3755, %v3999
  %v4032 = vmul.f32 %v3756, %v3999
  %v4033 = vmul.f32 %v3757, %v3999
  %v4034 = vmul.f32 %v3758, %v3999
  %v4035 = vmul.f32 %v3759, %v3999
  %v4036 = vmul.f32 %v3760, %v3999
  %v4037 = vmul.f32 %v3761, %v3999
  %v4038 = vmul.f32 %v3762, %v3999
  %v4039 = vmul.f32 %v3763, %v3999
  %v4040 = vmul.f32 %v3764, %v3999
  %v4041 = vmul.f32 %v3765, %v3999
  %v4042 = vmul.f32 %v3766, %v3999
  %v4043 = vmul.f32 %v3767, %v3999
  %v4044 = vmul.f32 %v3768, %v3999
  %v4045 = vmul.f32 %v3769, %v3999
  %v4046 = vmul.f32 %v3770, %v3999
  %v4047 = vmul.f32 %v3771, %v3999
  %v4048 = vmul.f32 %v3772, %v3999
  %v4049 = vmul.f32 %v3773, %v3999
  %v4050 = vmul.f32 %v3774, %v3999
  %v4051 = vmul.f32 %v3775, %v3999
  %v4052 = vmul.f32 %v3776, %v3999
  %v4053 = vmul.f32 %v3777, %v3999
  %v4054 = vmul.f32 %v3778, %v3999
  %v4055 = vmul.f32 %v3779, %v3999
  %v4056 = vmul.f32 %v3780, %v3999
  %v4057 = vmul.f32 %v3781, %v3999
  %v4058 = vmul.f32 %v3782, %v3999
  %v4059 = vmul.f32 %v3783, %v3999
  %v4060 = vmul.f32 %v3784, %v3999
  %v4061 = vmul.f32 %v3785, %v3999
  %v4062 = vmul.f32 %v3786, %v3999
  %v4063 = vmul.f32 %v3787, %v3999
  %v4064 = vld [vmem:[%s3] sm:$0x1]
  %v4066 = vperm.slane %v4064, 0
  %v4068 = vadd.f32 %v4000, %v4066
  %v4069 = vadd.f32 %v4001, %v4066
  %v4070 = vadd.f32 %v4002, %v4066
  %v4071 = vadd.f32 %v4003, %v4066
  %v4072 = vadd.f32 %v4004, %v4066
  %v4073 = vadd.f32 %v4005, %v4066
  %v4074 = vadd.f32 %v4006, %v4066
  %v4075 = vadd.f32 %v4007, %v4066
  %v4076 = vadd.f32 %v4008, %v4066
  %v4077 = vadd.f32 %v4009, %v4066
  %v4078 = vadd.f32 %v4010, %v4066
  %v4079 = vadd.f32 %v4011, %v4066
  %v4080 = vadd.f32 %v4012, %v4066
  %v4081 = vadd.f32 %v4013, %v4066
  %v4082 = vadd.f32 %v4014, %v4066
  %v4083 = vadd.f32 %v4015, %v4066
  %v4084 = vadd.f32 %v4016, %v4066
  %v4085 = vadd.f32 %v4017, %v4066
  %v4086 = vadd.f32 %v4018, %v4066
  %v4087 = vadd.f32 %v4019, %v4066
  %v4088 = vadd.f32 %v4020, %v4066
  %v4089 = vadd.f32 %v4021, %v4066
  %v4090 = vadd.f32 %v4022, %v4066
  %v4091 = vadd.f32 %v4023, %v4066
  %v4092 = vadd.f32 %v4024, %v4066
  %v4093 = vadd.f32 %v4025, %v4066
  %v4094 = vadd.f32 %v4026, %v4066
  %v4095 = vadd.f32 %v4027, %v4066
  %v4096 = vadd.f32 %v4028, %v4066
  %v4097 = vadd.f32 %v4029, %v4066
  %v4098 = vadd.f32 %v4030, %v4066
  %v4099 = vadd.f32 %v4031, %v4066
  %v4100 = vadd.f32 %v4032, %v4066
  %v4101 = vadd.f32 %v4033, %v4066
  %v4102 = vadd.f32 %v4034, %v4066
  %v4103 = vadd.f32 %v4035, %v4066
  %v4104 = vadd.f32 %v4036, %v4066
  %v4105 = vadd.f32 %v4037, %v4066
  %v4106 = vadd.f32 %v4038, %v4066
  %v4107 = vadd.f32 %v4039, %v4066
  %v4108 = vadd.f32 %v4040, %v4066
  %v4109 = vadd.f32 %v4041, %v4066
  %v4110 = vadd.f32 %v4042, %v4066
  %v4111 = vadd.f32 %v4043, %v4066
  %v4112 = vadd.f32 %v4044, %v4066
  %v4113 = vadd.f32 %v4045, %v4066
  %v4114 = vadd.f32 %v4046, %v4066
  %v4115 = vadd.f32 %v4047, %v4066
  %v4116 = vadd.f32 %v4048, %v4066
  %v4117 = vadd.f32 %v4049, %v4066
  %v4118 = vadd.f32 %v4050, %v4066
  %v4119 = vadd.f32 %v4051, %v4066
  %v4120 = vadd.f32 %v4052, %v4066
  %v4121 = vadd.f32 %v4053, %v4066
  %v4122 = vadd.f32 %v4054, %v4066
  %v4123 = vadd.f32 %v4055, %v4066
  %v4124 = vadd.f32 %v4056, %v4066
  %v4125 = vadd.f32 %v4057, %v4066
  %v4126 = vadd.f32 %v4058, %v4066
  %v4127 = vadd.f32 %v4059, %v4066
  %v4128 = vadd.f32 %v4060, %v4066
  %v4129 = vadd.f32 %v4061, %v4066
  %v4130 = vadd.f32 %v4062, %v4066
  %v4131 = vadd.f32 %v4063, %v4066
  %v4132 = vmax.f32 %v4068, 0.0
  %v4133 = vmax.f32 %v4069, 0.0
  %v4134 = vmax.f32 %v4070, 0.0
  %v4135 = vmax.f32 %v4071, 0.0
  %v4136 = vmax.f32 %v4072, 0.0
  %v4137 = vmax.f32 %v4073, 0.0
  %v4138 = vmax.f32 %v4074, 0.0
  %v4139 = vmax.f32 %v4075, 0.0
  %v4140 = vmax.f32 %v4076, 0.0
  %v4141 = vmax.f32 %v4077, 0.0
  %v4142 = vmax.f32 %v4078, 0.0
  %v4143 = vmax.f32 %v4079, 0.0
  %v4144 = vmax.f32 %v4080, 0.0
  %v4145 = vmax.f32 %v4081, 0.0
  %v4146 = vmax.f32 %v4082, 0.0
  %v4147 = vmax.f32 %v4083, 0.0
  %v4148 = vmax.f32 %v4084, 0.0
  %v4149 = vmax.f32 %v4085, 0.0
  %v4150 = vmax.f32 %v4086, 0.0
  %v4151 = vmax.f32 %v4087, 0.0
  %v4152 = vmax.f32 %v4088, 0.0
  %v4153 = vmax.f32 %v4089, 0.0
  %v4154 = vmax.f32 %v4090, 0.0
  %v4155 = vmax.f32 %v4091, 0.0
  %v4156 = vmax.f32 %v4092, 0.0
  %v4157 = vmax.f32 %v4093, 0.0
  %v4158 = vmax.f32 %v4094, 0.0
  %v4159 = vmax.f32 %v4095, 0.0
  %v4160 = vmax.f32 %v4096, 0.0
  %v4161 = vmax.f32 %v4097, 0.0
  %v4162 = vmax.f32 %v4098, 0.0
  %v4163 = vmax.f32 %v4099, 0.0
  %v4164 = vmax.f32 %v4100, 0.0
  %v4165 = vmax.f32 %v4101, 0.0
  %v4166 = vmax.f32 %v4102, 0.0
  %v4167 = vmax.f32 %v4103, 0.0
  %v4168 = vmax.f32 %v4104, 0.0
  %v4169 = vmax.f32 %v4105, 0.0
  %v4170 = vmax.f32 %v4106, 0.0
  %v4171 = vmax.f32 %v4107, 0.0
  %v4172 = vmax.f32 %v4108, 0.0
  %v4173 = vmax.f32 %v4109, 0.0
  %v4174 = vmax.f32 %v4110, 0.0
  %v4175 = vmax.f32 %v4111, 0.0
  %v4176 = vmax.f32 %v4112, 0.0
  %v4177 = vmax.f32 %v4113, 0.0
  %v4178 = vmax.f32 %v4114, 0.0
  %v4179 = vmax.f32 %v4115, 0.0
  %v4180 = vmax.f32 %v4116, 0.0
  %v4181 = vmax.f32 %v4117, 0.0
  %v4182 = vmax.f32 %v4118, 0.0
  %v4183 = vmax.f32 %v4119, 0.0
  %v4184 = vmax.f32 %v4120, 0.0
  %v4185 = vmax.f32 %v4121, 0.0
  %v4186 = vmax.f32 %v4122, 0.0
  %v4187 = vmax.f32 %v4123, 0.0
  %v4188 = vmax.f32 %v4124, 0.0
  %v4189 = vmax.f32 %v4125, 0.0
  %v4190 = vmax.f32 %v4126, 0.0
  %v4191 = vmax.f32 %v4127, 0.0
  %v4192 = vmax.f32 %v4128, 0.0
  %v4193 = vmax.f32 %v4129, 0.0
  %v4194 = vmax.f32 %v4130, 0.0
  %v4195 = vmax.f32 %v4131, 0.0
  %4196 = vst.msk [vmem:[#allocation2] sm:$0xff] %vm2717, 0.0
  %4197 = vst.msk [vmem:[#allocation2 + $0x8] sm:$0xff] %vm2717, 0.0
  %vm4198 = vcmask 58368
  %4199 = vst.msk [vmem:[#allocation2 + $0x10] sm:$0x3] %vm4198, 0.0
  %4200 = vst.msk [vmem:[#allocation2 + $0x1b0] sm:$0xff] %vm2717, 0.0
  %4201 = vst.msk [vmem:[#allocation2 + $0x1b8] sm:$0xff] %vm2717, 0.0
  %4202 = vst.msk [vmem:[#allocation2 + $0x1c0] sm:$0x3] %vm4198, 0.0
  %s4203 = scalar_lea.vmem [#allocation2], 408
  %4204 = vst.msk [vmem:[%s4203] sm:$0xff] %vm2717, 0.0
  %4205 = vst.msk [vmem:[%s4203 + $0x8] sm:$0xff] %vm2717, 0.0
  %4206 = vst.msk [vmem:[%s4203 + $0x10] sm:$0x3] %vm4198, 0.0
  %4207 = vst.msk [vmem:[%s4203 + $0x1b0] sm:$0xff] %vm2717, 0.0
  %4208 = vst.msk [vmem:[%s4203 + $0x1b8] sm:$0xff] %vm2717, 0.0
  %4209 = vst.msk [vmem:[%s4203 + $0x1c0] sm:$0x3] %vm4198, 0.0
  %vm4210 = vcmask 57344
  %4211 = vst.msk [vmem:[#allocation2] sm:$0x1] %vm4210, 0.0
  %4212 = vst.msk [vmem:[#allocation2 + $0x18] sm:$0x1] %vm4210, 0.0
  %4213 = vst.msk [vmem:[#allocation2 + $0x30] sm:$0x1] %vm4210, 0.0
  %4214 = vst.msk [vmem:[#allocation2 + $0x48] sm:$0x1] %vm4210, 0.0
  %4215 = vst.msk [vmem:[#allocation2 + $0x60] sm:$0x1] %vm4210, 0.0
  %4216 = vst.msk [vmem:[#allocation2 + $0x78] sm:$0x1] %vm4210, 0.0
  %4217 = vst.msk [vmem:[#allocation2 + $0x90] sm:$0x1] %vm4210, 0.0
  %4218 = vst.msk [vmem:[#allocation2 + $0xa8] sm:$0x1] %vm4210, 0.0
  %4219 = vst.msk [vmem:[#allocation2 + $0xc0] sm:$0x1] %vm4210, 0.0
  %4220 = vst.msk [vmem:[#allocation2 + $0xd8] sm:$0x1] %vm4210, 0.0
  %4221 = vst.msk [vmem:[#allocation2 + $0xf0] sm:$0x1] %vm4210, 0.0
  %4222 = vst.msk [vmem:[#allocation2 + $0x108] sm:$0x1] %vm4210, 0.0
  %4223 = vst.msk [vmem:[#allocation2 + $0x120] sm:$0x1] %vm4210, 0.0
  %4224 = vst.msk [vmem:[#allocation2 + $0x138] sm:$0x1] %vm4210, 0.0
  %4225 = vst.msk [vmem:[#allocation2 + $0x150] sm:$0x1] %vm4210, 0.0
  %4226 = vst.msk [vmem:[#allocation2 + $0x168] sm:$0x1] %vm4210, 0.0
  %4227 = vst.msk [vmem:[#allocation2 + $0x180] sm:$0x1] %vm4210, 0.0
  %4228 = vst.msk [vmem:[#allocation2 + $0x198] sm:$0x1] %vm4210, 0.0
  %4229 = vst.msk [vmem:[#allocation2 + $0x1b0] sm:$0x1] %vm4210, 0.0
  %4230 = vst.msk [vmem:[#allocation2 + $0x1c8] sm:$0x1] %vm4210, 0.0
  %4231 = vst.msk [vmem:[#allocation2 + $0x1e0] sm:$0x1] %vm4210, 0.0
  %4232 = vst.msk [vmem:[#allocation2 + $0x1f8] sm:$0x1] %vm4210, 0.0
  %4233 = vst.msk [vmem:[#allocation2 + $0x210] sm:$0x1] %vm4210, 0.0
  %4234 = vst.msk [vmem:[#allocation2 + $0x228] sm:$0x1] %vm4210, 0.0
  %4235 = vst.msk [vmem:[#allocation2 + $0x240] sm:$0x1] %vm4210, 0.0
  %4236 = vst.msk [vmem:[#allocation2 + $0x258] sm:$0x1] %vm4210, 0.0
  %4237 = vst.msk [vmem:[#allocation2 + $0x270] sm:$0x1] %vm4210, 0.0
  %4238 = vst.msk [vmem:[#allocation2 + $0x288] sm:$0x1] %vm4210, 0.0
  %4239 = vst.msk [vmem:[#allocation2 + $0x2a0] sm:$0x1] %vm4210, 0.0
  %4240 = vst.msk [vmem:[#allocation2 + $0x2b8] sm:$0x1] %vm4210, 0.0
  %4241 = vst.msk [vmem:[#allocation2 + $0x2d0] sm:$0x1] %vm4210, 0.0
  %4242 = vst.msk [vmem:[#allocation2 + $0x2e8] sm:$0x1] %vm4210, 0.0
  %4243 = vst.msk [vmem:[#allocation2 + $0x300] sm:$0x1] %vm4210, 0.0
  %4244 = vst.msk [vmem:[#allocation2 + $0x318] sm:$0x1] %vm4210, 0.0
  %4245 = vst.msk [vmem:[#allocation2 + $0x330] sm:$0x1] %vm4210, 0.0
  %4246 = vst.msk [vmem:[#allocation2 + $0x348] sm:$0x1] %vm4210, 0.0
  %4247 = vst.msk [vmem:[#allocation2 + $0x11] sm:$0x1] %vm4210, 0.0
  %4248 = vst.msk [vmem:[#allocation2 + $0x29] sm:$0x1] %vm4210, 0.0
  %4249 = vst.msk [vmem:[#allocation2 + $0x41] sm:$0x1] %vm4210, 0.0
  %4250 = vst.msk [vmem:[#allocation2 + $0x59] sm:$0x1] %vm4210, 0.0
  %4251 = vst.msk [vmem:[#allocation2 + $0x71] sm:$0x1] %vm4210, 0.0
  %4252 = vst.msk [vmem:[#allocation2 + $0x89] sm:$0x1] %vm4210, 0.0
  %4253 = vst.msk [vmem:[#allocation2 + $0xa1] sm:$0x1] %vm4210, 0.0
  %4254 = vst.msk [vmem:[#allocation2 + $0xb9] sm:$0x1] %vm4210, 0.0
  %4255 = vst.msk [vmem:[#allocation2 + $0xd1] sm:$0x1] %vm4210, 0.0
  %4256 = vst.msk [vmem:[#allocation2 + $0xe9] sm:$0x1] %vm4210, 0.0
  %4257 = vst.msk [vmem:[#allocation2 + $0x101] sm:$0x1] %vm4210, 0.0
  %4258 = vst.msk [vmem:[#allocation2 + $0x119] sm:$0x1] %vm4210, 0.0
  %4259 = vst.msk [vmem:[#allocation2 + $0x131] sm:$0x1] %vm4210, 0.0
  %4260 = vst.msk [vmem:[#allocation2 + $0x149] sm:$0x1] %vm4210, 0.0
  %4261 = vst.msk [vmem:[#allocation2 + $0x161] sm:$0x1] %vm4210, 0.0
  %4262 = vst.msk [vmem:[#allocation2 + $0x179] sm:$0x1] %vm4210, 0.0
  %4263 = vst.msk [vmem:[#allocation2 + $0x191] sm:$0x1] %vm4210, 0.0
  %4264 = vst.msk [vmem:[#allocation2 + $0x1a9] sm:$0x1] %vm4210, 0.0
  %4265 = vst.msk [vmem:[#allocation2 + $0x1c1] sm:$0x1] %vm4210, 0.0
  %4266 = vst.msk [vmem:[#allocation2 + $0x1d9] sm:$0x1] %vm4210, 0.0
  %4267 = vst.msk [vmem:[#allocation2 + $0x1f1] sm:$0x1] %vm4210, 0.0
  %4268 = vst.msk [vmem:[#allocation2 + $0x209] sm:$0x1] %vm4210, 0.0
  %4269 = vst.msk [vmem:[#allocation2 + $0x221] sm:$0x1] %vm4210, 0.0
  %4270 = vst.msk [vmem:[#allocation2 + $0x239] sm:$0x1] %vm4210, 0.0
  %4271 = vst.msk [vmem:[#allocation2 + $0x251] sm:$0x1] %vm4210, 0.0
  %4272 = vst.msk [vmem:[#allocation2 + $0x269] sm:$0x1] %vm4210, 0.0
  %4273 = vst.msk [vmem:[#allocation2 + $0x281] sm:$0x1] %vm4210, 0.0
  %4274 = vst.msk [vmem:[#allocation2 + $0x299] sm:$0x1] %vm4210, 0.0
  %4275 = vst.msk [vmem:[#allocation2 + $0x2b1] sm:$0x1] %vm4210, 0.0
  %4276 = vst.msk [vmem:[#allocation2 + $0x2c9] sm:$0x1] %vm4210, 0.0
  %4277 = vst.msk [vmem:[#allocation2 + $0x2e1] sm:$0x1] %vm4210, 0.0
  %4278 = vst.msk [vmem:[#allocation2 + $0x2f9] sm:$0x1] %vm4210, 0.0
  %4279 = vst.msk [vmem:[#allocation2 + $0x311] sm:$0x1] %vm4210, 0.0
  %4280 = vst.msk [vmem:[#allocation2 + $0x329] sm:$0x1] %vm4210, 0.0
  %4281 = vst.msk [vmem:[#allocation2 + $0x341] sm:$0x1] %vm4210, 0.0
  %4282 = vst.msk [vmem:[#allocation2 + $0x359] sm:$0x1] %vm4210, 0.0
  %s4283 = scalar_lea.vmem [#allocation2], 24
  %4284 = vst.msk [vmem:[%s4283 + $0x1] sm:$0xff] %vm2717, %v4132
  %4285 = vst.msk [vmem:[%s4283 + $0x9] sm:$0xff] %vm2717, %v4133
  %4286 = vst.msk [vmem:[%s4283 + $0x19] sm:$0xff] %vm2717, %v4134
  %4287 = vst.msk [vmem:[%s4283 + $0x21] sm:$0xff] %vm2717, %v4135
  %4288 = vst.msk [vmem:[%s4283 + $0x31] sm:$0xff] %vm2717, %v4136
  %4289 = vst.msk [vmem:[%s4283 + $0x39] sm:$0xff] %vm2717, %v4137
  %4290 = vst.msk [vmem:[%s4283 + $0x49] sm:$0xff] %vm2717, %v4138
  %4291 = vst.msk [vmem:[%s4283 + $0x51] sm:$0xff] %vm2717, %v4139
  %4292 = vst.msk [vmem:[%s4283 + $0x61] sm:$0xff] %vm2717, %v4140
  %4293 = vst.msk [vmem:[%s4283 + $0x69] sm:$0xff] %vm2717, %v4141
  %4294 = vst.msk [vmem:[%s4283 + $0x79] sm:$0xff] %vm2717, %v4142
  %4295 = vst.msk [vmem:[%s4283 + $0x81] sm:$0xff] %vm2717, %v4143
  %4296 = vst.msk [vmem:[%s4283 + $0x91] sm:$0xff] %vm2717, %v4144
  %4297 = vst.msk [vmem:[%s4283 + $0x99] sm:$0xff] %vm2717, %v4145
  %4298 = vst.msk [vmem:[%s4283 + $0xa9] sm:$0xff] %vm2717, %v4146
  %4299 = vst.msk [vmem:[%s4283 + $0xb1] sm:$0xff] %vm2717, %v4147
  %4300 = vst.msk [vmem:[%s4283 + $0xc1] sm:$0xff] %vm2717, %v4148
  %4301 = vst.msk [vmem:[%s4283 + $0xc9] sm:$0xff] %vm2717, %v4149
  %4302 = vst.msk [vmem:[%s4283 + $0xd9] sm:$0xff] %vm2717, %v4150
  %4303 = vst.msk [vmem:[%s4283 + $0xe1] sm:$0xff] %vm2717, %v4151
  %4304 = vst.msk [vmem:[%s4283 + $0xf1] sm:$0xff] %vm2717, %v4152
  %4305 = vst.msk [vmem:[%s4283 + $0xf9] sm:$0xff] %vm2717, %v4153
  %4306 = vst.msk [vmem:[%s4283 + $0x109] sm:$0xff] %vm2717, %v4154
  %4307 = vst.msk [vmem:[%s4283 + $0x111] sm:$0xff] %vm2717, %v4155
  %4308 = vst.msk [vmem:[%s4283 + $0x121] sm:$0xff] %vm2717, %v4156
  %4309 = vst.msk [vmem:[%s4283 + $0x129] sm:$0xff] %vm2717, %v4157
  %4310 = vst.msk [vmem:[%s4283 + $0x139] sm:$0xff] %vm2717, %v4158
  %4311 = vst.msk [vmem:[%s4283 + $0x141] sm:$0xff] %vm2717, %v4159
  %4312 = vst.msk [vmem:[%s4283 + $0x151] sm:$0xff] %vm2717, %v4160
  %4313 = vst.msk [vmem:[%s4283 + $0x159] sm:$0xff] %vm2717, %v4161
  %4314 = vst.msk [vmem:[%s4283 + $0x169] sm:$0xff] %vm2717, %v4162
  %4315 = vst.msk [vmem:[%s4283 + $0x171] sm:$0xff] %vm2717, %v4163
  %4316 = vst.msk [vmem:[%s4283 + $0x1b1] sm:$0xff] %vm2717, %v4164
  %4317 = vst.msk [vmem:[%s4283 + $0x1b9] sm:$0xff] %vm2717, %v4165
  %4318 = vst.msk [vmem:[%s4283 + $0x1c9] sm:$0xff] %vm2717, %v4166
  %4319 = vst.msk [vmem:[%s4283 + $0x1d1] sm:$0xff] %vm2717, %v4167
  %4320 = vst.msk [vmem:[%s4283 + $0x1e1] sm:$0xff] %vm2717, %v4168
  %4321 = vst.msk [vmem:[%s4283 + $0x1e9] sm:$0xff] %vm2717, %v4169
  %4322 = vst.msk [vmem:[%s4283 + $0x1f9] sm:$0xff] %vm2717, %v4170
  %4323 = vst.msk [vmem:[%s4283 + $0x201] sm:$0xff] %vm2717, %v4171
  %4324 = vst.msk [vmem:[%s4283 + $0x211] sm:$0xff] %vm2717, %v4172
  %4325 = vst.msk [vmem:[%s4283 + $0x219] sm:$0xff] %vm2717, %v4173
  %4326 = vst.msk [vmem:[%s4283 + $0x229] sm:$0xff] %vm2717, %v4174
  %4327 = vst.msk [vmem:[%s4283 + $0x231] sm:$0xff] %vm2717, %v4175
  %4328 = vst.msk [vmem:[%s4283 + $0x241] sm:$0xff] %vm2717, %v4176
  %4329 = vst.msk [vmem:[%s4283 + $0x249] sm:$0xff] %vm2717, %v4177
  %4330 = vst.msk [vmem:[%s4283 + $0x259] sm:$0xff] %vm2717, %v4178
  %4331 = vst.msk [vmem:[%s4283 + $0x261] sm:$0xff] %vm2717, %v4179
  %4332 = vst.msk [vmem:[%s4283 + $0x271] sm:$0xff] %vm2717, %v4180
  %4333 = vst.msk [vmem:[%s4283 + $0x279] sm:$0xff] %vm2717, %v4181
  %4334 = vst.msk [vmem:[%s4283 + $0x289] sm:$0xff] %vm2717, %v4182
  %4335 = vst.msk [vmem:[%s4283 + $0x291] sm:$0xff] %vm2717, %v4183
  %4336 = vst.msk [vmem:[%s4283 + $0x2a1] sm:$0xff] %vm2717, %v4184
  %4337 = vst.msk [vmem:[%s4283 + $0x2a9] sm:$0xff] %vm2717, %v4185
  %4338 = vst.msk [vmem:[%s4283 + $0x2b9] sm:$0xff] %vm2717, %v4186
  %4339 = vst.msk [vmem:[%s4283 + $0x2c1] sm:$0xff] %vm2717, %v4187
  %4340 = vst.msk [vmem:[%s4283 + $0x2d1] sm:$0xff] %vm2717, %v4188
  %4341 = vst.msk [vmem:[%s4283 + $0x2d9] sm:$0xff] %vm2717, %v4189
  %4342 = vst.msk [vmem:[%s4283 + $0x2e9] sm:$0xff] %vm2717, %v4190
  %4343 = vst.msk [vmem:[%s4283 + $0x2f1] sm:$0xff] %vm2717, %v4191
  %4344 = vst.msk [vmem:[%s4283 + $0x301] sm:$0xff] %vm2717, %v4192
  %4345 = vst.msk [vmem:[%s4283 + $0x309] sm:$0xff] %vm2717, %v4193
  %4346 = vst.msk [vmem:[%s4283 + $0x319] sm:$0xff] %vm2717, %v4194
  %4347 = vst.msk [vmem:[%s4283 + $0x321] sm:$0xff] %vm2717, %v4195
  %v4348 = vld [vmem:[#allocation2] sm:$0xff]
  %v4349 = vld [vmem:[#allocation2 + $0x8] sm:$0xff]
  %v4350 = vld [vmem:[#allocation2 + $0x18] sm:$0xff]
  %v4351 = vld [vmem:[#allocation2 + $0x20] sm:$0xff]
  %v4352 = vld [vmem:[#allocation2 + $0x30] sm:$0xff]
  %v4353 = vld [vmem:[#allocation2 + $0x38] sm:$0xff]
  %v4354 = vld [vmem:[#allocation2 + $0x48] sm:$0xff]
  %v4355 = vld [vmem:[#allocation2 + $0x50] sm:$0xff]
  %v4356 = vld [vmem:[#allocation2 + $0x60] sm:$0xff]
  %v4357 = vld [vmem:[#allocation2 + $0x68] sm:$0xff]
  %v4358 = vld [vmem:[#allocation2 + $0x78] sm:$0xff]
  %v4359 = vld [vmem:[#allocation2 + $0x80] sm:$0xff]
  %v4360 = vld [vmem:[#allocation2 + $0x90] sm:$0xff]
  %v4361 = vld [vmem:[#allocation2 + $0x98] sm:$0xff]
  %v4362 = vld [vmem:[#allocation2 + $0xa8] sm:$0xff]
  %v4363 = vld [vmem:[#allocation2 + $0xb0] sm:$0xff]
  %v4364 = vld [vmem:[#allocation2 + $0xc0] sm:$0xff]
  %v4365 = vld [vmem:[#allocation2 + $0xc8] sm:$0xff]
  %v4366 = vld [vmem:[#allocation2 + $0xd8] sm:$0xff]
  %v4367 = vld [vmem:[#allocation2 + $0xe0] sm:$0xff]
  %v4368 = vld [vmem:[#allocation2 + $0xf0] sm:$0xff]
  %v4369 = vld [vmem:[#allocation2 + $0xf8] sm:$0xff]
  %v4370 = vld [vmem:[#allocation2 + $0x108] sm:$0xff]
  %v4371 = vld [vmem:[#allocation2 + $0x110] sm:$0xff]
  %v4372 = vld [vmem:[#allocation2 + $0x120] sm:$0xff]
  %v4373 = vld [vmem:[#allocation2 + $0x128] sm:$0xff]
  %v4374 = vld [vmem:[#allocation2 + $0x138] sm:$0xff]
  %v4375 = vld [vmem:[#allocation2 + $0x140] sm:$0xff]
  %v4376 = vld [vmem:[#allocation2 + $0x150] sm:$0xff]
  %v4377 = vld [vmem:[#allocation2 + $0x158] sm:$0xff]
  %v4378 = vld [vmem:[#allocation2 + $0x168] sm:$0xff]
  %v4379 = vld [vmem:[#allocation2 + $0x170] sm:$0xff]
  %v4380 = vld [vmem:[#allocation2 + $0x1b0] sm:$0xff]
  %v4381 = vld [vmem:[#allocation2 + $0x1b8] sm:$0xff]
  %v4382 = vld [vmem:[#allocation2 + $0x1c8] sm:$0xff]
  %v4383 = vld [vmem:[#allocation2 + $0x1d0] sm:$0xff]
  %v4384 = vld [vmem:[#allocation2 + $0x1e0] sm:$0xff]
  %v4385 = vld [vmem:[#allocation2 + $0x1e8] sm:$0xff]
  %v4386 = vld [vmem:[#allocation2 + $0x1f8] sm:$0xff]
  %v4387 = vld [vmem:[#allocation2 + $0x200] sm:$0xff]
  %v4388 = vld [vmem:[#allocation2 + $0x210] sm:$0xff]
  %v4389 = vld [vmem:[#allocation2 + $0x218] sm:$0xff]
  %v4390 = vld [vmem:[#allocation2 + $0x228] sm:$0xff]
  %v4391 = vld [vmem:[#allocation2 + $0x230] sm:$0xff]
  %v4392 = vld [vmem:[#allocation2 + $0x240] sm:$0xff]
  %v4393 = vld [vmem:[#allocation2 + $0x248] sm:$0xff]
  %v4394 = vld [vmem:[#allocation2 + $0x258] sm:$0xff]
  %v4395 = vld [vmem:[#allocation2 + $0x260] sm:$0xff]
  %v4396 = vld [vmem:[#allocation2 + $0x270] sm:$0xff]
  %v4397 = vld [vmem:[#allocation2 + $0x278] sm:$0xff]
  %v4398 = vld [vmem:[#allocation2 + $0x288] sm:$0xff]
  %v4399 = vld [vmem:[#allocation2 + $0x290] sm:$0xff]
  %v4400 = vld [vmem:[#allocation2 + $0x2a0] sm:$0xff]
  %v4401 = vld [vmem:[#allocation2 + $0x2a8] sm:$0xff]
  %v4402 = vld [vmem:[#allocation2 + $0x2b8] sm:$0xff]
  %v4403 = vld [vmem:[#allocation2 + $0x2c0] sm:$0xff]
  %v4404 = vld [vmem:[#allocation2 + $0x2d0] sm:$0xff]
  %v4405 = vld [vmem:[#allocation2 + $0x2d8] sm:$0xff]
  %v4406 = vld [vmem:[#allocation2 + $0x2e8] sm:$0xff]
  %v4407 = vld [vmem:[#allocation2 + $0x2f0] sm:$0xff]
  %v4408 = vld [vmem:[#allocation2 + $0x300] sm:$0xff]
  %v4409 = vld [vmem:[#allocation2 + $0x308] sm:$0xff]
  %v4410 = vld [vmem:[#allocation2 + $0x318] sm:$0xff]
  %v4411 = vld [vmem:[#allocation2 + $0x320] sm:$0xff]
  %v4412 = vld [vmem:[#allocation2 + $0x1] sm:$0xff]
  %v4413 = vld [vmem:[#allocation2 + $0x9] sm:$0xff]
  %v4414 = vld [vmem:[#allocation2 + $0x19] sm:$0xff]
  %v4415 = vld [vmem:[#allocation2 + $0x21] sm:$0xff]
  %v4416 = vld [vmem:[#allocation2 + $0x31] sm:$0xff]
  %v4417 = vld [vmem:[#allocation2 + $0x39] sm:$0xff]
  %v4418 = vld [vmem:[#allocation2 + $0x49] sm:$0xff]
  %v4419 = vld [vmem:[#allocation2 + $0x51] sm:$0xff]
  %v4420 = vld [vmem:[#allocation2 + $0x61] sm:$0xff]
  %v4421 = vld [vmem:[#allocation2 + $0x69] sm:$0xff]
  %v4422 = vld [vmem:[#allocation2 + $0x79] sm:$0xff]
  %v4423 = vld [vmem:[#allocation2 + $0x81] sm:$0xff]
  %v4424 = vld [vmem:[#allocation2 + $0x91] sm:$0xff]
  %v4425 = vld [vmem:[#allocation2 + $0x99] sm:$0xff]
  %v4426 = vld [vmem:[#allocation2 + $0xa9] sm:$0xff]
  %v4427 = vld [vmem:[#allocation2 + $0xb1] sm:$0xff]
  %v4428 = vld [vmem:[#allocation2 + $0xc1] sm:$0xff]
  %v4429 = vld [vmem:[#allocation2 + $0xc9] sm:$0xff]
  %v4430 = vld [vmem:[#allocation2 + $0xd9] sm:$0xff]
  %v4431 = vld [vmem:[#allocation2 + $0xe1] sm:$0xff]
  %v4432 = vld [vmem:[#allocation2 + $0xf1] sm:$0xff]
  %v4433 = vld [vmem:[#allocation2 + $0xf9] sm:$0xff]
  %v4434 = vld [vmem:[#allocation2 + $0x109] sm:$0xff]
  %v4435 = vld [vmem:[#allocation2 + $0x111] sm:$0xff]
  %v4436 = vld [vmem:[#allocation2 + $0x121] sm:$0xff]
  %v4437 = vld [vmem:[#allocation2 + $0x129] sm:$0xff]
  %v4438 = vld [vmem:[#allocation2 + $0x139] sm:$0xff]
  %v4439 = vld [vmem:[#allocation2 + $0x141] sm:$0xff]
  %v4440 = vld [vmem:[#allocation2 + $0x151] sm:$0xff]
  %v4441 = vld [vmem:[#allocation2 + $0x159] sm:$0xff]
  %v4442 = vld [vmem:[#allocation2 + $0x169] sm:$0xff]
  %v4443 = vld [vmem:[#allocation2 + $0x171] sm:$0xff]
  %v4444 = vld [vmem:[#allocation2 + $0x1b1] sm:$0xff]
  %v4445 = vld [vmem:[#allocation2 + $0x1b9] sm:$0xff]
  %v4446 = vld [vmem:[#allocation2 + $0x1c9] sm:$0xff]
  %v4447 = vld [vmem:[#allocation2 + $0x1d1] sm:$0xff]
  %v4448 = vld [vmem:[#allocation2 + $0x1e1] sm:$0xff]
  %v4449 = vld [vmem:[#allocation2 + $0x1e9] sm:$0xff]
  %v4450 = vld [vmem:[#allocation2 + $0x1f9] sm:$0xff]
  %v4451 = vld [vmem:[#allocation2 + $0x201] sm:$0xff]
  %v4452 = vld [vmem:[#allocation2 + $0x211] sm:$0xff]
  %v4453 = vld [vmem:[#allocation2 + $0x219] sm:$0xff]
  %v4454 = vld [vmem:[#allocation2 + $0x229] sm:$0xff]
  %v4455 = vld [vmem:[#allocation2 + $0x231] sm:$0xff]
  %v4456 = vld [vmem:[#allocation2 + $0x241] sm:$0xff]
  %v4457 = vld [vmem:[#allocation2 + $0x249] sm:$0xff]
  %v4458 = vld [vmem:[#allocation2 + $0x259] sm:$0xff]
  %v4459 = vld [vmem:[#allocation2 + $0x261] sm:$0xff]
  %v4460 = vld [vmem:[#allocation2 + $0x271] sm:$0xff]
  %v4461 = vld [vmem:[#allocation2 + $0x279] sm:$0xff]
  %v4462 = vld [vmem:[#allocation2 + $0x289] sm:$0xff]
  %v4463 = vld [vmem:[#allocation2 + $0x291] sm:$0xff]
  %v4464 = vld [vmem:[#allocation2 + $0x2a1] sm:$0xff]
  %v4465 = vld [vmem:[#allocation2 + $0x2a9] sm:$0xff]
  %v4466 = vld [vmem:[#allocation2 + $0x2b9] sm:$0xff]
  %v4467 = vld [vmem:[#allocation2 + $0x2c1] sm:$0xff]
  %v4468 = vld [vmem:[#allocation2 + $0x2d1] sm:$0xff]
  %v4469 = vld [vmem:[#allocation2 + $0x2d9] sm:$0xff]
  %v4470 = vld [vmem:[#allocation2 + $0x2e9] sm:$0xff]
  %v4471 = vld [vmem:[#allocation2 + $0x2f1] sm:$0xff]
  %v4472 = vld [vmem:[#allocation2 + $0x301] sm:$0xff]
  %v4473 = vld [vmem:[#allocation2 + $0x309] sm:$0xff]
  %v4474 = vld [vmem:[#allocation2 + $0x319] sm:$0xff]
  %v4475 = vld [vmem:[#allocation2 + $0x321] sm:$0xff]
  %v4476 = vld [vmem:[#allocation2 + $0x2] sm:$0xff]
  %v4477 = vld [vmem:[#allocation2 + $0xa] sm:$0xff]
  %v4478 = vld [vmem:[#allocation2 + $0x1a] sm:$0xff]
  %v4479 = vld [vmem:[#allocation2 + $0x22] sm:$0xff]
  %v4480 = vld [vmem:[#allocation2 + $0x32] sm:$0xff]
  %v4481 = vld [vmem:[#allocation2 + $0x3a] sm:$0xff]
  %v4482 = vld [vmem:[#allocation2 + $0x4a] sm:$0xff]
  %v4483 = vld [vmem:[#allocation2 + $0x52] sm:$0xff]
  %v4484 = vld [vmem:[#allocation2 + $0x62] sm:$0xff]
  %v4485 = vld [vmem:[#allocation2 + $0x6a] sm:$0xff]
  %v4486 = vld [vmem:[#allocation2 + $0x7a] sm:$0xff]
  %v4487 = vld [vmem:[#allocation2 + $0x82] sm:$0xff]
  %v4488 = vld [vmem:[#allocation2 + $0x92] sm:$0xff]
  %v4489 = vld [vmem:[#allocation2 + $0x9a] sm:$0xff]
  %v4490 = vld [vmem:[#allocation2 + $0xaa] sm:$0xff]
  %v4491 = vld [vmem:[#allocation2 + $0xb2] sm:$0xff]
  %v4492 = vld [vmem:[#allocation2 + $0xc2] sm:$0xff]
  %v4493 = vld [vmem:[#allocation2 + $0xca] sm:$0xff]
  %v4494 = vld [vmem:[#allocation2 + $0xda] sm:$0xff]
  %v4495 = vld [vmem:[#allocation2 + $0xe2] sm:$0xff]
  %v4496 = vld [vmem:[#allocation2 + $0xf2] sm:$0xff]
  %v4497 = vld [vmem:[#allocation2 + $0xfa] sm:$0xff]
  %v4498 = vld [vmem:[#allocation2 + $0x10a] sm:$0xff]
  %v4499 = vld [vmem:[#allocation2 + $0x112] sm:$0xff]
  %v4500 = vld [vmem:[#allocation2 + $0x122] sm:$0xff]
  %v4501 = vld [vmem:[#allocation2 + $0x12a] sm:$0xff]
  %v4502 = vld [vmem:[#allocation2 + $0x13a] sm:$0xff]
  %v4503 = vld [vmem:[#allocation2 + $0x142] sm:$0xff]
  %v4504 = vld [vmem:[#allocation2 + $0x152] sm:$0xff]
  %v4505 = vld [vmem:[#allocation2 + $0x15a] sm:$0xff]
  %v4506 = vld [vmem:[#allocation2 + $0x16a] sm:$0xff]
  %v4507 = vld [vmem:[#allocation2 + $0x172] sm:$0xff]
  %v4508 = vld [vmem:[#allocation2 + $0x1b2] sm:$0xff]
  %v4509 = vld [vmem:[#allocation2 + $0x1ba] sm:$0xff]
  %v4510 = vld [vmem:[#allocation2 + $0x1ca] sm:$0xff]
  %v4511 = vld [vmem:[#allocation2 + $0x1d2] sm:$0xff]
  %v4512 = vld [vmem:[#allocation2 + $0x1e2] sm:$0xff]
  %v4513 = vld [vmem:[#allocation2 + $0x1ea] sm:$0xff]
  %v4514 = vld [vmem:[#allocation2 + $0x1fa] sm:$0xff]
  %v4515 = vld [vmem:[#allocation2 + $0x202] sm:$0xff]
  %v4516 = vld [vmem:[#allocation2 + $0x212] sm:$0xff]
  %v4517 = vld [vmem:[#allocation2 + $0x21a] sm:$0xff]
  %v4518 = vld [vmem:[#allocation2 + $0x22a] sm:$0xff]
  %v4519 = vld [vmem:[#allocation2 + $0x232] sm:$0xff]
  %v4520 = vld [vmem:[#allocation2 + $0x242] sm:$0xff]
  %v4521 = vld [vmem:[#allocation2 + $0x24a] sm:$0xff]
  %v4522 = vld [vmem:[#allocation2 + $0x25a] sm:$0xff]
  %v4523 = vld [vmem:[#allocation2 + $0x262] sm:$0xff]
  %v4524 = vld [vmem:[#allocation2 + $0x272] sm:$0xff]
  %v4525 = vld [vmem:[#allocation2 + $0x27a] sm:$0xff]
  %v4526 = vld [vmem:[#allocation2 + $0x28a] sm:$0xff]
  %v4527 = vld [vmem:[#allocation2 + $0x292] sm:$0xff]
  %v4528 = vld [vmem:[#allocation2 + $0x2a2] sm:$0xff]
  %v4529 = vld [vmem:[#allocation2 + $0x2aa] sm:$0xff]
  %v4530 = vld [vmem:[#allocation2 + $0x2ba] sm:$0xff]
  %v4531 = vld [vmem:[#allocation2 + $0x2c2] sm:$0xff]
  %v4532 = vld [vmem:[#allocation2 + $0x2d2] sm:$0xff]
  %v4533 = vld [vmem:[#allocation2 + $0x2da] sm:$0xff]
  %v4534 = vld [vmem:[#allocation2 + $0x2ea] sm:$0xff]
  %v4535 = vld [vmem:[#allocation2 + $0x2f2] sm:$0xff]
  %v4536 = vld [vmem:[#allocation2 + $0x302] sm:$0xff]
  %v4537 = vld [vmem:[#allocation2 + $0x30a] sm:$0xff]
  %v4538 = vld [vmem:[#allocation2 + $0x31a] sm:$0xff]
  %v4539 = vld [vmem:[#allocation2 + $0x322] sm:$0xff]
  %v4540 = vld [vmem:[%s4283] sm:$0xff]
  %v4541 = vld [vmem:[%s4283 + $0x8] sm:$0xff]
  %v4542 = vld [vmem:[%s4283 + $0x18] sm:$0xff]
  %v4543 = vld [vmem:[%s4283 + $0x20] sm:$0xff]
  %v4544 = vld [vmem:[%s4283 + $0x30] sm:$0xff]
  %v4545 = vld [vmem:[%s4283 + $0x38] sm:$0xff]
  %v4546 = vld [vmem:[%s4283 + $0x48] sm:$0xff]
  %v4547 = vld [vmem:[%s4283 + $0x50] sm:$0xff]
  %v4548 = vld [vmem:[%s4283 + $0x60] sm:$0xff]
  %v4549 = vld [vmem:[%s4283 + $0x68] sm:$0xff]
  %v4550 = vld [vmem:[%s4283 + $0x78] sm:$0xff]
  %v4551 = vld [vmem:[%s4283 + $0x80] sm:$0xff]
  %v4552 = vld [vmem:[%s4283 + $0x90] sm:$0xff]
  %v4553 = vld [vmem:[%s4283 + $0x98] sm:$0xff]
  %v4554 = vld [vmem:[%s4283 + $0xa8] sm:$0xff]
  %v4555 = vld [vmem:[%s4283 + $0xb0] sm:$0xff]
  %v4556 = vld [vmem:[%s4283 + $0xc0] sm:$0xff]
  %v4557 = vld [vmem:[%s4283 + $0xc8] sm:$0xff]
  %v4558 = vld [vmem:[%s4283 + $0xd8] sm:$0xff]
  %v4559 = vld [vmem:[%s4283 + $0xe0] sm:$0xff]
  %v4560 = vld [vmem:[%s4283 + $0xf0] sm:$0xff]
  %v4561 = vld [vmem:[%s4283 + $0xf8] sm:$0xff]
  %v4562 = vld [vmem:[%s4283 + $0x108] sm:$0xff]
  %v4563 = vld [vmem:[%s4283 + $0x110] sm:$0xff]
  %v4564 = vld [vmem:[%s4283 + $0x120] sm:$0xff]
  %v4565 = vld [vmem:[%s4283 + $0x128] sm:$0xff]
  %v4566 = vld [vmem:[%s4283 + $0x138] sm:$0xff]
  %v4567 = vld [vmem:[%s4283 + $0x140] sm:$0xff]
  %v4568 = vld [vmem:[%s4283 + $0x150] sm:$0xff]
  %v4569 = vld [vmem:[%s4283 + $0x158] sm:$0xff]
  %v4570 = vld [vmem:[%s4283 + $0x168] sm:$0xff]
  %v4571 = vld [vmem:[%s4283 + $0x170] sm:$0xff]
  %v4572 = vld [vmem:[%s4283 + $0x1b0] sm:$0xff]
  %v4573 = vld [vmem:[%s4283 + $0x1b8] sm:$0xff]
  %v4574 = vld [vmem:[%s4283 + $0x1c8] sm:$0xff]
  %v4575 = vld [vmem:[%s4283 + $0x1d0] sm:$0xff]
  %v4576 = vld [vmem:[%s4283 + $0x1e0] sm:$0xff]
  %v4577 = vld [vmem:[%s4283 + $0x1e8] sm:$0xff]
  %v4578 = vld [vmem:[%s4283 + $0x1f8] sm:$0xff]
  %v4579 = vld [vmem:[%s4283 + $0x200] sm:$0xff]
  %v4580 = vld [vmem:[%s4283 + $0x210] sm:$0xff]
  %v4581 = vld [vmem:[%s4283 + $0x218] sm:$0xff]
  %v4582 = vld [vmem:[%s4283 + $0x228] sm:$0xff]
  %v4583 = vld [vmem:[%s4283 + $0x230] sm:$0xff]
  %v4584 = vld [vmem:[%s4283 + $0x240] sm:$0xff]
  %v4585 = vld [vmem:[%s4283 + $0x248] sm:$0xff]
  %v4586 = vld [vmem:[%s4283 + $0x258] sm:$0xff]
  %v4587 = vld [vmem:[%s4283 + $0x260] sm:$0xff]
  %v4588 = vld [vmem:[%s4283 + $0x270] sm:$0xff]
  %v4589 = vld [vmem:[%s4283 + $0x278] sm:$0xff]
  %v4590 = vld [vmem:[%s4283 + $0x288] sm:$0xff]
  %v4591 = vld [vmem:[%s4283 + $0x290] sm:$0xff]
  %v4592 = vld [vmem:[%s4283 + $0x2a0] sm:$0xff]
  %v4593 = vld [vmem:[%s4283 + $0x2a8] sm:$0xff]
  %v4594 = vld [vmem:[%s4283 + $0x2b8] sm:$0xff]
  %v4595 = vld [vmem:[%s4283 + $0x2c0] sm:$0xff]
  %v4596 = vld [vmem:[%s4283 + $0x2d0] sm:$0xff]
  %v4597 = vld [vmem:[%s4283 + $0x2d8] sm:$0xff]
  %v4598 = vld [vmem:[%s4283 + $0x2e8] sm:$0xff]
  %v4599 = vld [vmem:[%s4283 + $0x2f0] sm:$0xff]
  %v4600 = vld [vmem:[%s4283 + $0x300] sm:$0xff]
  %v4601 = vld [vmem:[%s4283 + $0x308] sm:$0xff]
  %v4602 = vld [vmem:[%s4283 + $0x318] sm:$0xff]
  %v4603 = vld [vmem:[%s4283 + $0x320] sm:$0xff]
  %v4604 = vld [vmem:[%s4283 + $0x1] sm:$0xff]
  %v4605 = vld [vmem:[%s4283 + $0x9] sm:$0xff]
  %v4606 = vld [vmem:[%s4283 + $0x19] sm:$0xff]
  %v4607 = vld [vmem:[%s4283 + $0x21] sm:$0xff]
  %v4608 = vld [vmem:[%s4283 + $0x31] sm:$0xff]
  %v4609 = vld [vmem:[%s4283 + $0x39] sm:$0xff]
  %v4610 = vld [vmem:[%s4283 + $0x49] sm:$0xff]
  %v4611 = vld [vmem:[%s4283 + $0x51] sm:$0xff]
  %v4612 = vld [vmem:[%s4283 + $0x61] sm:$0xff]
  %v4613 = vld [vmem:[%s4283 + $0x69] sm:$0xff]
  %v4614 = vld [vmem:[%s4283 + $0x79] sm:$0xff]
  %v4615 = vld [vmem:[%s4283 + $0x81] sm:$0xff]
  %v4616 = vld [vmem:[%s4283 + $0x91] sm:$0xff]
  %v4617 = vld [vmem:[%s4283 + $0x99] sm:$0xff]
  %v4618 = vld [vmem:[%s4283 + $0xa9] sm:$0xff]
  %v4619 = vld [vmem:[%s4283 + $0xb1] sm:$0xff]
  %v4620 = vld [vmem:[%s4283 + $0xc1] sm:$0xff]
  %v4621 = vld [vmem:[%s4283 + $0xc9] sm:$0xff]
  %v4622 = vld [vmem:[%s4283 + $0xd9] sm:$0xff]
  %v4623 = vld [vmem:[%s4283 + $0xe1] sm:$0xff]
  %v4624 = vld [vmem:[%s4283 + $0xf1] sm:$0xff]
  %v4625 = vld [vmem:[%s4283 + $0xf9] sm:$0xff]
  %v4626 = vld [vmem:[%s4283 + $0x109] sm:$0xff]
  %v4627 = vld [vmem:[%s4283 + $0x111] sm:$0xff]
  %v4628 = vld [vmem:[%s4283 + $0x121] sm:$0xff]
  %v4629 = vld [vmem:[%s4283 + $0x129] sm:$0xff]
  %v4630 = vld [vmem:[%s4283 + $0x139] sm:$0xff]
  %v4631 = vld [vmem:[%s4283 + $0x141] sm:$0xff]
  %v4632 = vld [vmem:[%s4283 + $0x151] sm:$0xff]
  %v4633 = vld [vmem:[%s4283 + $0x159] sm:$0xff]
  %v4634 = vld [vmem:[%s4283 + $0x169] sm:$0xff]
  %v4635 = vld [vmem:[%s4283 + $0x171] sm:$0xff]
  %v4636 = vld [vmem:[%s4283 + $0x1b1] sm:$0xff]
  %v4637 = vld [vmem:[%s4283 + $0x1b9] sm:$0xff]
  %v4638 = vld [vmem:[%s4283 + $0x1c9] sm:$0xff]
  %v4639 = vld [vmem:[%s4283 + $0x1d1] sm:$0xff]
  %v4640 = vld [vmem:[%s4283 + $0x1e1] sm:$0xff]
  %v4641 = vld [vmem:[%s4283 + $0x1e9] sm:$0xff]
  %v4642 = vld [vmem:[%s4283 + $0x1f9] sm:$0xff]
  %v4643 = vld [vmem:[%s4283 + $0x201] sm:$0xff]
  %v4644 = vld [vmem:[%s4283 + $0x211] sm:$0xff]
  %v4645 = vld [vmem:[%s4283 + $0x219] sm:$0xff]
  %v4646 = vld [vmem:[%s4283 + $0x229] sm:$0xff]
  %v4647 = vld [vmem:[%s4283 + $0x231] sm:$0xff]
  %v4648 = vld [vmem:[%s4283 + $0x241] sm:$0xff]
  %v4649 = vld [vmem:[%s4283 + $0x249] sm:$0xff]
  %v4650 = vld [vmem:[%s4283 + $0x259] sm:$0xff]
  %v4651 = vld [vmem:[%s4283 + $0x261] sm:$0xff]
  %v4652 = vld [vmem:[%s4283 + $0x271] sm:$0xff]
  %v4653 = vld [vmem:[%s4283 + $0x279] sm:$0xff]
  %v4654 = vld [vmem:[%s4283 + $0x289] sm:$0xff]
  %v4655 = vld [vmem:[%s4283 + $0x291] sm:$0xff]
  %v4656 = vld [vmem:[%s4283 + $0x2a1] sm:$0xff]
  %v4657 = vld [vmem:[%s4283 + $0x2a9] sm:$0xff]
  %v4658 = vld [vmem:[%s4283 + $0x2b9] sm:$0xff]
  %v4659 = vld [vmem:[%s4283 + $0x2c1] sm:$0xff]
  %v4660 = vld [vmem:[%s4283 + $0x2d1] sm:$0xff]
  %v4661 = vld [vmem:[%s4283 + $0x2d9] sm:$0xff]
  %v4662 = vld [vmem:[%s4283 + $0x2e9] sm:$0xff]
  %v4663 = vld [vmem:[%s4283 + $0x2f1] sm:$0xff]
  %v4664 = vld [vmem:[%s4283 + $0x301] sm:$0xff]
  %v4665 = vld [vmem:[%s4283 + $0x309] sm:$0xff]
  %v4666 = vld [vmem:[%s4283 + $0x319] sm:$0xff]
  %v4667 = vld [vmem:[%s4283 + $0x321] sm:$0xff]
  %v4668 = vld [vmem:[%s4283 + $0x2] sm:$0xff]
  %v4669 = vld [vmem:[%s4283 + $0xa] sm:$0xff]
  %v4670 = vld [vmem:[%s4283 + $0x1a] sm:$0xff]
  %v4671 = vld [vmem:[%s4283 + $0x22] sm:$0xff]
  %v4672 = vld [vmem:[%s4283 + $0x32] sm:$0xff]
  %v4673 = vld [vmem:[%s4283 + $0x3a] sm:$0xff]
  %v4674 = vld [vmem:[%s4283 + $0x4a] sm:$0xff]
  %v4675 = vld [vmem:[%s4283 + $0x52] sm:$0xff]
  %v4676 = vld [vmem:[%s4283 + $0x62] sm:$0xff]
  %v4677 = vld [vmem:[%s4283 + $0x6a] sm:$0xff]
  %v4678 = vld [vmem:[%s4283 + $0x7a] sm:$0xff]
  %v4679 = vld [vmem:[%s4283 + $0x82] sm:$0xff]
  %v4680 = vld [vmem:[%s4283 + $0x92] sm:$0xff]
  %v4681 = vld [vmem:[%s4283 + $0x9a] sm:$0xff]
  %v4682 = vld [vmem:[%s4283 + $0xaa] sm:$0xff]
  %v4683 = vld [vmem:[%s4283 + $0xb2] sm:$0xff]
  %v4684 = vld [vmem:[%s4283 + $0xc2] sm:$0xff]
  %v4685 = vld [vmem:[%s4283 + $0xca] sm:$0xff]
  %v4686 = vld [vmem:[%s4283 + $0xda] sm:$0xff]
  %v4687 = vld [vmem:[%s4283 + $0xe2] sm:$0xff]
  %v4688 = vld [vmem:[%s4283 + $0xf2] sm:$0xff]
  %v4689 = vld [vmem:[%s4283 + $0xfa] sm:$0xff]
  %v4690 = vld [vmem:[%s4283 + $0x10a] sm:$0xff]
  %v4691 = vld [vmem:[%s4283 + $0x112] sm:$0xff]
  %v4692 = vld [vmem:[%s4283 + $0x122] sm:$0xff]
  %v4693 = vld [vmem:[%s4283 + $0x12a] sm:$0xff]
  %v4694 = vld [vmem:[%s4283 + $0x13a] sm:$0xff]
  %v4695 = vld [vmem:[%s4283 + $0x142] sm:$0xff]
  %v4696 = vld [vmem:[%s4283 + $0x152] sm:$0xff]
  %v4697 = vld [vmem:[%s4283 + $0x15a] sm:$0xff]
  %v4698 = vld [vmem:[%s4283 + $0x16a] sm:$0xff]
  %v4699 = vld [vmem:[%s4283 + $0x172] sm:$0xff]
  %v4700 = vld [vmem:[%s4283 + $0x1b2] sm:$0xff]
  %v4701 = vld [vmem:[%s4283 + $0x1ba] sm:$0xff]
  %v4702 = vld [vmem:[%s4283 + $0x1ca] sm:$0xff]
  %v4703 = vld [vmem:[%s4283 + $0x1d2] sm:$0xff]
  %v4704 = vld [vmem:[%s4283 + $0x1e2] sm:$0xff]
  %v4705 = vld [vmem:[%s4283 + $0x1ea] sm:$0xff]
  %v4706 = vld [vmem:[%s4283 + $0x1fa] sm:$0xff]
  %v4707 = vld [vmem:[%s4283 + $0x202] sm:$0xff]
  %v4708 = vld [vmem:[%s4283 + $0x212] sm:$0xff]
  %v4709 = vld [vmem:[%s4283 + $0x21a] sm:$0xff]
  %v4710 = vld [vmem:[%s4283 + $0x22a] sm:$0xff]
  %v4711 = vld [vmem:[%s4283 + $0x232] sm:$0xff]
  %v4712 = vld [vmem:[%s4283 + $0x242] sm:$0xff]
  %v4713 = vld [vmem:[%s4283 + $0x24a] sm:$0xff]
  %v4714 = vld [vmem:[%s4283 + $0x25a] sm:$0xff]
  %v4715 = vld [vmem:[%s4283 + $0x262] sm:$0xff]
  %v4716 = vld [vmem:[%s4283 + $0x272] sm:$0xff]
  %v4717 = vld [vmem:[%s4283 + $0x27a] sm:$0xff]
  %v4718 = vld [vmem:[%s4283 + $0x28a] sm:$0xff]
  %v4719 = vld [vmem:[%s4283 + $0x292] sm:$0xff]
  %v4720 = vld [vmem:[%s4283 + $0x2a2] sm:$0xff]
  %v4721 = vld [vmem:[%s4283 + $0x2aa] sm:$0xff]
  %v4722 = vld [vmem:[%s4283 + $0x2ba] sm:$0xff]
  %v4723 = vld [vmem:[%s4283 + $0x2c2] sm:$0xff]
  %v4724 = vld [vmem:[%s4283 + $0x2d2] sm:$0xff]
  %v4725 = vld [vmem:[%s4283 + $0x2da] sm:$0xff]
  %v4726 = vld [vmem:[%s4283 + $0x2ea] sm:$0xff]
  %v4727 = vld [vmem:[%s4283 + $0x2f2] sm:$0xff]
  %v4728 = vld [vmem:[%s4283 + $0x302] sm:$0xff]
  %v4729 = vld [vmem:[%s4283 + $0x30a] sm:$0xff]
  %v4730 = vld [vmem:[%s4283 + $0x31a] sm:$0xff]
  %v4731 = vld [vmem:[%s4283 + $0x322] sm:$0xff]
  %s4732 = scalar_lea.vmem [#allocation2], 48
  %v4733 = vld [vmem:[%s4732] sm:$0xff]
  %v4734 = vld [vmem:[%s4732 + $0x8] sm:$0xff]
  %v4735 = vld [vmem:[%s4732 + $0x18] sm:$0xff]
  %v4736 = vld [vmem:[%s4732 + $0x20] sm:$0xff]
  %v4737 = vld [vmem:[%s4732 + $0x30] sm:$0xff]
  %v4738 = vld [vmem:[%s4732 + $0x38] sm:$0xff]
  %v4739 = vld [vmem:[%s4732 + $0x48] sm:$0xff]
  %v4740 = vld [vmem:[%s4732 + $0x50] sm:$0xff]
  %v4741 = vld [vmem:[%s4732 + $0x60] sm:$0xff]
  %v4742 = vld [vmem:[%s4732 + $0x68] sm:$0xff]
  %v4743 = vld [vmem:[%s4732 + $0x78] sm:$0xff]
  %v4744 = vld [vmem:[%s4732 + $0x80] sm:$0xff]
  %v4745 = vld [vmem:[%s4732 + $0x90] sm:$0xff]
  %v4746 = vld [vmem:[%s4732 + $0x98] sm:$0xff]
  %v4747 = vld [vmem:[%s4732 + $0xa8] sm:$0xff]
  %v4748 = vld [vmem:[%s4732 + $0xb0] sm:$0xff]
  %v4749 = vld [vmem:[%s4732 + $0xc0] sm:$0xff]
  %v4750 = vld [vmem:[%s4732 + $0xc8] sm:$0xff]
  %v4751 = vld [vmem:[%s4732 + $0xd8] sm:$0xff]
  %v4752 = vld [vmem:[%s4732 + $0xe0] sm:$0xff]
  %v4753 = vld [vmem:[%s4732 + $0xf0] sm:$0xff]
  %v4754 = vld [vmem:[%s4732 + $0xf8] sm:$0xff]
  %v4755 = vld [vmem:[%s4732 + $0x108] sm:$0xff]
  %v4756 = vld [vmem:[%s4732 + $0x110] sm:$0xff]
  %v4757 = vld [vmem:[%s4732 + $0x120] sm:$0xff]
  %v4758 = vld [vmem:[%s4732 + $0x128] sm:$0xff]
  %v4759 = vld [vmem:[%s4732 + $0x138] sm:$0xff]
  %v4760 = vld [vmem:[%s4732 + $0x140] sm:$0xff]
  %v4761 = vld [vmem:[%s4732 + $0x150] sm:$0xff]
  %v4762 = vld [vmem:[%s4732 + $0x158] sm:$0xff]
  %v4763 = vld [vmem:[%s4732 + $0x168] sm:$0xff]
  %v4764 = vld [vmem:[%s4732 + $0x170] sm:$0xff]
  %v4765 = vld [vmem:[%s4732 + $0x1b0] sm:$0xff]
  %v4766 = vld [vmem:[%s4732 + $0x1b8] sm:$0xff]
  %v4767 = vld [vmem:[%s4732 + $0x1c8] sm:$0xff]
  %v4768 = vld [vmem:[%s4732 + $0x1d0] sm:$0xff]
  %v4769 = vld [vmem:[%s4732 + $0x1e0] sm:$0xff]
  %v4770 = vld [vmem:[%s4732 + $0x1e8] sm:$0xff]
  %v4771 = vld [vmem:[%s4732 + $0x1f8] sm:$0xff]
  %v4772 = vld [vmem:[%s4732 + $0x200] sm:$0xff]
  %v4773 = vld [vmem:[%s4732 + $0x210] sm:$0xff]
  %v4774 = vld [vmem:[%s4732 + $0x218] sm:$0xff]
  %v4775 = vld [vmem:[%s4732 + $0x228] sm:$0xff]
  %v4776 = vld [vmem:[%s4732 + $0x230] sm:$0xff]
  %v4777 = vld [vmem:[%s4732 + $0x240] sm:$0xff]
  %v4778 = vld [vmem:[%s4732 + $0x248] sm:$0xff]
  %v4779 = vld [vmem:[%s4732 + $0x258] sm:$0xff]
  %v4780 = vld [vmem:[%s4732 + $0x260] sm:$0xff]
  %v4781 = vld [vmem:[%s4732 + $0x270] sm:$0xff]
  %v4782 = vld [vmem:[%s4732 + $0x278] sm:$0xff]
  %v4783 = vld [vmem:[%s4732 + $0x288] sm:$0xff]
  %v4784 = vld [vmem:[%s4732 + $0x290] sm:$0xff]
  %v4785 = vld [vmem:[%s4732 + $0x2a0] sm:$0xff]
  %v4786 = vld [vmem:[%s4732 + $0x2a8] sm:$0xff]
  %v4787 = vld [vmem:[%s4732 + $0x2b8] sm:$0xff]
  %v4788 = vld [vmem:[%s4732 + $0x2c0] sm:$0xff]
  %v4789 = vld [vmem:[%s4732 + $0x2d0] sm:$0xff]
  %v4790 = vld [vmem:[%s4732 + $0x2d8] sm:$0xff]
  %v4791 = vld [vmem:[%s4732 + $0x2e8] sm:$0xff]
  %v4792 = vld [vmem:[%s4732 + $0x2f0] sm:$0xff]
  %v4793 = vld [vmem:[%s4732 + $0x300] sm:$0xff]
  %v4794 = vld [vmem:[%s4732 + $0x308] sm:$0xff]
  %v4795 = vld [vmem:[%s4732 + $0x318] sm:$0xff]
  %v4796 = vld [vmem:[%s4732 + $0x320] sm:$0xff]
  %v4797 = vld [vmem:[%s4732 + $0x1] sm:$0xff]
  %v4798 = vld [vmem:[%s4732 + $0x9] sm:$0xff]
  %v4799 = vld [vmem:[%s4732 + $0x19] sm:$0xff]
  %v4800 = vld [vmem:[%s4732 + $0x21] sm:$0xff]
  %v4801 = vld [vmem:[%s4732 + $0x31] sm:$0xff]
  %v4802 = vld [vmem:[%s4732 + $0x39] sm:$0xff]
  %v4803 = vld [vmem:[%s4732 + $0x49] sm:$0xff]
  %v4804 = vld [vmem:[%s4732 + $0x51] sm:$0xff]
  %v4805 = vld [vmem:[%s4732 + $0x61] sm:$0xff]
  %v4806 = vld [vmem:[%s4732 + $0x69] sm:$0xff]
  %v4807 = vld [vmem:[%s4732 + $0x79] sm:$0xff]
  %v4808 = vld [vmem:[%s4732 + $0x81] sm:$0xff]
  %v4809 = vld [vmem:[%s4732 + $0x91] sm:$0xff]
  %v4810 = vld [vmem:[%s4732 + $0x99] sm:$0xff]
  %v4811 = vld [vmem:[%s4732 + $0xa9] sm:$0xff]
  %v4812 = vld [vmem:[%s4732 + $0xb1] sm:$0xff]
  %v4813 = vld [vmem:[%s4732 + $0xc1] sm:$0xff]
  %v4814 = vld [vmem:[%s4732 + $0xc9] sm:$0xff]
  %v4815 = vld [vmem:[%s4732 + $0xd9] sm:$0xff]
  %v4816 = vld [vmem:[%s4732 + $0xe1] sm:$0xff]
  %v4817 = vld [vmem:[%s4732 + $0xf1] sm:$0xff]
  %v4818 = vld [vmem:[%s4732 + $0xf9] sm:$0xff]
  %v4819 = vld [vmem:[%s4732 + $0x109] sm:$0xff]
  %v4820 = vld [vmem:[%s4732 + $0x111] sm:$0xff]
  %v4821 = vld [vmem:[%s4732 + $0x121] sm:$0xff]
  %v4822 = vld [vmem:[%s4732 + $0x129] sm:$0xff]
  %v4823 = vld [vmem:[%s4732 + $0x139] sm:$0xff]
  %v4824 = vld [vmem:[%s4732 + $0x141] sm:$0xff]
  %v4825 = vld [vmem:[%s4732 + $0x151] sm:$0xff]
  %v4826 = vld [vmem:[%s4732 + $0x159] sm:$0xff]
  %v4827 = vld [vmem:[%s4732 + $0x169] sm:$0xff]
  %v4828 = vld [vmem:[%s4732 + $0x171] sm:$0xff]
  %v4829 = vld [vmem:[%s4732 + $0x1b1] sm:$0xff]
  %v4830 = vld [vmem:[%s4732 + $0x1b9] sm:$0xff]
  %v4831 = vld [vmem:[%s4732 + $0x1c9] sm:$0xff]
  %v4832 = vld [vmem:[%s4732 + $0x1d1] sm:$0xff]
  %v4833 = vld [vmem:[%s4732 + $0x1e1] sm:$0xff]
  %v4834 = vld [vmem:[%s4732 + $0x1e9] sm:$0xff]
  %v4835 = vld [vmem:[%s4732 + $0x1f9] sm:$0xff]
  %v4836 = vld [vmem:[%s4732 + $0x201] sm:$0xff]
  %v4837 = vld [vmem:[%s4732 + $0x211] sm:$0xff]
  %v4838 = vld [vmem:[%s4732 + $0x219] sm:$0xff]
  %v4839 = vld [vmem:[%s4732 + $0x229] sm:$0xff]
  %v4840 = vld [vmem:[%s4732 + $0x231] sm:$0xff]
  %v4841 = vld [vmem:[%s4732 + $0x241] sm:$0xff]
  %v4842 = vld [vmem:[%s4732 + $0x249] sm:$0xff]
  %v4843 = vld [vmem:[%s4732 + $0x259] sm:$0xff]
  %v4844 = vld [vmem:[%s4732 + $0x261] sm:$0xff]
  %v4845 = vld [vmem:[%s4732 + $0x271] sm:$0xff]
  %v4846 = vld [vmem:[%s4732 + $0x279] sm:$0xff]
  %v4847 = vld [vmem:[%s4732 + $0x289] sm:$0xff]
  %v4848 = vld [vmem:[%s4732 + $0x291] sm:$0xff]
  %v4849 = vld [vmem:[%s4732 + $0x2a1] sm:$0xff]
  %v4850 = vld [vmem:[%s4732 + $0x2a9] sm:$0xff]
  %v4851 = vld [vmem:[%s4732 + $0x2b9] sm:$0xff]
  %v4852 = vld [vmem:[%s4732 + $0x2c1] sm:$0xff]
  %v4853 = vld [vmem:[%s4732 + $0x2d1] sm:$0xff]
  %v4854 = vld [vmem:[%s4732 + $0x2d9] sm:$0xff]
  %v4855 = vld [vmem:[%s4732 + $0x2e9] sm:$0xff]
  %v4856 = vld [vmem:[%s4732 + $0x2f1] sm:$0xff]
  %v4857 = vld [vmem:[%s4732 + $0x301] sm:$0xff]
  %v4858 = vld [vmem:[%s4732 + $0x309] sm:$0xff]
  %v4859 = vld [vmem:[%s4732 + $0x319] sm:$0xff]
  %v4860 = vld [vmem:[%s4732 + $0x321] sm:$0xff]
  %v4861 = vld [vmem:[%s4732 + $0x2] sm:$0xff]
  %v4862 = vld [vmem:[%s4732 + $0xa] sm:$0xff]
  %v4863 = vld [vmem:[%s4732 + $0x1a] sm:$0xff]
  %v4864 = vld [vmem:[%s4732 + $0x22] sm:$0xff]
  %v4865 = vld [vmem:[%s4732 + $0x32] sm:$0xff]
  %v4866 = vld [vmem:[%s4732 + $0x3a] sm:$0xff]
  %v4867 = vld [vmem:[%s4732 + $0x4a] sm:$0xff]
  %v4868 = vld [vmem:[%s4732 + $0x52] sm:$0xff]
  %v4869 = vld [vmem:[%s4732 + $0x62] sm:$0xff]
  %v4870 = vld [vmem:[%s4732 + $0x6a] sm:$0xff]
  %v4871 = vld [vmem:[%s4732 + $0x7a] sm:$0xff]
  %v4872 = vld [vmem:[%s4732 + $0x82] sm:$0xff]
  %v4873 = vld [vmem:[%s4732 + $0x92] sm:$0xff]
  %v4874 = vld [vmem:[%s4732 + $0x9a] sm:$0xff]
  %v4875 = vld [vmem:[%s4732 + $0xaa] sm:$0xff]
  %v4876 = vld [vmem:[%s4732 + $0xb2] sm:$0xff]
  %v4877 = vld [vmem:[%s4732 + $0xc2] sm:$0xff]
  %v4878 = vld [vmem:[%s4732 + $0xca] sm:$0xff]
  %v4879 = vld [vmem:[%s4732 + $0xda] sm:$0xff]
  %v4880 = vld [vmem:[%s4732 + $0xe2] sm:$0xff]
  %v4881 = vld [vmem:[%s4732 + $0xf2] sm:$0xff]
  %v4882 = vld [vmem:[%s4732 + $0xfa] sm:$0xff]
  %v4883 = vld [vmem:[%s4732 + $0x10a] sm:$0xff]
  %v4884 = vld [vmem:[%s4732 + $0x112] sm:$0xff]
  %v4885 = vld [vmem:[%s4732 + $0x122] sm:$0xff]
  %v4886 = vld [vmem:[%s4732 + $0x12a] sm:$0xff]
  %v4887 = vld [vmem:[%s4732 + $0x13a] sm:$0xff]
  %v4888 = vld [vmem:[%s4732 + $0x142] sm:$0xff]
  %v4889 = vld [vmem:[%s4732 + $0x152] sm:$0xff]
  %v4890 = vld [vmem:[%s4732 + $0x15a] sm:$0xff]
  %v4891 = vld [vmem:[%s4732 + $0x16a] sm:$0xff]
  %v4892 = vld [vmem:[%s4732 + $0x172] sm:$0xff]
  %v4893 = vld [vmem:[%s4732 + $0x1b2] sm:$0xff]
  %v4894 = vld [vmem:[%s4732 + $0x1ba] sm:$0xff]
  %v4895 = vld [vmem:[%s4732 + $0x1ca] sm:$0xff]
  %v4896 = vld [vmem:[%s4732 + $0x1d2] sm:$0xff]
  %v4897 = vld [vmem:[%s4732 + $0x1e2] sm:$0xff]
  %v4898 = vld [vmem:[%s4732 + $0x1ea] sm:$0xff]
  %v4899 = vld [vmem:[%s4732 + $0x1fa] sm:$0xff]
  %v4900 = vld [vmem:[%s4732 + $0x202] sm:$0xff]
  %v4901 = vld [vmem:[%s4732 + $0x212] sm:$0xff]
  %v4902 = vld [vmem:[%s4732 + $0x21a] sm:$0xff]
  %v4903 = vld [vmem:[%s4732 + $0x22a] sm:$0xff]
  %v4904 = vld [vmem:[%s4732 + $0x232] sm:$0xff]
  %v4905 = vld [vmem:[%s4732 + $0x242] sm:$0xff]
  %v4906 = vld [vmem:[%s4732 + $0x24a] sm:$0xff]
  %v4907 = vld [vmem:[%s4732 + $0x25a] sm:$0xff]
  %v4908 = vld [vmem:[%s4732 + $0x262] sm:$0xff]
  %v4909 = vld [vmem:[%s4732 + $0x272] sm:$0xff]
  %v4910 = vld [vmem:[%s4732 + $0x27a] sm:$0xff]
  %v4911 = vld [vmem:[%s4732 + $0x28a] sm:$0xff]
  %v4912 = vld [vmem:[%s4732 + $0x292] sm:$0xff]
  %v4913 = vld [vmem:[%s4732 + $0x2a2] sm:$0xff]
  %v4914 = vld [vmem:[%s4732 + $0x2aa] sm:$0xff]
  %v4915 = vld [vmem:[%s4732 + $0x2ba] sm:$0xff]
  %v4916 = vld [vmem:[%s4732 + $0x2c2] sm:$0xff]
  %v4917 = vld [vmem:[%s4732 + $0x2d2] sm:$0xff]
  %v4918 = vld [vmem:[%s4732 + $0x2da] sm:$0xff]
  %v4919 = vld [vmem:[%s4732 + $0x2ea] sm:$0xff]
  %v4920 = vld [vmem:[%s4732 + $0x2f2] sm:$0xff]
  %v4921 = vld [vmem:[%s4732 + $0x302] sm:$0xff]
  %v4922 = vld [vmem:[%s4732 + $0x30a] sm:$0xff]
  %v4923 = vld [vmem:[%s4732 + $0x31a] sm:$0xff]
  %v4924 = vld [vmem:[%s4732 + $0x322] sm:$0xff]
  %4989 = vrot.lane.b32.xlu0 %v4412, 8
  %v4990 = vpop.permute.xlu0 %4989
  %4991 = vrot.lane.b32.xlu0 %v4413, 8
  %v4992 = vpop.permute.xlu0 %4991
  %4993 = vrot.lane.b32.xlu0 %v4414, 8
  %v4994 = vpop.permute.xlu0 %4993
  %4995 = vrot.lane.b32.xlu0 %v4415, 8
  %v4996 = vpop.permute.xlu0 %4995
  %4997 = vrot.lane.b32.xlu0 %v4416, 8
  %v4998 = vpop.permute.xlu0 %4997
  %4999 = vrot.lane.b32.xlu0 %v4417, 8
  %v5000 = vpop.permute.xlu0 %4999
  %5001 = vrot.lane.b32.xlu0 %v4418, 8
  %v5002 = vpop.permute.xlu0 %5001
  %5003 = vrot.lane.b32.xlu0 %v4419, 8
  %v5004 = vpop.permute.xlu0 %5003
  %5005 = vrot.lane.b32.xlu0 %v4420, 8
  %v5006 = vpop.permute.xlu0 %5005
  %5007 = vrot.lane.b32.xlu0 %v4421, 8
  %v5008 = vpop.permute.xlu0 %5007
  %5009 = vrot.lane.b32.xlu0 %v4422, 8
  %v5010 = vpop.permute.xlu0 %5009
  %5011 = vrot.lane.b32.xlu0 %v4423, 8
  %v5012 = vpop.permute.xlu0 %5011
  %5013 = vrot.lane.b32.xlu0 %v4424, 8
  %v5014 = vpop.permute.xlu0 %5013
  %5015 = vrot.lane.b32.xlu0 %v4425, 8
  %v5016 = vpop.permute.xlu0 %5015
  %5017 = vrot.lane.b32.xlu0 %v4426, 8
  %v5018 = vpop.permute.xlu0 %5017
  %5019 = vrot.lane.b32.xlu0 %v4427, 8
  %v5020 = vpop.permute.xlu0 %5019
  %5021 = vrot.lane.b32.xlu0 %v4428, 8
  %v5022 = vpop.permute.xlu0 %5021
  %5023 = vrot.lane.b32.xlu0 %v4429, 8
  %v5024 = vpop.permute.xlu0 %5023
  %5025 = vrot.lane.b32.xlu0 %v4430, 8
  %v5026 = vpop.permute.xlu0 %5025
  %5027 = vrot.lane.b32.xlu0 %v4431, 8
  %v5028 = vpop.permute.xlu0 %5027
  %5029 = vrot.lane.b32.xlu0 %v4432, 8
  %v5030 = vpop.permute.xlu0 %5029
  %5031 = vrot.lane.b32.xlu0 %v4433, 8
  %v5032 = vpop.permute.xlu0 %5031
  %5033 = vrot.lane.b32.xlu0 %v4434, 8
  %v5034 = vpop.permute.xlu0 %5033
  %5035 = vrot.lane.b32.xlu0 %v4435, 8
  %v5036 = vpop.permute.xlu0 %5035
  %5037 = vrot.lane.b32.xlu0 %v4436, 8
  %v5038 = vpop.permute.xlu0 %5037
  %5039 = vrot.lane.b32.xlu0 %v4437, 8
  %v5040 = vpop.permute.xlu0 %5039
  %5041 = vrot.lane.b32.xlu0 %v4438, 8
  %v5042 = vpop.permute.xlu0 %5041
  %5043 = vrot.lane.b32.xlu0 %v4439, 8
  %v5044 = vpop.permute.xlu0 %5043
  %5045 = vrot.lane.b32.xlu0 %v4440, 8
  %v5046 = vpop.permute.xlu0 %5045
  %5047 = vrot.lane.b32.xlu0 %v4441, 8
  %v5048 = vpop.permute.xlu0 %5047
  %5049 = vrot.lane.b32.xlu0 %v4442, 8
  %v5050 = vpop.permute.xlu0 %5049
  %5051 = vrot.lane.b32.xlu0 %v4443, 8
  %v5052 = vpop.permute.xlu0 %5051
  %5053 = vrot.lane.b32.xlu0 %v4444, 8
  %v5054 = vpop.permute.xlu0 %5053
  %5055 = vrot.lane.b32.xlu0 %v4445, 8
  %v5056 = vpop.permute.xlu0 %5055
  %5057 = vrot.lane.b32.xlu0 %v4446, 8
  %v5058 = vpop.permute.xlu0 %5057
  %5059 = vrot.lane.b32.xlu0 %v4447, 8
  %v5060 = vpop.permute.xlu0 %5059
  %5061 = vrot.lane.b32.xlu0 %v4448, 8
  %v5062 = vpop.permute.xlu0 %5061
  %5063 = vrot.lane.b32.xlu0 %v4449, 8
  %v5064 = vpop.permute.xlu0 %5063
  %5065 = vrot.lane.b32.xlu0 %v4450, 8
  %v5066 = vpop.permute.xlu0 %5065
  %5067 = vrot.lane.b32.xlu0 %v4451, 8
  %v5068 = vpop.permute.xlu0 %5067
  %5069 = vrot.lane.b32.xlu0 %v4452, 8
  %v5070 = vpop.permute.xlu0 %5069
  %5071 = vrot.lane.b32.xlu0 %v4453, 8
  %v5072 = vpop.permute.xlu0 %5071
  %5073 = vrot.lane.b32.xlu0 %v4454, 8
  %v5074 = vpop.permute.xlu0 %5073
  %5075 = vrot.lane.b32.xlu0 %v4455, 8
  %v5076 = vpop.permute.xlu0 %5075
  %5077 = vrot.lane.b32.xlu0 %v4456, 8
  %v5078 = vpop.permute.xlu0 %5077
  %5079 = vrot.lane.b32.xlu0 %v4457, 8
  %v5080 = vpop.permute.xlu0 %5079
  %5081 = vrot.lane.b32.xlu0 %v4458, 8
  %v5082 = vpop.permute.xlu0 %5081
  %5083 = vrot.lane.b32.xlu0 %v4459, 8
  %v5084 = vpop.permute.xlu0 %5083
  %5085 = vrot.lane.b32.xlu0 %v4460, 8
  %v5086 = vpop.permute.xlu0 %5085
  %5087 = vrot.lane.b32.xlu0 %v4461, 8
  %v5088 = vpop.permute.xlu0 %5087
  %5089 = vrot.lane.b32.xlu0 %v4462, 8
  %v5090 = vpop.permute.xlu0 %5089
  %5091 = vrot.lane.b32.xlu0 %v4463, 8
  %v5092 = vpop.permute.xlu0 %5091
  %5093 = vrot.lane.b32.xlu0 %v4464, 8
  %v5094 = vpop.permute.xlu0 %5093
  %5095 = vrot.lane.b32.xlu0 %v4465, 8
  %v5096 = vpop.permute.xlu0 %5095
  %5097 = vrot.lane.b32.xlu0 %v4466, 8
  %v5098 = vpop.permute.xlu0 %5097
  %5099 = vrot.lane.b32.xlu0 %v4467, 8
  %v5100 = vpop.permute.xlu0 %5099
  %5101 = vrot.lane.b32.xlu0 %v4468, 8
  %v5102 = vpop.permute.xlu0 %5101
  %5103 = vrot.lane.b32.xlu0 %v4469, 8
  %v5104 = vpop.permute.xlu0 %5103
  %5105 = vrot.lane.b32.xlu0 %v4470, 8
  %v5106 = vpop.permute.xlu0 %5105
  %5107 = vrot.lane.b32.xlu0 %v4471, 8
  %v5108 = vpop.permute.xlu0 %5107
  %5109 = vrot.lane.b32.xlu0 %v4472, 8
  %v5110 = vpop.permute.xlu0 %5109
  %5111 = vrot.lane.b32.xlu0 %v4473, 8
  %v5112 = vpop.permute.xlu0 %5111
  %5113 = vrot.lane.b32.xlu0 %v4474, 8
  %v5114 = vpop.permute.xlu0 %5113
  %5115 = vrot.lane.b32.xlu0 %v4475, 8
  %v5116 = vpop.permute.xlu0 %5115
  %5245 = vrot.lane.b32.xlu0 %v4476, 16
  %v5246 = vpop.permute.xlu0 %5245
  %5247 = vrot.lane.b32.xlu0 %v4477, 16
  %v5248 = vpop.permute.xlu0 %5247
  %5249 = vrot.lane.b32.xlu0 %v4478, 16
  %v5250 = vpop.permute.xlu0 %5249
  %5251 = vrot.lane.b32.xlu0 %v4479, 16
  %v5252 = vpop.permute.xlu0 %5251
  %5253 = vrot.lane.b32.xlu0 %v4480, 16
  %v5254 = vpop.permute.xlu0 %5253
  %5255 = vrot.lane.b32.xlu0 %v4481, 16
  %v5256 = vpop.permute.xlu0 %5255
  %5257 = vrot.lane.b32.xlu0 %v4482, 16
  %v5258 = vpop.permute.xlu0 %5257
  %5259 = vrot.lane.b32.xlu0 %v4483, 16
  %v5260 = vpop.permute.xlu0 %5259
  %5261 = vrot.lane.b32.xlu0 %v4484, 16
  %v5262 = vpop.permute.xlu0 %5261
  %5263 = vrot.lane.b32.xlu0 %v4485, 16
  %v5264 = vpop.permute.xlu0 %5263
  %5265 = vrot.lane.b32.xlu0 %v4486, 16
  %v5266 = vpop.permute.xlu0 %5265
  %5267 = vrot.lane.b32.xlu0 %v4487, 16
  %v5268 = vpop.permute.xlu0 %5267
  %5269 = vrot.lane.b32.xlu0 %v4488, 16
  %v5270 = vpop.permute.xlu0 %5269
  %5271 = vrot.lane.b32.xlu0 %v4489, 16
  %v5272 = vpop.permute.xlu0 %5271
  %5273 = vrot.lane.b32.xlu0 %v4490, 16
  %v5274 = vpop.permute.xlu0 %5273
  %5275 = vrot.lane.b32.xlu0 %v4491, 16
  %v5276 = vpop.permute.xlu0 %5275
  %5277 = vrot.lane.b32.xlu0 %v4492, 16
  %v5278 = vpop.permute.xlu0 %5277
  %5279 = vrot.lane.b32.xlu0 %v4493, 16
  %v5280 = vpop.permute.xlu0 %5279
  %5281 = vrot.lane.b32.xlu0 %v4494, 16
  %v5282 = vpop.permute.xlu0 %5281
  %5283 = vrot.lane.b32.xlu0 %v4495, 16
  %v5284 = vpop.permute.xlu0 %5283
  %5285 = vrot.lane.b32.xlu0 %v4496, 16
  %v5286 = vpop.permute.xlu0 %5285
  %5287 = vrot.lane.b32.xlu0 %v4497, 16
  %v5288 = vpop.permute.xlu0 %5287
  %5289 = vrot.lane.b32.xlu0 %v4498, 16
  %v5290 = vpop.permute.xlu0 %5289
  %5291 = vrot.lane.b32.xlu0 %v4499, 16
  %v5292 = vpop.permute.xlu0 %5291
  %5293 = vrot.lane.b32.xlu0 %v4500, 16
  %v5294 = vpop.permute.xlu0 %5293
  %5295 = vrot.lane.b32.xlu0 %v4501, 16
  %v5296 = vpop.permute.xlu0 %5295
  %5297 = vrot.lane.b32.xlu0 %v4502, 16
  %v5298 = vpop.permute.xlu0 %5297
  %5299 = vrot.lane.b32.xlu0 %v4503, 16
  %v5300 = vpop.permute.xlu0 %5299
  %5301 = vrot.lane.b32.xlu0 %v4504, 16
  %v5302 = vpop.permute.xlu0 %5301
  %5303 = vrot.lane.b32.xlu0 %v4505, 16
  %v5304 = vpop.permute.xlu0 %5303
  %5305 = vrot.lane.b32.xlu0 %v4506, 16
  %v5306 = vpop.permute.xlu0 %5305
  %5307 = vrot.lane.b32.xlu0 %v4507, 16
  %v5308 = vpop.permute.xlu0 %5307
  %5309 = vrot.lane.b32.xlu0 %v4508, 16
  %v5310 = vpop.permute.xlu0 %5309
  %5311 = vrot.lane.b32.xlu0 %v4509, 16
  %v5312 = vpop.permute.xlu0 %5311
  %5313 = vrot.lane.b32.xlu0 %v4510, 16
  %v5314 = vpop.permute.xlu0 %5313
  %5315 = vrot.lane.b32.xlu0 %v4511, 16
  %v5316 = vpop.permute.xlu0 %5315
  %5317 = vrot.lane.b32.xlu0 %v4512, 16
  %v5318 = vpop.permute.xlu0 %5317
  %5319 = vrot.lane.b32.xlu0 %v4513, 16
  %v5320 = vpop.permute.xlu0 %5319
  %5321 = vrot.lane.b32.xlu0 %v4514, 16
  %v5322 = vpop.permute.xlu0 %5321
  %5323 = vrot.lane.b32.xlu0 %v4515, 16
  %v5324 = vpop.permute.xlu0 %5323
  %5325 = vrot.lane.b32.xlu0 %v4516, 16
  %v5326 = vpop.permute.xlu0 %5325
  %5327 = vrot.lane.b32.xlu0 %v4517, 16
  %v5328 = vpop.permute.xlu0 %5327
  %5329 = vrot.lane.b32.xlu0 %v4518, 16
  %v5330 = vpop.permute.xlu0 %5329
  %5331 = vrot.lane.b32.xlu0 %v4519, 16
  %v5332 = vpop.permute.xlu0 %5331
  %5333 = vrot.lane.b32.xlu0 %v4520, 16
  %v5334 = vpop.permute.xlu0 %5333
  %5335 = vrot.lane.b32.xlu0 %v4521, 16
  %v5336 = vpop.permute.xlu0 %5335
  %5337 = vrot.lane.b32.xlu0 %v4522, 16
  %v5338 = vpop.permute.xlu0 %5337
  %5339 = vrot.lane.b32.xlu0 %v4523, 16
  %v5340 = vpop.permute.xlu0 %5339
  %5341 = vrot.lane.b32.xlu0 %v4524, 16
  %v5342 = vpop.permute.xlu0 %5341
  %5343 = vrot.lane.b32.xlu0 %v4525, 16
  %v5344 = vpop.permute.xlu0 %5343
  %5345 = vrot.lane.b32.xlu0 %v4526, 16
  %v5346 = vpop.permute.xlu0 %5345
  %5347 = vrot.lane.b32.xlu0 %v4527, 16
  %v5348 = vpop.permute.xlu0 %5347
  %5349 = vrot.lane.b32.xlu0 %v4528, 16
  %v5350 = vpop.permute.xlu0 %5349
  %5351 = vrot.lane.b32.xlu0 %v4529, 16
  %v5352 = vpop.permute.xlu0 %5351
  %5353 = vrot.lane.b32.xlu0 %v4530, 16
  %v5354 = vpop.permute.xlu0 %5353
  %5355 = vrot.lane.b32.xlu0 %v4531, 16
  %v5356 = vpop.permute.xlu0 %5355
  %5357 = vrot.lane.b32.xlu0 %v4532, 16
  %v5358 = vpop.permute.xlu0 %5357
  %5359 = vrot.lane.b32.xlu0 %v4533, 16
  %v5360 = vpop.permute.xlu0 %5359
  %5361 = vrot.lane.b32.xlu0 %v4534, 16
  %v5362 = vpop.permute.xlu0 %5361
  %5363 = vrot.lane.b32.xlu0 %v4535, 16
  %v5364 = vpop.permute.xlu0 %5363
  %5365 = vrot.lane.b32.xlu0 %v4536, 16
  %v5366 = vpop.permute.xlu0 %5365
  %5367 = vrot.lane.b32.xlu0 %v4537, 16
  %v5368 = vpop.permute.xlu0 %5367
  %5369 = vrot.lane.b32.xlu0 %v4538, 16
  %v5370 = vpop.permute.xlu0 %5369
  %5371 = vrot.lane.b32.xlu0 %v4539, 16
  %v5372 = vpop.permute.xlu0 %5371
  %5501 = vrot.lane.b32.xlu0 %v4540, 24
  %v5502 = vpop.permute.xlu0 %5501
  %5503 = vrot.lane.b32.xlu0 %v4541, 24
  %v5504 = vpop.permute.xlu0 %5503
  %5505 = vrot.lane.b32.xlu0 %v4542, 24
  %v5506 = vpop.permute.xlu0 %5505
  %5507 = vrot.lane.b32.xlu0 %v4543, 24
  %v5508 = vpop.permute.xlu0 %5507
  %5509 = vrot.lane.b32.xlu0 %v4544, 24
  %v5510 = vpop.permute.xlu0 %5509
  %5511 = vrot.lane.b32.xlu0 %v4545, 24
  %v5512 = vpop.permute.xlu0 %5511
  %5513 = vrot.lane.b32.xlu0 %v4546, 24
  %v5514 = vpop.permute.xlu0 %5513
  %5515 = vrot.lane.b32.xlu0 %v4547, 24
  %v5516 = vpop.permute.xlu0 %5515
  %5517 = vrot.lane.b32.xlu0 %v4548, 24
  %v5518 = vpop.permute.xlu0 %5517
  %5519 = vrot.lane.b32.xlu0 %v4549, 24
  %v5520 = vpop.permute.xlu0 %5519
  %5521 = vrot.lane.b32.xlu0 %v4550, 24
  %v5522 = vpop.permute.xlu0 %5521
  %5523 = vrot.lane.b32.xlu0 %v4551, 24
  %v5524 = vpop.permute.xlu0 %5523
  %5525 = vrot.lane.b32.xlu0 %v4552, 24
  %v5526 = vpop.permute.xlu0 %5525
  %5527 = vrot.lane.b32.xlu0 %v4553, 24
  %v5528 = vpop.permute.xlu0 %5527
  %5529 = vrot.lane.b32.xlu0 %v4554, 24
  %v5530 = vpop.permute.xlu0 %5529
  %5531 = vrot.lane.b32.xlu0 %v4555, 24
  %v5532 = vpop.permute.xlu0 %5531
  %5533 = vrot.lane.b32.xlu0 %v4556, 24
  %v5534 = vpop.permute.xlu0 %5533
  %5535 = vrot.lane.b32.xlu0 %v4557, 24
  %v5536 = vpop.permute.xlu0 %5535
  %5537 = vrot.lane.b32.xlu0 %v4558, 24
  %v5538 = vpop.permute.xlu0 %5537
  %5539 = vrot.lane.b32.xlu0 %v4559, 24
  %v5540 = vpop.permute.xlu0 %5539
  %5541 = vrot.lane.b32.xlu0 %v4560, 24
  %v5542 = vpop.permute.xlu0 %5541
  %5543 = vrot.lane.b32.xlu0 %v4561, 24
  %v5544 = vpop.permute.xlu0 %5543
  %5545 = vrot.lane.b32.xlu0 %v4562, 24
  %v5546 = vpop.permute.xlu0 %5545
  %5547 = vrot.lane.b32.xlu0 %v4563, 24
  %v5548 = vpop.permute.xlu0 %5547
  %5549 = vrot.lane.b32.xlu0 %v4564, 24
  %v5550 = vpop.permute.xlu0 %5549
  %5551 = vrot.lane.b32.xlu0 %v4565, 24
  %v5552 = vpop.permute.xlu0 %5551
  %5553 = vrot.lane.b32.xlu0 %v4566, 24
  %v5554 = vpop.permute.xlu0 %5553
  %5555 = vrot.lane.b32.xlu0 %v4567, 24
  %v5556 = vpop.permute.xlu0 %5555
  %5557 = vrot.lane.b32.xlu0 %v4568, 24
  %v5558 = vpop.permute.xlu0 %5557
  %5559 = vrot.lane.b32.xlu0 %v4569, 24
  %v5560 = vpop.permute.xlu0 %5559
  %5561 = vrot.lane.b32.xlu0 %v4570, 24
  %v5562 = vpop.permute.xlu0 %5561
  %5563 = vrot.lane.b32.xlu0 %v4571, 24
  %v5564 = vpop.permute.xlu0 %5563
  %5565 = vrot.lane.b32.xlu0 %v4572, 24
  %v5566 = vpop.permute.xlu0 %5565
  %5567 = vrot.lane.b32.xlu0 %v4573, 24
  %v5568 = vpop.permute.xlu0 %5567
  %5569 = vrot.lane.b32.xlu0 %v4574, 24
  %v5570 = vpop.permute.xlu0 %5569
  %5571 = vrot.lane.b32.xlu0 %v4575, 24
  %v5572 = vpop.permute.xlu0 %5571
  %5573 = vrot.lane.b32.xlu0 %v4576, 24
  %v5574 = vpop.permute.xlu0 %5573
  %5575 = vrot.lane.b32.xlu0 %v4577, 24
  %v5576 = vpop.permute.xlu0 %5575
  %5577 = vrot.lane.b32.xlu0 %v4578, 24
  %v5578 = vpop.permute.xlu0 %5577
  %5579 = vrot.lane.b32.xlu0 %v4579, 24
  %v5580 = vpop.permute.xlu0 %5579
  %5581 = vrot.lane.b32.xlu0 %v4580, 24
  %v5582 = vpop.permute.xlu0 %5581
  %5583 = vrot.lane.b32.xlu0 %v4581, 24
  %v5584 = vpop.permute.xlu0 %5583
  %5585 = vrot.lane.b32.xlu0 %v4582, 24
  %v5586 = vpop.permute.xlu0 %5585
  %5587 = vrot.lane.b32.xlu0 %v4583, 24
  %v5588 = vpop.permute.xlu0 %5587
  %5589 = vrot.lane.b32.xlu0 %v4584, 24
  %v5590 = vpop.permute.xlu0 %5589
  %5591 = vrot.lane.b32.xlu0 %v4585, 24
  %v5592 = vpop.permute.xlu0 %5591
  %5593 = vrot.lane.b32.xlu0 %v4586, 24
  %v5594 = vpop.permute.xlu0 %5593
  %5595 = vrot.lane.b32.xlu0 %v4587, 24
  %v5596 = vpop.permute.xlu0 %5595
  %5597 = vrot.lane.b32.xlu0 %v4588, 24
  %v5598 = vpop.permute.xlu0 %5597
  %5599 = vrot.lane.b32.xlu0 %v4589, 24
  %v5600 = vpop.permute.xlu0 %5599
  %5601 = vrot.lane.b32.xlu0 %v4590, 24
  %v5602 = vpop.permute.xlu0 %5601
  %5603 = vrot.lane.b32.xlu0 %v4591, 24
  %v5604 = vpop.permute.xlu0 %5603
  %5605 = vrot.lane.b32.xlu0 %v4592, 24
  %v5606 = vpop.permute.xlu0 %5605
  %5607 = vrot.lane.b32.xlu0 %v4593, 24
  %v5608 = vpop.permute.xlu0 %5607
  %5609 = vrot.lane.b32.xlu0 %v4594, 24
  %v5610 = vpop.permute.xlu0 %5609
  %5611 = vrot.lane.b32.xlu0 %v4595, 24
  %v5612 = vpop.permute.xlu0 %5611
  %5613 = vrot.lane.b32.xlu0 %v4596, 24
  %v5614 = vpop.permute.xlu0 %5613
  %5615 = vrot.lane.b32.xlu0 %v4597, 24
  %v5616 = vpop.permute.xlu0 %5615
  %5617 = vrot.lane.b32.xlu0 %v4598, 24
  %v5618 = vpop.permute.xlu0 %5617
  %5619 = vrot.lane.b32.xlu0 %v4599, 24
  %v5620 = vpop.permute.xlu0 %5619
  %5621 = vrot.lane.b32.xlu0 %v4600, 24
  %v5622 = vpop.permute.xlu0 %5621
  %5623 = vrot.lane.b32.xlu0 %v4601, 24
  %v5624 = vpop.permute.xlu0 %5623
  %5625 = vrot.lane.b32.xlu0 %v4602, 24
  %v5626 = vpop.permute.xlu0 %5625
  %5627 = vrot.lane.b32.xlu0 %v4603, 24
  %v5628 = vpop.permute.xlu0 %5627
  %5757 = vrot.lane.b32.xlu0 %v4604, 32
  %v5758 = vpop.permute.xlu0 %5757
  %5759 = vrot.lane.b32.xlu0 %v4605, 32
  %v5760 = vpop.permute.xlu0 %5759
  %5761 = vrot.lane.b32.xlu0 %v4606, 32
  %v5762 = vpop.permute.xlu0 %5761
  %5763 = vrot.lane.b32.xlu0 %v4607, 32
  %v5764 = vpop.permute.xlu0 %5763
  %5765 = vrot.lane.b32.xlu0 %v4608, 32
  %v5766 = vpop.permute.xlu0 %5765
  %5767 = vrot.lane.b32.xlu0 %v4609, 32
  %v5768 = vpop.permute.xlu0 %5767
  %5769 = vrot.lane.b32.xlu0 %v4610, 32
  %v5770 = vpop.permute.xlu0 %5769
  %5771 = vrot.lane.b32.xlu0 %v4611, 32
  %v5772 = vpop.permute.xlu0 %5771
  %5773 = vrot.lane.b32.xlu0 %v4612, 32
  %v5774 = vpop.permute.xlu0 %5773
  %5775 = vrot.lane.b32.xlu0 %v4613, 32
  %v5776 = vpop.permute.xlu0 %5775
  %5777 = vrot.lane.b32.xlu0 %v4614, 32
  %v5778 = vpop.permute.xlu0 %5777
  %5779 = vrot.lane.b32.xlu0 %v4615, 32
  %v5780 = vpop.permute.xlu0 %5779
  %5781 = vrot.lane.b32.xlu0 %v4616, 32
  %v5782 = vpop.permute.xlu0 %5781
  %5783 = vrot.lane.b32.xlu0 %v4617, 32
  %v5784 = vpop.permute.xlu0 %5783
  %5785 = vrot.lane.b32.xlu0 %v4618, 32
  %v5786 = vpop.permute.xlu0 %5785
  %5787 = vrot.lane.b32.xlu0 %v4619, 32
  %v5788 = vpop.permute.xlu0 %5787
  %5789 = vrot.lane.b32.xlu0 %v4620, 32
  %v5790 = vpop.permute.xlu0 %5789
  %5791 = vrot.lane.b32.xlu0 %v4621, 32
  %v5792 = vpop.permute.xlu0 %5791
  %5793 = vrot.lane.b32.xlu0 %v4622, 32
  %v5794 = vpop.permute.xlu0 %5793
  %5795 = vrot.lane.b32.xlu0 %v4623, 32
  %v5796 = vpop.permute.xlu0 %5795
  %5797 = vrot.lane.b32.xlu0 %v4624, 32
  %v5798 = vpop.permute.xlu0 %5797
  %5799 = vrot.lane.b32.xlu0 %v4625, 32
  %v5800 = vpop.permute.xlu0 %5799
  %5801 = vrot.lane.b32.xlu0 %v4626, 32
  %v5802 = vpop.permute.xlu0 %5801
  %5803 = vrot.lane.b32.xlu0 %v4627, 32
  %v5804 = vpop.permute.xlu0 %5803
  %5805 = vrot.lane.b32.xlu0 %v4628, 32
  %v5806 = vpop.permute.xlu0 %5805
  %5807 = vrot.lane.b32.xlu0 %v4629, 32
  %v5808 = vpop.permute.xlu0 %5807
  %5809 = vrot.lane.b32.xlu0 %v4630, 32
  %v5810 = vpop.permute.xlu0 %5809
  %5811 = vrot.lane.b32.xlu0 %v4631, 32
  %v5812 = vpop.permute.xlu0 %5811
  %5813 = vrot.lane.b32.xlu0 %v4632, 32
  %v5814 = vpop.permute.xlu0 %5813
  %5815 = vrot.lane.b32.xlu0 %v4633, 32
  %v5816 = vpop.permute.xlu0 %5815
  %5817 = vrot.lane.b32.xlu0 %v4634, 32
  %v5818 = vpop.permute.xlu0 %5817
  %5819 = vrot.lane.b32.xlu0 %v4635, 32
  %v5820 = vpop.permute.xlu0 %5819
  %5821 = vrot.lane.b32.xlu0 %v4636, 32
  %v5822 = vpop.permute.xlu0 %5821
  %5823 = vrot.lane.b32.xlu0 %v4637, 32
  %v5824 = vpop.permute.xlu0 %5823
  %5825 = vrot.lane.b32.xlu0 %v4638, 32
  %v5826 = vpop.permute.xlu0 %5825
  %5827 = vrot.lane.b32.xlu0 %v4639, 32
  %v5828 = vpop.permute.xlu0 %5827
  %5829 = vrot.lane.b32.xlu0 %v4640, 32
  %v5830 = vpop.permute.xlu0 %5829
  %5831 = vrot.lane.b32.xlu0 %v4641, 32
  %v5832 = vpop.permute.xlu0 %5831
  %5833 = vrot.lane.b32.xlu0 %v4642, 32
  %v5834 = vpop.permute.xlu0 %5833
  %5835 = vrot.lane.b32.xlu0 %v4643, 32
  %v5836 = vpop.permute.xlu0 %5835
  %5837 = vrot.lane.b32.xlu0 %v4644, 32
  %v5838 = vpop.permute.xlu0 %5837
  %5839 = vrot.lane.b32.xlu0 %v4645, 32
  %v5840 = vpop.permute.xlu0 %5839
  %5841 = vrot.lane.b32.xlu0 %v4646, 32
  %v5842 = vpop.permute.xlu0 %5841
  %5843 = vrot.lane.b32.xlu0 %v4647, 32
  %v5844 = vpop.permute.xlu0 %5843
  %5845 = vrot.lane.b32.xlu0 %v4648, 32
  %v5846 = vpop.permute.xlu0 %5845
  %5847 = vrot.lane.b32.xlu0 %v4649, 32
  %v5848 = vpop.permute.xlu0 %5847
  %5849 = vrot.lane.b32.xlu0 %v4650, 32
  %v5850 = vpop.permute.xlu0 %5849
  %5851 = vrot.lane.b32.xlu0 %v4651, 32
  %v5852 = vpop.permute.xlu0 %5851
  %5853 = vrot.lane.b32.xlu0 %v4652, 32
  %v5854 = vpop.permute.xlu0 %5853
  %5855 = vrot.lane.b32.xlu0 %v4653, 32
  %v5856 = vpop.permute.xlu0 %5855
  %5857 = vrot.lane.b32.xlu0 %v4654, 32
  %v5858 = vpop.permute.xlu0 %5857
  %5859 = vrot.lane.b32.xlu0 %v4655, 32
  %v5860 = vpop.permute.xlu0 %5859
  %5861 = vrot.lane.b32.xlu0 %v4656, 32
  %v5862 = vpop.permute.xlu0 %5861
  %5863 = vrot.lane.b32.xlu0 %v4657, 32
  %v5864 = vpop.permute.xlu0 %5863
  %5865 = vrot.lane.b32.xlu0 %v4658, 32
  %v5866 = vpop.permute.xlu0 %5865
  %5867 = vrot.lane.b32.xlu0 %v4659, 32
  %v5868 = vpop.permute.xlu0 %5867
  %5869 = vrot.lane.b32.xlu0 %v4660, 32
  %v5870 = vpop.permute.xlu0 %5869
  %5871 = vrot.lane.b32.xlu0 %v4661, 32
  %v5872 = vpop.permute.xlu0 %5871
  %5873 = vrot.lane.b32.xlu0 %v4662, 32
  %v5874 = vpop.permute.xlu0 %5873
  %5875 = vrot.lane.b32.xlu0 %v4663, 32
  %v5876 = vpop.permute.xlu0 %5875
  %5877 = vrot.lane.b32.xlu0 %v4664, 32
  %v5878 = vpop.permute.xlu0 %5877
  %5879 = vrot.lane.b32.xlu0 %v4665, 32
  %v5880 = vpop.permute.xlu0 %5879
  %5881 = vrot.lane.b32.xlu0 %v4666, 32
  %v5882 = vpop.permute.xlu0 %5881
  %5883 = vrot.lane.b32.xlu0 %v4667, 32
  %v5884 = vpop.permute.xlu0 %5883
  %6013 = vrot.lane.b32.xlu0 %v4668, 40
  %v6014 = vpop.permute.xlu0 %6013
  %6015 = vrot.lane.b32.xlu0 %v4669, 40
  %v6016 = vpop.permute.xlu0 %6015
  %6017 = vrot.lane.b32.xlu0 %v4670, 40
  %v6018 = vpop.permute.xlu0 %6017
  %6019 = vrot.lane.b32.xlu0 %v4671, 40
  %v6020 = vpop.permute.xlu0 %6019
  %6021 = vrot.lane.b32.xlu0 %v4672, 40
  %v6022 = vpop.permute.xlu0 %6021
  %6023 = vrot.lane.b32.xlu0 %v4673, 40
  %v6024 = vpop.permute.xlu0 %6023
  %6025 = vrot.lane.b32.xlu0 %v4674, 40
  %v6026 = vpop.permute.xlu0 %6025
  %6027 = vrot.lane.b32.xlu0 %v4675, 40
  %v6028 = vpop.permute.xlu0 %6027
  %6029 = vrot.lane.b32.xlu0 %v4676, 40
  %v6030 = vpop.permute.xlu0 %6029
  %6031 = vrot.lane.b32.xlu0 %v4677, 40
  %v6032 = vpop.permute.xlu0 %6031
  %6033 = vrot.lane.b32.xlu0 %v4678, 40
  %v6034 = vpop.permute.xlu0 %6033
  %6035 = vrot.lane.b32.xlu0 %v4679, 40
  %v6036 = vpop.permute.xlu0 %6035
  %6037 = vrot.lane.b32.xlu0 %v4680, 40
  %v6038 = vpop.permute.xlu0 %6037
  %6039 = vrot.lane.b32.xlu0 %v4681, 40
  %v6040 = vpop.permute.xlu0 %6039
  %6041 = vrot.lane.b32.xlu0 %v4682, 40
  %v6042 = vpop.permute.xlu0 %6041
  %6043 = vrot.lane.b32.xlu0 %v4683, 40
  %v6044 = vpop.permute.xlu0 %6043
  %6045 = vrot.lane.b32.xlu0 %v4684, 40
  %v6046 = vpop.permute.xlu0 %6045
  %6047 = vrot.lane.b32.xlu0 %v4685, 40
  %v6048 = vpop.permute.xlu0 %6047
  %6049 = vrot.lane.b32.xlu0 %v4686, 40
  %v6050 = vpop.permute.xlu0 %6049
  %6051 = vrot.lane.b32.xlu0 %v4687, 40
  %v6052 = vpop.permute.xlu0 %6051
  %6053 = vrot.lane.b32.xlu0 %v4688, 40
  %v6054 = vpop.permute.xlu0 %6053
  %6055 = vrot.lane.b32.xlu0 %v4689, 40
  %v6056 = vpop.permute.xlu0 %6055
  %6057 = vrot.lane.b32.xlu0 %v4690, 40
  %v6058 = vpop.permute.xlu0 %6057
  %6059 = vrot.lane.b32.xlu0 %v4691, 40
  %v6060 = vpop.permute.xlu0 %6059
  %6061 = vrot.lane.b32.xlu0 %v4692, 40
  %v6062 = vpop.permute.xlu0 %6061
  %6063 = vrot.lane.b32.xlu0 %v4693, 40
  %v6064 = vpop.permute.xlu0 %6063
  %6065 = vrot.lane.b32.xlu0 %v4694, 40
  %v6066 = vpop.permute.xlu0 %6065
  %6067 = vrot.lane.b32.xlu0 %v4695, 40
  %v6068 = vpop.permute.xlu0 %6067
  %6069 = vrot.lane.b32.xlu0 %v4696, 40
  %v6070 = vpop.permute.xlu0 %6069
  %6071 = vrot.lane.b32.xlu0 %v4697, 40
  %v6072 = vpop.permute.xlu0 %6071
  %6073 = vrot.lane.b32.xlu0 %v4698, 40
  %v6074 = vpop.permute.xlu0 %6073
  %6075 = vrot.lane.b32.xlu0 %v4699, 40
  %v6076 = vpop.permute.xlu0 %6075
  %6077 = vrot.lane.b32.xlu0 %v4700, 40
  %v6078 = vpop.permute.xlu0 %6077
  %6079 = vrot.lane.b32.xlu0 %v4701, 40
  %v6080 = vpop.permute.xlu0 %6079
  %6081 = vrot.lane.b32.xlu0 %v4702, 40
  %v6082 = vpop.permute.xlu0 %6081
  %6083 = vrot.lane.b32.xlu0 %v4703, 40
  %v6084 = vpop.permute.xlu0 %6083
  %6085 = vrot.lane.b32.xlu0 %v4704, 40
  %v6086 = vpop.permute.xlu0 %6085
  %6087 = vrot.lane.b32.xlu0 %v4705, 40
  %v6088 = vpop.permute.xlu0 %6087
  %6089 = vrot.lane.b32.xlu0 %v4706, 40
  %v6090 = vpop.permute.xlu0 %6089
  %6091 = vrot.lane.b32.xlu0 %v4707, 40
  %v6092 = vpop.permute.xlu0 %6091
  %6093 = vrot.lane.b32.xlu0 %v4708, 40
  %v6094 = vpop.permute.xlu0 %6093
  %6095 = vrot.lane.b32.xlu0 %v4709, 40
  %v6096 = vpop.permute.xlu0 %6095
  %6097 = vrot.lane.b32.xlu0 %v4710, 40
  %v6098 = vpop.permute.xlu0 %6097
  %6099 = vrot.lane.b32.xlu0 %v4711, 40
  %v6100 = vpop.permute.xlu0 %6099
  %6101 = vrot.lane.b32.xlu0 %v4712, 40
  %v6102 = vpop.permute.xlu0 %6101
  %6103 = vrot.lane.b32.xlu0 %v4713, 40
  %v6104 = vpop.permute.xlu0 %6103
  %6105 = vrot.lane.b32.xlu0 %v4714, 40
  %v6106 = vpop.permute.xlu0 %6105
  %6107 = vrot.lane.b32.xlu0 %v4715, 40
  %v6108 = vpop.permute.xlu0 %6107
  %6109 = vrot.lane.b32.xlu0 %v4716, 40
  %v6110 = vpop.permute.xlu0 %6109
  %6111 = vrot.lane.b32.xlu0 %v4717, 40
  %v6112 = vpop.permute.xlu0 %6111
  %6113 = vrot.lane.b32.xlu0 %v4718, 40
  %v6114 = vpop.permute.xlu0 %6113
  %6115 = vrot.lane.b32.xlu0 %v4719, 40
  %v6116 = vpop.permute.xlu0 %6115
  %6117 = vrot.lane.b32.xlu0 %v4720, 40
  %v6118 = vpop.permute.xlu0 %6117
  %6119 = vrot.lane.b32.xlu0 %v4721, 40
  %v6120 = vpop.permute.xlu0 %6119
  %6121 = vrot.lane.b32.xlu0 %v4722, 40
  %v6122 = vpop.permute.xlu0 %6121
  %6123 = vrot.lane.b32.xlu0 %v4723, 40
  %v6124 = vpop.permute.xlu0 %6123
  %6125 = vrot.lane.b32.xlu0 %v4724, 40
  %v6126 = vpop.permute.xlu0 %6125
  %6127 = vrot.lane.b32.xlu0 %v4725, 40
  %v6128 = vpop.permute.xlu0 %6127
  %6129 = vrot.lane.b32.xlu0 %v4726, 40
  %v6130 = vpop.permute.xlu0 %6129
  %6131 = vrot.lane.b32.xlu0 %v4727, 40
  %v6132 = vpop.permute.xlu0 %6131
  %6133 = vrot.lane.b32.xlu0 %v4728, 40
  %v6134 = vpop.permute.xlu0 %6133
  %6135 = vrot.lane.b32.xlu0 %v4729, 40
  %v6136 = vpop.permute.xlu0 %6135
  %6137 = vrot.lane.b32.xlu0 %v4730, 40
  %v6138 = vpop.permute.xlu0 %6137
  %6139 = vrot.lane.b32.xlu0 %v4731, 40
  %v6140 = vpop.permute.xlu0 %6139
  %6269 = vrot.lane.b32.xlu0 %v4733, 48
  %v6270 = vpop.permute.xlu0 %6269
  %6271 = vrot.lane.b32.xlu0 %v4734, 48
  %v6272 = vpop.permute.xlu0 %6271
  %6273 = vrot.lane.b32.xlu0 %v4735, 48
  %v6274 = vpop.permute.xlu0 %6273
  %6275 = vrot.lane.b32.xlu0 %v4736, 48
  %v6276 = vpop.permute.xlu0 %6275
  %6277 = vrot.lane.b32.xlu0 %v4737, 48
  %v6278 = vpop.permute.xlu0 %6277
  %6279 = vrot.lane.b32.xlu0 %v4738, 48
  %v6280 = vpop.permute.xlu0 %6279
  %6281 = vrot.lane.b32.xlu0 %v4739, 48
  %v6282 = vpop.permute.xlu0 %6281
  %6283 = vrot.lane.b32.xlu0 %v4740, 48
  %v6284 = vpop.permute.xlu0 %6283
  %6285 = vrot.lane.b32.xlu0 %v4741, 48
  %v6286 = vpop.permute.xlu0 %6285
  %6287 = vrot.lane.b32.xlu0 %v4742, 48
  %v6288 = vpop.permute.xlu0 %6287
  %6289 = vrot.lane.b32.xlu0 %v4743, 48
  %v6290 = vpop.permute.xlu0 %6289
  %6291 = vrot.lane.b32.xlu0 %v4744, 48
  %v6292 = vpop.permute.xlu0 %6291
  %6293 = vrot.lane.b32.xlu0 %v4745, 48
  %v6294 = vpop.permute.xlu0 %6293
  %6295 = vrot.lane.b32.xlu0 %v4746, 48
  %v6296 = vpop.permute.xlu0 %6295
  %6297 = vrot.lane.b32.xlu0 %v4747, 48
  %v6298 = vpop.permute.xlu0 %6297
  %6299 = vrot.lane.b32.xlu0 %v4748, 48
  %v6300 = vpop.permute.xlu0 %6299
  %6301 = vrot.lane.b32.xlu0 %v4749, 48
  %v6302 = vpop.permute.xlu0 %6301
  %6303 = vrot.lane.b32.xlu0 %v4750, 48
  %v6304 = vpop.permute.xlu0 %6303
  %6305 = vrot.lane.b32.xlu0 %v4751, 48
  %v6306 = vpop.permute.xlu0 %6305
  %6307 = vrot.lane.b32.xlu0 %v4752, 48
  %v6308 = vpop.permute.xlu0 %6307
  %6309 = vrot.lane.b32.xlu0 %v4753, 48
  %v6310 = vpop.permute.xlu0 %6309
  %6311 = vrot.lane.b32.xlu0 %v4754, 48
  %v6312 = vpop.permute.xlu0 %6311
  %6313 = vrot.lane.b32.xlu0 %v4755, 48
  %v6314 = vpop.permute.xlu0 %6313
  %6315 = vrot.lane.b32.xlu0 %v4756, 48
  %v6316 = vpop.permute.xlu0 %6315
  %6317 = vrot.lane.b32.xlu0 %v4757, 48
  %v6318 = vpop.permute.xlu0 %6317
  %6319 = vrot.lane.b32.xlu0 %v4758, 48
  %v6320 = vpop.permute.xlu0 %6319
  %6321 = vrot.lane.b32.xlu0 %v4759, 48
  %v6322 = vpop.permute.xlu0 %6321
  %6323 = vrot.lane.b32.xlu0 %v4760, 48
  %v6324 = vpop.permute.xlu0 %6323
  %6325 = vrot.lane.b32.xlu0 %v4761, 48
  %v6326 = vpop.permute.xlu0 %6325
  %6327 = vrot.lane.b32.xlu0 %v4762, 48
  %v6328 = vpop.permute.xlu0 %6327
  %6329 = vrot.lane.b32.xlu0 %v4763, 48
  %v6330 = vpop.permute.xlu0 %6329
  %6331 = vrot.lane.b32.xlu0 %v4764, 48
  %v6332 = vpop.permute.xlu0 %6331
  %6333 = vrot.lane.b32.xlu0 %v4765, 48
  %v6334 = vpop.permute.xlu0 %6333
  %6335 = vrot.lane.b32.xlu0 %v4766, 48
  %v6336 = vpop.permute.xlu0 %6335
  %6337 = vrot.lane.b32.xlu0 %v4767, 48
  %v6338 = vpop.permute.xlu0 %6337
  %6339 = vrot.lane.b32.xlu0 %v4768, 48
  %v6340 = vpop.permute.xlu0 %6339
  %6341 = vrot.lane.b32.xlu0 %v4769, 48
  %v6342 = vpop.permute.xlu0 %6341
  %6343 = vrot.lane.b32.xlu0 %v4770, 48
  %v6344 = vpop.permute.xlu0 %6343
  %6345 = vrot.lane.b32.xlu0 %v4771, 48
  %v6346 = vpop.permute.xlu0 %6345
  %6347 = vrot.lane.b32.xlu0 %v4772, 48
  %v6348 = vpop.permute.xlu0 %6347
  %6349 = vrot.lane.b32.xlu0 %v4773, 48
  %v6350 = vpop.permute.xlu0 %6349
  %6351 = vrot.lane.b32.xlu0 %v4774, 48
  %v6352 = vpop.permute.xlu0 %6351
  %6353 = vrot.lane.b32.xlu0 %v4775, 48
  %v6354 = vpop.permute.xlu0 %6353
  %6355 = vrot.lane.b32.xlu0 %v4776, 48
  %v6356 = vpop.permute.xlu0 %6355
  %6357 = vrot.lane.b32.xlu0 %v4777, 48
  %v6358 = vpop.permute.xlu0 %6357
  %6359 = vrot.lane.b32.xlu0 %v4778, 48
  %v6360 = vpop.permute.xlu0 %6359
  %6361 = vrot.lane.b32.xlu0 %v4779, 48
  %v6362 = vpop.permute.xlu0 %6361
  %6363 = vrot.lane.b32.xlu0 %v4780, 48
  %v6364 = vpop.permute.xlu0 %6363
  %6365 = vrot.lane.b32.xlu0 %v4781, 48
  %v6366 = vpop.permute.xlu0 %6365
  %6367 = vrot.lane.b32.xlu0 %v4782, 48
  %v6368 = vpop.permute.xlu0 %6367
  %6369 = vrot.lane.b32.xlu0 %v4783, 48
  %v6370 = vpop.permute.xlu0 %6369
  %6371 = vrot.lane.b32.xlu0 %v4784, 48
  %v6372 = vpop.permute.xlu0 %6371
  %6373 = vrot.lane.b32.xlu0 %v4785, 48
  %v6374 = vpop.permute.xlu0 %6373
  %6375 = vrot.lane.b32.xlu0 %v4786, 48
  %v6376 = vpop.permute.xlu0 %6375
  %6377 = vrot.lane.b32.xlu0 %v4787, 48
  %v6378 = vpop.permute.xlu0 %6377
  %6379 = vrot.lane.b32.xlu0 %v4788, 48
  %v6380 = vpop.permute.xlu0 %6379
  %6381 = vrot.lane.b32.xlu0 %v4789, 48
  %v6382 = vpop.permute.xlu0 %6381
  %6383 = vrot.lane.b32.xlu0 %v4790, 48
  %v6384 = vpop.permute.xlu0 %6383
  %6385 = vrot.lane.b32.xlu0 %v4791, 48
  %v6386 = vpop.permute.xlu0 %6385
  %6387 = vrot.lane.b32.xlu0 %v4792, 48
  %v6388 = vpop.permute.xlu0 %6387
  %6389 = vrot.lane.b32.xlu0 %v4793, 48
  %v6390 = vpop.permute.xlu0 %6389
  %6391 = vrot.lane.b32.xlu0 %v4794, 48
  %v6392 = vpop.permute.xlu0 %6391
  %6393 = vrot.lane.b32.xlu0 %v4795, 48
  %v6394 = vpop.permute.xlu0 %6393
  %6395 = vrot.lane.b32.xlu0 %v4796, 48
  %v6396 = vpop.permute.xlu0 %6395
  %6525 = vrot.lane.b32.xlu0 %v4797, 56
  %v6526 = vpop.permute.xlu0 %6525
  %6527 = vrot.lane.b32.xlu0 %v4798, 56
  %v6528 = vpop.permute.xlu0 %6527
  %6529 = vrot.lane.b32.xlu0 %v4799, 56
  %v6530 = vpop.permute.xlu0 %6529
  %6531 = vrot.lane.b32.xlu0 %v4800, 56
  %v6532 = vpop.permute.xlu0 %6531
  %6533 = vrot.lane.b32.xlu0 %v4801, 56
  %v6534 = vpop.permute.xlu0 %6533
  %6535 = vrot.lane.b32.xlu0 %v4802, 56
  %v6536 = vpop.permute.xlu0 %6535
  %6537 = vrot.lane.b32.xlu0 %v4803, 56
  %v6538 = vpop.permute.xlu0 %6537
  %6539 = vrot.lane.b32.xlu0 %v4804, 56
  %v6540 = vpop.permute.xlu0 %6539
  %6541 = vrot.lane.b32.xlu0 %v4805, 56
  %v6542 = vpop.permute.xlu0 %6541
  %6543 = vrot.lane.b32.xlu0 %v4806, 56
  %v6544 = vpop.permute.xlu0 %6543
  %6545 = vrot.lane.b32.xlu0 %v4807, 56
  %v6546 = vpop.permute.xlu0 %6545
  %6547 = vrot.lane.b32.xlu0 %v4808, 56
  %v6548 = vpop.permute.xlu0 %6547
  %6549 = vrot.lane.b32.xlu0 %v4809, 56
  %v6550 = vpop.permute.xlu0 %6549
  %6551 = vrot.lane.b32.xlu0 %v4810, 56
  %v6552 = vpop.permute.xlu0 %6551
  %6553 = vrot.lane.b32.xlu0 %v4811, 56
  %v6554 = vpop.permute.xlu0 %6553
  %6555 = vrot.lane.b32.xlu0 %v4812, 56
  %v6556 = vpop.permute.xlu0 %6555
  %6557 = vrot.lane.b32.xlu0 %v4813, 56
  %v6558 = vpop.permute.xlu0 %6557
  %6559 = vrot.lane.b32.xlu0 %v4814, 56
  %v6560 = vpop.permute.xlu0 %6559
  %6561 = vrot.lane.b32.xlu0 %v4815, 56
  %v6562 = vpop.permute.xlu0 %6561
  %6563 = vrot.lane.b32.xlu0 %v4816, 56
  %v6564 = vpop.permute.xlu0 %6563
  %6565 = vrot.lane.b32.xlu0 %v4817, 56
  %v6566 = vpop.permute.xlu0 %6565
  %6567 = vrot.lane.b32.xlu0 %v4818, 56
  %v6568 = vpop.permute.xlu0 %6567
  %6569 = vrot.lane.b32.xlu0 %v4819, 56
  %v6570 = vpop.permute.xlu0 %6569
  %6571 = vrot.lane.b32.xlu0 %v4820, 56
  %v6572 = vpop.permute.xlu0 %6571
  %6573 = vrot.lane.b32.xlu0 %v4821, 56
  %v6574 = vpop.permute.xlu0 %6573
  %6575 = vrot.lane.b32.xlu0 %v4822, 56
  %v6576 = vpop.permute.xlu0 %6575
  %6577 = vrot.lane.b32.xlu0 %v4823, 56
  %v6578 = vpop.permute.xlu0 %6577
  %6579 = vrot.lane.b32.xlu0 %v4824, 56
  %v6580 = vpop.permute.xlu0 %6579
  %6581 = vrot.lane.b32.xlu0 %v4825, 56
  %v6582 = vpop.permute.xlu0 %6581
  %6583 = vrot.lane.b32.xlu0 %v4826, 56
  %v6584 = vpop.permute.xlu0 %6583
  %6585 = vrot.lane.b32.xlu0 %v4827, 56
  %v6586 = vpop.permute.xlu0 %6585
  %6587 = vrot.lane.b32.xlu0 %v4828, 56
  %v6588 = vpop.permute.xlu0 %6587
  %6589 = vrot.lane.b32.xlu0 %v4829, 56
  %v6590 = vpop.permute.xlu0 %6589
  %6591 = vrot.lane.b32.xlu0 %v4830, 56
  %v6592 = vpop.permute.xlu0 %6591
  %6593 = vrot.lane.b32.xlu0 %v4831, 56
  %v6594 = vpop.permute.xlu0 %6593
  %6595 = vrot.lane.b32.xlu0 %v4832, 56
  %v6596 = vpop.permute.xlu0 %6595
  %6597 = vrot.lane.b32.xlu0 %v4833, 56
  %v6598 = vpop.permute.xlu0 %6597
  %6599 = vrot.lane.b32.xlu0 %v4834, 56
  %v6600 = vpop.permute.xlu0 %6599
  %6601 = vrot.lane.b32.xlu0 %v4835, 56
  %v6602 = vpop.permute.xlu0 %6601
  %6603 = vrot.lane.b32.xlu0 %v4836, 56
  %v6604 = vpop.permute.xlu0 %6603
  %6605 = vrot.lane.b32.xlu0 %v4837, 56
  %v6606 = vpop.permute.xlu0 %6605
  %6607 = vrot.lane.b32.xlu0 %v4838, 56
  %v6608 = vpop.permute.xlu0 %6607
  %6609 = vrot.lane.b32.xlu0 %v4839, 56
  %v6610 = vpop.permute.xlu0 %6609
  %6611 = vrot.lane.b32.xlu0 %v4840, 56
  %v6612 = vpop.permute.xlu0 %6611
  %6613 = vrot.lane.b32.xlu0 %v4841, 56
  %v6614 = vpop.permute.xlu0 %6613
  %6615 = vrot.lane.b32.xlu0 %v4842, 56
  %v6616 = vpop.permute.xlu0 %6615
  %6617 = vrot.lane.b32.xlu0 %v4843, 56
  %v6618 = vpop.permute.xlu0 %6617
  %6619 = vrot.lane.b32.xlu0 %v4844, 56
  %v6620 = vpop.permute.xlu0 %6619
  %6621 = vrot.lane.b32.xlu0 %v4845, 56
  %v6622 = vpop.permute.xlu0 %6621
  %6623 = vrot.lane.b32.xlu0 %v4846, 56
  %v6624 = vpop.permute.xlu0 %6623
  %6625 = vrot.lane.b32.xlu0 %v4847, 56
  %v6626 = vpop.permute.xlu0 %6625
  %6627 = vrot.lane.b32.xlu0 %v4848, 56
  %v6628 = vpop.permute.xlu0 %6627
  %6629 = vrot.lane.b32.xlu0 %v4849, 56
  %v6630 = vpop.permute.xlu0 %6629
  %6631 = vrot.lane.b32.xlu0 %v4850, 56
  %v6632 = vpop.permute.xlu0 %6631
  %6633 = vrot.lane.b32.xlu0 %v4851, 56
  %v6634 = vpop.permute.xlu0 %6633
  %6635 = vrot.lane.b32.xlu0 %v4852, 56
  %v6636 = vpop.permute.xlu0 %6635
  %6637 = vrot.lane.b32.xlu0 %v4853, 56
  %v6638 = vpop.permute.xlu0 %6637
  %6639 = vrot.lane.b32.xlu0 %v4854, 56
  %v6640 = vpop.permute.xlu0 %6639
  %6641 = vrot.lane.b32.xlu0 %v4855, 56
  %v6642 = vpop.permute.xlu0 %6641
  %6643 = vrot.lane.b32.xlu0 %v4856, 56
  %v6644 = vpop.permute.xlu0 %6643
  %6645 = vrot.lane.b32.xlu0 %v4857, 56
  %v6646 = vpop.permute.xlu0 %6645
  %6647 = vrot.lane.b32.xlu0 %v4858, 56
  %v6648 = vpop.permute.xlu0 %6647
  %6649 = vrot.lane.b32.xlu0 %v4859, 56
  %v6650 = vpop.permute.xlu0 %6649
  %6651 = vrot.lane.b32.xlu0 %v4860, 56
  %v6652 = vpop.permute.xlu0 %6651
  %6781 = vrot.lane.b32.xlu0 %v4861, 64
  %v6782 = vpop.permute.xlu0 %6781
  %6783 = vrot.lane.b32.xlu0 %v4862, 64
  %v6784 = vpop.permute.xlu0 %6783
  %6785 = vrot.lane.b32.xlu0 %v4863, 64
  %v6786 = vpop.permute.xlu0 %6785
  %6787 = vrot.lane.b32.xlu0 %v4864, 64
  %v6788 = vpop.permute.xlu0 %6787
  %6789 = vrot.lane.b32.xlu0 %v4865, 64
  %v6790 = vpop.permute.xlu0 %6789
  %6791 = vrot.lane.b32.xlu0 %v4866, 64
  %v6792 = vpop.permute.xlu0 %6791
  %6793 = vrot.lane.b32.xlu0 %v4867, 64
  %v6794 = vpop.permute.xlu0 %6793
  %6795 = vrot.lane.b32.xlu0 %v4868, 64
  %v6796 = vpop.permute.xlu0 %6795
  %6797 = vrot.lane.b32.xlu0 %v4869, 64
  %v6798 = vpop.permute.xlu0 %6797
  %6799 = vrot.lane.b32.xlu0 %v4870, 64
  %v6800 = vpop.permute.xlu0 %6799
  %6801 = vrot.lane.b32.xlu0 %v4871, 64
  %v6802 = vpop.permute.xlu0 %6801
  %6803 = vrot.lane.b32.xlu0 %v4872, 64
  %v6804 = vpop.permute.xlu0 %6803
  %6805 = vrot.lane.b32.xlu0 %v4873, 64
  %v6806 = vpop.permute.xlu0 %6805
  %6807 = vrot.lane.b32.xlu0 %v4874, 64
  %v6808 = vpop.permute.xlu0 %6807
  %6809 = vrot.lane.b32.xlu0 %v4875, 64
  %v6810 = vpop.permute.xlu0 %6809
  %6811 = vrot.lane.b32.xlu0 %v4876, 64
  %v6812 = vpop.permute.xlu0 %6811
  %6813 = vrot.lane.b32.xlu0 %v4877, 64
  %v6814 = vpop.permute.xlu0 %6813
  %6815 = vrot.lane.b32.xlu0 %v4878, 64
  %v6816 = vpop.permute.xlu0 %6815
  %6817 = vrot.lane.b32.xlu0 %v4879, 64
  %v6818 = vpop.permute.xlu0 %6817
  %6819 = vrot.lane.b32.xlu0 %v4880, 64
  %v6820 = vpop.permute.xlu0 %6819
  %6821 = vrot.lane.b32.xlu0 %v4881, 64
  %v6822 = vpop.permute.xlu0 %6821
  %6823 = vrot.lane.b32.xlu0 %v4882, 64
  %v6824 = vpop.permute.xlu0 %6823
  %6825 = vrot.lane.b32.xlu0 %v4883, 64
  %v6826 = vpop.permute.xlu0 %6825
  %6827 = vrot.lane.b32.xlu0 %v4884, 64
  %v6828 = vpop.permute.xlu0 %6827
  %6829 = vrot.lane.b32.xlu0 %v4885, 64
  %v6830 = vpop.permute.xlu0 %6829
  %6831 = vrot.lane.b32.xlu0 %v4886, 64
  %v6832 = vpop.permute.xlu0 %6831
  %6833 = vrot.lane.b32.xlu0 %v4887, 64
  %v6834 = vpop.permute.xlu0 %6833
  %6835 = vrot.lane.b32.xlu0 %v4888, 64
  %v6836 = vpop.permute.xlu0 %6835
  %6837 = vrot.lane.b32.xlu0 %v4889, 64
  %v6838 = vpop.permute.xlu0 %6837
  %6839 = vrot.lane.b32.xlu0 %v4890, 64
  %v6840 = vpop.permute.xlu0 %6839
  %6841 = vrot.lane.b32.xlu0 %v4891, 64
  %v6842 = vpop.permute.xlu0 %6841
  %6843 = vrot.lane.b32.xlu0 %v4892, 64
  %v6844 = vpop.permute.xlu0 %6843
  %6845 = vrot.lane.b32.xlu0 %v4893, 64
  %v6846 = vpop.permute.xlu0 %6845
  %6847 = vrot.lane.b32.xlu0 %v4894, 64
  %v6848 = vpop.permute.xlu0 %6847
  %6849 = vrot.lane.b32.xlu0 %v4895, 64
  %v6850 = vpop.permute.xlu0 %6849
  %6851 = vrot.lane.b32.xlu0 %v4896, 64
  %v6852 = vpop.permute.xlu0 %6851
  %6853 = vrot.lane.b32.xlu0 %v4897, 64
  %v6854 = vpop.permute.xlu0 %6853
  %6855 = vrot.lane.b32.xlu0 %v4898, 64
  %v6856 = vpop.permute.xlu0 %6855
  %6857 = vrot.lane.b32.xlu0 %v4899, 64
  %v6858 = vpop.permute.xlu0 %6857
  %6859 = vrot.lane.b32.xlu0 %v4900, 64
  %v6860 = vpop.permute.xlu0 %6859
  %6861 = vrot.lane.b32.xlu0 %v4901, 64
  %v6862 = vpop.permute.xlu0 %6861
  %6863 = vrot.lane.b32.xlu0 %v4902, 64
  %v6864 = vpop.permute.xlu0 %6863
  %6865 = vrot.lane.b32.xlu0 %v4903, 64
  %v6866 = vpop.permute.xlu0 %6865
  %6867 = vrot.lane.b32.xlu0 %v4904, 64
  %v6868 = vpop.permute.xlu0 %6867
  %6869 = vrot.lane.b32.xlu0 %v4905, 64
  %v6870 = vpop.permute.xlu0 %6869
  %6871 = vrot.lane.b32.xlu0 %v4906, 64
  %v6872 = vpop.permute.xlu0 %6871
  %6873 = vrot.lane.b32.xlu0 %v4907, 64
  %v6874 = vpop.permute.xlu0 %6873
  %6875 = vrot.lane.b32.xlu0 %v4908, 64
  %v6876 = vpop.permute.xlu0 %6875
  %6877 = vrot.lane.b32.xlu0 %v4909, 64
  %v6878 = vpop.permute.xlu0 %6877
  %6879 = vrot.lane.b32.xlu0 %v4910, 64
  %v6880 = vpop.permute.xlu0 %6879
  %6881 = vrot.lane.b32.xlu0 %v4911, 64
  %v6882 = vpop.permute.xlu0 %6881
  %6883 = vrot.lane.b32.xlu0 %v4912, 64
  %v6884 = vpop.permute.xlu0 %6883
  %6885 = vrot.lane.b32.xlu0 %v4913, 64
  %v6886 = vpop.permute.xlu0 %6885
  %6887 = vrot.lane.b32.xlu0 %v4914, 64
  %v6888 = vpop.permute.xlu0 %6887
  %6889 = vrot.lane.b32.xlu0 %v4915, 64
  %v6890 = vpop.permute.xlu0 %6889
  %6891 = vrot.lane.b32.xlu0 %v4916, 64
  %v6892 = vpop.permute.xlu0 %6891
  %6893 = vrot.lane.b32.xlu0 %v4917, 64
  %v6894 = vpop.permute.xlu0 %6893
  %6895 = vrot.lane.b32.xlu0 %v4918, 64
  %v6896 = vpop.permute.xlu0 %6895
  %6897 = vrot.lane.b32.xlu0 %v4919, 64
  %v6898 = vpop.permute.xlu0 %6897
  %6899 = vrot.lane.b32.xlu0 %v4920, 64
  %v6900 = vpop.permute.xlu0 %6899
  %6901 = vrot.lane.b32.xlu0 %v4921, 64
  %v6902 = vpop.permute.xlu0 %6901
  %6903 = vrot.lane.b32.xlu0 %v4922, 64
  %v6904 = vpop.permute.xlu0 %6903
  %6905 = vrot.lane.b32.xlu0 %v4923, 64
  %v6906 = vpop.permute.xlu0 %6905
  %6907 = vrot.lane.b32.xlu0 %v4924, 64
  %v6908 = vpop.permute.xlu0 %6907
  %v6973 = vsel %vm2717, %v4348, %v4990
  %v6974 = vsel %vm2717, %v4349, %v4992
  %v6975 = vsel %vm2717, %v4350, %v4994
  %v6976 = vsel %vm2717, %v4351, %v4996
  %v6977 = vsel %vm2717, %v4352, %v4998
  %v6978 = vsel %vm2717, %v4353, %v5000
  %v6979 = vsel %vm2717, %v4354, %v5002
  %v6980 = vsel %vm2717, %v4355, %v5004
  %v6981 = vsel %vm2717, %v4356, %v5006
  %v6982 = vsel %vm2717, %v4357, %v5008
  %v6983 = vsel %vm2717, %v4358, %v5010
  %v6984 = vsel %vm2717, %v4359, %v5012
  %v6985 = vsel %vm2717, %v4360, %v5014
  %v6986 = vsel %vm2717, %v4361, %v5016
  %v6987 = vsel %vm2717, %v4362, %v5018
  %v6988 = vsel %vm2717, %v4363, %v5020
  %v6989 = vsel %vm2717, %v4364, %v5022
  %v6990 = vsel %vm2717, %v4365, %v5024
  %v6991 = vsel %vm2717, %v4366, %v5026
  %v6992 = vsel %vm2717, %v4367, %v5028
  %v6993 = vsel %vm2717, %v4368, %v5030
  %v6994 = vsel %vm2717, %v4369, %v5032
  %v6995 = vsel %vm2717, %v4370, %v5034
  %v6996 = vsel %vm2717, %v4371, %v5036
  %v6997 = vsel %vm2717, %v4372, %v5038
  %v6998 = vsel %vm2717, %v4373, %v5040
  %v6999 = vsel %vm2717, %v4374, %v5042
  %v7000 = vsel %vm2717, %v4375, %v5044
  %v7001 = vsel %vm2717, %v4376, %v5046
  %v7002 = vsel %vm2717, %v4377, %v5048
  %v7003 = vsel %vm2717, %v4378, %v5050
  %v7004 = vsel %vm2717, %v4379, %v5052
  %v7005 = vsel %vm2717, %v4380, %v5054
  %v7006 = vsel %vm2717, %v4381, %v5056
  %v7007 = vsel %vm2717, %v4382, %v5058
  %v7008 = vsel %vm2717, %v4383, %v5060
  %v7009 = vsel %vm2717, %v4384, %v5062
  %v7010 = vsel %vm2717, %v4385, %v5064
  %v7011 = vsel %vm2717, %v4386, %v5066
  %v7012 = vsel %vm2717, %v4387, %v5068
  %v7013 = vsel %vm2717, %v4388, %v5070
  %v7014 = vsel %vm2717, %v4389, %v5072
  %v7015 = vsel %vm2717, %v4390, %v5074
  %v7016 = vsel %vm2717, %v4391, %v5076
  %v7017 = vsel %vm2717, %v4392, %v5078
  %v7018 = vsel %vm2717, %v4393, %v5080
  %v7019 = vsel %vm2717, %v4394, %v5082
  %v7020 = vsel %vm2717, %v4395, %v5084
  %v7021 = vsel %vm2717, %v4396, %v5086
  %v7022 = vsel %vm2717, %v4397, %v5088
  %v7023 = vsel %vm2717, %v4398, %v5090
  %v7024 = vsel %vm2717, %v4399, %v5092
  %v7025 = vsel %vm2717, %v4400, %v5094
  %v7026 = vsel %vm2717, %v4401, %v5096
  %v7027 = vsel %vm2717, %v4402, %v5098
  %v7028 = vsel %vm2717, %v4403, %v5100
  %v7029 = vsel %vm2717, %v4404, %v5102
  %v7030 = vsel %vm2717, %v4405, %v5104
  %v7031 = vsel %vm2717, %v4406, %v5106
  %v7032 = vsel %vm2717, %v4407, %v5108
  %v7033 = vsel %vm2717, %v4408, %v5110
  %v7034 = vsel %vm2717, %v4409, %v5112
  %v7035 = vsel %vm2717, %v4410, %v5114
  %v7036 = vsel %vm2717, %v4411, %v5116
  %v7037 = vsel %vm2847, %v6973, %v5246
  %v7038 = vsel %vm2847, %v6974, %v5248
  %v7039 = vsel %vm2847, %v6975, %v5250
  %v7040 = vsel %vm2847, %v6976, %v5252
  %v7041 = vsel %vm2847, %v6977, %v5254
  %v7042 = vsel %vm2847, %v6978, %v5256
  %v7043 = vsel %vm2847, %v6979, %v5258
  %v7044 = vsel %vm2847, %v6980, %v5260
  %v7045 = vsel %vm2847, %v6981, %v5262
  %v7046 = vsel %vm2847, %v6982, %v5264
  %v7047 = vsel %vm2847, %v6983, %v5266
  %v7048 = vsel %vm2847, %v6984, %v5268
  %v7049 = vsel %vm2847, %v6985, %v5270
  %v7050 = vsel %vm2847, %v6986, %v5272
  %v7051 = vsel %vm2847, %v6987, %v5274
  %v7052 = vsel %vm2847, %v6988, %v5276
  %v7053 = vsel %vm2847, %v6989, %v5278
  %v7054 = vsel %vm2847, %v6990, %v5280
  %v7055 = vsel %vm2847, %v6991, %v5282
  %v7056 = vsel %vm2847, %v6992, %v5284
  %v7057 = vsel %vm2847, %v6993, %v5286
  %v7058 = vsel %vm2847, %v6994, %v5288
  %v7059 = vsel %vm2847, %v6995, %v5290
  %v7060 = vsel %vm2847, %v6996, %v5292
  %v7061 = vsel %vm2847, %v6997, %v5294
  %v7062 = vsel %vm2847, %v6998, %v5296
  %v7063 = vsel %vm2847, %v6999, %v5298
  %v7064 = vsel %vm2847, %v7000, %v5300
  %v7065 = vsel %vm2847, %v7001, %v5302
  %v7066 = vsel %vm2847, %v7002, %v5304
  %v7067 = vsel %vm2847, %v7003, %v5306
  %v7068 = vsel %vm2847, %v7004, %v5308
  %v7069 = vsel %vm2847, %v7005, %v5310
  %v7070 = vsel %vm2847, %v7006, %v5312
  %v7071 = vsel %vm2847, %v7007, %v5314
  %v7072 = vsel %vm2847, %v7008, %v5316
  %v7073 = vsel %vm2847, %v7009, %v5318
  %v7074 = vsel %vm2847, %v7010, %v5320
  %v7075 = vsel %vm2847, %v7011, %v5322
  %v7076 = vsel %vm2847, %v7012, %v5324
  %v7077 = vsel %vm2847, %v7013, %v5326
  %v7078 = vsel %vm2847, %v7014, %v5328
  %v7079 = vsel %vm2847, %v7015, %v5330
  %v7080 = vsel %vm2847, %v7016, %v5332
  %v7081 = vsel %vm2847, %v7017, %v5334
  %v7082 = vsel %vm2847, %v7018, %v5336
  %v7083 = vsel %vm2847, %v7019, %v5338
  %v7084 = vsel %vm2847, %v7020, %v5340
  %v7085 = vsel %vm2847, %v7021, %v5342
  %v7086 = vsel %vm2847, %v7022, %v5344
  %v7087 = vsel %vm2847, %v7023, %v5346
  %v7088 = vsel %vm2847, %v7024, %v5348
  %v7089 = vsel %vm2847, %v7025, %v5350
  %v7090 = vsel %vm2847, %v7026, %v5352
  %v7091 = vsel %vm2847, %v7027, %v5354
  %v7092 = vsel %vm2847, %v7028, %v5356
  %v7093 = vsel %vm2847, %v7029, %v5358
  %v7094 = vsel %vm2847, %v7030, %v5360
  %v7095 = vsel %vm2847, %v7031, %v5362
  %v7096 = vsel %vm2847, %v7032, %v5364
  %v7097 = vsel %vm2847, %v7033, %v5366
  %v7098 = vsel %vm2847, %v7034, %v5368
  %v7099 = vsel %vm2847, %v7035, %v5370
  %v7100 = vsel %vm2847, %v7036, %v5372
  %v7101 = vsel %vm2977, %v7037, %v5502
  %v7102 = vsel %vm2977, %v7038, %v5504
  %v7103 = vsel %vm2977, %v7039, %v5506
  %v7104 = vsel %vm2977, %v7040, %v5508
  %v7105 = vsel %vm2977, %v7041, %v5510
  %v7106 = vsel %vm2977, %v7042, %v5512
  %v7107 = vsel %vm2977, %v7043, %v5514
  %v7108 = vsel %vm2977, %v7044, %v5516
  %v7109 = vsel %vm2977, %v7045, %v5518
  %v7110 = vsel %vm2977, %v7046, %v5520
  %v7111 = vsel %vm2977, %v7047, %v5522
  %v7112 = vsel %vm2977, %v7048, %v5524
  %v7113 = vsel %vm2977, %v7049, %v5526
  %v7114 = vsel %vm2977, %v7050, %v5528
  %v7115 = vsel %vm2977, %v7051, %v5530
  %v7116 = vsel %vm2977, %v7052, %v5532
  %v7117 = vsel %vm2977, %v7053, %v5534
  %v7118 = vsel %vm2977, %v7054, %v5536
  %v7119 = vsel %vm2977, %v7055, %v5538
  %v7120 = vsel %vm2977, %v7056, %v5540
  %v7121 = vsel %vm2977, %v7057, %v5542
  %v7122 = vsel %vm2977, %v7058, %v5544
  %v7123 = vsel %vm2977, %v7059, %v5546
  %v7124 = vsel %vm2977, %v7060, %v5548
  %v7125 = vsel %vm2977, %v7061, %v5550
  %v7126 = vsel %vm2977, %v7062, %v5552
  %v7127 = vsel %vm2977, %v7063, %v5554
  %v7128 = vsel %vm2977, %v7064, %v5556
  %v7129 = vsel %vm2977, %v7065, %v5558
  %v7130 = vsel %vm2977, %v7066, %v5560
  %v7131 = vsel %vm2977, %v7067, %v5562
  %v7132 = vsel %vm2977, %v7068, %v5564
  %v7133 = vsel %vm2977, %v7069, %v5566
  %v7134 = vsel %vm2977, %v7070, %v5568
  %v7135 = vsel %vm2977, %v7071, %v5570
  %v7136 = vsel %vm2977, %v7072, %v5572
  %v7137 = vsel %vm2977, %v7073, %v5574
  %v7138 = vsel %vm2977, %v7074, %v5576
  %v7139 = vsel %vm2977, %v7075, %v5578
  %v7140 = vsel %vm2977, %v7076, %v5580
  %v7141 = vsel %vm2977, %v7077, %v5582
  %v7142 = vsel %vm2977, %v7078, %v5584
  %v7143 = vsel %vm2977, %v7079, %v5586
  %v7144 = vsel %vm2977, %v7080, %v5588
  %v7145 = vsel %vm2977, %v7081, %v5590
  %v7146 = vsel %vm2977, %v7082, %v5592
  %v7147 = vsel %vm2977, %v7083, %v5594
  %v7148 = vsel %vm2977, %v7084, %v5596
  %v7149 = vsel %vm2977, %v7085, %v5598
  %v7150 = vsel %vm2977, %v7086, %v5600
  %v7151 = vsel %vm2977, %v7087, %v5602
  %v7152 = vsel %vm2977, %v7088, %v5604
  %v7153 = vsel %vm2977, %v7089, %v5606
  %v7154 = vsel %vm2977, %v7090, %v5608
  %v7155 = vsel %vm2977, %v7091, %v5610
  %v7156 = vsel %vm2977, %v7092, %v5612
  %v7157 = vsel %vm2977, %v7093, %v5614
  %v7158 = vsel %vm2977, %v7094, %v5616
  %v7159 = vsel %vm2977, %v7095, %v5618
  %v7160 = vsel %vm2977, %v7096, %v5620
  %v7161 = vsel %vm2977, %v7097, %v5622
  %v7162 = vsel %vm2977, %v7098, %v5624
  %v7163 = vsel %vm2977, %v7099, %v5626
  %v7164 = vsel %vm2977, %v7100, %v5628
  %v7165 = vsel %vm3107, %v7101, %v5758
  %v7166 = vsel %vm3107, %v7102, %v5760
  %v7167 = vsel %vm3107, %v7103, %v5762
  %v7168 = vsel %vm3107, %v7104, %v5764
  %v7169 = vsel %vm3107, %v7105, %v5766
  %v7170 = vsel %vm3107, %v7106, %v5768
  %v7171 = vsel %vm3107, %v7107, %v5770
  %v7172 = vsel %vm3107, %v7108, %v5772
  %v7173 = vsel %vm3107, %v7109, %v5774
  %v7174 = vsel %vm3107, %v7110, %v5776
  %v7175 = vsel %vm3107, %v7111, %v5778
  %v7176 = vsel %vm3107, %v7112, %v5780
  %v7177 = vsel %vm3107, %v7113, %v5782
  %v7178 = vsel %vm3107, %v7114, %v5784
  %v7179 = vsel %vm3107, %v7115, %v5786
  %v7180 = vsel %vm3107, %v7116, %v5788
  %v7181 = vsel %vm3107, %v7117, %v5790
  %v7182 = vsel %vm3107, %v7118, %v5792
  %v7183 = vsel %vm3107, %v7119, %v5794
  %v7184 = vsel %vm3107, %v7120, %v5796
  %v7185 = vsel %vm3107, %v7121, %v5798
  %v7186 = vsel %vm3107, %v7122, %v5800
  %v7187 = vsel %vm3107, %v7123, %v5802
  %v7188 = vsel %vm3107, %v7124, %v5804
  %v7189 = vsel %vm3107, %v7125, %v5806
  %v7190 = vsel %vm3107, %v7126, %v5808
  %v7191 = vsel %vm3107, %v7127, %v5810
  %v7192 = vsel %vm3107, %v7128, %v5812
  %v7193 = vsel %vm3107, %v7129, %v5814
  %v7194 = vsel %vm3107, %v7130, %v5816
  %v7195 = vsel %vm3107, %v7131, %v5818
  %v7196 = vsel %vm3107, %v7132, %v5820
  %v7197 = vsel %vm3107, %v7133, %v5822
  %v7198 = vsel %vm3107, %v7134, %v5824
  %v7199 = vsel %vm3107, %v7135, %v5826
  %v7200 = vsel %vm3107, %v7136, %v5828
  %v7201 = vsel %vm3107, %v7137, %v5830
  %v7202 = vsel %vm3107, %v7138, %v5832
  %v7203 = vsel %vm3107, %v7139, %v5834
  %v7204 = vsel %vm3107, %v7140, %v5836
  %v7205 = vsel %vm3107, %v7141, %v5838
  %v7206 = vsel %vm3107, %v7142, %v5840
  %v7207 = vsel %vm3107, %v7143, %v5842
  %v7208 = vsel %vm3107, %v7144, %v5844
  %v7209 = vsel %vm3107, %v7145, %v5846
  %v7210 = vsel %vm3107, %v7146, %v5848
  %v7211 = vsel %vm3107, %v7147, %v5850
  %v7212 = vsel %vm3107, %v7148, %v5852
  %v7213 = vsel %vm3107, %v7149, %v5854
  %v7214 = vsel %vm3107, %v7150, %v5856
  %v7215 = vsel %vm3107, %v7151, %v5858
  %v7216 = vsel %vm3107, %v7152, %v5860
  %v7217 = vsel %vm3107, %v7153, %v5862
  %v7218 = vsel %vm3107, %v7154, %v5864
  %v7219 = vsel %vm3107, %v7155, %v5866
  %v7220 = vsel %vm3107, %v7156, %v5868
  %v7221 = vsel %vm3107, %v7157, %v5870
  %v7222 = vsel %vm3107, %v7158, %v5872
  %v7223 = vsel %vm3107, %v7159, %v5874
  %v7224 = vsel %vm3107, %v7160, %v5876
  %v7225 = vsel %vm3107, %v7161, %v5878
  %v7226 = vsel %vm3107, %v7162, %v5880
  %v7227 = vsel %vm3107, %v7163, %v5882
  %v7228 = vsel %vm3107, %v7164, %v5884
  %vm7229 = vcmask 326656
  %v7230 = vsel %vm7229, %v7165, %v6014
  %v7231 = vsel %vm7229, %v7166, %v6016
  %v7232 = vsel %vm7229, %v7167, %v6018
  %v7233 = vsel %vm7229, %v7168, %v6020
  %v7234 = vsel %vm7229, %v7169, %v6022
  %v7235 = vsel %vm7229, %v7170, %v6024
  %v7236 = vsel %vm7229, %v7171, %v6026
  %v7237 = vsel %vm7229, %v7172, %v6028
  %v7238 = vsel %vm7229, %v7173, %v6030
  %v7239 = vsel %vm7229, %v7174, %v6032
  %v7240 = vsel %vm7229, %v7175, %v6034
  %v7241 = vsel %vm7229, %v7176, %v6036
  %v7242 = vsel %vm7229, %v7177, %v6038
  %v7243 = vsel %vm7229, %v7178, %v6040
  %v7244 = vsel %vm7229, %v7179, %v6042
  %v7245 = vsel %vm7229, %v7180, %v6044
  %v7246 = vsel %vm7229, %v7181, %v6046
  %v7247 = vsel %vm7229, %v7182, %v6048
  %v7248 = vsel %vm7229, %v7183, %v6050
  %v7249 = vsel %vm7229, %v7184, %v6052
  %v7250 = vsel %vm7229, %v7185, %v6054
  %v7251 = vsel %vm7229, %v7186, %v6056
  %v7252 = vsel %vm7229, %v7187, %v6058
  %v7253 = vsel %vm7229, %v7188, %v6060
  %v7254 = vsel %vm7229, %v7189, %v6062
  %v7255 = vsel %vm7229, %v7190, %v6064
  %v7256 = vsel %vm7229, %v7191, %v6066
  %v7257 = vsel %vm7229, %v7192, %v6068
  %v7258 = vsel %vm7229, %v7193, %v6070
  %v7259 = vsel %vm7229, %v7194, %v6072
  %v7260 = vsel %vm7229, %v7195, %v6074
  %v7261 = vsel %vm7229, %v7196, %v6076
  %v7262 = vsel %vm7229, %v7197, %v6078
  %v7263 = vsel %vm7229, %v7198, %v6080
  %v7264 = vsel %vm7229, %v7199, %v6082
  %v7265 = vsel %vm7229, %v7200, %v6084
  %v7266 = vsel %vm7229, %v7201, %v6086
  %v7267 = vsel %vm7229, %v7202, %v6088
  %v7268 = vsel %vm7229, %v7203, %v6090
  %v7269 = vsel %vm7229, %v7204, %v6092
  %v7270 = vsel %vm7229, %v7205, %v6094
  %v7271 = vsel %vm7229, %v7206, %v6096
  %v7272 = vsel %vm7229, %v7207, %v6098
  %v7273 = vsel %vm7229, %v7208, %v6100
  %v7274 = vsel %vm7229, %v7209, %v6102
  %v7275 = vsel %vm7229, %v7210, %v6104
  %v7276 = vsel %vm7229, %v7211, %v6106
  %v7277 = vsel %vm7229, %v7212, %v6108
  %v7278 = vsel %vm7229, %v7213, %v6110
  %v7279 = vsel %vm7229, %v7214, %v6112
  %v7280 = vsel %vm7229, %v7215, %v6114
  %v7281 = vsel %vm7229, %v7216, %v6116
  %v7282 = vsel %vm7229, %v7217, %v6118
  %v7283 = vsel %vm7229, %v7218, %v6120
  %v7284 = vsel %vm7229, %v7219, %v6122
  %v7285 = vsel %vm7229, %v7220, %v6124
  %v7286 = vsel %vm7229, %v7221, %v6126
  %v7287 = vsel %vm7229, %v7222, %v6128
  %v7288 = vsel %vm7229, %v7223, %v6130
  %v7289 = vsel %vm7229, %v7224, %v6132
  %v7290 = vsel %vm7229, %v7225, %v6134
  %v7291 = vsel %vm7229, %v7226, %v6136
  %v7292 = vsel %vm7229, %v7227, %v6138
  %v7293 = vsel %vm7229, %v7228, %v6140
  %vm7294 = vcmask 392192
  %v7295 = vsel %vm7294, %v7230, %v6270
  %v7296 = vsel %vm7294, %v7231, %v6272
  %v7297 = vsel %vm7294, %v7232, %v6274
  %v7298 = vsel %vm7294, %v7233, %v6276
  %v7299 = vsel %vm7294, %v7234, %v6278
  %v7300 = vsel %vm7294, %v7235, %v6280
  %v7301 = vsel %vm7294, %v7236, %v6282
  %v7302 = vsel %vm7294, %v7237, %v6284
  %v7303 = vsel %vm7294, %v7238, %v6286
  %v7304 = vsel %vm7294, %v7239, %v6288
  %v7305 = vsel %vm7294, %v7240, %v6290
  %v7306 = vsel %vm7294, %v7241, %v6292
  %v7307 = vsel %vm7294, %v7242, %v6294
  %v7308 = vsel %vm7294, %v7243, %v6296
  %v7309 = vsel %vm7294, %v7244, %v6298
  %v7310 = vsel %vm7294, %v7245, %v6300
  %v7311 = vsel %vm7294, %v7246, %v6302
  %v7312 = vsel %vm7294, %v7247, %v6304
  %v7313 = vsel %vm7294, %v7248, %v6306
  %v7314 = vsel %vm7294, %v7249, %v6308
  %v7315 = vsel %vm7294, %v7250, %v6310
  %v7316 = vsel %vm7294, %v7251, %v6312
  %v7317 = vsel %vm7294, %v7252, %v6314
  %v7318 = vsel %vm7294, %v7253, %v6316
  %v7319 = vsel %vm7294, %v7254, %v6318
  %v7320 = vsel %vm7294, %v7255, %v6320
  %v7321 = vsel %vm7294, %v7256, %v6322
  %v7322 = vsel %vm7294, %v7257, %v6324
  %v7323 = vsel %vm7294, %v7258, %v6326
  %v7324 = vsel %vm7294, %v7259, %v6328
  %v7325 = vsel %vm7294, %v7260, %v6330
  %v7326 = vsel %vm7294, %v7261, %v6332
  %v7327 = vsel %vm7294, %v7262, %v6334
  %v7328 = vsel %vm7294, %v7263, %v6336
  %v7329 = vsel %vm7294, %v7264, %v6338
  %v7330 = vsel %vm7294, %v7265, %v6340
  %v7331 = vsel %vm7294, %v7266, %v6342
  %v7332 = vsel %vm7294, %v7267, %v6344
  %v7333 = vsel %vm7294, %v7268, %v6346
  %v7334 = vsel %vm7294, %v7269, %v6348
  %v7335 = vsel %vm7294, %v7270, %v6350
  %v7336 = vsel %vm7294, %v7271, %v6352
  %v7337 = vsel %vm7294, %v7272, %v6354
  %v7338 = vsel %vm7294, %v7273, %v6356
  %v7339 = vsel %vm7294, %v7274, %v6358
  %v7340 = vsel %vm7294, %v7275, %v6360
  %v7341 = vsel %vm7294, %v7276, %v6362
  %v7342 = vsel %vm7294, %v7277, %v6364
  %v7343 = vsel %vm7294, %v7278, %v6366
  %v7344 = vsel %vm7294, %v7279, %v6368
  %v7345 = vsel %vm7294, %v7280, %v6370
  %v7346 = vsel %vm7294, %v7281, %v6372
  %v7347 = vsel %vm7294, %v7282, %v6374
  %v7348 = vsel %vm7294, %v7283, %v6376
  %v7349 = vsel %vm7294, %v7284, %v6378
  %v7350 = vsel %vm7294, %v7285, %v6380
  %v7351 = vsel %vm7294, %v7286, %v6382
  %v7352 = vsel %vm7294, %v7287, %v6384
  %v7353 = vsel %vm7294, %v7288, %v6386
  %v7354 = vsel %vm7294, %v7289, %v6388
  %v7355 = vsel %vm7294, %v7290, %v6390
  %v7356 = vsel %vm7294, %v7291, %v6392
  %v7357 = vsel %vm7294, %v7292, %v6394
  %v7358 = vsel %vm7294, %v7293, %v6396
  %vm7359 = vcmask 457728
  %v7360 = vsel %vm7359, %v7295, %v6526
  %v7361 = vsel %vm7359, %v7296, %v6528
  %v7362 = vsel %vm7359, %v7297, %v6530
  %v7363 = vsel %vm7359, %v7298, %v6532
  %v7364 = vsel %vm7359, %v7299, %v6534
  %v7365 = vsel %vm7359, %v7300, %v6536
  %v7366 = vsel %vm7359, %v7301, %v6538
  %v7367 = vsel %vm7359, %v7302, %v6540
  %v7368 = vsel %vm7359, %v7303, %v6542
  %v7369 = vsel %vm7359, %v7304, %v6544
  %v7370 = vsel %vm7359, %v7305, %v6546
  %v7371 = vsel %vm7359, %v7306, %v6548
  %v7372 = vsel %vm7359, %v7307, %v6550
  %v7373 = vsel %vm7359, %v7308, %v6552
  %v7374 = vsel %vm7359, %v7309, %v6554
  %v7375 = vsel %vm7359, %v7310, %v6556
  %v7376 = vsel %vm7359, %v7311, %v6558
  %v7377 = vsel %vm7359, %v7312, %v6560
  %v7378 = vsel %vm7359, %v7313, %v6562
  %v7379 = vsel %vm7359, %v7314, %v6564
  %v7380 = vsel %vm7359, %v7315, %v6566
  %v7381 = vsel %vm7359, %v7316, %v6568
  %v7382 = vsel %vm7359, %v7317, %v6570
  %v7383 = vsel %vm7359, %v7318, %v6572
  %v7384 = vsel %vm7359, %v7319, %v6574
  %v7385 = vsel %vm7359, %v7320, %v6576
  %v7386 = vsel %vm7359, %v7321, %v6578
  %v7387 = vsel %vm7359, %v7322, %v6580
  %v7388 = vsel %vm7359, %v7323, %v6582
  %v7389 = vsel %vm7359, %v7324, %v6584
  %v7390 = vsel %vm7359, %v7325, %v6586
  %v7391 = vsel %vm7359, %v7326, %v6588
  %v7392 = vsel %vm7359, %v7327, %v6590
  %v7393 = vsel %vm7359, %v7328, %v6592
  %v7394 = vsel %vm7359, %v7329, %v6594
  %v7395 = vsel %vm7359, %v7330, %v6596
  %v7396 = vsel %vm7359, %v7331, %v6598
  %v7397 = vsel %vm7359, %v7332, %v6600
  %v7398 = vsel %vm7359, %v7333, %v6602
  %v7399 = vsel %vm7359, %v7334, %v6604
  %v7400 = vsel %vm7359, %v7335, %v6606
  %v7401 = vsel %vm7359, %v7336, %v6608
  %v7402 = vsel %vm7359, %v7337, %v6610
  %v7403 = vsel %vm7359, %v7338, %v6612
  %v7404 = vsel %vm7359, %v7339, %v6614
  %v7405 = vsel %vm7359, %v7340, %v6616
  %v7406 = vsel %vm7359, %v7341, %v6618
  %v7407 = vsel %vm7359, %v7342, %v6620
  %v7408 = vsel %vm7359, %v7343, %v6622
  %v7409 = vsel %vm7359, %v7344, %v6624
  %v7410 = vsel %vm7359, %v7345, %v6626
  %v7411 = vsel %vm7359, %v7346, %v6628
  %v7412 = vsel %vm7359, %v7347, %v6630
  %v7413 = vsel %vm7359, %v7348, %v6632
  %v7414 = vsel %vm7359, %v7349, %v6634
  %v7415 = vsel %vm7359, %v7350, %v6636
  %v7416 = vsel %vm7359, %v7351, %v6638
  %v7417 = vsel %vm7359, %v7352, %v6640
  %v7418 = vsel %vm7359, %v7353, %v6642
  %v7419 = vsel %vm7359, %v7354, %v6644
  %v7420 = vsel %vm7359, %v7355, %v6646
  %v7421 = vsel %vm7359, %v7356, %v6648
  %v7422 = vsel %vm7359, %v7357, %v6650
  %v7423 = vsel %vm7359, %v7358, %v6652
  %vm7424 = vcmask 523264
  %v7425 = vsel %vm7424, %v7360, %v6782
  %v7426 = vsel %vm7424, %v7361, %v6784
  %v7427 = vsel %vm7424, %v7362, %v6786
  %v7428 = vsel %vm7424, %v7363, %v6788
  %v7429 = vsel %vm7424, %v7364, %v6790
  %v7430 = vsel %vm7424, %v7365, %v6792
  %v7431 = vsel %vm7424, %v7366, %v6794
  %v7432 = vsel %vm7424, %v7367, %v6796
  %v7433 = vsel %vm7424, %v7368, %v6798
  %v7434 = vsel %vm7424, %v7369, %v6800
  %v7435 = vsel %vm7424, %v7370, %v6802
  %v7436 = vsel %vm7424, %v7371, %v6804
  %v7437 = vsel %vm7424, %v7372, %v6806
  %v7438 = vsel %vm7424, %v7373, %v6808
  %v7439 = vsel %vm7424, %v7374, %v6810
  %v7440 = vsel %vm7424, %v7375, %v6812
  %v7441 = vsel %vm7424, %v7376, %v6814
  %v7442 = vsel %vm7424, %v7377, %v6816
  %v7443 = vsel %vm7424, %v7378, %v6818
  %v7444 = vsel %vm7424, %v7379, %v6820
  %v7445 = vsel %vm7424, %v7380, %v6822
  %v7446 = vsel %vm7424, %v7381, %v6824
  %v7447 = vsel %vm7424, %v7382, %v6826
  %v7448 = vsel %vm7424, %v7383, %v6828
  %v7449 = vsel %vm7424, %v7384, %v6830
  %v7450 = vsel %vm7424, %v7385, %v6832
  %v7451 = vsel %vm7424, %v7386, %v6834
  %v7452 = vsel %vm7424, %v7387, %v6836
  %v7453 = vsel %vm7424, %v7388, %v6838
  %v7454 = vsel %vm7424, %v7389, %v6840
  %v7455 = vsel %vm7424, %v7390, %v6842
  %v7456 = vsel %vm7424, %v7391, %v6844
  %v7457 = vsel %vm7424, %v7392, %v6846
  %v7458 = vsel %vm7424, %v7393, %v6848
  %v7459 = vsel %vm7424, %v7394, %v6850
  %v7460 = vsel %vm7424, %v7395, %v6852
  %v7461 = vsel %vm7424, %v7396, %v6854
  %v7462 = vsel %vm7424, %v7397, %v6856
  %v7463 = vsel %vm7424, %v7398, %v6858
  %v7464 = vsel %vm7424, %v7399, %v6860
  %v7465 = vsel %vm7424, %v7400, %v6862
  %v7466 = vsel %vm7424, %v7401, %v6864
  %v7467 = vsel %vm7424, %v7402, %v6866
  %v7468 = vsel %vm7424, %v7403, %v6868
  %v7469 = vsel %vm7424, %v7404, %v6870
  %v7470 = vsel %vm7424, %v7405, %v6872
  %v7471 = vsel %vm7424, %v7406, %v6874
  %v7472 = vsel %vm7424, %v7407, %v6876
  %v7473 = vsel %vm7424, %v7408, %v6878
  %v7474 = vsel %vm7424, %v7409, %v6880
  %v7475 = vsel %vm7424, %v7410, %v6882
  %v7476 = vsel %vm7424, %v7411, %v6884
  %v7477 = vsel %vm7424, %v7412, %v6886
  %v7478 = vsel %vm7424, %v7413, %v6888
  %v7479 = vsel %vm7424, %v7414, %v6890
  %v7480 = vsel %vm7424, %v7415, %v6892
  %v7481 = vsel %vm7424, %v7416, %v6894
  %v7482 = vsel %vm7424, %v7417, %v6896
  %v7483 = vsel %vm7424, %v7418, %v6898
  %v7484 = vsel %vm7424, %v7419, %v6900
  %v7485 = vsel %vm7424, %v7420, %v6902
  %v7486 = vsel %vm7424, %v7421, %v6904
  %v7487 = vsel %vm7424, %v7422, %v6906
  %v7488 = vsel %vm7424, %v7423, %v6908
  %v7489 = vld [vmem:[%s4] sm:$0xff]
  %v7490 = vld [vmem:[%s4 + $0x8] sm:$0xff]
  %v7491 = vld [vmem:[%s4 + $0x10] sm:$0xff]
  %v7492 = vld [vmem:[%s4 + $0x18] sm:$0xff]
  %v7493 = vld [vmem:[%s4 + $0x20] sm:$0xff]
  %v7494 = vld [vmem:[%s4 + $0x28] sm:$0xff]
  %v7495 = vld [vmem:[%s4 + $0x30] sm:$0xff]
  %v7496 = vld [vmem:[%s4 + $0x38] sm:$0xff]
  %v7497 = vld [vmem:[%s4 + $0x40] sm:$0xff]
  %vm7498 = vcmask 588800
  %v7500 = vsel %vm7498, %v7425, 0
  %v7503 = vsel %vm7498, %v7426, 0
  %v7506 = vsel %vm7498, %v7427, 0
  %v7509 = vsel %vm7498, %v7428, 0
  %v7512 = vsel %vm7498, %v7429, 0
  %v7515 = vsel %vm7498, %v7430, 0
  %v7518 = vsel %vm7498, %v7431, 0
  %v7521 = vsel %vm7498, %v7432, 0
  %v7524 = vsel %vm7498, %v7433, 0
  %v7527 = vsel %vm7498, %v7434, 0
  %v7530 = vsel %vm7498, %v7435, 0
  %v7533 = vsel %vm7498, %v7436, 0
  %v7536 = vsel %vm7498, %v7437, 0
  %v7539 = vsel %vm7498, %v7438, 0
  %v7542 = vsel %vm7498, %v7439, 0
  %v7545 = vsel %vm7498, %v7440, 0
  %v7548 = vsel %vm7498, %v7441, 0
  %v7551 = vsel %vm7498, %v7442, 0
  %v7554 = vsel %vm7498, %v7443, 0
  %v7557 = vsel %vm7498, %v7444, 0
  %v7560 = vsel %vm7498, %v7445, 0
  %v7563 = vsel %vm7498, %v7446, 0
  %v7566 = vsel %vm7498, %v7447, 0
  %v7569 = vsel %vm7498, %v7448, 0
  %v7572 = vsel %vm7498, %v7449, 0
  %v7575 = vsel %vm7498, %v7450, 0
  %v7578 = vsel %vm7498, %v7451, 0
  %v7581 = vsel %vm7498, %v7452, 0
  %v7584 = vsel %vm7498, %v7453, 0
  %v7587 = vsel %vm7498, %v7454, 0
  %v7590 = vsel %vm7498, %v7455, 0
  %v7593 = vsel %vm7498, %v7456, 0
  %v7596 = vsel %vm7498, %v7457, 0
  %v7599 = vsel %vm7498, %v7458, 0
  %v7602 = vsel %vm7498, %v7459, 0
  %v7605 = vsel %vm7498, %v7460, 0
  %v7608 = vsel %vm7498, %v7461, 0
  %v7611 = vsel %vm7498, %v7462, 0
  %v7614 = vsel %vm7498, %v7463, 0
  %v7617 = vsel %vm7498, %v7464, 0
  %v7620 = vsel %vm7498, %v7465, 0
  %v7623 = vsel %vm7498, %v7466, 0
  %v7626 = vsel %vm7498, %v7467, 0
  %v7629 = vsel %vm7498, %v7468, 0
  %v7632 = vsel %vm7498, %v7469, 0
  %v7635 = vsel %vm7498, %v7470, 0
  %v7638 = vsel %vm7498, %v7471, 0
  %v7641 = vsel %vm7498, %v7472, 0
  %v7644 = vsel %vm7498, %v7473, 0
  %v7647 = vsel %vm7498, %v7474, 0
  %v7650 = vsel %vm7498, %v7475, 0
  %v7653 = vsel %vm7498, %v7476, 0
  %v7656 = vsel %vm7498, %v7477, 0
  %v7659 = vsel %vm7498, %v7478, 0
  %v7662 = vsel %vm7498, %v7479, 0
  %v7665 = vsel %vm7498, %v7480, 0
  %v7668 = vsel %vm7498, %v7481, 0
  %v7671 = vsel %vm7498, %v7482, 0
  %v7674 = vsel %vm7498, %v7483, 0
  %v7677 = vsel %vm7498, %v7484, 0
  %v7680 = vsel %vm7498, %v7485, 0
  %v7683 = vsel %vm7498, %v7486, 0
  %v7686 = vsel %vm7498, %v7487, 0
  %v7689 = vsel %vm7498, %v7488, 0
  %7691 = vmatpush.msra.mxu0 0.0
  %7692 = vmatpush.msra.mxu0 0.0
  %7693 = vmatpush.msra.mxu0 0.0
  %7694 = vmatpush.msra.mxu0 0.0
  %7695 = vmatpush.msra.mxu0 0.0
  %7696 = vmatpush.msra.mxu0 0.0
  %7697 = vmatpush.msra.mxu0 0.0
  %7698 = vmatpush.msra.mxu0 %v7497
  %7699 = vmatpush.msra.mxu0 %v7496
  %7700 = vmatpush.msra.mxu0 %v7495
  %7701 = vmatpush.msra.mxu0 %v7494
  %7702 = vmatpush.msra.mxu0 %v7493
  %7703 = vmatpush.msra.mxu0 %v7492
  %7704 = vmatpush.msra.mxu0 %v7491
  %7705 = vmatpush.msra.mxu0 %v7490
  %7706 = vmatpush.msra.mxu0 %v7489
  %7707 = vmatmul.f32.gmra.mxu0 %v7500
  %v7708 = vpop.f32.mrf.mxu0
  %v7709 = vadd.f32 0.0, %v7708
  %7710 = vmatmul.f32.gmra.mxu0 %v7503
  %v7711 = vpop.f32.mrf.mxu0
  %v7712 = vadd.f32 0.0, %v7711
  %7713 = vmatmul.f32.gmra.mxu0 %v7506
  %v7714 = vpop.f32.mrf.mxu0
  %v7715 = vadd.f32 0.0, %v7714
  %7716 = vmatmul.f32.gmra.mxu0 %v7509
  %v7717 = vpop.f32.mrf.mxu0
  %v7718 = vadd.f32 0.0, %v7717
  %7719 = vmatmul.f32.gmra.mxu0 %v7512
  %v7720 = vpop.f32.mrf.mxu0
  %v7721 = vadd.f32 0.0, %v7720
  %7722 = vmatmul.f32.gmra.mxu0 %v7515
  %v7723 = vpop.f32.mrf.mxu0
  %v7724 = vadd.f32 0.0, %v7723
  %7725 = vmatmul.f32.gmra.mxu0 %v7518
  %v7726 = vpop.f32.mrf.mxu0
  %v7727 = vadd.f32 0.0, %v7726
  %7728 = vmatmul.f32.gmra.mxu0 %v7521
  %v7729 = vpop.f32.mrf.mxu0
  %v7730 = vadd.f32 0.0, %v7729
  %7731 = vmatmul.f32.gmra.mxu0 %v7524
  %v7732 = vpop.f32.mrf.mxu0
  %v7733 = vadd.f32 0.0, %v7732
  %7734 = vmatmul.f32.gmra.mxu0 %v7527
  %v7735 = vpop.f32.mrf.mxu0
  %v7736 = vadd.f32 0.0, %v7735
  %7737 = vmatmul.f32.gmra.mxu0 %v7530
  %v7738 = vpop.f32.mrf.mxu0
  %v7739 = vadd.f32 0.0, %v7738
  %7740 = vmatmul.f32.gmra.mxu0 %v7533
  %v7741 = vpop.f32.mrf.mxu0
  %v7742 = vadd.f32 0.0, %v7741
  %7743 = vmatmul.f32.gmra.mxu0 %v7536
  %v7744 = vpop.f32.mrf.mxu0
  %v7745 = vadd.f32 0.0, %v7744
  %7746 = vmatmul.f32.gmra.mxu0 %v7539
  %v7747 = vpop.f32.mrf.mxu0
  %v7748 = vadd.f32 0.0, %v7747
  %7749 = vmatmul.f32.gmra.mxu0 %v7542
  %v7750 = vpop.f32.mrf.mxu0
  %v7751 = vadd.f32 0.0, %v7750
  %7752 = vmatmul.f32.gmra.mxu0 %v7545
  %v7753 = vpop.f32.mrf.mxu0
  %v7754 = vadd.f32 0.0, %v7753
  %7755 = vmatmul.f32.gmra.mxu0 %v7548
  %v7756 = vpop.f32.mrf.mxu0
  %v7757 = vadd.f32 0.0, %v7756
  %7758 = vmatmul.f32.gmra.mxu0 %v7551
  %v7759 = vpop.f32.mrf.mxu0
  %v7760 = vadd.f32 0.0, %v7759
  %7761 = vmatmul.f32.gmra.mxu0 %v7554
  %v7762 = vpop.f32.mrf.mxu0
  %v7763 = vadd.f32 0.0, %v7762
  %7764 = vmatmul.f32.gmra.mxu0 %v7557
  %v7765 = vpop.f32.mrf.mxu0
  %v7766 = vadd.f32 0.0, %v7765
  %7767 = vmatmul.f32.gmra.mxu0 %v7560
  %v7768 = vpop.f32.mrf.mxu0
  %v7769 = vadd.f32 0.0, %v7768
  %7770 = vmatmul.f32.gmra.mxu0 %v7563
  %v7771 = vpop.f32.mrf.mxu0
  %v7772 = vadd.f32 0.0, %v7771
  %7773 = vmatmul.f32.gmra.mxu0 %v7566
  %v7774 = vpop.f32.mrf.mxu0
  %v7775 = vadd.f32 0.0, %v7774
  %7776 = vmatmul.f32.gmra.mxu0 %v7569
  %v7777 = vpop.f32.mrf.mxu0
  %v7778 = vadd.f32 0.0, %v7777
  %7779 = vmatmul.f32.gmra.mxu0 %v7572
  %v7780 = vpop.f32.mrf.mxu0
  %v7781 = vadd.f32 0.0, %v7780
  %7782 = vmatmul.f32.gmra.mxu0 %v7575
  %v7783 = vpop.f32.mrf.mxu0
  %v7784 = vadd.f32 0.0, %v7783
  %7785 = vmatmul.f32.gmra.mxu0 %v7578
  %v7786 = vpop.f32.mrf.mxu0
  %v7787 = vadd.f32 0.0, %v7786
  %7788 = vmatmul.f32.gmra.mxu0 %v7581
  %v7789 = vpop.f32.mrf.mxu0
  %v7790 = vadd.f32 0.0, %v7789
  %7791 = vmatmul.f32.gmra.mxu0 %v7584
  %v7792 = vpop.f32.mrf.mxu0
  %v7793 = vadd.f32 0.0, %v7792
  %7794 = vmatmul.f32.gmra.mxu0 %v7587
  %v7795 = vpop.f32.mrf.mxu0
  %v7796 = vadd.f32 0.0, %v7795
  %7797 = vmatmul.f32.gmra.mxu0 %v7590
  %v7798 = vpop.f32.mrf.mxu0
  %v7799 = vadd.f32 0.0, %v7798
  %7800 = vmatmul.f32.gmra.mxu0 %v7593
  %v7801 = vpop.f32.mrf.mxu0
  %v7802 = vadd.f32 0.0, %v7801
  %7803 = vmatmul.f32.gmra.mxu0 %v7596
  %v7804 = vpop.f32.mrf.mxu0
  %v7805 = vadd.f32 0.0, %v7804
  %7806 = vmatmul.f32.gmra.mxu0 %v7599
  %v7807 = vpop.f32.mrf.mxu0
  %v7808 = vadd.f32 0.0, %v7807
  %7809 = vmatmul.f32.gmra.mxu0 %v7602
  %v7810 = vpop.f32.mrf.mxu0
  %v7811 = vadd.f32 0.0, %v7810
  %7812 = vmatmul.f32.gmra.mxu0 %v7605
  %v7813 = vpop.f32.mrf.mxu0
  %v7814 = vadd.f32 0.0, %v7813
  %7815 = vmatmul.f32.gmra.mxu0 %v7608
  %v7816 = vpop.f32.mrf.mxu0
  %v7817 = vadd.f32 0.0, %v7816
  %7818 = vmatmul.f32.gmra.mxu0 %v7611
  %v7819 = vpop.f32.mrf.mxu0
  %v7820 = vadd.f32 0.0, %v7819
  %7821 = vmatmul.f32.gmra.mxu0 %v7614
  %v7822 = vpop.f32.mrf.mxu0
  %v7823 = vadd.f32 0.0, %v7822
  %7824 = vmatmul.f32.gmra.mxu0 %v7617
  %v7825 = vpop.f32.mrf.mxu0
  %v7826 = vadd.f32 0.0, %v7825
  %7827 = vmatmul.f32.gmra.mxu0 %v7620
  %v7828 = vpop.f32.mrf.mxu0
  %v7829 = vadd.f32 0.0, %v7828
  %7830 = vmatmul.f32.gmra.mxu0 %v7623
  %v7831 = vpop.f32.mrf.mxu0
  %v7832 = vadd.f32 0.0, %v7831
  %7833 = vmatmul.f32.gmra.mxu0 %v7626
  %v7834 = vpop.f32.mrf.mxu0
  %v7835 = vadd.f32 0.0, %v7834
  %7836 = vmatmul.f32.gmra.mxu0 %v7629
  %v7837 = vpop.f32.mrf.mxu0
  %v7838 = vadd.f32 0.0, %v7837
  %7839 = vmatmul.f32.gmra.mxu0 %v7632
  %v7840 = vpop.f32.mrf.mxu0
  %v7841 = vadd.f32 0.0, %v7840
  %7842 = vmatmul.f32.gmra.mxu0 %v7635
  %v7843 = vpop.f32.mrf.mxu0
  %v7844 = vadd.f32 0.0, %v7843
  %7845 = vmatmul.f32.gmra.mxu0 %v7638
  %v7846 = vpop.f32.mrf.mxu0
  %v7847 = vadd.f32 0.0, %v7846
  %7848 = vmatmul.f32.gmra.mxu0 %v7641
  %v7849 = vpop.f32.mrf.mxu0
  %v7850 = vadd.f32 0.0, %v7849
  %7851 = vmatmul.f32.gmra.mxu0 %v7644
  %v7852 = vpop.f32.mrf.mxu0
  %v7853 = vadd.f32 0.0, %v7852
  %7854 = vmatmul.f32.gmra.mxu0 %v7647
  %v7855 = vpop.f32.mrf.mxu0
  %v7856 = vadd.f32 0.0, %v7855
  %7857 = vmatmul.f32.gmra.mxu0 %v7650
  %v7858 = vpop.f32.mrf.mxu0
  %v7859 = vadd.f32 0.0, %v7858
  %7860 = vmatmul.f32.gmra.mxu0 %v7653
  %v7861 = vpop.f32.mrf.mxu0
  %v7862 = vadd.f32 0.0, %v7861
  %7863 = vmatmul.f32.gmra.mxu0 %v7656
  %v7864 = vpop.f32.mrf.mxu0
  %v7865 = vadd.f32 0.0, %v7864
  %7866 = vmatmul.f32.gmra.mxu0 %v7659
  %v7867 = vpop.f32.mrf.mxu0
  %v7868 = vadd.f32 0.0, %v7867
  %7869 = vmatmul.f32.gmra.mxu0 %v7662
  %v7870 = vpop.f32.mrf.mxu0
  %v7871 = vadd.f32 0.0, %v7870
  %7872 = vmatmul.f32.gmra.mxu0 %v7665
  %v7873 = vpop.f32.mrf.mxu0
  %v7874 = vadd.f32 0.0, %v7873
  %7875 = vmatmul.f32.gmra.mxu0 %v7668
  %v7876 = vpop.f32.mrf.mxu0
  %v7877 = vadd.f32 0.0, %v7876
  %7878 = vmatmul.f32.gmra.mxu0 %v7671
  %v7879 = vpop.f32.mrf.mxu0
  %v7880 = vadd.f32 0.0, %v7879
  %7881 = vmatmul.f32.gmra.mxu0 %v7674
  %v7882 = vpop.f32.mrf.mxu0
  %v7883 = vadd.f32 0.0, %v7882
  %7884 = vmatmul.f32.gmra.mxu0 %v7677
  %v7885 = vpop.f32.mrf.mxu0
  %v7886 = vadd.f32 0.0, %v7885
  %7887 = vmatmul.f32.gmra.mxu0 %v7680
  %v7888 = vpop.f32.mrf.mxu0
  %v7889 = vadd.f32 0.0, %v7888
  %7890 = vmatmul.f32.gmra.mxu0 %v7683
  %v7891 = vpop.f32.mrf.mxu0
  %v7892 = vadd.f32 0.0, %v7891
  %7893 = vmatmul.f32.gmra.mxu0 %v7686
  %v7894 = vpop.f32.mrf.mxu0
  %v7895 = vadd.f32 0.0, %v7894
  %7896 = vmatmul.f32.gmra.mxu0 %v7689
  %v7897 = vpop.f32.mrf.mxu0
  %v7898 = vadd.f32 0.0, %v7897
  %7899 = vdwg.mxu0
  %v7900 = vsel %vm2717, %v7709, 0.0
  %v7901 = vsel %vm2717, %v7712, 0.0
  %v7902 = vadd.f32 %v7900, %v7901
  %v7903 = vsel %vm2717, %v7715, 0.0
  %v7904 = vadd.f32 %v7902, %v7903
  %v7905 = vsel %vm2717, %v7718, 0.0
  %v7906 = vadd.f32 %v7904, %v7905
  %v7907 = vsel %vm2717, %v7721, 0.0
  %v7908 = vadd.f32 %v7906, %v7907
  %v7909 = vsel %vm2717, %v7724, 0.0
  %v7910 = vadd.f32 %v7908, %v7909
  %v7911 = vsel %vm2717, %v7727, 0.0
  %v7912 = vadd.f32 %v7910, %v7911
  %v7913 = vsel %vm2717, %v7730, 0.0
  %v7914 = vadd.f32 %v7912, %v7913
  %v7915 = vsel %vm2717, %v7733, 0.0
  %v7916 = vadd.f32 %v7914, %v7915
  %v7917 = vsel %vm2717, %v7736, 0.0
  %v7918 = vadd.f32 %v7916, %v7917
  %v7919 = vsel %vm2717, %v7739, 0.0
  %v7920 = vadd.f32 %v7918, %v7919
  %v7921 = vsel %vm2717, %v7742, 0.0
  %v7922 = vadd.f32 %v7920, %v7921
  %v7923 = vsel %vm2717, %v7745, 0.0
  %v7924 = vadd.f32 %v7922, %v7923
  %v7925 = vsel %vm2717, %v7748, 0.0
  %v7926 = vadd.f32 %v7924, %v7925
  %v7927 = vsel %vm2717, %v7751, 0.0
  %v7928 = vadd.f32 %v7926, %v7927
  %v7929 = vsel %vm2717, %v7754, 0.0
  %v7930 = vadd.f32 %v7928, %v7929
  %v7931 = vsel %vm2717, %v7757, 0.0
  %v7932 = vadd.f32 %v7930, %v7931
  %v7933 = vsel %vm2717, %v7760, 0.0
  %v7934 = vadd.f32 %v7932, %v7933
  %v7935 = vsel %vm2717, %v7763, 0.0
  %v7936 = vadd.f32 %v7934, %v7935
  %v7937 = vsel %vm2717, %v7766, 0.0
  %v7938 = vadd.f32 %v7936, %v7937
  %v7939 = vsel %vm2717, %v7769, 0.0
  %v7940 = vadd.f32 %v7938, %v7939
  %v7941 = vsel %vm2717, %v7772, 0.0
  %v7942 = vadd.f32 %v7940, %v7941
  %v7943 = vsel %vm2717, %v7775, 0.0
  %v7944 = vadd.f32 %v7942, %v7943
  %v7945 = vsel %vm2717, %v7778, 0.0
  %v7946 = vadd.f32 %v7944, %v7945
  %v7947 = vsel %vm2717, %v7781, 0.0
  %v7948 = vadd.f32 %v7946, %v7947
  %v7949 = vsel %vm2717, %v7784, 0.0
  %v7950 = vadd.f32 %v7948, %v7949
  %v7951 = vsel %vm2717, %v7787, 0.0
  %v7952 = vadd.f32 %v7950, %v7951
  %v7953 = vsel %vm2717, %v7790, 0.0
  %v7954 = vadd.f32 %v7952, %v7953
  %v7955 = vsel %vm2717, %v7793, 0.0
  %v7956 = vadd.f32 %v7954, %v7955
  %v7957 = vsel %vm2717, %v7796, 0.0
  %v7958 = vadd.f32 %v7956, %v7957
  %v7959 = vsel %vm2717, %v7799, 0.0
  %v7960 = vadd.f32 %v7958, %v7959
  %v7961 = vsel %vm2717, %v7802, 0.0
  %v7962 = vadd.f32 %v7960, %v7961
  %v7963 = vsel %vm2717, %v7805, 0.0
  %v7964 = vadd.f32 %v7962, %v7963
  %v7965 = vsel %vm2717, %v7808, 0.0
  %v7966 = vadd.f32 %v7964, %v7965
  %v7967 = vsel %vm2717, %v7811, 0.0
  %v7968 = vadd.f32 %v7966, %v7967
  %v7969 = vsel %vm2717, %v7814, 0.0
  %v7970 = vadd.f32 %v7968, %v7969
  %v7971 = vsel %vm2717, %v7817, 0.0
  %v7972 = vadd.f32 %v7970, %v7971
  %v7973 = vsel %vm2717, %v7820, 0.0
  %v7974 = vadd.f32 %v7972, %v7973
  %v7975 = vsel %vm2717, %v7823, 0.0
  %v7976 = vadd.f32 %v7974, %v7975
  %v7977 = vsel %vm2717, %v7826, 0.0
  %v7978 = vadd.f32 %v7976, %v7977
  %v7979 = vsel %vm2717, %v7829, 0.0
  %v7980 = vadd.f32 %v7978, %v7979
  %v7981 = vsel %vm2717, %v7832, 0.0
  %v7982 = vadd.f32 %v7980, %v7981
  %v7983 = vsel %vm2717, %v7835, 0.0
  %v7984 = vadd.f32 %v7982, %v7983
  %v7985 = vsel %vm2717, %v7838, 0.0
  %v7986 = vadd.f32 %v7984, %v7985
  %v7987 = vsel %vm2717, %v7841, 0.0
  %v7988 = vadd.f32 %v7986, %v7987
  %v7989 = vsel %vm2717, %v7844, 0.0
  %v7990 = vadd.f32 %v7988, %v7989
  %v7991 = vsel %vm2717, %v7847, 0.0
  %v7992 = vadd.f32 %v7990, %v7991
  %v7993 = vsel %vm2717, %v7850, 0.0
  %v7994 = vadd.f32 %v7992, %v7993
  %v7995 = vsel %vm2717, %v7853, 0.0
  %v7996 = vadd.f32 %v7994, %v7995
  %v7997 = vsel %vm2717, %v7856, 0.0
  %v7998 = vadd.f32 %v7996, %v7997
  %v7999 = vsel %vm2717, %v7859, 0.0
  %v8000 = vadd.f32 %v7998, %v7999
  %v8001 = vsel %vm2717, %v7862, 0.0
  %v8002 = vadd.f32 %v8000, %v8001
  %v8003 = vsel %vm2717, %v7865, 0.0
  %v8004 = vadd.f32 %v8002, %v8003
  %v8005 = vsel %vm2717, %v7868, 0.0
  %v8006 = vadd.f32 %v8004, %v8005
  %v8007 = vsel %vm2717, %v7871, 0.0
  %v8008 = vadd.f32 %v8006, %v8007
  %v8009 = vsel %vm2717, %v7874, 0.0
  %v8010 = vadd.f32 %v8008, %v8009
  %v8011 = vsel %vm2717, %v7877, 0.0
  %v8012 = vadd.f32 %v8010, %v8011
  %v8013 = vsel %vm2717, %v7880, 0.0
  %v8014 = vadd.f32 %v8012, %v8013
  %v8015 = vsel %vm2717, %v7883, 0.0
  %v8016 = vadd.f32 %v8014, %v8015
  %v8017 = vsel %vm2717, %v7886, 0.0
  %v8018 = vadd.f32 %v8016, %v8017
  %v8019 = vsel %vm2717, %v7889, 0.0
  %v8020 = vadd.f32 %v8018, %v8019
  %v8021 = vsel %vm2717, %v7892, 0.0
  %v8022 = vadd.f32 %v8020, %v8021
  %v8023 = vsel %vm2717, %v7895, 0.0
  %v8024 = vadd.f32 %v8022, %v8023
  %v8025 = vsel %vm2717, %v7898, 0.0
  %v8026 = vadd.f32 %v8024, %v8025
  %v8027 = vrot.slane %v8026, 4
  %v8028 = vadd.f32 %v8026, %v8027
  %v8029 = vrot.slane %v8028, 2
  %v8030 = vadd.f32 %v8028, %v8029
  %v8031 = vrot.slane %v8030, 1
  %v8032 = vadd.f32 %v8030, %v8031
  %v8033 = vmul.f32 %v8032, %v3722
  %v8034 = vsub.f32 %v7709, %v8033
  %v8035 = vsub.f32 %v7712, %v8033
  %v8036 = vsub.f32 %v7715, %v8033
  %v8037 = vsub.f32 %v7718, %v8033
  %v8038 = vsub.f32 %v7721, %v8033
  %v8039 = vsub.f32 %v7724, %v8033
  %v8040 = vsub.f32 %v7727, %v8033
  %v8041 = vsub.f32 %v7730, %v8033
  %v8042 = vsub.f32 %v7733, %v8033
  %v8043 = vsub.f32 %v7736, %v8033
  %v8044 = vsub.f32 %v7739, %v8033
  %v8045 = vsub.f32 %v7742, %v8033
  %v8046 = vsub.f32 %v7745, %v8033
  %v8047 = vsub.f32 %v7748, %v8033
  %v8048 = vsub.f32 %v7751, %v8033
  %v8049 = vsub.f32 %v7754, %v8033
  %v8050 = vsub.f32 %v7757, %v8033
  %v8051 = vsub.f32 %v7760, %v8033
  %v8052 = vsub.f32 %v7763, %v8033
  %v8053 = vsub.f32 %v7766, %v8033
  %v8054 = vsub.f32 %v7769, %v8033
  %v8055 = vsub.f32 %v7772, %v8033
  %v8056 = vsub.f32 %v7775, %v8033
  %v8057 = vsub.f32 %v7778, %v8033
  %v8058 = vsub.f32 %v7781, %v8033
  %v8059 = vsub.f32 %v7784, %v8033
  %v8060 = vsub.f32 %v7787, %v8033
  %v8061 = vsub.f32 %v7790, %v8033
  %v8062 = vsub.f32 %v7793, %v8033
  %v8063 = vsub.f32 %v7796, %v8033
  %v8064 = vsub.f32 %v7799, %v8033
  %v8065 = vsub.f32 %v7802, %v8033
  %v8066 = vsub.f32 %v7805, %v8033
  %v8067 = vsub.f32 %v7808, %v8033
  %v8068 = vsub.f32 %v7811, %v8033
  %v8069 = vsub.f32 %v7814, %v8033
  %v8070 = vsub.f32 %v7817, %v8033
  %v8071 = vsub.f32 %v7820, %v8033
  %v8072 = vsub.f32 %v7823, %v8033
  %v8073 = vsub.f32 %v7826, %v8033
  %v8074 = vsub.f32 %v7829, %v8033
  %v8075 = vsub.f32 %v7832, %v8033
  %v8076 = vsub.f32 %v7835, %v8033
  %v8077 = vsub.f32 %v7838, %v8033
  %v8078 = vsub.f32 %v7841, %v8033
  %v8079 = vsub.f32 %v7844, %v8033
  %v8080 = vsub.f32 %v7847, %v8033
  %v8081 = vsub.f32 %v7850, %v8033
  %v8082 = vsub.f32 %v7853, %v8033
  %v8083 = vsub.f32 %v7856, %v8033
  %v8084 = vsub.f32 %v7859, %v8033
  %v8085 = vsub.f32 %v7862, %v8033
  %v8086 = vsub.f32 %v7865, %v8033
  %v8087 = vsub.f32 %v7868, %v8033
  %v8088 = vsub.f32 %v7871, %v8033
  %v8089 = vsub.f32 %v7874, %v8033
  %v8090 = vsub.f32 %v7877, %v8033
  %v8091 = vsub.f32 %v7880, %v8033
  %v8092 = vsub.f32 %v7883, %v8033
  %v8093 = vsub.f32 %v7886, %v8033
  %v8094 = vsub.f32 %v7889, %v8033
  %v8095 = vsub.f32 %v7892, %v8033
  %v8096 = vsub.f32 %v7895, %v8033
  %v8097 = vsub.f32 %v7898, %v8033
  %v8098 = vmul.f32 %v8034, %v8034
  %v8099 = vmul.f32 %v8035, %v8035
  %v8100 = vmul.f32 %v8036, %v8036
  %v8101 = vmul.f32 %v8037, %v8037
  %v8102 = vmul.f32 %v8038, %v8038
  %v8103 = vmul.f32 %v8039, %v8039
  %v8104 = vmul.f32 %v8040, %v8040
  %v8105 = vmul.f32 %v8041, %v8041
  %v8106 = vmul.f32 %v8042, %v8042
  %v8107 = vmul.f32 %v8043, %v8043
  %v8108 = vmul.f32 %v8044, %v8044
  %v8109 = vmul.f32 %v8045, %v8045
  %v8110 = vmul.f32 %v8046, %v8046
  %v8111 = vmul.f32 %v8047, %v8047
  %v8112 = vmul.f32 %v8048, %v8048
  %v8113 = vmul.f32 %v8049, %v8049
  %v8114 = vmul.f32 %v8050, %v8050
  %v8115 = vmul.f32 %v8051, %v8051
  %v8116 = vmul.f32 %v8052, %v8052
  %v8117 = vmul.f32 %v8053, %v8053
  %v8118 = vmul.f32 %v8054, %v8054
  %v8119 = vmul.f32 %v8055, %v8055
  %v8120 = vmul.f32 %v8056, %v8056
  %v8121 = vmul.f32 %v8057, %v8057
  %v8122 = vmul.f32 %v8058, %v8058
  %v8123 = vmul.f32 %v8059, %v8059
  %v8124 = vmul.f32 %v8060, %v8060
  %v8125 = vmul.f32 %v8061, %v8061
  %v8126 = vmul.f32 %v8062, %v8062
  %v8127 = vmul.f32 %v8063, %v8063
  %v8128 = vmul.f32 %v8064, %v8064
  %v8129 = vmul.f32 %v8065, %v8065
  %v8130 = vmul.f32 %v8066, %v8066
  %v8131 = vmul.f32 %v8067, %v8067
  %v8132 = vmul.f32 %v8068, %v8068
  %v8133 = vmul.f32 %v8069, %v8069
  %v8134 = vmul.f32 %v8070, %v8070
  %v8135 = vmul.f32 %v8071, %v8071
  %v8136 = vmul.f32 %v8072, %v8072
  %v8137 = vmul.f32 %v8073, %v8073
  %v8138 = vmul.f32 %v8074, %v8074
  %v8139 = vmul.f32 %v8075, %v8075
  %v8140 = vmul.f32 %v8076, %v8076
  %v8141 = vmul.f32 %v8077, %v8077
  %v8142 = vmul.f32 %v8078, %v8078
  %v8143 = vmul.f32 %v8079, %v8079
  %v8144 = vmul.f32 %v8080, %v8080
  %v8145 = vmul.f32 %v8081, %v8081
  %v8146 = vmul.f32 %v8082, %v8082
  %v8147 = vmul.f32 %v8083, %v8083
  %v8148 = vmul.f32 %v8084, %v8084
  %v8149 = vmul.f32 %v8085, %v8085
  %v8150 = vmul.f32 %v8086, %v8086
  %v8151 = vmul.f32 %v8087, %v8087
  %v8152 = vmul.f32 %v8088, %v8088
  %v8153 = vmul.f32 %v8089, %v8089
  %v8154 = vmul.f32 %v8090, %v8090
  %v8155 = vmul.f32 %v8091, %v8091
  %v8156 = vmul.f32 %v8092, %v8092
  %v8157 = vmul.f32 %v8093, %v8093
  %v8158 = vmul.f32 %v8094, %v8094
  %v8159 = vmul.f32 %v8095, %v8095
  %v8160 = vmul.f32 %v8096, %v8096
  %v8161 = vmul.f32 %v8097, %v8097
  %v8162 = vsel %vm2717, %v8098, 0.0
  %v8163 = vsel %vm2717, %v8099, 0.0
  %v8164 = vadd.f32 %v8162, %v8163
  %v8165 = vsel %vm2717, %v8100, 0.0
  %v8166 = vadd.f32 %v8164, %v8165
  %v8167 = vsel %vm2717, %v8101, 0.0
  %v8168 = vadd.f32 %v8166, %v8167
  %v8169 = vsel %vm2717, %v8102, 0.0
  %v8170 = vadd.f32 %v8168, %v8169
  %v8171 = vsel %vm2717, %v8103, 0.0
  %v8172 = vadd.f32 %v8170, %v8171
  %v8173 = vsel %vm2717, %v8104, 0.0
  %v8174 = vadd.f32 %v8172, %v8173
  %v8175 = vsel %vm2717, %v8105, 0.0
  %v8176 = vadd.f32 %v8174, %v8175
  %v8177 = vsel %vm2717, %v8106, 0.0
  %v8178 = vadd.f32 %v8176, %v8177
  %v8179 = vsel %vm2717, %v8107, 0.0
  %v8180 = vadd.f32 %v8178, %v8179
  %v8181 = vsel %vm2717, %v8108, 0.0
  %v8182 = vadd.f32 %v8180, %v8181
  %v8183 = vsel %vm2717, %v8109, 0.0
  %v8184 = vadd.f32 %v8182, %v8183
  %v8185 = vsel %vm2717, %v8110, 0.0
  %v8186 = vadd.f32 %v8184, %v8185
  %v8187 = vsel %vm2717, %v8111, 0.0
  %v8188 = vadd.f32 %v8186, %v8187
  %v8189 = vsel %vm2717, %v8112, 0.0
  %v8190 = vadd.f32 %v8188, %v8189
  %v8191 = vsel %vm2717, %v8113, 0.0
  %v8192 = vadd.f32 %v8190, %v8191
  %v8193 = vsel %vm2717, %v8114, 0.0
  %v8194 = vadd.f32 %v8192, %v8193
  %v8195 = vsel %vm2717, %v8115, 0.0
  %v8196 = vadd.f32 %v8194, %v8195
  %v8197 = vsel %vm2717, %v8116, 0.0
  %v8198 = vadd.f32 %v8196, %v8197
  %v8199 = vsel %vm2717, %v8117, 0.0
  %v8200 = vadd.f32 %v8198, %v8199
  %v8201 = vsel %vm2717, %v8118, 0.0
  %v8202 = vadd.f32 %v8200, %v8201
  %v8203 = vsel %vm2717, %v8119, 0.0
  %v8204 = vadd.f32 %v8202, %v8203
  %v8205 = vsel %vm2717, %v8120, 0.0
  %v8206 = vadd.f32 %v8204, %v8205
  %v8207 = vsel %vm2717, %v8121, 0.0
  %v8208 = vadd.f32 %v8206, %v8207
  %v8209 = vsel %vm2717, %v8122, 0.0
  %v8210 = vadd.f32 %v8208, %v8209
  %v8211 = vsel %vm2717, %v8123, 0.0
  %v8212 = vadd.f32 %v8210, %v8211
  %v8213 = vsel %vm2717, %v8124, 0.0
  %v8214 = vadd.f32 %v8212, %v8213
  %v8215 = vsel %vm2717, %v8125, 0.0
  %v8216 = vadd.f32 %v8214, %v8215
  %v8217 = vsel %vm2717, %v8126, 0.0
  %v8218 = vadd.f32 %v8216, %v8217
  %v8219 = vsel %vm2717, %v8127, 0.0
  %v8220 = vadd.f32 %v8218, %v8219
  %v8221 = vsel %vm2717, %v8128, 0.0
  %v8222 = vadd.f32 %v8220, %v8221
  %v8223 = vsel %vm2717, %v8129, 0.0
  %v8224 = vadd.f32 %v8222, %v8223
  %v8225 = vsel %vm2717, %v8130, 0.0
  %v8226 = vadd.f32 %v8224, %v8225
  %v8227 = vsel %vm2717, %v8131, 0.0
  %v8228 = vadd.f32 %v8226, %v8227
  %v8229 = vsel %vm2717, %v8132, 0.0
  %v8230 = vadd.f32 %v8228, %v8229
  %v8231 = vsel %vm2717, %v8133, 0.0
  %v8232 = vadd.f32 %v8230, %v8231
  %v8233 = vsel %vm2717, %v8134, 0.0
  %v8234 = vadd.f32 %v8232, %v8233
  %v8235 = vsel %vm2717, %v8135, 0.0
  %v8236 = vadd.f32 %v8234, %v8235
  %v8237 = vsel %vm2717, %v8136, 0.0
  %v8238 = vadd.f32 %v8236, %v8237
  %v8239 = vsel %vm2717, %v8137, 0.0
  %v8240 = vadd.f32 %v8238, %v8239
  %v8241 = vsel %vm2717, %v8138, 0.0
  %v8242 = vadd.f32 %v8240, %v8241
  %v8243 = vsel %vm2717, %v8139, 0.0
  %v8244 = vadd.f32 %v8242, %v8243
  %v8245 = vsel %vm2717, %v8140, 0.0
  %v8246 = vadd.f32 %v8244, %v8245
  %v8247 = vsel %vm2717, %v8141, 0.0
  %v8248 = vadd.f32 %v8246, %v8247
  %v8249 = vsel %vm2717, %v8142, 0.0
  %v8250 = vadd.f32 %v8248, %v8249
  %v8251 = vsel %vm2717, %v8143, 0.0
  %v8252 = vadd.f32 %v8250, %v8251
  %v8253 = vsel %vm2717, %v8144, 0.0
  %v8254 = vadd.f32 %v8252, %v8253
  %v8255 = vsel %vm2717, %v8145, 0.0
  %v8256 = vadd.f32 %v8254, %v8255
  %v8257 = vsel %vm2717, %v8146, 0.0
  %v8258 = vadd.f32 %v8256, %v8257
  %v8259 = vsel %vm2717, %v8147, 0.0
  %v8260 = vadd.f32 %v8258, %v8259
  %v8261 = vsel %vm2717, %v8148, 0.0
  %v8262 = vadd.f32 %v8260, %v8261
  %v8263 = vsel %vm2717, %v8149, 0.0
  %v8264 = vadd.f32 %v8262, %v8263
  %v8265 = vsel %vm2717, %v8150, 0.0
  %v8266 = vadd.f32 %v8264, %v8265
  %v8267 = vsel %vm2717, %v8151, 0.0
  %v8268 = vadd.f32 %v8266, %v8267
  %v8269 = vsel %vm2717, %v8152, 0.0
  %v8270 = vadd.f32 %v8268, %v8269
  %v8271 = vsel %vm2717, %v8153, 0.0
  %v8272 = vadd.f32 %v8270, %v8271
  %v8273 = vsel %vm2717, %v8154, 0.0
  %v8274 = vadd.f32 %v8272, %v8273
  %v8275 = vsel %vm2717, %v8155, 0.0
  %v8276 = vadd.f32 %v8274, %v8275
  %v8277 = vsel %vm2717, %v8156, 0.0
  %v8278 = vadd.f32 %v8276, %v8277
  %v8279 = vsel %vm2717, %v8157, 0.0
  %v8280 = vadd.f32 %v8278, %v8279
  %v8281 = vsel %vm2717, %v8158, 0.0
  %v8282 = vadd.f32 %v8280, %v8281
  %v8283 = vsel %vm2717, %v8159, 0.0
  %v8284 = vadd.f32 %v8282, %v8283
  %v8285 = vsel %vm2717, %v8160, 0.0
  %v8286 = vadd.f32 %v8284, %v8285
  %v8287 = vsel %vm2717, %v8161, 0.0
  %v8288 = vadd.f32 %v8286, %v8287
  %v8289 = vrot.slane %v8288, 4
  %v8290 = vadd.f32 %v8288, %v8289
  %v8291 = vrot.slane %v8290, 2
  %v8292 = vadd.f32 %v8290, %v8291
  %v8293 = vrot.slane %v8292, 1
  %v8294 = vadd.f32 %v8292, %v8293
  %v8295 = vmul.f32 %v8294, %v3722
  %v8296 = vadd.f32 %v8295, 1e-05
  %v8297 = vrsqrt.pop %v8296
  %v8298 = vmul.f32 %v8297, %v8296
  %v8299 = vmul.f32 %v8298, %v8297
  %v8300 = vmul.f32 0.5, %v8299
  %v8301 = vsub.f32 1.5, %v8300
  %v8302 = vmul.f32 %v8297, %v8301
  %vm8303 = vweird.f32 %v8296
  %vm8304 = vweird.f32 %v8297
  %vm8305 = vmor %vm8303, %vm8304
  %v8306 = vsel %vm8305, %v8297, %v8302
  %v8307 = vld [vmem:[%s5] sm:$0x1]
  %v8308 = vmul.f32 %v8306, %v8307
  %v8309 = vperm.slane %v8308, 0
  %v8310 = vmul.f32 %v8034, %v8309
  %v8311 = vmul.f32 %v8035, %v8309
  %v8312 = vmul.f32 %v8036, %v8309
  %v8313 = vmul.f32 %v8037, %v8309
  %v8314 = vmul.f32 %v8038, %v8309
  %v8315 = vmul.f32 %v8039, %v8309
  %v8316 = vmul.f32 %v8040, %v8309
  %v8317 = vmul.f32 %v8041, %v8309
  %v8318 = vmul.f32 %v8042, %v8309
  %v8319 = vmul.f32 %v8043, %v8309
  %v8320 = vmul.f32 %v8044, %v8309
  %v8321 = vmul.f32 %v8045, %v8309
  %v8322 = vmul.f32 %v8046, %v8309
  %v8323 = vmul.f32 %v8047, %v8309
  %v8324 = vmul.f32 %v8048, %v8309
  %v8325 = vmul.f32 %v8049, %v8309
  %v8326 = vmul.f32 %v8050, %v8309
  %v8327 = vmul.f32 %v8051, %v8309
  %v8328 = vmul.f32 %v8052, %v8309
  %v8329 = vmul.f32 %v8053, %v8309
  %v8330 = vmul.f32 %v8054, %v8309
  %v8331 = vmul.f32 %v8055, %v8309
  %v8332 = vmul.f32 %v8056, %v8309
  %v8333 = vmul.f32 %v8057, %v8309
  %v8334 = vmul.f32 %v8058, %v8309
  %v8335 = vmul.f32 %v8059, %v8309
  %v8336 = vmul.f32 %v8060, %v8309
  %v8337 = vmul.f32 %v8061, %v8309
  %v8338 = vmul.f32 %v8062, %v8309
  %v8339 = vmul.f32 %v8063, %v8309
  %v8340 = vmul.f32 %v8064, %v8309
  %v8341 = vmul.f32 %v8065, %v8309
  %v8342 = vmul.f32 %v8066, %v8309
  %v8343 = vmul.f32 %v8067, %v8309
  %v8344 = vmul.f32 %v8068, %v8309
  %v8345 = vmul.f32 %v8069, %v8309
  %v8346 = vmul.f32 %v8070, %v8309
  %v8347 = vmul.f32 %v8071, %v8309
  %v8348 = vmul.f32 %v8072, %v8309
  %v8349 = vmul.f32 %v8073, %v8309
  %v8350 = vmul.f32 %v8074, %v8309
  %v8351 = vmul.f32 %v8075, %v8309
  %v8352 = vmul.f32 %v8076, %v8309
  %v8353 = vmul.f32 %v8077, %v8309
  %v8354 = vmul.f32 %v8078, %v8309
  %v8355 = vmul.f32 %v8079, %v8309
  %v8356 = vmul.f32 %v8080, %v8309
  %v8357 = vmul.f32 %v8081, %v8309
  %v8358 = vmul.f32 %v8082, %v8309
  %v8359 = vmul.f32 %v8083, %v8309
  %v8360 = vmul.f32 %v8084, %v8309
  %v8361 = vmul.f32 %v8085, %v8309
  %v8362 = vmul.f32 %v8086, %v8309
  %v8363 = vmul.f32 %v8087, %v8309
  %v8364 = vmul.f32 %v8088, %v8309
  %v8365 = vmul.f32 %v8089, %v8309
  %v8366 = vmul.f32 %v8090, %v8309
  %v8367 = vmul.f32 %v8091, %v8309
  %v8368 = vmul.f32 %v8092, %v8309
  %v8369 = vmul.f32 %v8093, %v8309
  %v8370 = vmul.f32 %v8094, %v8309
  %v8371 = vmul.f32 %v8095, %v8309
  %v8372 = vmul.f32 %v8096, %v8309
  %v8373 = vmul.f32 %v8097, %v8309
  %v8374 = vld [vmem:[%s6] sm:$0x1]
  %v8376 = vperm.slane %v8374, 0
  %v8378 = vadd.f32 %v8310, %v8376
  %v8379 = vadd.f32 %v8311, %v8376
  %v8380 = vadd.f32 %v8312, %v8376
  %v8381 = vadd.f32 %v8313, %v8376
  %v8382 = vadd.f32 %v8314, %v8376
  %v8383 = vadd.f32 %v8315, %v8376
  %v8384 = vadd.f32 %v8316, %v8376
  %v8385 = vadd.f32 %v8317, %v8376
  %v8386 = vadd.f32 %v8318, %v8376
  %v8387 = vadd.f32 %v8319, %v8376
  %v8388 = vadd.f32 %v8320, %v8376
  %v8389 = vadd.f32 %v8321, %v8376
  %v8390 = vadd.f32 %v8322, %v8376
  %v8391 = vadd.f32 %v8323, %v8376
  %v8392 = vadd.f32 %v8324, %v8376
  %v8393 = vadd.f32 %v8325, %v8376
  %v8394 = vadd.f32 %v8326, %v8376
  %v8395 = vadd.f32 %v8327, %v8376
  %v8396 = vadd.f32 %v8328, %v8376
  %v8397 = vadd.f32 %v8329, %v8376
  %v8398 = vadd.f32 %v8330, %v8376
  %v8399 = vadd.f32 %v8331, %v8376
  %v8400 = vadd.f32 %v8332, %v8376
  %v8401 = vadd.f32 %v8333, %v8376
  %v8402 = vadd.f32 %v8334, %v8376
  %v8403 = vadd.f32 %v8335, %v8376
  %v8404 = vadd.f32 %v8336, %v8376
  %v8405 = vadd.f32 %v8337, %v8376
  %v8406 = vadd.f32 %v8338, %v8376
  %v8407 = vadd.f32 %v8339, %v8376
  %v8408 = vadd.f32 %v8340, %v8376
  %v8409 = vadd.f32 %v8341, %v8376
  %v8410 = vadd.f32 %v8342, %v8376
  %v8411 = vadd.f32 %v8343, %v8376
  %v8412 = vadd.f32 %v8344, %v8376
  %v8413 = vadd.f32 %v8345, %v8376
  %v8414 = vadd.f32 %v8346, %v8376
  %v8415 = vadd.f32 %v8347, %v8376
  %v8416 = vadd.f32 %v8348, %v8376
  %v8417 = vadd.f32 %v8349, %v8376
  %v8418 = vadd.f32 %v8350, %v8376
  %v8419 = vadd.f32 %v8351, %v8376
  %v8420 = vadd.f32 %v8352, %v8376
  %v8421 = vadd.f32 %v8353, %v8376
  %v8422 = vadd.f32 %v8354, %v8376
  %v8423 = vadd.f32 %v8355, %v8376
  %v8424 = vadd.f32 %v8356, %v8376
  %v8425 = vadd.f32 %v8357, %v8376
  %v8426 = vadd.f32 %v8358, %v8376
  %v8427 = vadd.f32 %v8359, %v8376
  %v8428 = vadd.f32 %v8360, %v8376
  %v8429 = vadd.f32 %v8361, %v8376
  %v8430 = vadd.f32 %v8362, %v8376
  %v8431 = vadd.f32 %v8363, %v8376
  %v8432 = vadd.f32 %v8364, %v8376
  %v8433 = vadd.f32 %v8365, %v8376
  %v8434 = vadd.f32 %v8366, %v8376
  %v8435 = vadd.f32 %v8367, %v8376
  %v8436 = vadd.f32 %v8368, %v8376
  %v8437 = vadd.f32 %v8369, %v8376
  %v8438 = vadd.f32 %v8370, %v8376
  %v8439 = vadd.f32 %v8371, %v8376
  %v8440 = vadd.f32 %v8372, %v8376
  %v8441 = vadd.f32 %v8373, %v8376
  %v8442 = vmax.f32 %v8378, 0.0
  %v8443 = vmax.f32 %v8379, 0.0
  %v8444 = vmax.f32 %v8380, 0.0
  %v8445 = vmax.f32 %v8381, 0.0
  %v8446 = vmax.f32 %v8382, 0.0
  %v8447 = vmax.f32 %v8383, 0.0
  %v8448 = vmax.f32 %v8384, 0.0
  %v8449 = vmax.f32 %v8385, 0.0
  %v8450 = vmax.f32 %v8386, 0.0
  %v8451 = vmax.f32 %v8387, 0.0
  %v8452 = vmax.f32 %v8388, 0.0
  %v8453 = vmax.f32 %v8389, 0.0
  %v8454 = vmax.f32 %v8390, 0.0
  %v8455 = vmax.f32 %v8391, 0.0
  %v8456 = vmax.f32 %v8392, 0.0
  %v8457 = vmax.f32 %v8393, 0.0
  %v8458 = vmax.f32 %v8394, 0.0
  %v8459 = vmax.f32 %v8395, 0.0
  %v8460 = vmax.f32 %v8396, 0.0
  %v8461 = vmax.f32 %v8397, 0.0
  %v8462 = vmax.f32 %v8398, 0.0
  %v8463 = vmax.f32 %v8399, 0.0
  %v8464 = vmax.f32 %v8400, 0.0
  %v8465 = vmax.f32 %v8401, 0.0
  %v8466 = vmax.f32 %v8402, 0.0
  %v8467 = vmax.f32 %v8403, 0.0
  %v8468 = vmax.f32 %v8404, 0.0
  %v8469 = vmax.f32 %v8405, 0.0
  %v8470 = vmax.f32 %v8406, 0.0
  %v8471 = vmax.f32 %v8407, 0.0
  %v8472 = vmax.f32 %v8408, 0.0
  %v8473 = vmax.f32 %v8409, 0.0
  %v8474 = vmax.f32 %v8410, 0.0
  %v8475 = vmax.f32 %v8411, 0.0
  %v8476 = vmax.f32 %v8412, 0.0
  %v8477 = vmax.f32 %v8413, 0.0
  %v8478 = vmax.f32 %v8414, 0.0
  %v8479 = vmax.f32 %v8415, 0.0
  %v8480 = vmax.f32 %v8416, 0.0
  %v8481 = vmax.f32 %v8417, 0.0
  %v8482 = vmax.f32 %v8418, 0.0
  %v8483 = vmax.f32 %v8419, 0.0
  %v8484 = vmax.f32 %v8420, 0.0
  %v8485 = vmax.f32 %v8421, 0.0
  %v8486 = vmax.f32 %v8422, 0.0
  %v8487 = vmax.f32 %v8423, 0.0
  %v8488 = vmax.f32 %v8424, 0.0
  %v8489 = vmax.f32 %v8425, 0.0
  %v8490 = vmax.f32 %v8426, 0.0
  %v8491 = vmax.f32 %v8427, 0.0
  %v8492 = vmax.f32 %v8428, 0.0
  %v8493 = vmax.f32 %v8429, 0.0
  %v8494 = vmax.f32 %v8430, 0.0
  %v8495 = vmax.f32 %v8431, 0.0
  %v8496 = vmax.f32 %v8432, 0.0
  %v8497 = vmax.f32 %v8433, 0.0
  %v8498 = vmax.f32 %v8434, 0.0
  %v8499 = vmax.f32 %v8435, 0.0
  %v8500 = vmax.f32 %v8436, 0.0
  %v8501 = vmax.f32 %v8437, 0.0
  %v8502 = vmax.f32 %v8438, 0.0
  %v8503 = vmax.f32 %v8439, 0.0
  %v8504 = vmax.f32 %v8440, 0.0
  %v8505 = vmax.f32 %v8441, 0.0
  %8506 = vst.msk [vmem:[%s7] sm:$0xff] %vm2717, %v8442
  %8507 = vst.msk [vmem:[%s7 + $0x8] sm:$0xff] %vm2717, %v8443
  %8508 = vst.msk [vmem:[%s7 + $0x10] sm:$0xff] %vm2717, %v8444
  %8509 = vst.msk [vmem:[%s7 + $0x18] sm:$0xff] %vm2717, %v8445
  %8510 = vst.msk [vmem:[%s7 + $0x20] sm:$0xff] %vm2717, %v8446
  %8511 = vst.msk [vmem:[%s7 + $0x28] sm:$0xff] %vm2717, %v8447
  %8512 = vst.msk [vmem:[%s7 + $0x30] sm:$0xff] %vm2717, %v8448
  %8513 = vst.msk [vmem:[%s7 + $0x38] sm:$0xff] %vm2717, %v8449
  %8514 = vst.msk [vmem:[%s7 + $0x40] sm:$0xff] %vm2717, %v8450
  %8515 = vst.msk [vmem:[%s7 + $0x48] sm:$0xff] %vm2717, %v8451
  %8516 = vst.msk [vmem:[%s7 + $0x50] sm:$0xff] %vm2717, %v8452
  %8517 = vst.msk [vmem:[%s7 + $0x58] sm:$0xff] %vm2717, %v8453
  %8518 = vst.msk [vmem:[%s7 + $0x60] sm:$0xff] %vm2717, %v8454
  %8519 = vst.msk [vmem:[%s7 + $0x68] sm:$0xff] %vm2717, %v8455
  %8520 = vst.msk [vmem:[%s7 + $0x70] sm:$0xff] %vm2717, %v8456
  %8521 = vst.msk [vmem:[%s7 + $0x78] sm:$0xff] %vm2717, %v8457
  %8522 = vst.msk [vmem:[%s7 + $0x80] sm:$0xff] %vm2717, %v8458
  %8523 = vst.msk [vmem:[%s7 + $0x88] sm:$0xff] %vm2717, %v8459
  %8524 = vst.msk [vmem:[%s7 + $0x90] sm:$0xff] %vm2717, %v8460
  %8525 = vst.msk [vmem:[%s7 + $0x98] sm:$0xff] %vm2717, %v8461
  %8526 = vst.msk [vmem:[%s7 + $0xa0] sm:$0xff] %vm2717, %v8462
  %8527 = vst.msk [vmem:[%s7 + $0xa8] sm:$0xff] %vm2717, %v8463
  %8528 = vst.msk [vmem:[%s7 + $0xb0] sm:$0xff] %vm2717, %v8464
  %8529 = vst.msk [vmem:[%s7 + $0xb8] sm:$0xff] %vm2717, %v8465
  %8530 = vst.msk [vmem:[%s7 + $0xc0] sm:$0xff] %vm2717, %v8466
  %8531 = vst.msk [vmem:[%s7 + $0xc8] sm:$0xff] %vm2717, %v8467
  %8532 = vst.msk [vmem:[%s7 + $0xd0] sm:$0xff] %vm2717, %v8468
  %8533 = vst.msk [vmem:[%s7 + $0xd8] sm:$0xff] %vm2717, %v8469
  %8534 = vst.msk [vmem:[%s7 + $0xe0] sm:$0xff] %vm2717, %v8470
  %8535 = vst.msk [vmem:[%s7 + $0xe8] sm:$0xff] %vm2717, %v8471
  %8536 = vst.msk [vmem:[%s7 + $0xf0] sm:$0xff] %vm2717, %v8472
  %8537 = vst.msk [vmem:[%s7 + $0xf8] sm:$0xff] %vm2717, %v8473
  %8538 = vst.msk [vmem:[%s7 + $0x100] sm:$0xff] %vm2717, %v8474
  %8539 = vst.msk [vmem:[%s7 + $0x108] sm:$0xff] %vm2717, %v8475
  %8540 = vst.msk [vmem:[%s7 + $0x110] sm:$0xff] %vm2717, %v8476
  %8541 = vst.msk [vmem:[%s7 + $0x118] sm:$0xff] %vm2717, %v8477
  %8542 = vst.msk [vmem:[%s7 + $0x120] sm:$0xff] %vm2717, %v8478
  %8543 = vst.msk [vmem:[%s7 + $0x128] sm:$0xff] %vm2717, %v8479
  %8544 = vst.msk [vmem:[%s7 + $0x130] sm:$0xff] %vm2717, %v8480
  %8545 = vst.msk [vmem:[%s7 + $0x138] sm:$0xff] %vm2717, %v8481
  %8546 = vst.msk [vmem:[%s7 + $0x140] sm:$0xff] %vm2717, %v8482
  %8547 = vst.msk [vmem:[%s7 + $0x148] sm:$0xff] %vm2717, %v8483
  %8548 = vst.msk [vmem:[%s7 + $0x150] sm:$0xff] %vm2717, %v8484
  %8549 = vst.msk [vmem:[%s7 + $0x158] sm:$0xff] %vm2717, %v8485
  %8550 = vst.msk [vmem:[%s7 + $0x160] sm:$0xff] %vm2717, %v8486
  %8551 = vst.msk [vmem:[%s7 + $0x168] sm:$0xff] %vm2717, %v8487
  %8552 = vst.msk [vmem:[%s7 + $0x170] sm:$0xff] %vm2717, %v8488
  %8553 = vst.msk [vmem:[%s7 + $0x178] sm:$0xff] %vm2717, %v8489
  %8554 = vst.msk [vmem:[%s7 + $0x180] sm:$0xff] %vm2717, %v8490
  %8555 = vst.msk [vmem:[%s7 + $0x188] sm:$0xff] %vm2717, %v8491
  %8556 = vst.msk [vmem:[%s7 + $0x190] sm:$0xff] %vm2717, %v8492
  %8557 = vst.msk [vmem:[%s7 + $0x198] sm:$0xff] %vm2717, %v8493
  %8558 = vst.msk [vmem:[%s7 + $0x1a0] sm:$0xff] %vm2717, %v8494
  %8559 = vst.msk [vmem:[%s7 + $0x1a8] sm:$0xff] %vm2717, %v8495
  %8560 = vst.msk [vmem:[%s7 + $0x1b0] sm:$0xff] %vm2717, %v8496
  %8561 = vst.msk [vmem:[%s7 + $0x1b8] sm:$0xff] %vm2717, %v8497
  %8562 = vst.msk [vmem:[%s7 + $0x1c0] sm:$0xff] %vm2717, %v8498
  %8563 = vst.msk [vmem:[%s7 + $0x1c8] sm:$0xff] %vm2717, %v8499
  %8564 = vst.msk [vmem:[%s7 + $0x1d0] sm:$0xff] %vm2717, %v8500
  %8565 = vst.msk [vmem:[%s7 + $0x1d8] sm:$0xff] %vm2717, %v8501
  %8566 = vst.msk [vmem:[%s7 + $0x1e0] sm:$0xff] %vm2717, %v8502
  %8567 = vst.msk [vmem:[%s7 + $0x1e8] sm:$0xff] %vm2717, %v8503
  %8568 = vst.msk [vmem:[%s7 + $0x1f0] sm:$0xff] %vm2717, %v8504
  %8569 = vst.msk [vmem:[%s7 + $0x1f8] sm:$0xff] %vm2717, %v8505
  // Predicated region
  $region30: #{tpu_custom_call.1} parent=0 // pred_check
    _
  $region31: #{tpu_custom_call.1} parent=0 // pred_check_branch
    %8571 = sbr.rel (0) target = $region33
  $region32: #{tpu_custom_call.1} parent=0 // pred_region
    _
  $region33: #{tpu_custom_call.1} parent=0 // pred_fallthru
    _
  // Predicated region
  $region34: #{tpu_custom_call.1} parent=0 // pred_check
    _
  $region35: #{tpu_custom_call.1} parent=0 // pred_check_branch
    %8573 = sbr.rel (0) target = $region37
  $region36: #{tpu_custom_call.1} parent=0 // pred_region
    _
  $region37: #{tpu_custom_call.1} parent=0 // pred_fallthru
    _

</llo_original>
